<compile_context>
chip_gen: v6e
topology: v6e:2x2x1
jax: 0.10.0
libtpu: 0.0.40
codegen_flags: <defaults>
</compile_context>

<pallas_src>
import functools

import jax
import jax.numpy as jnp
from jax import lax
from jax.experimental import pallas as pl
from jax.experimental.pallas import tpu as pltpu


# --------------------------- spherical harmonics -----------------------------

def _rsh_cart_3(d):
    """Reference real SH up to degree 3 (16 coeffs); used only for checking."""
    x = d[:, 0:1]
    y = d[:, 1:2]
    z = d[:, 2:3]
    x2, y2, z2 = x * x, y * y, z * z
    xy, xz, yz = x * y, x * z, y * z
    one = jnp.ones_like(x)
    return jnp.concatenate(
        [
            0.282094791773878 * one,
            -0.48860251190292 * y,
            0.48860251190292 * z,
            -0.48860251190292 * x,
            1.09254843059208 * xy,
            -1.09254843059208 * yz,
            0.94617469575756 * z2 - 0.31539156525252,
            -1.09254843059208 * xz,
            0.54627421529604 * x2 - 0.54627421529604 * y2,
            -0.590043589926644 * y * (3.0 * x2 - y2),
            2.89061144264055 * xy * z,
            0.304697199642977 * y * (1.5 - 7.5 * z2),
            1.24392110863372 * z * (1.5 * z2 - 0.5) - 0.497568443453487 * z,
            0.304697199642977 * x * (1.5 - 7.5 * z2),
            1.44530572132028 * z * (x2 - y2),
            -0.590043589926644 * x * (x2 - 3.0 * y2),
        ],
        axis=-1,
    )


def _sh3_pieces(d):
    """Degree<=3 monomial pieces from full [*, 3] elementwise products.

    Only ONE column permutation of d is needed.  Returns (pieces, xyz) with
      pieces[0] = [x, y, z]
      pieces[1] = [x2, y2, z2]
      pieces[2] = [xy, yz, zx]
      pieces[3] = [x2y, y2z, xz2]        (= dcross * d)
      pieces[4] = [xy2, yz2, x2z]        (= dcross * dperm)
      pieces[5] = [x3, y3, z3]           (= dsq * d)
      xyz       = [xyz]
    """
    dperm = jnp.concatenate([d[:, 1:], d[:, :1]], axis=1)    # [y, z, x]
    dsq = d * d
    dcross = d * dperm                                       # xy yz zx
    cub_a = dcross * d                                       # x2y y2z xz2
    cub_b = dcross * dperm                                   # xy2 yz2 x2z
    cub_c = dsq * d                                          # x3 y3 z3
    xyz = dcross[:, :1] * d[:, 2:3]                          # xy * z
    return [d, dsq, dcross, cub_a, cub_b, cub_c], xyz


def _sh3_basis(d):
    """[*, 19] monomial basis (checking only); same column order as the fold."""
    pieces, xyz = _sh3_pieces(d)
    return jnp.concatenate(pieces + [xyz], axis=1)


def _sh3_fold_matrices():
    """(T, c) with  rsh_cart_3(d) == _sh3_basis(d) @ T + c  (exact polynomials).

    Basis column order:
      0:x 1:y 2:z | 3:x2 4:y2 5:z2 | 6:xy 7:yz 8:zx |
      9:x2y 10:y2z 11:xz2 | 12:xy2 13:yz2 14:x2z | 15:x3 16:y3 17:z3 | 18:xyz
    """
    c1 = 0.48860251190292
    c2 = 1.09254843059208
    c3 = 0.94617469575756
    c5 = 0.54627421529604
    c6 = 0.590043589926644
    c7 = 2.89061144264055
    c8 = 0.304697199642977
    c9 = 1.24392110863372
    c10 = 0.497568443453487
    c11 = 1.44530572132028
    T = [[0.0] * 16 for _ in range(19)]
    T[1][1] = -c1
    T[2][2] = c1
    T[0][3] = -c1
    T[6][4] = c2
    T[7][5] = -c2
    T[5][6] = c3
    T[8][7] = -c2
    T[3][8] = c5
    T[4][8] = -c5
    T[9][9] = -3.0 * c6          # x2y
    T[16][9] = c6                # y3
    T[18][10] = c7               # xyz
    T[1][11] = 1.5 * c8          # y
    T[13][11] = -7.5 * c8        # yz2
    T[17][12] = 1.5 * c9         # z3
    T[2][12] = -(0.5 * c9 + c10)  # z
    T[0][13] = 1.5 * c8          # x
    T[11][13] = -7.5 * c8        # xz2
    T[14][14] = c11              # x2z
    T[10][14] = -c11             # y2z
    T[15][15] = -c6              # x3
    T[12][15] = 3.0 * c6         # xy2
    const = [0.0] * 16
    const[0] = 0.282094791773878
    const[6] = -0.31539156525252
    return jnp.array(T, dtype=jnp.float32), jnp.array([const], dtype=jnp.float32)


# --------------------------------- kernel ------------------------------------

def _affine_mlp_kernel(n_hidden_layers, mm, ew,
                       dir_ref, x_ref,
                       wbs_ref, wbxyz_ref, b0e_ref,
                       w1a_ref, b1a_ref, w1b_ref, b1b_ref,
                       w0_ref, b0_ref, wh_ref, bh_ref, wout_ref, bout_ref,
                       o_ref):
    f32 = jnp.float32

    def dense(act, w, b, relu):
        # MXU operands in mm (bf16 on the perf path), f32 accumulation, cast
        # down once; elementwise math stays in ew.
        y = jnp.dot(act.astype(mm), w, preferred_element_type=f32).astype(ew) + b
        return jnp.maximum(y, 0.0) if relu else y

    d = dir_ref[...].astype(ew)                  # [TN, 3]
    pieces, xyz = _sh3_pieces(d)                 # 6 x [TN, 3], [TN, 1]

    # encode_dir first layer: SH constants folded into wbs/wbxyz/b0e; no 19-wide
    # lane concatenate — 6 tiny matmuls + one rank-1 broadcast, summed in f32.
    acc = jnp.dot(pieces[0].astype(mm), wbs_ref[0], preferred_element_type=f32)
    for k in range(1, 6):
        acc = acc + jnp.dot(pieces[k].astype(mm), wbs_ref[k],
                            preferred_element_type=f32)
    acc = acc + xyz.astype(f32) * wbxyz_ref[...].astype(f32)
    h = jnp.maximum(acc.astype(ew) + b0e_ref[...], 0.0)

    # encode_dir second layer, split into lane-aligned a / b halves.
    a = dense(h, w1a_ref[...], b1a_ref[...], relu=False)
    b = dense(h, w1b_ref[...], b1b_ref[...], relu=False)
    feat = x_ref[...].astype(ew) * a + b         # norm_feature = Identity

    # main MLP: Linear(I,H)+ReLU ; L x (Linear(H,H)+ReLU) ; Linear(H,O)+Identity
    h = dense(feat, w0_ref[...], b0_ref[...], relu=True)
    if n_hidden_layers > 0:
        if n_hidden_layers <= 8:
            for l in range(n_hidden_layers):     # static unroll (LLO visibility)
                h = dense(h, wh_ref[l], bh_ref[l], relu=True)
        else:                                    # bound live ranges, partial unroll
            def body(l, hh):
                return dense(hh, wh_ref[l], bh_ref[l], relu=True)
            h = lax.fori_loop(0, n_hidden_layers, body, h, unroll=2)

    out = jnp.dot(h.astype(mm), wout_ref[...],
                  preferred_element_type=f32) + bout_ref[...]
    o_ref[...] = out.astype(o_ref.dtype)


# -------------------------------- wrapper -------------------------------------

def _round_up(v, m):
    return (v + m - 1) // m * m


def _vpu_has_bf16():
    """bf16 elementwise is a win only on chips with a bf16 VPU (v6e / v7x+)."""
    try:
        kind = jax.devices()[0].device_kind.lower()
    except Exception:
        return True
    return not any(t in kind for t in ("v2", "v3", "v4", "v5"))


def prepare_params(params, *, matmul_dtype=jnp.bfloat16, elementwise_dtype=None):
    """One-time weight prep (hoisted out of the hot path):

    * folds rsh_cart_3 + Linear(16,H) into monomial-basis row blocks,
    * splits w1e/b1e into lane-aligned (a, b) halves,
    * casts matmul weights to matmul_dtype and biases to the elementwise dtype.
    """
    mm = jnp.dtype(matmul_dtype)
    if elementwise_dtype is None:
        if mm == jnp.dtype(jnp.float32):
            ew = jnp.dtype(jnp.float32)
        else:
            ew = jnp.dtype(jnp.bfloat16) if _vpu_has_bf16() else jnp.dtype(jnp.float32)
    else:
        ew = jnp.dtype(elementwise_dtype)

    hi = jax.lax.Precision.HIGHEST
    T, const = _sh3_fold_matrices()
    wb = jnp.dot(T, params["w0e"], precision=hi)                        # [19, H]
    b0e = params["b0e"] + jnp.dot(const, params["w0e"], precision=hi)   # [1, H]

    hidden = params["w0e"].shape[1]
    n_inputs = params["w1e"].shape[1] // 2

    return {
        "wbs": wb[:18].reshape(6, 3, hidden).astype(mm),   # 6 x [3, H] row blocks
        "wbxyz": wb[18:19].astype(jnp.float32),            # [1, H] (rank-1 term)
        "b0e": b0e.astype(ew),
        "w1a": params["w1e"][:, :n_inputs].astype(mm),
        "b1a": params["b1e"][:, :n_inputs].astype(ew),
        "w1b": params["w1e"][:, n_inputs:].astype(mm),
        "b1b": params["b1e"][:, n_inputs:].astype(ew),
        "w0": params["w0"].astype(mm),
        "b0": params["b0"].astype(ew),
        "wh": params["wh"].astype(mm),
        "bh": params["bh"].astype(ew),
        "wout": params["wout"].astype(mm),
        "bout": params["bout"].astype(jnp.float32),
    }


def affine_mlp(dirs, x, prepared, *, hidden_layers, tile_n=512):
    """dirs: [N, 3], x: [N, inputs] -> [N, outputs].  `prepared` = prepare_params(...)."""
    N, n_inputs = x.shape
    hidden = prepared["w0"].shape[1]
    outputs = prepared["wout"].shape[1]
    assert prepared["w1a"].shape[1] == n_inputs
    mm = prepared["w0"].dtype
    ew = prepared["b0"].dtype

    # Tile sizing: big enough to amortize per-step overhead (~0.35 us) and MXU
    # weight pushes, small enough that each v7x TensorCore gets several
    # pipelined grid steps.  No divisibility requirement: the ragged final
    # block is masked on store (rows are independent, so garbage rows in the
    # partial block cannot leak).
    tile = min(int(tile_n),
               _round_up(max(128, pl.cdiv(N, 8)), 8),
               _round_up(N, 8))
    tile = _round_up(max(tile, 8), 8)
    grid = pl.cdiv(N, tile)

    weight_names = ("wbs", "wbxyz", "b0e", "w1a", "b1a", "w1b", "b1b",
                    "w0", "b0", "wh", "bh", "wout", "bout")
    weight_args = [prepared[k] for k in weight_names]

    def full_spec(arr):  # resident (untiled) weight/bias
        nd = arr.ndim
        return pl.BlockSpec(arr.shape, lambda i, _nd=nd: (0,) * _nd)

    kernel = functools.partial(_affine_mlp_kernel, hidden_layers, mm, ew)

    flops = 2 * N * (19 * hidden + hidden * 2 * n_inputs + n_inputs * hidden
                     + hidden_layers * hidden * hidden + hidden * outputs)
    bytes_accessed = int(dirs.size * dirs.dtype.itemsize
                         + x.size * x.dtype.itemsize
                         + N * outputs * x.dtype.itemsize
                         + sum(int(a.size) * a.dtype.itemsize for a in weight_args))

    return pl.pallas_call(
        kernel,
        out_shape=jax.ShapeDtypeStruct((N, outputs), x.dtype),
        grid_spec=pltpu.PrefetchScalarGridSpec(
            num_scalar_prefetch=0,
            grid=(grid,),
            in_specs=[
                pl.BlockSpec((tile, 3), lambda i: (i, 0)),          # dir
                pl.BlockSpec((tile, n_inputs), lambda i: (i, 0)),   # x
                *[full_spec(a) for a in weight_args],               # weights/biases
            ],
            out_specs=pl.BlockSpec((tile, outputs), lambda i: (i, 0)),
        ),
        compiler_params=pltpu.CompilerParams(
            dimension_semantics=("parallel",),
            vmem_limit_bytes=32 * 1024 * 1024),
        cost_estimate=pl.CostEstimate(flops=flops, transcendentals=0,
                                      bytes_accessed=bytes_accessed),
    )(dirs, x, *weight_args)


# ---------------- deterministic parameter construction (synthetic) ------------

def _linear_params(key, fan_in, fan_out):
    """PyTorch-default-style uniform init, stored as W:[in,out], b:[1,out]."""
    kw, kb = jax.random.split(key)
    bound = 1.0 / jnp.sqrt(float(fan_in))
    wgt = jax.random.uniform(kw, (fan_in, fan_out), jnp.float32, -bound, bound)
    b = jax.random.uniform(kb, (1, fan_out), jnp.float32, -bound, bound)
    return wgt, b


def make_params(key, inputs, outputs, hidden, hidden_layers):
    keys = jax.random.split(key, 4 + max(hidden_layers, 1))
    p = {}
    # encode_dir (ProjectSH, sh_degree=3 -> 16 coeffs, 0 hidden layers)
    p["w0e"], p["b0e"] = _linear_params(keys[0], 16, hidden)
    p["w1e"], p["b1e"] = _linear_params(keys[1], hidden, 2 * inputs)
    # main MLP
    p["w0"], p["b0"] = _linear_params(keys[2], inputs, hidden)
    whs, bhs = [], []
    for l in range(max(hidden_layers, 1)):
        wgt, b = _linear_params(keys[4 + l], hidden, hidden)
        whs.append(wgt)
        bhs.append(b)
    p["wh"] = jnp.stack(whs)           # [L, H, H] (dummy entry if hidden_layers == 0)
    p["bh"] = jnp.stack(bhs)           # [L, 1, H]
    p["wout"], p["bout"] = _linear_params(keys[3], hidden, outputs)
    return p


def reference(dirs, x, p, hidden_layers, n_inputs):
    """Faithful f32 reference of AffineMLP.forward."""
    hi = jax.lax.Precision.HIGHEST
    mm = lambda a, b: jnp.dot(a, b, precision=hi)
    coeffs = _rsh_cart_3(dirs)
    h = jax.nn.relu(mm(coeffs, p["w0e"]) + p["b0e"])
    enc = mm(h, p["w1e"]) + p["b1e"]
    a, b = enc[:, :n_inputs], enc[:, n_inputs:]
    feat = x * a + b
    h = jax.nn.relu(mm(feat, p["w0"]) + p["b0"])
    for l in range(hidden_layers):
        h = jax.nn.relu(mm(h, p["wh"][l]) + p["bh"][l])
    return mm(h, p["wout"]) + p["bout"]


if __name__ == "__main__":
    N, inputs, outputs, hidden, hidden_layers = 4096, 8, 4, 32, 1

    key = jax.random.PRNGKey(0)
    k_dir, k_x, k_p = jax.random.split(key, 3)

    dirs = jax.random.normal(k_dir, (N, 3), jnp.float32)
    dirs = dirs / jnp.linalg.norm(dirs, axis=-1, keepdims=True)   # unit view dirs
    x = jax.random.normal(k_x, (N, inputs), jnp.float32)

    params = make_params(k_p, inputs, outputs, hidden, hidden_layers)

    # Structural check of the SH fold (pure JAX, exact polynomials).
    T, const = _sh3_fold_matrices()
    sh_fold = jnp.dot(_sh3_basis(dirs), T, precision=jax.lax.Precision.HIGHEST) + const
    fold_err = float(jnp.max(jnp.abs(sh_fold - _rsh_cart_3(dirs))))
    assert fold_err < 1e-5, f"SH fold max abs err = {fold_err}"

    ref = reference(dirs, x, params, hidden_layers, inputs)

    # f32 matmul + f32 elementwise path: structural/numerical check.
    prep_f32 = prepare_params(params, matmul_dtype=jnp.float32)
    out_f32 = jax.block_until_ready(
        affine_mlp(dirs, x, prep_f32, hidden_layers=hidden_layers))
    assert out_f32.shape == (N, outputs)
    err_f32 = float(jnp.max(jnp.abs(out_f32 - ref)))
    assert err_f32 < 1e-2, f"f32 path max abs err = {err_f32}"

    # bf16 performance default (bf16 MXU operands; bf16 elementwise on v6e/v7x).
    prep_bf16 = prepare_params(params)
    out_bf16 = jax.block_until_ready(
        affine_mlp(dirs, x, prep_bf16, hidden_layers=hidden_layers))
    assert out_bf16.shape == (N, outputs)
    err_bf16 = float(jnp.max(jnp.abs(out_bf16 - ref)))
    assert err_bf16 < 2e-1, f"bf16 path max abs err = {err_bf16}"

    # Ragged N (N % tile != 0): no wrapper padding — the partial last block is
    # masked on store by Pallas.
    n2 = 1000
    out_rag = jax.block_until_ready(
        affine_mlp(dirs[:n2], x[:n2], prep_f32, hidden_layers=hidden_layers))
    assert out_rag.shape == (n2, outputs)
    assert bool(jnp.isfinite(out_rag).all()), "NaN/Inf leaked from masked block"
    err_rag = float(jnp.max(jnp.abs(out_rag - ref[:n2])))
    assert err_rag < 1e-2, f"ragged path max abs err = {err_rag}"

    print("KERNEL_OK")
</pallas_src>

<mosaic_0001>
module attributes {stable_mosaic.version = 11 : i64} {
  func.func @_affine_mlp_kernel(%arg0: i32, %arg1: memref<512x3xf32, #tpu.memory_space<vmem>>, %arg2: memref<512x8xf32, #tpu.memory_space<vmem>>, %arg3: memref<6x3x32xf32, #tpu.memory_space<vmem>>, %arg4: memref<1x32xf32, #tpu.memory_space<vmem>>, %arg5: memref<1x32xf32, #tpu.memory_space<vmem>>, %arg6: memref<32x8xf32, #tpu.memory_space<vmem>>, %arg7: memref<1x8xf32, #tpu.memory_space<vmem>>, %arg8: memref<32x8xf32, #tpu.memory_space<vmem>>, %arg9: memref<1x8xf32, #tpu.memory_space<vmem>>, %arg10: memref<8x32xf32, #tpu.memory_space<vmem>>, %arg11: memref<1x32xf32, #tpu.memory_space<vmem>>, %arg12: memref<1x32x32xf32, #tpu.memory_space<vmem>>, %arg13: memref<1x1x32xf32, #tpu.memory_space<vmem>>, %arg14: memref<32x4xf32, #tpu.memory_space<vmem>>, %arg15: memref<1x4xf32, #tpu.memory_space<vmem>>, %arg16: memref<512x4xf32, #tpu.memory_space<vmem>>) attributes {dimension_semantics = [#tpu.dimension_semantics<parallel>], iteration_bounds = array<i64: 8>, scalar_prefetch = 0 : i64, scratch_operands = 0 : i64, tpu.core_type = #tpu.core_type<tc>, window_params = [{transform_indices = @transform_0, window_bounds = array<i64: 512, 3>}, {transform_indices = @transform_1, window_bounds = array<i64: 512, 8>}, {pipeline_mode = #tpu.pipeline_mode<synchronous>, transform_indices = @transform_2, window_bounds = array<i64: 6, 3, 32>}, {pipeline_mode = #tpu.pipeline_mode<synchronous>, transform_indices = @transform_3, window_bounds = array<i64: 1, 32>}, {pipeline_mode = #tpu.pipeline_mode<synchronous>, transform_indices = @transform_4, window_bounds = array<i64: 1, 32>}, {pipeline_mode = #tpu.pipeline_mode<synchronous>, transform_indices = @transform_5, window_bounds = array<i64: 32, 8>}, {pipeline_mode = #tpu.pipeline_mode<synchronous>, transform_indices = @transform_6, window_bounds = array<i64: 1, 8>}, {pipeline_mode = #tpu.pipeline_mode<synchronous>, transform_indices = @transform_7, window_bounds = array<i64: 32, 8>}, {pipeline_mode = #tpu.pipeline_mode<synchronous>, transform_indices = @transform_8, window_bounds = array<i64: 1, 8>}, {pipeline_mode = #tpu.pipeline_mode<synchronous>, transform_indices = @transform_9, window_bounds = array<i64: 8, 32>}, {pipeline_mode = #tpu.pipeline_mode<synchronous>, transform_indices = @transform_10, window_bounds = array<i64: 1, 32>}, {pipeline_mode = #tpu.pipeline_mode<synchronous>, transform_indices = @transform_11, window_bounds = array<i64: 1, 32, 32>}, {pipeline_mode = #tpu.pipeline_mode<synchronous>, transform_indices = @transform_12, window_bounds = array<i64: 1, 1, 32>}, {pipeline_mode = #tpu.pipeline_mode<synchronous>, transform_indices = @transform_13, window_bounds = array<i64: 32, 4>}, {pipeline_mode = #tpu.pipeline_mode<synchronous>, transform_indices = @transform_14, window_bounds = array<i64: 1, 4>}, {transform_indices = @transform_15, window_bounds = array<i64: 512, 4>}]} {
    %c0 = arith.constant 0 : index
    %c0_0 = arith.constant 0 : index
    %0 = vector.load %arg1[%c0, %c0_0] : memref<512x3xf32, #tpu.memory_space<vmem>>, vector<512x3xf32>
    %1 = vector.extract_strided_slice %0 {offsets = [0, 1], sizes = [512, 2], strides = [1, 1]} : vector<512x3xf32> to vector<512x2xf32>
    %2 = vector.extract_strided_slice %0 {offsets = [0, 0], sizes = [512, 1], strides = [1, 1]} : vector<512x3xf32> to vector<512x1xf32>
    %3 = tpu.concatenate %1, %2 in 1 : vector<512x2xf32>, vector<512x1xf32> -> vector<512x3xf32>
    %4 = arith.mulf %0, %0 : vector<512x3xf32>
    %5 = arith.mulf %0, %3 : vector<512x3xf32>
    %6 = arith.mulf %5, %0 : vector<512x3xf32>
    %7 = arith.mulf %5, %3 : vector<512x3xf32>
    %8 = arith.mulf %4, %0 : vector<512x3xf32>
    %9 = vector.extract_strided_slice %5 {offsets = [0, 0], sizes = [512, 1], strides = [1, 1]} : vector<512x3xf32> to vector<512x1xf32>
    %10 = vector.extract_strided_slice %0 {offsets = [0, 2], sizes = [512, 1], strides = [1, 1]} : vector<512x3xf32> to vector<512x1xf32>
    %11 = arith.mulf %9, %10 : vector<512x1xf32>
    %c0_1 = arith.constant 0 : index
    %c0_2 = arith.constant 0 : index
    %c0_3 = arith.constant 0 : index
    %12 = vector.load %arg3[%c0_1, %c0_2, %c0_3] : memref<6x3x32xf32, #tpu.memory_space<vmem>>, vector<1x3x32xf32>
    %13 = vector.shape_cast %12 : vector<1x3x32xf32> to vector<3x32xf32>
    %cst = arith.constant dense<0.000000e+00> : vector<512x32xf32>
    %14 = tpu.matmul %0, %13, %cst {dimension_numbers = #tpu.dot_dimension_numbers<[1], [0], [0], [1], [0, 0, 1, 1], [], []>} : vector<512x3xf32>, vector<3x32xf32>, vector<512x32xf32> -> vector<512x32xf32>
    %c1 = arith.constant 1 : index
    %c0_4 = arith.constant 0 : index
    %c0_5 = arith.constant 0 : index
    %15 = vector.load %arg3[%c1, %c0_4, %c0_5] : memref<6x3x32xf32, #tpu.memory_space<vmem>>, vector<1x3x32xf32>
    %16 = vector.shape_cast %15 : vector<1x3x32xf32> to vector<3x32xf32>
    %cst_6 = arith.constant dense<0.000000e+00> : vector<512x32xf32>
    %17 = tpu.matmul %4, %16, %cst_6 {dimension_numbers = #tpu.dot_dimension_numbers<[1], [0], [0], [1], [0, 0, 1, 1], [], []>} : vector<512x3xf32>, vector<3x32xf32>, vector<512x32xf32> -> vector<512x32xf32>
    %18 = arith.addf %14, %17 : vector<512x32xf32>
    %c2 = arith.constant 2 : index
    %c0_7 = arith.constant 0 : index
    %c0_8 = arith.constant 0 : index
    %19 = vector.load %arg3[%c2, %c0_7, %c0_8] : memref<6x3x32xf32, #tpu.memory_space<vmem>>, vector<1x3x32xf32>
    %20 = vector.shape_cast %19 : vector<1x3x32xf32> to vector<3x32xf32>
    %cst_9 = arith.constant dense<0.000000e+00> : vector<512x32xf32>
    %21 = tpu.matmul %5, %20, %cst_9 {dimension_numbers = #tpu.dot_dimension_numbers<[1], [0], [0], [1], [0, 0, 1, 1], [], []>} : vector<512x3xf32>, vector<3x32xf32>, vector<512x32xf32> -> vector<512x32xf32>
    %22 = arith.addf %18, %21 : vector<512x32xf32>
    %c3 = arith.constant 3 : index
    %c0_10 = arith.constant 0 : index
    %c0_11 = arith.constant 0 : index
    %23 = vector.load %arg3[%c3, %c0_10, %c0_11] : memref<6x3x32xf32, #tpu.memory_space<vmem>>, vector<1x3x32xf32>
    %24 = vector.shape_cast %23 : vector<1x3x32xf32> to vector<3x32xf32>
    %cst_12 = arith.constant dense<0.000000e+00> : vector<512x32xf32>
    %25 = tpu.matmul %6, %24, %cst_12 {dimension_numbers = #tpu.dot_dimension_numbers<[1], [0], [0], [1], [0, 0, 1, 1], [], []>} : vector<512x3xf32>, vector<3x32xf32>, vector<512x32xf32> -> vector<512x32xf32>
    %26 = arith.addf %22, %25 : vector<512x32xf32>
    %c4 = arith.constant 4 : index
    %c0_13 = arith.constant 0 : index
    %c0_14 = arith.constant 0 : index
    %27 = vector.load %arg3[%c4, %c0_13, %c0_14] : memref<6x3x32xf32, #tpu.memory_space<vmem>>, vector<1x3x32xf32>
    %28 = vector.shape_cast %27 : vector<1x3x32xf32> to vector<3x32xf32>
    %cst_15 = arith.constant dense<0.000000e+00> : vector<512x32xf32>
    %29 = tpu.matmul %7, %28, %cst_15 {dimension_numbers = #tpu.dot_dimension_numbers<[1], [0], [0], [1], [0, 0, 1, 1], [], []>} : vector<512x3xf32>, vector<3x32xf32>, vector<512x32xf32> -> vector<512x32xf32>
    %30 = arith.addf %26, %29 : vector<512x32xf32>
    %c5 = arith.constant 5 : index
    %c0_16 = arith.constant 0 : index
    %c0_17 = arith.constant 0 : index
    %31 = vector.load %arg3[%c5, %c0_16, %c0_17] : memref<6x3x32xf32, #tpu.memory_space<vmem>>, vector<1x3x32xf32>
    %32 = vector.shape_cast %31 : vector<1x3x32xf32> to vector<3x32xf32>
    %cst_18 = arith.constant dense<0.000000e+00> : vector<512x32xf32>
    %33 = tpu.matmul %8, %32, %cst_18 {dimension_numbers = #tpu.dot_dimension_numbers<[1], [0], [0], [1], [0, 0, 1, 1], [], []>} : vector<512x3xf32>, vector<3x32xf32>, vector<512x32xf32> -> vector<512x32xf32>
    %34 = arith.addf %30, %33 : vector<512x32xf32>
    %c0_19 = arith.constant 0 : index
    %c0_20 = arith.constant 0 : index
    %35 = vector.load %arg4[%c0_19, %c0_20] : memref<1x32xf32, #tpu.memory_space<vmem>>, vector<1x32xf32>
    %36 = vector.broadcast %11 : vector<512x1xf32> to vector<512x32xf32>
    %37 = vector.broadcast %35 : vector<1x32xf32> to vector<512x32xf32>
    %38 = arith.mulf %36, %37 : vector<512x32xf32>
    %39 = arith.addf %34, %38 : vector<512x32xf32>
    %c0_21 = arith.constant 0 : index
    %c0_22 = arith.constant 0 : index
    %40 = vector.load %arg5[%c0_21, %c0_22] : memref<1x32xf32, #tpu.memory_space<vmem>>, vector<1x32xf32>
    %41 = vector.broadcast %40 : vector<1x32xf32> to vector<512x32xf32>
    %42 = arith.addf %39, %41 : vector<512x32xf32>
    %cst_23 = arith.constant 0.000000e+00 : f32
    %43 = vector.broadcast %cst_23 : f32 to vector<512x32xf32>
    %44 = arith.maximumf %42, %43 : vector<512x32xf32>
    %c0_24 = arith.constant 0 : index
    %c0_25 = arith.constant 0 : index
    %45 = vector.load %arg6[%c0_24, %c0_25] : memref<32x8xf32, #tpu.memory_space<vmem>>, vector<32x8xf32>
    %c0_26 = arith.constant 0 : index
    %c0_27 = arith.constant 0 : index
    %46 = vector.load %arg7[%c0_26, %c0_27] : memref<1x8xf32, #tpu.memory_space<vmem>>, vector<1x8xf32>
    %cst_28 = arith.constant dense<0.000000e+00> : vector<512x8xf32>
    %47 = tpu.matmul %44, %45, %cst_28 {dimension_numbers = #tpu.dot_dimension_numbers<[1], [0], [0], [1], [0, 0, 1, 1], [], []>} : vector<512x32xf32>, vector<32x8xf32>, vector<512x8xf32> -> vector<512x8xf32>
    %48 = vector.broadcast %46 : vector<1x8xf32> to vector<512x8xf32>
    %49 = arith.addf %47, %48 : vector<512x8xf32>
    %c0_29 = arith.constant 0 : index
    %c0_30 = arith.constant 0 : index
    %50 = vector.load %arg8[%c0_29, %c0_30] : memref<32x8xf32, #tpu.memory_space<vmem>>, vector<32x8xf32>
    %c0_31 = arith.constant 0 : index
    %c0_32 = arith.constant 0 : index
    %51 = vector.load %arg9[%c0_31, %c0_32] : memref<1x8xf32, #tpu.memory_space<vmem>>, vector<1x8xf32>
    %cst_33 = arith.constant dense<0.000000e+00> : vector<512x8xf32>
    %52 = tpu.matmul %44, %50, %cst_33 {dimension_numbers = #tpu.dot_dimension_numbers<[1], [0], [0], [1], [0, 0, 1, 1], [], []>} : vector<512x32xf32>, vector<32x8xf32>, vector<512x8xf32> -> vector<512x8xf32>
    %53 = vector.broadcast %51 : vector<1x8xf32> to vector<512x8xf32>
    %54 = arith.addf %52, %53 : vector<512x8xf32>
    %c0_34 = arith.constant 0 : index
    %c0_35 = arith.constant 0 : index
    %55 = vector.load %arg2[%c0_34, %c0_35] : memref<512x8xf32, #tpu.memory_space<vmem>>, vector<512x8xf32>
    %56 = arith.mulf %55, %49 : vector<512x8xf32>
    %57 = arith.addf %56, %54 : vector<512x8xf32>
    %c0_36 = arith.constant 0 : index
    %c0_37 = arith.constant 0 : index
    %58 = vector.load %arg10[%c0_36, %c0_37] : memref<8x32xf32, #tpu.memory_space<vmem>>, vector<8x32xf32>
    %c0_38 = arith.constant 0 : index
    %c0_39 = arith.constant 0 : index
    %59 = vector.load %arg11[%c0_38, %c0_39] : memref<1x32xf32, #tpu.memory_space<vmem>>, vector<1x32xf32>
    %cst_40 = arith.constant dense<0.000000e+00> : vector<512x32xf32>
    %60 = tpu.matmul %57, %58, %cst_40 {dimension_numbers = #tpu.dot_dimension_numbers<[1], [0], [0], [1], [0, 0, 1, 1], [], []>} : vector<512x8xf32>, vector<8x32xf32>, vector<512x32xf32> -> vector<512x32xf32>
    %61 = vector.broadcast %59 : vector<1x32xf32> to vector<512x32xf32>
    %62 = arith.addf %60, %61 : vector<512x32xf32>
    %cst_41 = arith.constant 0.000000e+00 : f32
    %63 = vector.broadcast %cst_41 : f32 to vector<512x32xf32>
    %64 = arith.maximumf %62, %63 : vector<512x32xf32>
    %c0_42 = arith.constant 0 : index
    %c0_43 = arith.constant 0 : index
    %c0_44 = arith.constant 0 : index
    %65 = vector.load %arg12[%c0_42, %c0_43, %c0_44] : memref<1x32x32xf32, #tpu.memory_space<vmem>>, vector<1x32x32xf32>
    %66 = vector.shape_cast %65 : vector<1x32x32xf32> to vector<32x32xf32>
    %c0_45 = arith.constant 0 : index
    %c0_46 = arith.constant 0 : index
    %c0_47 = arith.constant 0 : index
    %67 = vector.load %arg13[%c0_45, %c0_46, %c0_47] : memref<1x1x32xf32, #tpu.memory_space<vmem>>, vector<1x1x32xf32>
    %68 = vector.shape_cast %67 : vector<1x1x32xf32> to vector<1x32xf32>
    %cst_48 = arith.constant dense<0.000000e+00> : vector<512x32xf32>
    %69 = tpu.matmul %64, %66, %cst_48 {dimension_numbers = #tpu.dot_dimension_numbers<[1], [0], [0], [1], [0, 0, 1, 1], [], []>} : vector<512x32xf32>, vector<32x32xf32>, vector<512x32xf32> -> vector<512x32xf32>
    %70 = vector.broadcast %68 : vector<1x32xf32> to vector<512x32xf32>
    %71 = arith.addf %69, %70 : vector<512x32xf32>
    %cst_49 = arith.constant 0.000000e+00 : f32
    %72 = vector.broadcast %cst_49 : f32 to vector<512x32xf32>
    %73 = arith.maximumf %71, %72 : vector<512x32xf32>
    %c0_50 = arith.constant 0 : index
    %c0_51 = arith.constant 0 : index
    %74 = vector.load %arg14[%c0_50, %c0_51] : memref<32x4xf32, #tpu.memory_space<vmem>>, vector<32x4xf32>
    %cst_52 = arith.constant dense<0.000000e+00> : vector<512x4xf32>
    %75 = tpu.matmul %73, %74, %cst_52 {dimension_numbers = #tpu.dot_dimension_numbers<[1], [0], [0], [1], [0, 0, 1, 1], [], []>} : vector<512x32xf32>, vector<32x4xf32>, vector<512x4xf32> -> vector<512x4xf32>
    %c0_53 = arith.constant 0 : index
    %c0_54 = arith.constant 0 : index
    %76 = vector.load %arg15[%c0_53, %c0_54] : memref<1x4xf32, #tpu.memory_space<vmem>>, vector<1x4xf32>
    %77 = vector.broadcast %76 : vector<1x4xf32> to vector<512x4xf32>
    %78 = arith.addf %75, %77 : vector<512x4xf32>
    %c0_55 = arith.constant 0 : index
    %c0_56 = arith.constant 0 : index
    %79 = vector.load %arg16[%c0_55, %c0_56] : memref<512x4xf32, #tpu.memory_space<vmem>>, vector<512x4xf32>
    tpu.vector_store %arg16[%c0_55, %c0_56], %78 {strides = array<i32>} : memref<512x4xf32, #tpu.memory_space<vmem>>, vector<512x4xf32>,
    return
  }
  func.func @transform_0(%arg0: i32) -> (i32, i32) {
    %c0_i32 = arith.constant 0 : i32
    %c0_i32_0 = arith.constant 0 : i32
    return %arg0, %c0_i32 : i32, i32
  }
  func.func @transform_1(%arg0: i32) -> (i32, i32) {
    %c0_i32 = arith.constant 0 : i32
    %c0_i32_0 = arith.constant 0 : i32
    return %arg0, %c0_i32 : i32, i32
  }
  func.func @transform_2(%arg0: i32) -> (i32, i32, i32) {
    %c0_i32 = arith.constant 0 : i32
    %c0_i32_0 = arith.constant 0 : i32
    %c0_i32_1 = arith.constant 0 : i32
    %c0_i32_2 = arith.constant 0 : i32
    return %c0_i32, %c0_i32_0, %c0_i32_1 : i32, i32, i32
  }
  func.func @transform_3(%arg0: i32) -> (i32, i32) {
    %c0_i32 = arith.constant 0 : i32
    %c0_i32_0 = arith.constant 0 : i32
    %c0_i32_1 = arith.constant 0 : i32
    return %c0_i32, %c0_i32_0 : i32, i32
  }
  func.func @transform_4(%arg0: i32) -> (i32, i32) {
    %c0_i32 = arith.constant 0 : i32
    %c0_i32_0 = arith.constant 0 : i32
    %c0_i32_1 = arith.constant 0 : i32
    return %c0_i32, %c0_i32_0 : i32, i32
  }
  func.func @transform_5(%arg0: i32) -> (i32, i32) {
    %c0_i32 = arith.constant 0 : i32
    %c0_i32_0 = arith.constant 0 : i32
    %c0_i32_1 = arith.constant 0 : i32
    return %c0_i32, %c0_i32_0 : i32, i32
  }
  func.func @transform_6(%arg0: i32) -> (i32, i32) {
    %c0_i32 = arith.constant 0 : i32
    %c0_i32_0 = arith.constant 0 : i32
    %c0_i32_1 = arith.constant 0 : i32
    return %c0_i32, %c0_i32_0 : i32, i32
  }
  func.func @transform_7(%arg0: i32) -> (i32, i32) {
    %c0_i32 = arith.constant 0 : i32
    %c0_i32_0 = arith.constant 0 : i32
    %c0_i32_1 = arith.constant 0 : i32
    return %c0_i32, %c0_i32_0 : i32, i32
  }
  func.func @transform_8(%arg0: i32) -> (i32, i32) {
    %c0_i32 = arith.constant 0 : i32
    %c0_i32_0 = arith.constant 0 : i32
    %c0_i32_1 = arith.constant 0 : i32
    return %c0_i32, %c0_i32_0 : i32, i32
  }
  func.func @transform_9(%arg0: i32) -> (i32, i32) {
    %c0_i32 = arith.constant 0 : i32
    %c0_i32_0 = arith.constant 0 : i32
    %c0_i32_1 = arith.constant 0 : i32
    return %c0_i32, %c0_i32_0 : i32, i32
  }
  func.func @transform_10(%arg0: i32) -> (i32, i32) {
    %c0_i32 = arith.constant 0 : i32
    %c0_i32_0 = arith.constant 0 : i32
    %c0_i32_1 = arith.constant 0 : i32
    return %c0_i32, %c0_i32_0 : i32, i32
  }
  func.func @transform_11(%arg0: i32) -> (i32, i32, i32) {
    %c0_i32 = arith.constant 0 : i32
    %c0_i32_0 = arith.constant 0 : i32
    %c0_i32_1 = arith.constant 0 : i32
    %c0_i32_2 = arith.constant 0 : i32
    return %c0_i32, %c0_i32_0, %c0_i32_1 : i32, i32, i32
  }
  func.func @transform_12(%arg0: i32) -> (i32, i32, i32) {
    %c0_i32 = arith.constant 0 : i32
    %c0_i32_0 = arith.constant 0 : i32
    %c0_i32_1 = arith.constant 0 : i32
    %c0_i32_2 = arith.constant 0 : i32
    return %c0_i32, %c0_i32_0, %c0_i32_1 : i32, i32, i32
  }
  func.func @transform_13(%arg0: i32) -> (i32, i32) {
    %c0_i32 = arith.constant 0 : i32
    %c0_i32_0 = arith.constant 0 : i32
    %c0_i32_1 = arith.constant 0 : i32
    return %c0_i32, %c0_i32_0 : i32, i32
  }
  func.func @transform_14(%arg0: i32) -> (i32, i32) {
    %c0_i32 = arith.constant 0 : i32
    %c0_i32_0 = arith.constant 0 : i32
    %c0_i32_1 = arith.constant 0 : i32
    return %c0_i32, %c0_i32_0 : i32, i32
  }
  func.func @transform_15(%arg0: i32) -> (i32, i32) {
    %c0_i32 = arith.constant 0 : i32
    %c0_i32_0 = arith.constant 0 : i32
    return %arg0, %c0_i32 : i32, i32
  }
}

</mosaic_0001>

<llo_original>
// kernel: tpu_custom_call.1
$region0: #{tpu_custom_call.1}
  #allocation0 [shape = 'u32[]', space=smem, size = 0x4, offset = 0x4, fixed_abs, tag = 'smem constant byte address 0x4 - core index']
  #allocation1 [shape = 'u32[144,128]{1,0:T(1,128)}', space=vmem, size = 0x12000, scoped, tag = 'internal scratch']
  %s0 = inlined_call_operand.vmem [shape: f32[4096,3], index: 0, kind: input, shape index: {}]
  %s1 = inlined_call_operand.vmem [shape: f32[4096,8], index: 1, kind: input, shape index: {}]
  %s2 = inlined_call_operand.vmem [shape: f32[6,3,32], index: 2, kind: input, shape index: {}]
  %s3 = inlined_call_operand.vmem [shape: f32[1,32], index: 3, kind: input, shape index: {}]
  %s4 = inlined_call_operand.vmem [shape: f32[1,32], index: 4, kind: input, shape index: {}]
  %s5 = inlined_call_operand.vmem [shape: f32[32,8], index: 5, kind: input, shape index: {}]
  %s6 = inlined_call_operand.vmem [shape: f32[1,8], index: 6, kind: input, shape index: {}]
  %s7 = inlined_call_operand.vmem [shape: f32[32,8], index: 7, kind: input, shape index: {}]
  %s8 = inlined_call_operand.vmem [shape: f32[1,8], index: 8, kind: input, shape index: {}]
  %s9 = inlined_call_operand.vmem [shape: f32[8,32], index: 9, kind: input, shape index: {}]
  %s10 = inlined_call_operand.vmem [shape: f32[1,32], index: 10, kind: input, shape index: {}]
  %s11 = inlined_call_operand.vmem [shape: f32[1,32,32], index: 11, kind: input, shape index: {}]
  %s12 = inlined_call_operand.vmem [shape: f32[1,1,32], index: 12, kind: input, shape index: {}]
  %s13 = inlined_call_operand.vmem [shape: f32[32,4], index: 13, kind: input, shape index: {}]
  %s14 = inlined_call_operand.vmem [shape: f32[1,4], index: 14, kind: input, shape index: {}]
  %s15 = inlined_call_operand.vmem [shape: f32[4096,4], index: 15, kind: output, shape index: {}]
  %s16 = sld [smem:[#allocation0]]
  $region93: #{tpu_custom_call.1} parent=0
    _
  %s18 = ssub.s32 1, %s16
  %s19 = scalar_select 0, %s18, %s16
  loop: start=0, step=1, limit=10
  $region2: #{tpu_custom_call.1} parent=0 // loop_pre_header
    _
  $region3: #{tpu_custom_call.1} parent=0 // loop_header
    %s21 = sphi 0, %s25
    %p22 = scmp.ge.s32.totalorder %s21, 10
    %s31 = sphi 0, %s33
    %s34 = sphi 0, %s31
    %s35 = sphi 0, %s34
    %s51 = sphi 0, %s35
    %s57 = sphi 0, %s59
    %s60 = sphi 0, %s57
    %s61 = sphi 0, %s60
    %s77 = sphi 0, %s61
    %s81 = sphi 0, %s81
    %s83 = sphi 0, %s81
    %s84 = sphi 0, %s83
    %s98 = sphi 0, %s84
    %s102 = sphi 0, %s102
    %s104 = sphi 0, %s102
    %s105 = sphi 0, %s104
    %s119 = sphi 0, %s105
    %s123 = sphi 0, %s123
    %s125 = sphi 0, %s123
    %s126 = sphi 0, %s125
    %s140 = sphi 0, %s126
    %s144 = sphi 0, %s144
    %s146 = sphi 0, %s144
    %s147 = sphi 0, %s146
    %s161 = sphi 0, %s147
    %s165 = sphi 0, %s165
    %s167 = sphi 0, %s165
    %s168 = sphi 0, %s167
    %s182 = sphi 0, %s168
    %s186 = sphi 0, %s186
    %s188 = sphi 0, %s186
    %s189 = sphi 0, %s188
    %s203 = sphi 0, %s189
    %s207 = sphi 0, %s207
    %s209 = sphi 0, %s207
    %s210 = sphi 0, %s209
    %s224 = sphi 0, %s210
    %s228 = sphi 0, %s228
    %s230 = sphi 0, %s228
    %s231 = sphi 0, %s230
    %s245 = sphi 0, %s231
    %s249 = sphi 0, %s249
    %s251 = sphi 0, %s249
    %s252 = sphi 0, %s251
    %s266 = sphi 0, %s252
    %s270 = sphi 0, %s270
    %s272 = sphi 0, %s270
    %s273 = sphi 0, %s272
    %s287 = sphi 0, %s273
    %s291 = sphi 0, %s291
    %s293 = sphi 0, %s291
    %s294 = sphi 0, %s293
    %s308 = sphi 0, %s294
    %s312 = sphi 0, %s312
    %s314 = sphi 0, %s312
    %s315 = sphi 0, %s314
    %s329 = sphi 0, %s315
    %s333 = sphi 0, %s333
    %s335 = sphi 0, %s333
    %s336 = sphi 0, %s335
    %s350 = sphi 0, %s336
    %s356 = sphi 0, %s358
    %s359 = sphi 0, %s356
    %s360 = sphi 0, %s359
    %s376 = sphi 0, %s360
  $region4: #{tpu_custom_call.1} parent=0 // loop_header_branch
    %24 = sbr.rel (%p22) target = $region8
  $region5: #{tpu_custom_call.1} parent=0 // loop_body
    %s26 = ssub.s32 %s21, 1
    %s27 = ssub.s32 %s21, 2
    %s28 = sadd.s32 %s21, 1
    %s29 = ssub.s32 %s21, %s28
    %p30 = scmp.eq.s32.totalorder %s29, 0
    %s32 = sadd.s32 %s31, 1
    %s33 = scalar_select %p30, %s31, %s32
    %p36 = pneg %p30
    %p37 = scmp.eq.s32.totalorder %s21, 7
    %p38 = por %p36, %p37
    %p39 = scmp.ne.s32.totalorder %s31, %s34
    %p40 = scmp.eq.s32.totalorder %s21, 0
    %p41 = por %p39, %p40
    %p42 = scmp.ne.s32.totalorder %s31, %s34
    %p43 = scmp.eq.s32.totalorder %s26, 7
    %p44 = por %p42, %p43
    %p45 = scmp.ne.s32.totalorder %s34, %s35
    %p46 = scmp.eq.s32.totalorder %s26, 0
    %p47 = por %p45, %p46
    %p48 = scmp.ne.s32.totalorder %s34, %s35
    %p49 = scmp.eq.s32.totalorder %s27, 7
    %p50 = por %p48, %p49
    %p52 = scmp.ne.s32.totalorder %s35, %s51
    %p53 = scmp.eq.s32.totalorder %s27, 0
    %p54 = por %p52, %p53
    %s55 = ssub.s32 %s21, %s28
    %p56 = scmp.eq.s32.totalorder %s55, 0
    %s58 = sadd.s32 %s57, 1
    %s59 = scalar_select %p56, %s57, %s58
    %p62 = pneg %p56
    %p63 = scmp.eq.s32.totalorder %s21, 7
    %p64 = por %p62, %p63
    %p65 = scmp.ne.s32.totalorder %s57, %s60
    %p66 = scmp.eq.s32.totalorder %s21, 0
    %p67 = por %p65, %p66
    %p68 = scmp.ne.s32.totalorder %s57, %s60
    %p69 = scmp.eq.s32.totalorder %s26, 7
    %p70 = por %p68, %p69
    %p71 = scmp.ne.s32.totalorder %s60, %s61
    %p72 = scmp.eq.s32.totalorder %s26, 0
    %p73 = por %p71, %p72
    %p74 = scmp.ne.s32.totalorder %s60, %s61
    %p75 = scmp.eq.s32.totalorder %s27, 7
    %p76 = por %p74, %p75
    %p78 = scmp.ne.s32.totalorder %s61, %s77
    %p79 = scmp.eq.s32.totalorder %s27, 0
    %p80 = por %p78, %p79
    %s82 = sadd.s32 %s81, 1
    %p85 = scmp.eq.s32.totalorder %s21, 7
    %p86 = scmp.ne.s32.totalorder %s81, %s83
    %p87 = scmp.eq.s32.totalorder %s21, 0
    %p88 = por %p86, %p87
    %p89 = scmp.ne.s32.totalorder %s81, %s83
    %p90 = scmp.eq.s32.totalorder %s26, 7
    %p91 = por %p89, %p90
    %p92 = scmp.ne.s32.totalorder %s83, %s84
    %p93 = scmp.eq.s32.totalorder %s26, 0
    %p94 = por %p92, %p93
    %p95 = scmp.ne.s32.totalorder %s83, %s84
    %p96 = scmp.eq.s32.totalorder %s27, 7
    %p97 = por %p95, %p96
    %p99 = scmp.ne.s32.totalorder %s84, %s98
    %p100 = scmp.eq.s32.totalorder %s27, 0
    %p101 = por %p99, %p100
    %s103 = sadd.s32 %s102, 1
    %p106 = scmp.eq.s32.totalorder %s21, 7
    %p107 = scmp.ne.s32.totalorder %s102, %s104
    %p108 = scmp.eq.s32.totalorder %s21, 0
    %p109 = por %p107, %p108
    %p110 = scmp.ne.s32.totalorder %s102, %s104
    %p111 = scmp.eq.s32.totalorder %s26, 7
    %p112 = por %p110, %p111
    %p113 = scmp.ne.s32.totalorder %s104, %s105
    %p114 = scmp.eq.s32.totalorder %s26, 0
    %p115 = por %p113, %p114
    %p116 = scmp.ne.s32.totalorder %s104, %s105
    %p117 = scmp.eq.s32.totalorder %s27, 7
    %p118 = por %p116, %p117
    %p120 = scmp.ne.s32.totalorder %s105, %s119
    %p121 = scmp.eq.s32.totalorder %s27, 0
    %p122 = por %p120, %p121
    %s124 = sadd.s32 %s123, 1
    %p127 = scmp.eq.s32.totalorder %s21, 7
    %p128 = scmp.ne.s32.totalorder %s123, %s125
    %p129 = scmp.eq.s32.totalorder %s21, 0
    %p130 = por %p128, %p129
    %p131 = scmp.ne.s32.totalorder %s123, %s125
    %p132 = scmp.eq.s32.totalorder %s26, 7
    %p133 = por %p131, %p132
    %p134 = scmp.ne.s32.totalorder %s125, %s126
    %p135 = scmp.eq.s32.totalorder %s26, 0
    %p136 = por %p134, %p135
    %p137 = scmp.ne.s32.totalorder %s125, %s126
    %p138 = scmp.eq.s32.totalorder %s27, 7
    %p139 = por %p137, %p138
    %p141 = scmp.ne.s32.totalorder %s126, %s140
    %p142 = scmp.eq.s32.totalorder %s27, 0
    %p143 = por %p141, %p142
    %s145 = sadd.s32 %s144, 1
    %p148 = scmp.eq.s32.totalorder %s21, 7
    %p149 = scmp.ne.s32.totalorder %s144, %s146
    %p150 = scmp.eq.s32.totalorder %s21, 0
    %p151 = por %p149, %p150
    %p152 = scmp.ne.s32.totalorder %s144, %s146
    %p153 = scmp.eq.s32.totalorder %s26, 7
    %p154 = por %p152, %p153
    %p155 = scmp.ne.s32.totalorder %s146, %s147
    %p156 = scmp.eq.s32.totalorder %s26, 0
    %p157 = por %p155, %p156
    %p158 = scmp.ne.s32.totalorder %s146, %s147
    %p159 = scmp.eq.s32.totalorder %s27, 7
    %p160 = por %p158, %p159
    %p162 = scmp.ne.s32.totalorder %s147, %s161
    %p163 = scmp.eq.s32.totalorder %s27, 0
    %p164 = por %p162, %p163
    %s166 = sadd.s32 %s165, 1
    %p169 = scmp.eq.s32.totalorder %s21, 7
    %p170 = scmp.ne.s32.totalorder %s165, %s167
    %p171 = scmp.eq.s32.totalorder %s21, 0
    %p172 = por %p170, %p171
    %p173 = scmp.ne.s32.totalorder %s165, %s167
    %p174 = scmp.eq.s32.totalorder %s26, 7
    %p175 = por %p173, %p174
    %p176 = scmp.ne.s32.totalorder %s167, %s168
    %p177 = scmp.eq.s32.totalorder %s26, 0
    %p178 = por %p176, %p177
    %p179 = scmp.ne.s32.totalorder %s167, %s168
    %p180 = scmp.eq.s32.totalorder %s27, 7
    %p181 = por %p179, %p180
    %p183 = scmp.ne.s32.totalorder %s168, %s182
    %p184 = scmp.eq.s32.totalorder %s27, 0
    %p185 = por %p183, %p184
    %s187 = sadd.s32 %s186, 1
    %p190 = scmp.eq.s32.totalorder %s21, 7
    %p191 = scmp.ne.s32.totalorder %s186, %s188
    %p192 = scmp.eq.s32.totalorder %s21, 0
    %p193 = por %p191, %p192
    %p194 = scmp.ne.s32.totalorder %s186, %s188
    %p195 = scmp.eq.s32.totalorder %s26, 7
    %p196 = por %p194, %p195
    %p197 = scmp.ne.s32.totalorder %s188, %s189
    %p198 = scmp.eq.s32.totalorder %s26, 0
    %p199 = por %p197, %p198
    %p200 = scmp.ne.s32.totalorder %s188, %s189
    %p201 = scmp.eq.s32.totalorder %s27, 7
    %p202 = por %p200, %p201
    %p204 = scmp.ne.s32.totalorder %s189, %s203
    %p205 = scmp.eq.s32.totalorder %s27, 0
    %p206 = por %p204, %p205
    %s208 = sadd.s32 %s207, 1
    %p211 = scmp.eq.s32.totalorder %s21, 7
    %p212 = scmp.ne.s32.totalorder %s207, %s209
    %p213 = scmp.eq.s32.totalorder %s21, 0
    %p214 = por %p212, %p213
    %p215 = scmp.ne.s32.totalorder %s207, %s209
    %p216 = scmp.eq.s32.totalorder %s26, 7
    %p217 = por %p215, %p216
    %p218 = scmp.ne.s32.totalorder %s209, %s210
    %p219 = scmp.eq.s32.totalorder %s26, 0
    %p220 = por %p218, %p219
    %p221 = scmp.ne.s32.totalorder %s209, %s210
    %p222 = scmp.eq.s32.totalorder %s27, 7
    %p223 = por %p221, %p222
    %p225 = scmp.ne.s32.totalorder %s210, %s224
    %p226 = scmp.eq.s32.totalorder %s27, 0
    %p227 = por %p225, %p226
    %s229 = sadd.s32 %s228, 1
    %p232 = scmp.eq.s32.totalorder %s21, 7
    %p233 = scmp.ne.s32.totalorder %s228, %s230
    %p234 = scmp.eq.s32.totalorder %s21, 0
    %p235 = por %p233, %p234
    %p236 = scmp.ne.s32.totalorder %s228, %s230
    %p237 = scmp.eq.s32.totalorder %s26, 7
    %p238 = por %p236, %p237
    %p239 = scmp.ne.s32.totalorder %s230, %s231
    %p240 = scmp.eq.s32.totalorder %s26, 0
    %p241 = por %p239, %p240
    %p242 = scmp.ne.s32.totalorder %s230, %s231
    %p243 = scmp.eq.s32.totalorder %s27, 7
    %p244 = por %p242, %p243
    %p246 = scmp.ne.s32.totalorder %s231, %s245
    %p247 = scmp.eq.s32.totalorder %s27, 0
    %p248 = por %p246, %p247
    %s250 = sadd.s32 %s249, 1
    %p253 = scmp.eq.s32.totalorder %s21, 7
    %p254 = scmp.ne.s32.totalorder %s249, %s251
    %p255 = scmp.eq.s32.totalorder %s21, 0
    %p256 = por %p254, %p255
    %p257 = scmp.ne.s32.totalorder %s249, %s251
    %p258 = scmp.eq.s32.totalorder %s26, 7
    %p259 = por %p257, %p258
    %p260 = scmp.ne.s32.totalorder %s251, %s252
    %p261 = scmp.eq.s32.totalorder %s26, 0
    %p262 = por %p260, %p261
    %p263 = scmp.ne.s32.totalorder %s251, %s252
    %p264 = scmp.eq.s32.totalorder %s27, 7
    %p265 = por %p263, %p264
    %p267 = scmp.ne.s32.totalorder %s252, %s266
    %p268 = scmp.eq.s32.totalorder %s27, 0
    %p269 = por %p267, %p268
    %s271 = sadd.s32 %s270, 1
    %p274 = scmp.eq.s32.totalorder %s21, 7
    %p275 = scmp.ne.s32.totalorder %s270, %s272
    %p276 = scmp.eq.s32.totalorder %s21, 0
    %p277 = por %p275, %p276
    %p278 = scmp.ne.s32.totalorder %s270, %s272
    %p279 = scmp.eq.s32.totalorder %s26, 7
    %p280 = por %p278, %p279
    %p281 = scmp.ne.s32.totalorder %s272, %s273
    %p282 = scmp.eq.s32.totalorder %s26, 0
    %p283 = por %p281, %p282
    %p284 = scmp.ne.s32.totalorder %s272, %s273
    %p285 = scmp.eq.s32.totalorder %s27, 7
    %p286 = por %p284, %p285
    %p288 = scmp.ne.s32.totalorder %s273, %s287
    %p289 = scmp.eq.s32.totalorder %s27, 0
    %p290 = por %p288, %p289
    %s292 = sadd.s32 %s291, 1
    %p295 = scmp.eq.s32.totalorder %s21, 7
    %p296 = scmp.ne.s32.totalorder %s291, %s293
    %p297 = scmp.eq.s32.totalorder %s21, 0
    %p298 = por %p296, %p297
    %p299 = scmp.ne.s32.totalorder %s291, %s293
    %p300 = scmp.eq.s32.totalorder %s26, 7
    %p301 = por %p299, %p300
    %p302 = scmp.ne.s32.totalorder %s293, %s294
    %p303 = scmp.eq.s32.totalorder %s26, 0
    %p304 = por %p302, %p303
    %p305 = scmp.ne.s32.totalorder %s293, %s294
    %p306 = scmp.eq.s32.totalorder %s27, 7
    %p307 = por %p305, %p306
    %p309 = scmp.ne.s32.totalorder %s294, %s308
    %p310 = scmp.eq.s32.totalorder %s27, 0
    %p311 = por %p309, %p310
    %s313 = sadd.s32 %s312, 1
    %p316 = scmp.eq.s32.totalorder %s21, 7
    %p317 = scmp.ne.s32.totalorder %s312, %s314
    %p318 = scmp.eq.s32.totalorder %s21, 0
    %p319 = por %p317, %p318
    %p320 = scmp.ne.s32.totalorder %s312, %s314
    %p321 = scmp.eq.s32.totalorder %s26, 7
    %p322 = por %p320, %p321
    %p323 = scmp.ne.s32.totalorder %s314, %s315
    %p324 = scmp.eq.s32.totalorder %s26, 0
    %p325 = por %p323, %p324
    %p326 = scmp.ne.s32.totalorder %s314, %s315
    %p327 = scmp.eq.s32.totalorder %s27, 7
    %p328 = por %p326, %p327
    %p330 = scmp.ne.s32.totalorder %s315, %s329
    %p331 = scmp.eq.s32.totalorder %s27, 0
    %p332 = por %p330, %p331
    %s334 = sadd.s32 %s333, 1
    %p337 = scmp.eq.s32.totalorder %s21, 7
    %p338 = scmp.ne.s32.totalorder %s333, %s335
    %p339 = scmp.eq.s32.totalorder %s21, 0
    %p340 = por %p338, %p339
    %p341 = scmp.ne.s32.totalorder %s333, %s335
    %p342 = scmp.eq.s32.totalorder %s26, 7
    %p343 = por %p341, %p342
    %p344 = scmp.ne.s32.totalorder %s335, %s336
    %p345 = scmp.eq.s32.totalorder %s26, 0
    %p346 = por %p344, %p345
    %p347 = scmp.ne.s32.totalorder %s335, %s336
    %p348 = scmp.eq.s32.totalorder %s27, 7
    %p349 = por %p347, %p348
    %p351 = scmp.ne.s32.totalorder %s336, %s350
    %p352 = scmp.eq.s32.totalorder %s27, 0
    %p353 = por %p351, %p352
    %s354 = ssub.s32 %s21, %s28
    %p355 = scmp.eq.s32.totalorder %s354, 0
    %s357 = sadd.s32 %s356, 1
    %s358 = scalar_select %p355, %s356, %s357
    %p361 = pneg %p355
    %p362 = scmp.eq.s32.totalorder %s21, 7
    %p363 = por %p361, %p362
    %p364 = scmp.ne.s32.totalorder %s356, %s359
    %p365 = scmp.eq.s32.totalorder %s21, 0
    %p366 = por %p364, %p365
    %p367 = scmp.ne.s32.totalorder %s356, %s359
    %p368 = scmp.eq.s32.totalorder %s26, 7
    %p369 = por %p367, %p368
    %p370 = scmp.ne.s32.totalorder %s359, %s360
    %p371 = scmp.eq.s32.totalorder %s26, 0
    %p372 = por %p370, %p371
    %p373 = scmp.ne.s32.totalorder %s359, %s360
    %p374 = scmp.eq.s32.totalorder %s27, 7
    %p375 = por %p373, %p374
    %p377 = scmp.ne.s32.totalorder %s360, %s376
    %p378 = scmp.eq.s32.totalorder %s27, 0
    %p379 = por %p377, %p378
    %p380 = scmp.le.s32.totalorder 1, %s21
    %p381 = scmp.lt.s32.totalorder %s21, 9
    %p382 = pnand %p380, %p381
    %p383 = pneg %p382
    // Predicated region
    $region9: #{tpu_custom_call.1} parent=5 // pred_check
      _
    $region10: #{tpu_custom_call.1} parent=5 // pred_check_branch
      %385 = sbr.rel (%p382) target = $region12
    $region11: #{tpu_custom_call.1} parent=5 // pred_region
      %s386 = ssub.s32 %s21, 1
      // Predicated region
      $region13: #{tpu_custom_call.1} parent=11 // pred_check
        %p387 = pneg %p94
      $region14: #{tpu_custom_call.1} parent=11 // pred_check_branch
        %389 = sbr.rel (%p387) target = $region16
      $region15: #{tpu_custom_call.1} parent=11 // pred_region
        _
      $region16: #{tpu_custom_call.1} parent=11 // pred_fallthru
        _
      // Predicated region
      $region17: #{tpu_custom_call.1} parent=11 // pred_check
        %p390 = pneg %p115
      $region18: #{tpu_custom_call.1} parent=11 // pred_check_branch
        %392 = sbr.rel (%p390) target = $region20
      $region19: #{tpu_custom_call.1} parent=11 // pred_region
        _
      $region20: #{tpu_custom_call.1} parent=11 // pred_fallthru
        _
      // Predicated region
      $region21: #{tpu_custom_call.1} parent=11 // pred_check
        %p393 = pneg %p136
      $region22: #{tpu_custom_call.1} parent=11 // pred_check_branch
        %395 = sbr.rel (%p393) target = $region24
      $region23: #{tpu_custom_call.1} parent=11 // pred_region
        _
      $region24: #{tpu_custom_call.1} parent=11 // pred_fallthru
        _
      // Predicated region
      $region25: #{tpu_custom_call.1} parent=11 // pred_check
        %p396 = pneg %p157
      $region26: #{tpu_custom_call.1} parent=11 // pred_check_branch
        %398 = sbr.rel (%p396) target = $region28
      $region27: #{tpu_custom_call.1} parent=11 // pred_region
        _
      $region28: #{tpu_custom_call.1} parent=11 // pred_fallthru
        _
      // Predicated region
      $region29: #{tpu_custom_call.1} parent=11 // pred_check
        %p399 = pneg %p178
      $region30: #{tpu_custom_call.1} parent=11 // pred_check_branch
        %401 = sbr.rel (%p399) target = $region32
      $region31: #{tpu_custom_call.1} parent=11 // pred_region
        _
      $region32: #{tpu_custom_call.1} parent=11 // pred_fallthru
        _
      // Predicated region
      $region33: #{tpu_custom_call.1} parent=11 // pred_check
        %p402 = pneg %p199
      $region34: #{tpu_custom_call.1} parent=11 // pred_check_branch
        %404 = sbr.rel (%p402) target = $region36
      $region35: #{tpu_custom_call.1} parent=11 // pred_region
        _
      $region36: #{tpu_custom_call.1} parent=11 // pred_fallthru
        _
      // Predicated region
      $region37: #{tpu_custom_call.1} parent=11 // pred_check
        %p405 = pneg %p220
      $region38: #{tpu_custom_call.1} parent=11 // pred_check_branch
        %407 = sbr.rel (%p405) target = $region40
      $region39: #{tpu_custom_call.1} parent=11 // pred_region
        _
      $region40: #{tpu_custom_call.1} parent=11 // pred_fallthru
        _
      // Predicated region
      $region41: #{tpu_custom_call.1} parent=11 // pred_check
        %p408 = pneg %p241
      $region42: #{tpu_custom_call.1} parent=11 // pred_check_branch
        %410 = sbr.rel (%p408) target = $region44
      $region43: #{tpu_custom_call.1} parent=11 // pred_region
        _
      $region44: #{tpu_custom_call.1} parent=11 // pred_fallthru
        _
      // Predicated region
      $region45: #{tpu_custom_call.1} parent=11 // pred_check
        %p411 = pneg %p262
      $region46: #{tpu_custom_call.1} parent=11 // pred_check_branch
        %413 = sbr.rel (%p411) target = $region48
      $region47: #{tpu_custom_call.1} parent=11 // pred_region
        _
      $region48: #{tpu_custom_call.1} parent=11 // pred_fallthru
        _
      // Predicated region
      $region49: #{tpu_custom_call.1} parent=11 // pred_check
        %p414 = pneg %p283
      $region50: #{tpu_custom_call.1} parent=11 // pred_check_branch
        %416 = sbr.rel (%p414) target = $region52
      $region51: #{tpu_custom_call.1} parent=11 // pred_region
        _
      $region52: #{tpu_custom_call.1} parent=11 // pred_fallthru
        _
      // Predicated region
      $region53: #{tpu_custom_call.1} parent=11 // pred_check
        %p417 = pneg %p304
      $region54: #{tpu_custom_call.1} parent=11 // pred_check_branch
        %419 = sbr.rel (%p417) target = $region56
      $region55: #{tpu_custom_call.1} parent=11 // pred_region
        _
      $region56: #{tpu_custom_call.1} parent=11 // pred_fallthru
        _
      // Predicated region
      $region57: #{tpu_custom_call.1} parent=11 // pred_check
        %p420 = pneg %p325
      $region58: #{tpu_custom_call.1} parent=11 // pred_check_branch
        %422 = sbr.rel (%p420) target = $region60
      $region59: #{tpu_custom_call.1} parent=11 // pred_region
        _
      $region60: #{tpu_custom_call.1} parent=11 // pred_fallthru
        _
      // Predicated region
      $region61: #{tpu_custom_call.1} parent=11 // pred_check
        %p423 = pneg %p346
      $region62: #{tpu_custom_call.1} parent=11 // pred_check_branch
        %425 = sbr.rel (%p423) target = $region64
      $region63: #{tpu_custom_call.1} parent=11 // pred_region
        _
      $region64: #{tpu_custom_call.1} parent=11 // pred_fallthru
        _
    $region12: #{tpu_custom_call.1} parent=5 // pred_fallthru
      _
    %p426 = scmp.lt.s32.totalorder %s21, 8
    // Predicated region
    $region65: #{tpu_custom_call.1} parent=5 // pred_check
      %p427 = pneg %p426
    $region66: #{tpu_custom_call.1} parent=5 // pred_check_branch
      %429 = sbr.rel (%p427) target = $region68
    $region67: #{tpu_custom_call.1} parent=5 // pred_region
      // Predicated region
      $region69: #{tpu_custom_call.1} parent=67 // pred_check
        %p430 = pneg %p41
      $region70: #{tpu_custom_call.1} parent=67 // pred_check_branch
        %432 = sbr.rel (%p430) target = $region72
      $region71: #{tpu_custom_call.1} parent=67 // pred_region
        %s433 = smul.u32 64, %s21
        %p434 = scmp.lt.s32.totalorder %s433, 511
        %s435 = scalar_select %p434, %s433, 511
        %s436 = smul.addr %s435, 8
        %s437 = scalar_lea.vmem %s0, %s436
        %s438 = smul.u32 64, %s21
      $region72: #{tpu_custom_call.1} parent=67 // pred_fallthru
        _
      // Predicated region
      $region73: #{tpu_custom_call.1} parent=67 // pred_check
        %p439 = pneg %p67
      $region74: #{tpu_custom_call.1} parent=67 // pred_check_branch
        %441 = sbr.rel (%p439) target = $region76
      $region75: #{tpu_custom_call.1} parent=67 // pred_region
        %s442 = smul.u32 64, %s21
        %p443 = scmp.lt.s32.totalorder %s442, 511
        %s444 = scalar_select %p443, %s442, 511
        %s445 = smul.addr %s444, 8
        %s446 = scalar_lea.vmem %s1, %s445
        %s447 = smul.u32 64, %s21
      $region76: #{tpu_custom_call.1} parent=67 // pred_fallthru
        _
    $region68: #{tpu_custom_call.1} parent=5 // pred_fallthru
      _
    %p448 = scmp.le.s32.totalorder 1, %s21
    %p449 = scmp.lt.s32.totalorder %s21, 9
    %p450 = pnand %p448, %p449
    %p451 = pneg %p450
    // Predicated region
    $region77: #{tpu_custom_call.1} parent=5 // pred_check
      _
    $region78: #{tpu_custom_call.1} parent=5 // pred_check_branch
      %453 = sbr.rel (%p450) target = $region80
    $region79: #{tpu_custom_call.1} parent=5 // pred_region
      %s454 = ssub.s32 %s21, 1
      %s455 = smul.u32 64, %s26
      %p456 = scmp.lt.s32.totalorder %s455, 511
      %s457 = scalar_select %p456, %s455, 511
      %s458 = smul.addr %s457, 8
      %s459 = scalar_lea.vmem %s0, %s458
      %p460 = pneg %p47
      %p461 = pneg %p44
      %s462 = smul.u32 64, %s26
      %p463 = scmp.lt.s32.totalorder %s462, 511
      %s464 = scalar_select %p463, %s462, 511
      %s465 = smul.addr %s464, 8
      %s466 = scalar_lea.vmem %s1, %s465
      %p467 = pneg %p73
      %p468 = pneg %p70
      %p469 = pneg %p94
      %p470 = pneg %p91
      %p471 = pneg %p115
      %p472 = pneg %p112
      %p473 = pneg %p136
      %p474 = pneg %p133
      %p475 = pneg %p157
      %p476 = pneg %p154
      %p477 = pneg %p178
      %p478 = pneg %p175
      %p479 = pneg %p199
      %p480 = pneg %p196
      %p481 = pneg %p220
      %p482 = pneg %p217
      %p483 = pneg %p241
      %p484 = pneg %p238
      %p485 = pneg %p262
      %p486 = pneg %p259
      %p487 = pneg %p283
      %p488 = pneg %p280
      %p489 = pneg %p304
      %p490 = pneg %p301
      %p491 = pneg %p325
      %p492 = pneg %p322
      %p493 = pneg %p346
      %p494 = pneg %p343
      %p495 = pneg %p372
      %p496 = pneg %p369
      %s497 = smul.u32 64, %s26
      %p498 = scmp.lt.s32.totalorder %s497, 511
      %s499 = scalar_select %p498, %s497, 511
      %s500 = smul.addr %s499, 8
      %s501 = scalar_lea.vmem %s15, %s500
      %s502 = smul.u32 64, %s26
      %p503 = scmp.lt.s32.totalorder %s502, 511
      %s504 = scalar_select %p503, %s502, 511
      %s505 = smul.addr %s504, 8
      %s506 = scalar_lea.vmem %s0, %s505
      %s507 = smul.u32 64, %s26
      %s508 = smul.u32 64, %s26
      %p509 = scmp.lt.s32.totalorder %s508, 511
      %s510 = scalar_select %p509, %s508, 511
      %s511 = smul.addr %s510, 8
      %s512 = scalar_lea.vmem %s1, %s511
      %s513 = smul.u32 64, %s26
      %s514 = smul.u32 64, %s26
      %p515 = scmp.lt.s32.totalorder %s514, 511
      %s516 = scalar_select %p515, %s514, 511
      %s517 = smul.addr %s516, 8
      %s518 = scalar_lea.vmem %s15, %s517
      %s519 = smul.u32 64, %s26
      %v520 = vld [vmem:[%s506] sm:$0xff]
      %v521 = vld [vmem:[%s506 + $0x8] sm:$0xff]
      %v522 = vld [vmem:[%s506 + $0x10] sm:$0xff]
      %v523 = vld [vmem:[%s506 + $0x18] sm:$0xff]
      %v524 = vld [vmem:[%s506 + $0x20] sm:$0xff]
      %v525 = vld [vmem:[%s506 + $0x28] sm:$0xff]
      %v526 = vld [vmem:[%s506 + $0x30] sm:$0xff]
      %v527 = vld [vmem:[%s506 + $0x38] sm:$0xff]
      %v528 = vld [vmem:[%s506 + $0x40] sm:$0xff]
      %v529 = vld [vmem:[%s506 + $0x48] sm:$0xff]
      %v530 = vld [vmem:[%s506 + $0x50] sm:$0xff]
      %v531 = vld [vmem:[%s506 + $0x58] sm:$0xff]
      %v532 = vld [vmem:[%s506 + $0x60] sm:$0xff]
      %v533 = vld [vmem:[%s506 + $0x68] sm:$0xff]
      %v534 = vld [vmem:[%s506 + $0x70] sm:$0xff]
      %v535 = vld [vmem:[%s506 + $0x78] sm:$0xff]
      %v536 = vld [vmem:[%s506 + $0x80] sm:$0xff]
      %v537 = vld [vmem:[%s506 + $0x88] sm:$0xff]
      %v538 = vld [vmem:[%s506 + $0x90] sm:$0xff]
      %v539 = vld [vmem:[%s506 + $0x98] sm:$0xff]
      %v540 = vld [vmem:[%s506 + $0xa0] sm:$0xff]
      %v541 = vld [vmem:[%s506 + $0xa8] sm:$0xff]
      %v542 = vld [vmem:[%s506 + $0xb0] sm:$0xff]
      %v543 = vld [vmem:[%s506 + $0xb8] sm:$0xff]
      %v544 = vld [vmem:[%s506 + $0xc0] sm:$0xff]
      %v545 = vld [vmem:[%s506 + $0xc8] sm:$0xff]
      %v546 = vld [vmem:[%s506 + $0xd0] sm:$0xff]
      %v547 = vld [vmem:[%s506 + $0xd8] sm:$0xff]
      %v548 = vld [vmem:[%s506 + $0xe0] sm:$0xff]
      %v549 = vld [vmem:[%s506 + $0xe8] sm:$0xff]
      %v550 = vld [vmem:[%s506 + $0xf0] sm:$0xff]
      %v551 = vld [vmem:[%s506 + $0xf8] sm:$0xff]
      %v552 = vld [vmem:[%s506 + $0x100] sm:$0xff]
      %v553 = vld [vmem:[%s506 + $0x108] sm:$0xff]
      %v554 = vld [vmem:[%s506 + $0x110] sm:$0xff]
      %v555 = vld [vmem:[%s506 + $0x118] sm:$0xff]
      %v556 = vld [vmem:[%s506 + $0x120] sm:$0xff]
      %v557 = vld [vmem:[%s506 + $0x128] sm:$0xff]
      %v558 = vld [vmem:[%s506 + $0x130] sm:$0xff]
      %v559 = vld [vmem:[%s506 + $0x138] sm:$0xff]
      %v560 = vld [vmem:[%s506 + $0x140] sm:$0xff]
      %v561 = vld [vmem:[%s506 + $0x148] sm:$0xff]
      %v562 = vld [vmem:[%s506 + $0x150] sm:$0xff]
      %v563 = vld [vmem:[%s506 + $0x158] sm:$0xff]
      %v564 = vld [vmem:[%s506 + $0x160] sm:$0xff]
      %v565 = vld [vmem:[%s506 + $0x168] sm:$0xff]
      %v566 = vld [vmem:[%s506 + $0x170] sm:$0xff]
      %v567 = vld [vmem:[%s506 + $0x178] sm:$0xff]
      %v568 = vld [vmem:[%s506 + $0x180] sm:$0xff]
      %v569 = vld [vmem:[%s506 + $0x188] sm:$0xff]
      %v570 = vld [vmem:[%s506 + $0x190] sm:$0xff]
      %v571 = vld [vmem:[%s506 + $0x198] sm:$0xff]
      %v572 = vld [vmem:[%s506 + $0x1a0] sm:$0xff]
      %v573 = vld [vmem:[%s506 + $0x1a8] sm:$0xff]
      %v574 = vld [vmem:[%s506 + $0x1b0] sm:$0xff]
      %v575 = vld [vmem:[%s506 + $0x1b8] sm:$0xff]
      %v576 = vld [vmem:[%s506 + $0x1c0] sm:$0xff]
      %v577 = vld [vmem:[%s506 + $0x1c8] sm:$0xff]
      %v578 = vld [vmem:[%s506 + $0x1d0] sm:$0xff]
      %v579 = vld [vmem:[%s506 + $0x1d8] sm:$0xff]
      %v580 = vld [vmem:[%s506 + $0x1e0] sm:$0xff]
      %v581 = vld [vmem:[%s506 + $0x1e8] sm:$0xff]
      %v582 = vld [vmem:[%s506 + $0x1f0] sm:$0xff]
      %v583 = vld [vmem:[%s506 + $0x1f8] sm:$0xff]
      %648 = vrot.lane.b32.xlu0 %v520, 127
      %v649 = vpop.permute.xlu0 %648
      %650 = vrot.lane.b32.xlu0 %v521, 127
      %v651 = vpop.permute.xlu0 %650
      %652 = vrot.lane.b32.xlu0 %v522, 127
      %v653 = vpop.permute.xlu0 %652
      %654 = vrot.lane.b32.xlu0 %v523, 127
      %v655 = vpop.permute.xlu0 %654
      %656 = vrot.lane.b32.xlu0 %v524, 127
      %v657 = vpop.permute.xlu0 %656
      %658 = vrot.lane.b32.xlu0 %v525, 127
      %v659 = vpop.permute.xlu0 %658
      %660 = vrot.lane.b32.xlu0 %v526, 127
      %v661 = vpop.permute.xlu0 %660
      %662 = vrot.lane.b32.xlu0 %v527, 127
      %v663 = vpop.permute.xlu0 %662
      %664 = vrot.lane.b32.xlu0 %v528, 127
      %v665 = vpop.permute.xlu0 %664
      %666 = vrot.lane.b32.xlu0 %v529, 127
      %v667 = vpop.permute.xlu0 %666
      %668 = vrot.lane.b32.xlu0 %v530, 127
      %v669 = vpop.permute.xlu0 %668
      %670 = vrot.lane.b32.xlu0 %v531, 127
      %v671 = vpop.permute.xlu0 %670
      %672 = vrot.lane.b32.xlu0 %v532, 127
      %v673 = vpop.permute.xlu0 %672
      %674 = vrot.lane.b32.xlu0 %v533, 127
      %v675 = vpop.permute.xlu0 %674
      %676 = vrot.lane.b32.xlu0 %v534, 127
      %v677 = vpop.permute.xlu0 %676
      %678 = vrot.lane.b32.xlu0 %v535, 127
      %v679 = vpop.permute.xlu0 %678
      %680 = vrot.lane.b32.xlu0 %v536, 127
      %v681 = vpop.permute.xlu0 %680
      %682 = vrot.lane.b32.xlu0 %v537, 127
      %v683 = vpop.permute.xlu0 %682
      %684 = vrot.lane.b32.xlu0 %v538, 127
      %v685 = vpop.permute.xlu0 %684
      %686 = vrot.lane.b32.xlu0 %v539, 127
      %v687 = vpop.permute.xlu0 %686
      %688 = vrot.lane.b32.xlu0 %v540, 127
      %v689 = vpop.permute.xlu0 %688
      %690 = vrot.lane.b32.xlu0 %v541, 127
      %v691 = vpop.permute.xlu0 %690
      %692 = vrot.lane.b32.xlu0 %v542, 127
      %v693 = vpop.permute.xlu0 %692
      %694 = vrot.lane.b32.xlu0 %v543, 127
      %v695 = vpop.permute.xlu0 %694
      %696 = vrot.lane.b32.xlu0 %v544, 127
      %v697 = vpop.permute.xlu0 %696
      %698 = vrot.lane.b32.xlu0 %v545, 127
      %v699 = vpop.permute.xlu0 %698
      %700 = vrot.lane.b32.xlu0 %v546, 127
      %v701 = vpop.permute.xlu0 %700
      %702 = vrot.lane.b32.xlu0 %v547, 127
      %v703 = vpop.permute.xlu0 %702
      %704 = vrot.lane.b32.xlu0 %v548, 127
      %v705 = vpop.permute.xlu0 %704
      %706 = vrot.lane.b32.xlu0 %v549, 127
      %v707 = vpop.permute.xlu0 %706
      %708 = vrot.lane.b32.xlu0 %v550, 127
      %v709 = vpop.permute.xlu0 %708
      %710 = vrot.lane.b32.xlu0 %v551, 127
      %v711 = vpop.permute.xlu0 %710
      %712 = vrot.lane.b32.xlu0 %v552, 127
      %v713 = vpop.permute.xlu0 %712
      %714 = vrot.lane.b32.xlu0 %v553, 127
      %v715 = vpop.permute.xlu0 %714
      %716 = vrot.lane.b32.xlu0 %v554, 127
      %v717 = vpop.permute.xlu0 %716
      %718 = vrot.lane.b32.xlu0 %v555, 127
      %v719 = vpop.permute.xlu0 %718
      %720 = vrot.lane.b32.xlu0 %v556, 127
      %v721 = vpop.permute.xlu0 %720
      %722 = vrot.lane.b32.xlu0 %v557, 127
      %v723 = vpop.permute.xlu0 %722
      %724 = vrot.lane.b32.xlu0 %v558, 127
      %v725 = vpop.permute.xlu0 %724
      %726 = vrot.lane.b32.xlu0 %v559, 127
      %v727 = vpop.permute.xlu0 %726
      %728 = vrot.lane.b32.xlu0 %v560, 127
      %v729 = vpop.permute.xlu0 %728
      %730 = vrot.lane.b32.xlu0 %v561, 127
      %v731 = vpop.permute.xlu0 %730
      %732 = vrot.lane.b32.xlu0 %v562, 127
      %v733 = vpop.permute.xlu0 %732
      %734 = vrot.lane.b32.xlu0 %v563, 127
      %v735 = vpop.permute.xlu0 %734
      %736 = vrot.lane.b32.xlu0 %v564, 127
      %v737 = vpop.permute.xlu0 %736
      %738 = vrot.lane.b32.xlu0 %v565, 127
      %v739 = vpop.permute.xlu0 %738
      %740 = vrot.lane.b32.xlu0 %v566, 127
      %v741 = vpop.permute.xlu0 %740
      %742 = vrot.lane.b32.xlu0 %v567, 127
      %v743 = vpop.permute.xlu0 %742
      %744 = vrot.lane.b32.xlu0 %v568, 127
      %v745 = vpop.permute.xlu0 %744
      %746 = vrot.lane.b32.xlu0 %v569, 127
      %v747 = vpop.permute.xlu0 %746
      %748 = vrot.lane.b32.xlu0 %v570, 127
      %v749 = vpop.permute.xlu0 %748
      %750 = vrot.lane.b32.xlu0 %v571, 127
      %v751 = vpop.permute.xlu0 %750
      %752 = vrot.lane.b32.xlu0 %v572, 127
      %v753 = vpop.permute.xlu0 %752
      %754 = vrot.lane.b32.xlu0 %v573, 127
      %v755 = vpop.permute.xlu0 %754
      %756 = vrot.lane.b32.xlu0 %v574, 127
      %v757 = vpop.permute.xlu0 %756
      %758 = vrot.lane.b32.xlu0 %v575, 127
      %v759 = vpop.permute.xlu0 %758
      %760 = vrot.lane.b32.xlu0 %v576, 127
      %v761 = vpop.permute.xlu0 %760
      %762 = vrot.lane.b32.xlu0 %v577, 127
      %v763 = vpop.permute.xlu0 %762
      %764 = vrot.lane.b32.xlu0 %v578, 127
      %v765 = vpop.permute.xlu0 %764
      %766 = vrot.lane.b32.xlu0 %v579, 127
      %v767 = vpop.permute.xlu0 %766
      %768 = vrot.lane.b32.xlu0 %v580, 127
      %v769 = vpop.permute.xlu0 %768
      %770 = vrot.lane.b32.xlu0 %v581, 127
      %v771 = vpop.permute.xlu0 %770
      %772 = vrot.lane.b32.xlu0 %v582, 127
      %v773 = vpop.permute.xlu0 %772
      %774 = vrot.lane.b32.xlu0 %v583, 127
      %v775 = vpop.permute.xlu0 %774
      %840 = vrot.lane.b32.xlu0 %v520, 2
      %v841 = vpop.permute.xlu0 %840
      %842 = vrot.lane.b32.xlu0 %v521, 2
      %v843 = vpop.permute.xlu0 %842
      %844 = vrot.lane.b32.xlu0 %v522, 2
      %v845 = vpop.permute.xlu0 %844
      %846 = vrot.lane.b32.xlu0 %v523, 2
      %v847 = vpop.permute.xlu0 %846
      %848 = vrot.lane.b32.xlu0 %v524, 2
      %v849 = vpop.permute.xlu0 %848
      %850 = vrot.lane.b32.xlu0 %v525, 2
      %v851 = vpop.permute.xlu0 %850
      %852 = vrot.lane.b32.xlu0 %v526, 2
      %v853 = vpop.permute.xlu0 %852
      %854 = vrot.lane.b32.xlu0 %v527, 2
      %v855 = vpop.permute.xlu0 %854
      %856 = vrot.lane.b32.xlu0 %v528, 2
      %v857 = vpop.permute.xlu0 %856
      %858 = vrot.lane.b32.xlu0 %v529, 2
      %v859 = vpop.permute.xlu0 %858
      %860 = vrot.lane.b32.xlu0 %v530, 2
      %v861 = vpop.permute.xlu0 %860
      %862 = vrot.lane.b32.xlu0 %v531, 2
      %v863 = vpop.permute.xlu0 %862
      %864 = vrot.lane.b32.xlu0 %v532, 2
      %v865 = vpop.permute.xlu0 %864
      %866 = vrot.lane.b32.xlu0 %v533, 2
      %v867 = vpop.permute.xlu0 %866
      %868 = vrot.lane.b32.xlu0 %v534, 2
      %v869 = vpop.permute.xlu0 %868
      %870 = vrot.lane.b32.xlu0 %v535, 2
      %v871 = vpop.permute.xlu0 %870
      %872 = vrot.lane.b32.xlu0 %v536, 2
      %v873 = vpop.permute.xlu0 %872
      %874 = vrot.lane.b32.xlu0 %v537, 2
      %v875 = vpop.permute.xlu0 %874
      %876 = vrot.lane.b32.xlu0 %v538, 2
      %v877 = vpop.permute.xlu0 %876
      %878 = vrot.lane.b32.xlu0 %v539, 2
      %v879 = vpop.permute.xlu0 %878
      %880 = vrot.lane.b32.xlu0 %v540, 2
      %v881 = vpop.permute.xlu0 %880
      %882 = vrot.lane.b32.xlu0 %v541, 2
      %v883 = vpop.permute.xlu0 %882
      %884 = vrot.lane.b32.xlu0 %v542, 2
      %v885 = vpop.permute.xlu0 %884
      %886 = vrot.lane.b32.xlu0 %v543, 2
      %v887 = vpop.permute.xlu0 %886
      %888 = vrot.lane.b32.xlu0 %v544, 2
      %v889 = vpop.permute.xlu0 %888
      %890 = vrot.lane.b32.xlu0 %v545, 2
      %v891 = vpop.permute.xlu0 %890
      %892 = vrot.lane.b32.xlu0 %v546, 2
      %v893 = vpop.permute.xlu0 %892
      %894 = vrot.lane.b32.xlu0 %v547, 2
      %v895 = vpop.permute.xlu0 %894
      %896 = vrot.lane.b32.xlu0 %v548, 2
      %v897 = vpop.permute.xlu0 %896
      %898 = vrot.lane.b32.xlu0 %v549, 2
      %v899 = vpop.permute.xlu0 %898
      %900 = vrot.lane.b32.xlu0 %v550, 2
      %v901 = vpop.permute.xlu0 %900
      %902 = vrot.lane.b32.xlu0 %v551, 2
      %v903 = vpop.permute.xlu0 %902
      %904 = vrot.lane.b32.xlu0 %v552, 2
      %v905 = vpop.permute.xlu0 %904
      %906 = vrot.lane.b32.xlu0 %v553, 2
      %v907 = vpop.permute.xlu0 %906
      %908 = vrot.lane.b32.xlu0 %v554, 2
      %v909 = vpop.permute.xlu0 %908
      %910 = vrot.lane.b32.xlu0 %v555, 2
      %v911 = vpop.permute.xlu0 %910
      %912 = vrot.lane.b32.xlu0 %v556, 2
      %v913 = vpop.permute.xlu0 %912
      %914 = vrot.lane.b32.xlu0 %v557, 2
      %v915 = vpop.permute.xlu0 %914
      %916 = vrot.lane.b32.xlu0 %v558, 2
      %v917 = vpop.permute.xlu0 %916
      %918 = vrot.lane.b32.xlu0 %v559, 2
      %v919 = vpop.permute.xlu0 %918
      %920 = vrot.lane.b32.xlu0 %v560, 2
      %v921 = vpop.permute.xlu0 %920
      %922 = vrot.lane.b32.xlu0 %v561, 2
      %v923 = vpop.permute.xlu0 %922
      %924 = vrot.lane.b32.xlu0 %v562, 2
      %v925 = vpop.permute.xlu0 %924
      %926 = vrot.lane.b32.xlu0 %v563, 2
      %v927 = vpop.permute.xlu0 %926
      %928 = vrot.lane.b32.xlu0 %v564, 2
      %v929 = vpop.permute.xlu0 %928
      %930 = vrot.lane.b32.xlu0 %v565, 2
      %v931 = vpop.permute.xlu0 %930
      %932 = vrot.lane.b32.xlu0 %v566, 2
      %v933 = vpop.permute.xlu0 %932
      %934 = vrot.lane.b32.xlu0 %v567, 2
      %v935 = vpop.permute.xlu0 %934
      %936 = vrot.lane.b32.xlu0 %v568, 2
      %v937 = vpop.permute.xlu0 %936
      %938 = vrot.lane.b32.xlu0 %v569, 2
      %v939 = vpop.permute.xlu0 %938
      %940 = vrot.lane.b32.xlu0 %v570, 2
      %v941 = vpop.permute.xlu0 %940
      %942 = vrot.lane.b32.xlu0 %v571, 2
      %v943 = vpop.permute.xlu0 %942
      %944 = vrot.lane.b32.xlu0 %v572, 2
      %v945 = vpop.permute.xlu0 %944
      %946 = vrot.lane.b32.xlu0 %v573, 2
      %v947 = vpop.permute.xlu0 %946
      %948 = vrot.lane.b32.xlu0 %v574, 2
      %v949 = vpop.permute.xlu0 %948
      %950 = vrot.lane.b32.xlu0 %v575, 2
      %v951 = vpop.permute.xlu0 %950
      %952 = vrot.lane.b32.xlu0 %v576, 2
      %v953 = vpop.permute.xlu0 %952
      %954 = vrot.lane.b32.xlu0 %v577, 2
      %v955 = vpop.permute.xlu0 %954
      %956 = vrot.lane.b32.xlu0 %v578, 2
      %v957 = vpop.permute.xlu0 %956
      %958 = vrot.lane.b32.xlu0 %v579, 2
      %v959 = vpop.permute.xlu0 %958
      %960 = vrot.lane.b32.xlu0 %v580, 2
      %v961 = vpop.permute.xlu0 %960
      %962 = vrot.lane.b32.xlu0 %v581, 2
      %v963 = vpop.permute.xlu0 %962
      %964 = vrot.lane.b32.xlu0 %v582, 2
      %v965 = vpop.permute.xlu0 %964
      %966 = vrot.lane.b32.xlu0 %v583, 2
      %v967 = vpop.permute.xlu0 %966
      %vm1032 = vcmask 15360
      %v1033 = vsel %vm1032, %v649, %v841
      %v1034 = vsel %vm1032, %v651, %v843
      %v1035 = vsel %vm1032, %v653, %v845
      %v1036 = vsel %vm1032, %v655, %v847
      %v1037 = vsel %vm1032, %v657, %v849
      %v1038 = vsel %vm1032, %v659, %v851
      %v1039 = vsel %vm1032, %v661, %v853
      %v1040 = vsel %vm1032, %v663, %v855
      %v1041 = vsel %vm1032, %v665, %v857
      %v1042 = vsel %vm1032, %v667, %v859
      %v1043 = vsel %vm1032, %v669, %v861
      %v1044 = vsel %vm1032, %v671, %v863
      %v1045 = vsel %vm1032, %v673, %v865
      %v1046 = vsel %vm1032, %v675, %v867
      %v1047 = vsel %vm1032, %v677, %v869
      %v1048 = vsel %vm1032, %v679, %v871
      %v1049 = vsel %vm1032, %v681, %v873
      %v1050 = vsel %vm1032, %v683, %v875
      %v1051 = vsel %vm1032, %v685, %v877
      %v1052 = vsel %vm1032, %v687, %v879
      %v1053 = vsel %vm1032, %v689, %v881
      %v1054 = vsel %vm1032, %v691, %v883
      %v1055 = vsel %vm1032, %v693, %v885
      %v1056 = vsel %vm1032, %v695, %v887
      %v1057 = vsel %vm1032, %v697, %v889
      %v1058 = vsel %vm1032, %v699, %v891
      %v1059 = vsel %vm1032, %v701, %v893
      %v1060 = vsel %vm1032, %v703, %v895
      %v1061 = vsel %vm1032, %v705, %v897
      %v1062 = vsel %vm1032, %v707, %v899
      %v1063 = vsel %vm1032, %v709, %v901
      %v1064 = vsel %vm1032, %v711, %v903
      %v1065 = vsel %vm1032, %v713, %v905
      %v1066 = vsel %vm1032, %v715, %v907
      %v1067 = vsel %vm1032, %v717, %v909
      %v1068 = vsel %vm1032, %v719, %v911
      %v1069 = vsel %vm1032, %v721, %v913
      %v1070 = vsel %vm1032, %v723, %v915
      %v1071 = vsel %vm1032, %v725, %v917
      %v1072 = vsel %vm1032, %v727, %v919
      %v1073 = vsel %vm1032, %v729, %v921
      %v1074 = vsel %vm1032, %v731, %v923
      %v1075 = vsel %vm1032, %v733, %v925
      %v1076 = vsel %vm1032, %v735, %v927
      %v1077 = vsel %vm1032, %v737, %v929
      %v1078 = vsel %vm1032, %v739, %v931
      %v1079 = vsel %vm1032, %v741, %v933
      %v1080 = vsel %vm1032, %v743, %v935
      %v1081 = vsel %vm1032, %v745, %v937
      %v1082 = vsel %vm1032, %v747, %v939
      %v1083 = vsel %vm1032, %v749, %v941
      %v1084 = vsel %vm1032, %v751, %v943
      %v1085 = vsel %vm1032, %v753, %v945
      %v1086 = vsel %vm1032, %v755, %v947
      %v1087 = vsel %vm1032, %v757, %v949
      %v1088 = vsel %vm1032, %v759, %v951
      %v1089 = vsel %vm1032, %v761, %v953
      %v1090 = vsel %vm1032, %v763, %v955
      %v1091 = vsel %vm1032, %v765, %v957
      %v1092 = vsel %vm1032, %v767, %v959
      %v1093 = vsel %vm1032, %v769, %v961
      %v1094 = vsel %vm1032, %v771, %v963
      %v1095 = vsel %vm1032, %v773, %v965
      %v1096 = vsel %vm1032, %v775, %v967
      %v1097 = vmul.f32 %v520, %v520
      %v1098 = vmul.f32 %v521, %v521
      %v1099 = vmul.f32 %v522, %v522
      %v1100 = vmul.f32 %v523, %v523
      %v1101 = vmul.f32 %v524, %v524
      %v1102 = vmul.f32 %v525, %v525
      %v1103 = vmul.f32 %v526, %v526
      %v1104 = vmul.f32 %v527, %v527
      %v1105 = vmul.f32 %v528, %v528
      %v1106 = vmul.f32 %v529, %v529
      %v1107 = vmul.f32 %v530, %v530
      %v1108 = vmul.f32 %v531, %v531
      %v1109 = vmul.f32 %v532, %v532
      %v1110 = vmul.f32 %v533, %v533
      %v1111 = vmul.f32 %v534, %v534
      %v1112 = vmul.f32 %v535, %v535
      %v1113 = vmul.f32 %v536, %v536
      %v1114 = vmul.f32 %v537, %v537
      %v1115 = vmul.f32 %v538, %v538
      %v1116 = vmul.f32 %v539, %v539
      %v1117 = vmul.f32 %v540, %v540
      %v1118 = vmul.f32 %v541, %v541
      %v1119 = vmul.f32 %v542, %v542
      %v1120 = vmul.f32 %v543, %v543
      %v1121 = vmul.f32 %v544, %v544
      %v1122 = vmul.f32 %v545, %v545
      %v1123 = vmul.f32 %v546, %v546
      %v1124 = vmul.f32 %v547, %v547
      %v1125 = vmul.f32 %v548, %v548
      %v1126 = vmul.f32 %v549, %v549
      %v1127 = vmul.f32 %v550, %v550
      %v1128 = vmul.f32 %v551, %v551
      %v1129 = vmul.f32 %v552, %v552
      %v1130 = vmul.f32 %v553, %v553
      %v1131 = vmul.f32 %v554, %v554
      %v1132 = vmul.f32 %v555, %v555
      %v1133 = vmul.f32 %v556, %v556
      %v1134 = vmul.f32 %v557, %v557
      %v1135 = vmul.f32 %v558, %v558
      %v1136 = vmul.f32 %v559, %v559
      %v1137 = vmul.f32 %v560, %v560
      %v1138 = vmul.f32 %v561, %v561
      %v1139 = vmul.f32 %v562, %v562
      %v1140 = vmul.f32 %v563, %v563
      %v1141 = vmul.f32 %v564, %v564
      %v1142 = vmul.f32 %v565, %v565
      %v1143 = vmul.f32 %v566, %v566
      %v1144 = vmul.f32 %v567, %v567
      %v1145 = vmul.f32 %v568, %v568
      %v1146 = vmul.f32 %v569, %v569
      %v1147 = vmul.f32 %v570, %v570
      %v1148 = vmul.f32 %v571, %v571
      %v1149 = vmul.f32 %v572, %v572
      %v1150 = vmul.f32 %v573, %v573
      %v1151 = vmul.f32 %v574, %v574
      %v1152 = vmul.f32 %v575, %v575
      %v1153 = vmul.f32 %v576, %v576
      %v1154 = vmul.f32 %v577, %v577
      %v1155 = vmul.f32 %v578, %v578
      %v1156 = vmul.f32 %v579, %v579
      %v1157 = vmul.f32 %v580, %v580
      %v1158 = vmul.f32 %v581, %v581
      %v1159 = vmul.f32 %v582, %v582
      %v1160 = vmul.f32 %v583, %v583
      %v1161 = vmul.f32 %v520, %v1033
      %v1162 = vmul.f32 %v521, %v1034
      %v1163 = vmul.f32 %v522, %v1035
      %v1164 = vmul.f32 %v523, %v1036
      %v1165 = vmul.f32 %v524, %v1037
      %v1166 = vmul.f32 %v525, %v1038
      %v1167 = vmul.f32 %v526, %v1039
      %v1168 = vmul.f32 %v527, %v1040
      %v1169 = vmul.f32 %v528, %v1041
      %v1170 = vmul.f32 %v529, %v1042
      %v1171 = vmul.f32 %v530, %v1043
      %v1172 = vmul.f32 %v531, %v1044
      %v1173 = vmul.f32 %v532, %v1045
      %v1174 = vmul.f32 %v533, %v1046
      %v1175 = vmul.f32 %v534, %v1047
      %v1176 = vmul.f32 %v535, %v1048
      %v1177 = vmul.f32 %v536, %v1049
      %v1178 = vmul.f32 %v537, %v1050
      %v1179 = vmul.f32 %v538, %v1051
      %v1180 = vmul.f32 %v539, %v1052
      %v1181 = vmul.f32 %v540, %v1053
      %v1182 = vmul.f32 %v541, %v1054
      %v1183 = vmul.f32 %v542, %v1055
      %v1184 = vmul.f32 %v543, %v1056
      %v1185 = vmul.f32 %v544, %v1057
      %v1186 = vmul.f32 %v545, %v1058
      %v1187 = vmul.f32 %v546, %v1059
      %v1188 = vmul.f32 %v547, %v1060
      %v1189 = vmul.f32 %v548, %v1061
      %v1190 = vmul.f32 %v549, %v1062
      %v1191 = vmul.f32 %v550, %v1063
      %v1192 = vmul.f32 %v551, %v1064
      %v1193 = vmul.f32 %v552, %v1065
      %v1194 = vmul.f32 %v553, %v1066
      %v1195 = vmul.f32 %v554, %v1067
      %v1196 = vmul.f32 %v555, %v1068
      %v1197 = vmul.f32 %v556, %v1069
      %v1198 = vmul.f32 %v557, %v1070
      %v1199 = vmul.f32 %v558, %v1071
      %v1200 = vmul.f32 %v559, %v1072
      %v1201 = vmul.f32 %v560, %v1073
      %v1202 = vmul.f32 %v561, %v1074
      %v1203 = vmul.f32 %v562, %v1075
      %v1204 = vmul.f32 %v563, %v1076
      %v1205 = vmul.f32 %v564, %v1077
      %v1206 = vmul.f32 %v565, %v1078
      %v1207 = vmul.f32 %v566, %v1079
      %v1208 = vmul.f32 %v567, %v1080
      %v1209 = vmul.f32 %v568, %v1081
      %v1210 = vmul.f32 %v569, %v1082
      %v1211 = vmul.f32 %v570, %v1083
      %v1212 = vmul.f32 %v571, %v1084
      %v1213 = vmul.f32 %v572, %v1085
      %v1214 = vmul.f32 %v573, %v1086
      %v1215 = vmul.f32 %v574, %v1087
      %v1216 = vmul.f32 %v575, %v1088
      %v1217 = vmul.f32 %v576, %v1089
      %v1218 = vmul.f32 %v577, %v1090
      %v1219 = vmul.f32 %v578, %v1091
      %v1220 = vmul.f32 %v579, %v1092
      %v1221 = vmul.f32 %v580, %v1093
      %v1222 = vmul.f32 %v581, %v1094
      %v1223 = vmul.f32 %v582, %v1095
      %v1224 = vmul.f32 %v583, %v1096
      %v1225 = vmul.f32 %v1161, %v520
      %v1226 = vmul.f32 %v1162, %v521
      %v1227 = vmul.f32 %v1163, %v522
      %v1228 = vmul.f32 %v1164, %v523
      %v1229 = vmul.f32 %v1165, %v524
      %v1230 = vmul.f32 %v1166, %v525
      %v1231 = vmul.f32 %v1167, %v526
      %v1232 = vmul.f32 %v1168, %v527
      %v1233 = vmul.f32 %v1169, %v528
      %v1234 = vmul.f32 %v1170, %v529
      %v1235 = vmul.f32 %v1171, %v530
      %v1236 = vmul.f32 %v1172, %v531
      %v1237 = vmul.f32 %v1173, %v532
      %v1238 = vmul.f32 %v1174, %v533
      %v1239 = vmul.f32 %v1175, %v534
      %v1240 = vmul.f32 %v1176, %v535
      %v1241 = vmul.f32 %v1177, %v536
      %v1242 = vmul.f32 %v1178, %v537
      %v1243 = vmul.f32 %v1179, %v538
      %v1244 = vmul.f32 %v1180, %v539
      %v1245 = vmul.f32 %v1181, %v540
      %v1246 = vmul.f32 %v1182, %v541
      %v1247 = vmul.f32 %v1183, %v542
      %v1248 = vmul.f32 %v1184, %v543
      %v1249 = vmul.f32 %v1185, %v544
      %v1250 = vmul.f32 %v1186, %v545
      %v1251 = vmul.f32 %v1187, %v546
      %v1252 = vmul.f32 %v1188, %v547
      %v1253 = vmul.f32 %v1189, %v548
      %v1254 = vmul.f32 %v1190, %v549
      %v1255 = vmul.f32 %v1191, %v550
      %v1256 = vmul.f32 %v1192, %v551
      %v1257 = vmul.f32 %v1193, %v552
      %v1258 = vmul.f32 %v1194, %v553
      %v1259 = vmul.f32 %v1195, %v554
      %v1260 = vmul.f32 %v1196, %v555
      %v1261 = vmul.f32 %v1197, %v556
      %v1262 = vmul.f32 %v1198, %v557
      %v1263 = vmul.f32 %v1199, %v558
      %v1264 = vmul.f32 %v1200, %v559
      %v1265 = vmul.f32 %v1201, %v560
      %v1266 = vmul.f32 %v1202, %v561
      %v1267 = vmul.f32 %v1203, %v562
      %v1268 = vmul.f32 %v1204, %v563
      %v1269 = vmul.f32 %v1205, %v564
      %v1270 = vmul.f32 %v1206, %v565
      %v1271 = vmul.f32 %v1207, %v566
      %v1272 = vmul.f32 %v1208, %v567
      %v1273 = vmul.f32 %v1209, %v568
      %v1274 = vmul.f32 %v1210, %v569
      %v1275 = vmul.f32 %v1211, %v570
      %v1276 = vmul.f32 %v1212, %v571
      %v1277 = vmul.f32 %v1213, %v572
      %v1278 = vmul.f32 %v1214, %v573
      %v1279 = vmul.f32 %v1215, %v574
      %v1280 = vmul.f32 %v1216, %v575
      %v1281 = vmul.f32 %v1217, %v576
      %v1282 = vmul.f32 %v1218, %v577
      %v1283 = vmul.f32 %v1219, %v578
      %v1284 = vmul.f32 %v1220, %v579
      %v1285 = vmul.f32 %v1221, %v580
      %v1286 = vmul.f32 %v1222, %v581
      %v1287 = vmul.f32 %v1223, %v582
      %v1288 = vmul.f32 %v1224, %v583
      %v1289 = vmul.f32 %v1161, %v1033
      %v1290 = vmul.f32 %v1162, %v1034
      %v1291 = vmul.f32 %v1163, %v1035
      %v1292 = vmul.f32 %v1164, %v1036
      %v1293 = vmul.f32 %v1165, %v1037
      %v1294 = vmul.f32 %v1166, %v1038
      %v1295 = vmul.f32 %v1167, %v1039
      %v1296 = vmul.f32 %v1168, %v1040
      %v1297 = vmul.f32 %v1169, %v1041
      %v1298 = vmul.f32 %v1170, %v1042
      %v1299 = vmul.f32 %v1171, %v1043
      %v1300 = vmul.f32 %v1172, %v1044
      %v1301 = vmul.f32 %v1173, %v1045
      %v1302 = vmul.f32 %v1174, %v1046
      %v1303 = vmul.f32 %v1175, %v1047
      %v1304 = vmul.f32 %v1176, %v1048
      %v1305 = vmul.f32 %v1177, %v1049
      %v1306 = vmul.f32 %v1178, %v1050
      %v1307 = vmul.f32 %v1179, %v1051
      %v1308 = vmul.f32 %v1180, %v1052
      %v1309 = vmul.f32 %v1181, %v1053
      %v1310 = vmul.f32 %v1182, %v1054
      %v1311 = vmul.f32 %v1183, %v1055
      %v1312 = vmul.f32 %v1184, %v1056
      %v1313 = vmul.f32 %v1185, %v1057
      %v1314 = vmul.f32 %v1186, %v1058
      %v1315 = vmul.f32 %v1187, %v1059
      %v1316 = vmul.f32 %v1188, %v1060
      %v1317 = vmul.f32 %v1189, %v1061
      %v1318 = vmul.f32 %v1190, %v1062
      %v1319 = vmul.f32 %v1191, %v1063
      %v1320 = vmul.f32 %v1192, %v1064
      %v1321 = vmul.f32 %v1193, %v1065
      %v1322 = vmul.f32 %v1194, %v1066
      %v1323 = vmul.f32 %v1195, %v1067
      %v1324 = vmul.f32 %v1196, %v1068
      %v1325 = vmul.f32 %v1197, %v1069
      %v1326 = vmul.f32 %v1198, %v1070
      %v1327 = vmul.f32 %v1199, %v1071
      %v1328 = vmul.f32 %v1200, %v1072
      %v1329 = vmul.f32 %v1201, %v1073
      %v1330 = vmul.f32 %v1202, %v1074
      %v1331 = vmul.f32 %v1203, %v1075
      %v1332 = vmul.f32 %v1204, %v1076
      %v1333 = vmul.f32 %v1205, %v1077
      %v1334 = vmul.f32 %v1206, %v1078
      %v1335 = vmul.f32 %v1207, %v1079
      %v1336 = vmul.f32 %v1208, %v1080
      %v1337 = vmul.f32 %v1209, %v1081
      %v1338 = vmul.f32 %v1210, %v1082
      %v1339 = vmul.f32 %v1211, %v1083
      %v1340 = vmul.f32 %v1212, %v1084
      %v1341 = vmul.f32 %v1213, %v1085
      %v1342 = vmul.f32 %v1214, %v1086
      %v1343 = vmul.f32 %v1215, %v1087
      %v1344 = vmul.f32 %v1216, %v1088
      %v1345 = vmul.f32 %v1217, %v1089
      %v1346 = vmul.f32 %v1218, %v1090
      %v1347 = vmul.f32 %v1219, %v1091
      %v1348 = vmul.f32 %v1220, %v1092
      %v1349 = vmul.f32 %v1221, %v1093
      %v1350 = vmul.f32 %v1222, %v1094
      %v1351 = vmul.f32 %v1223, %v1095
      %v1352 = vmul.f32 %v1224, %v1096
      %v1353 = vmul.f32 %v1097, %v520
      %v1354 = vmul.f32 %v1098, %v521
      %v1355 = vmul.f32 %v1099, %v522
      %v1356 = vmul.f32 %v1100, %v523
      %v1357 = vmul.f32 %v1101, %v524
      %v1358 = vmul.f32 %v1102, %v525
      %v1359 = vmul.f32 %v1103, %v526
      %v1360 = vmul.f32 %v1104, %v527
      %v1361 = vmul.f32 %v1105, %v528
      %v1362 = vmul.f32 %v1106, %v529
      %v1363 = vmul.f32 %v1107, %v530
      %v1364 = vmul.f32 %v1108, %v531
      %v1365 = vmul.f32 %v1109, %v532
      %v1366 = vmul.f32 %v1110, %v533
      %v1367 = vmul.f32 %v1111, %v534
      %v1368 = vmul.f32 %v1112, %v535
      %v1369 = vmul.f32 %v1113, %v536
      %v1370 = vmul.f32 %v1114, %v537
      %v1371 = vmul.f32 %v1115, %v538
      %v1372 = vmul.f32 %v1116, %v539
      %v1373 = vmul.f32 %v1117, %v540
      %v1374 = vmul.f32 %v1118, %v541
      %v1375 = vmul.f32 %v1119, %v542
      %v1376 = vmul.f32 %v1120, %v543
      %v1377 = vmul.f32 %v1121, %v544
      %v1378 = vmul.f32 %v1122, %v545
      %v1379 = vmul.f32 %v1123, %v546
      %v1380 = vmul.f32 %v1124, %v547
      %v1381 = vmul.f32 %v1125, %v548
      %v1382 = vmul.f32 %v1126, %v549
      %v1383 = vmul.f32 %v1127, %v550
      %v1384 = vmul.f32 %v1128, %v551
      %v1385 = vmul.f32 %v1129, %v552
      %v1386 = vmul.f32 %v1130, %v553
      %v1387 = vmul.f32 %v1131, %v554
      %v1388 = vmul.f32 %v1132, %v555
      %v1389 = vmul.f32 %v1133, %v556
      %v1390 = vmul.f32 %v1134, %v557
      %v1391 = vmul.f32 %v1135, %v558
      %v1392 = vmul.f32 %v1136, %v559
      %v1393 = vmul.f32 %v1137, %v560
      %v1394 = vmul.f32 %v1138, %v561
      %v1395 = vmul.f32 %v1139, %v562
      %v1396 = vmul.f32 %v1140, %v563
      %v1397 = vmul.f32 %v1141, %v564
      %v1398 = vmul.f32 %v1142, %v565
      %v1399 = vmul.f32 %v1143, %v566
      %v1400 = vmul.f32 %v1144, %v567
      %v1401 = vmul.f32 %v1145, %v568
      %v1402 = vmul.f32 %v1146, %v569
      %v1403 = vmul.f32 %v1147, %v570
      %v1404 = vmul.f32 %v1148, %v571
      %v1405 = vmul.f32 %v1149, %v572
      %v1406 = vmul.f32 %v1150, %v573
      %v1407 = vmul.f32 %v1151, %v574
      %v1408 = vmul.f32 %v1152, %v575
      %v1409 = vmul.f32 %v1153, %v576
      %v1410 = vmul.f32 %v1154, %v577
      %v1411 = vmul.f32 %v1155, %v578
      %v1412 = vmul.f32 %v1156, %v579
      %v1413 = vmul.f32 %v1157, %v580
      %v1414 = vmul.f32 %v1158, %v581
      %v1415 = vmul.f32 %v1159, %v582
      %v1416 = vmul.f32 %v1160, %v583
      %1417 = vrot.lane.b32.xlu0 %v520, 126
      %v1418 = vpop.permute.xlu0 %1417
      %1419 = vrot.lane.b32.xlu0 %v521, 126
      %v1420 = vpop.permute.xlu0 %1419
      %1421 = vrot.lane.b32.xlu0 %v522, 126
      %v1422 = vpop.permute.xlu0 %1421
      %1423 = vrot.lane.b32.xlu0 %v523, 126
      %v1424 = vpop.permute.xlu0 %1423
      %1425 = vrot.lane.b32.xlu0 %v524, 126
      %v1426 = vpop.permute.xlu0 %1425
      %1427 = vrot.lane.b32.xlu0 %v525, 126
      %v1428 = vpop.permute.xlu0 %1427
      %1429 = vrot.lane.b32.xlu0 %v526, 126
      %v1430 = vpop.permute.xlu0 %1429
      %1431 = vrot.lane.b32.xlu0 %v527, 126
      %v1432 = vpop.permute.xlu0 %1431
      %1433 = vrot.lane.b32.xlu0 %v528, 126
      %v1434 = vpop.permute.xlu0 %1433
      %1435 = vrot.lane.b32.xlu0 %v529, 126
      %v1436 = vpop.permute.xlu0 %1435
      %1437 = vrot.lane.b32.xlu0 %v530, 126
      %v1438 = vpop.permute.xlu0 %1437
      %1439 = vrot.lane.b32.xlu0 %v531, 126
      %v1440 = vpop.permute.xlu0 %1439
      %1441 = vrot.lane.b32.xlu0 %v532, 126
      %v1442 = vpop.permute.xlu0 %1441
      %1443 = vrot.lane.b32.xlu0 %v533, 126
      %v1444 = vpop.permute.xlu0 %1443
      %1445 = vrot.lane.b32.xlu0 %v534, 126
      %v1446 = vpop.permute.xlu0 %1445
      %1447 = vrot.lane.b32.xlu0 %v535, 126
      %v1448 = vpop.permute.xlu0 %1447
      %1449 = vrot.lane.b32.xlu0 %v536, 126
      %v1450 = vpop.permute.xlu0 %1449
      %1451 = vrot.lane.b32.xlu0 %v537, 126
      %v1452 = vpop.permute.xlu0 %1451
      %1453 = vrot.lane.b32.xlu0 %v538, 126
      %v1454 = vpop.permute.xlu0 %1453
      %1455 = vrot.lane.b32.xlu0 %v539, 126
      %v1456 = vpop.permute.xlu0 %1455
      %1457 = vrot.lane.b32.xlu0 %v540, 126
      %v1458 = vpop.permute.xlu0 %1457
      %1459 = vrot.lane.b32.xlu0 %v541, 126
      %v1460 = vpop.permute.xlu0 %1459
      %1461 = vrot.lane.b32.xlu0 %v542, 126
      %v1462 = vpop.permute.xlu0 %1461
      %1463 = vrot.lane.b32.xlu0 %v543, 126
      %v1464 = vpop.permute.xlu0 %1463
      %1465 = vrot.lane.b32.xlu0 %v544, 126
      %v1466 = vpop.permute.xlu0 %1465
      %1467 = vrot.lane.b32.xlu0 %v545, 126
      %v1468 = vpop.permute.xlu0 %1467
      %1469 = vrot.lane.b32.xlu0 %v546, 126
      %v1470 = vpop.permute.xlu0 %1469
      %1471 = vrot.lane.b32.xlu0 %v547, 126
      %v1472 = vpop.permute.xlu0 %1471
      %1473 = vrot.lane.b32.xlu0 %v548, 126
      %v1474 = vpop.permute.xlu0 %1473
      %1475 = vrot.lane.b32.xlu0 %v549, 126
      %v1476 = vpop.permute.xlu0 %1475
      %1477 = vrot.lane.b32.xlu0 %v550, 126
      %v1478 = vpop.permute.xlu0 %1477
      %1479 = vrot.lane.b32.xlu0 %v551, 126
      %v1480 = vpop.permute.xlu0 %1479
      %1481 = vrot.lane.b32.xlu0 %v552, 126
      %v1482 = vpop.permute.xlu0 %1481
      %1483 = vrot.lane.b32.xlu0 %v553, 126
      %v1484 = vpop.permute.xlu0 %1483
      %1485 = vrot.lane.b32.xlu0 %v554, 126
      %v1486 = vpop.permute.xlu0 %1485
      %1487 = vrot.lane.b32.xlu0 %v555, 126
      %v1488 = vpop.permute.xlu0 %1487
      %1489 = vrot.lane.b32.xlu0 %v556, 126
      %v1490 = vpop.permute.xlu0 %1489
      %1491 = vrot.lane.b32.xlu0 %v557, 126
      %v1492 = vpop.permute.xlu0 %1491
      %1493 = vrot.lane.b32.xlu0 %v558, 126
      %v1494 = vpop.permute.xlu0 %1493
      %1495 = vrot.lane.b32.xlu0 %v559, 126
      %v1496 = vpop.permute.xlu0 %1495
      %1497 = vrot.lane.b32.xlu0 %v560, 126
      %v1498 = vpop.permute.xlu0 %1497
      %1499 = vrot.lane.b32.xlu0 %v561, 126
      %v1500 = vpop.permute.xlu0 %1499
      %1501 = vrot.lane.b32.xlu0 %v562, 126
      %v1502 = vpop.permute.xlu0 %1501
      %1503 = vrot.lane.b32.xlu0 %v563, 126
      %v1504 = vpop.permute.xlu0 %1503
      %1505 = vrot.lane.b32.xlu0 %v564, 126
      %v1506 = vpop.permute.xlu0 %1505
      %1507 = vrot.lane.b32.xlu0 %v565, 126
      %v1508 = vpop.permute.xlu0 %1507
      %1509 = vrot.lane.b32.xlu0 %v566, 126
      %v1510 = vpop.permute.xlu0 %1509
      %1511 = vrot.lane.b32.xlu0 %v567, 126
      %v1512 = vpop.permute.xlu0 %1511
      %1513 = vrot.lane.b32.xlu0 %v568, 126
      %v1514 = vpop.permute.xlu0 %1513
      %1515 = vrot.lane.b32.xlu0 %v569, 126
      %v1516 = vpop.permute.xlu0 %1515
      %1517 = vrot.lane.b32.xlu0 %v570, 126
      %v1518 = vpop.permute.xlu0 %1517
      %1519 = vrot.lane.b32.xlu0 %v571, 126
      %v1520 = vpop.permute.xlu0 %1519
      %1521 = vrot.lane.b32.xlu0 %v572, 126
      %v1522 = vpop.permute.xlu0 %1521
      %1523 = vrot.lane.b32.xlu0 %v573, 126
      %v1524 = vpop.permute.xlu0 %1523
      %1525 = vrot.lane.b32.xlu0 %v574, 126
      %v1526 = vpop.permute.xlu0 %1525
      %1527 = vrot.lane.b32.xlu0 %v575, 126
      %v1528 = vpop.permute.xlu0 %1527
      %1529 = vrot.lane.b32.xlu0 %v576, 126
      %v1530 = vpop.permute.xlu0 %1529
      %1531 = vrot.lane.b32.xlu0 %v577, 126
      %v1532 = vpop.permute.xlu0 %1531
      %1533 = vrot.lane.b32.xlu0 %v578, 126
      %v1534 = vpop.permute.xlu0 %1533
      %1535 = vrot.lane.b32.xlu0 %v579, 126
      %v1536 = vpop.permute.xlu0 %1535
      %1537 = vrot.lane.b32.xlu0 %v580, 126
      %v1538 = vpop.permute.xlu0 %1537
      %1539 = vrot.lane.b32.xlu0 %v581, 126
      %v1540 = vpop.permute.xlu0 %1539
      %1541 = vrot.lane.b32.xlu0 %v582, 126
      %v1542 = vpop.permute.xlu0 %1541
      %1543 = vrot.lane.b32.xlu0 %v583, 126
      %v1544 = vpop.permute.xlu0 %1543
      %v1609 = vmul.f32 %v1161, %v1418
      %v1610 = vmul.f32 %v1162, %v1420
      %v1611 = vmul.f32 %v1163, %v1422
      %v1612 = vmul.f32 %v1164, %v1424
      %v1613 = vmul.f32 %v1165, %v1426
      %v1614 = vmul.f32 %v1166, %v1428
      %v1615 = vmul.f32 %v1167, %v1430
      %v1616 = vmul.f32 %v1168, %v1432
      %v1617 = vmul.f32 %v1169, %v1434
      %v1618 = vmul.f32 %v1170, %v1436
      %v1619 = vmul.f32 %v1171, %v1438
      %v1620 = vmul.f32 %v1172, %v1440
      %v1621 = vmul.f32 %v1173, %v1442
      %v1622 = vmul.f32 %v1174, %v1444
      %v1623 = vmul.f32 %v1175, %v1446
      %v1624 = vmul.f32 %v1176, %v1448
      %v1625 = vmul.f32 %v1177, %v1450
      %v1626 = vmul.f32 %v1178, %v1452
      %v1627 = vmul.f32 %v1179, %v1454
      %v1628 = vmul.f32 %v1180, %v1456
      %v1629 = vmul.f32 %v1181, %v1458
      %v1630 = vmul.f32 %v1182, %v1460
      %v1631 = vmul.f32 %v1183, %v1462
      %v1632 = vmul.f32 %v1184, %v1464
      %v1633 = vmul.f32 %v1185, %v1466
      %v1634 = vmul.f32 %v1186, %v1468
      %v1635 = vmul.f32 %v1187, %v1470
      %v1636 = vmul.f32 %v1188, %v1472
      %v1637 = vmul.f32 %v1189, %v1474
      %v1638 = vmul.f32 %v1190, %v1476
      %v1639 = vmul.f32 %v1191, %v1478
      %v1640 = vmul.f32 %v1192, %v1480
      %v1641 = vmul.f32 %v1193, %v1482
      %v1642 = vmul.f32 %v1194, %v1484
      %v1643 = vmul.f32 %v1195, %v1486
      %v1644 = vmul.f32 %v1196, %v1488
      %v1645 = vmul.f32 %v1197, %v1490
      %v1646 = vmul.f32 %v1198, %v1492
      %v1647 = vmul.f32 %v1199, %v1494
      %v1648 = vmul.f32 %v1200, %v1496
      %v1649 = vmul.f32 %v1201, %v1498
      %v1650 = vmul.f32 %v1202, %v1500
      %v1651 = vmul.f32 %v1203, %v1502
      %v1652 = vmul.f32 %v1204, %v1504
      %v1653 = vmul.f32 %v1205, %v1506
      %v1654 = vmul.f32 %v1206, %v1508
      %v1655 = vmul.f32 %v1207, %v1510
      %v1656 = vmul.f32 %v1208, %v1512
      %v1657 = vmul.f32 %v1209, %v1514
      %v1658 = vmul.f32 %v1210, %v1516
      %v1659 = vmul.f32 %v1211, %v1518
      %v1660 = vmul.f32 %v1212, %v1520
      %v1661 = vmul.f32 %v1213, %v1522
      %v1662 = vmul.f32 %v1214, %v1524
      %v1663 = vmul.f32 %v1215, %v1526
      %v1664 = vmul.f32 %v1216, %v1528
      %v1665 = vmul.f32 %v1217, %v1530
      %v1666 = vmul.f32 %v1218, %v1532
      %v1667 = vmul.f32 %v1219, %v1534
      %v1668 = vmul.f32 %v1220, %v1536
      %v1669 = vmul.f32 %v1221, %v1538
      %v1670 = vmul.f32 %v1222, %v1540
      %v1671 = vmul.f32 %v1223, %v1542
      %v1672 = vmul.f32 %v1224, %v1544
      %v1673 = vld [vmem:[%s2] sm:$0x7]
      %s1674 = scalar_lea.vmem %s2, 4
      %v1675 = vld [vmem:[%s1674] sm:$0x7]
      %vm1676 = vcmask 23552
      %v1678 = vsel %vm1676, %v1097, 0
      %v1681 = vsel %vm1676, %v1098, 0
      %v1684 = vsel %vm1676, %v1099, 0
      %v1687 = vsel %vm1676, %v1100, 0
      %v1690 = vsel %vm1676, %v1101, 0
      %v1693 = vsel %vm1676, %v1102, 0
      %v1696 = vsel %vm1676, %v1103, 0
      %v1699 = vsel %vm1676, %v1104, 0
      %v1702 = vsel %vm1676, %v1105, 0
      %v1705 = vsel %vm1676, %v1106, 0
      %v1708 = vsel %vm1676, %v1107, 0
      %v1711 = vsel %vm1676, %v1108, 0
      %v1714 = vsel %vm1676, %v1109, 0
      %v1717 = vsel %vm1676, %v1110, 0
      %v1720 = vsel %vm1676, %v1111, 0
      %v1723 = vsel %vm1676, %v1112, 0
      %v1726 = vsel %vm1676, %v1113, 0
      %v1729 = vsel %vm1676, %v1114, 0
      %v1732 = vsel %vm1676, %v1115, 0
      %v1735 = vsel %vm1676, %v1116, 0
      %v1738 = vsel %vm1676, %v1117, 0
      %v1741 = vsel %vm1676, %v1118, 0
      %v1744 = vsel %vm1676, %v1119, 0
      %v1747 = vsel %vm1676, %v1120, 0
      %v1750 = vsel %vm1676, %v1121, 0
      %v1753 = vsel %vm1676, %v1122, 0
      %v1756 = vsel %vm1676, %v1123, 0
      %v1759 = vsel %vm1676, %v1124, 0
      %v1762 = vsel %vm1676, %v1125, 0
      %v1765 = vsel %vm1676, %v1126, 0
      %v1768 = vsel %vm1676, %v1127, 0
      %v1771 = vsel %vm1676, %v1128, 0
      %v1774 = vsel %vm1676, %v1129, 0
      %v1777 = vsel %vm1676, %v1130, 0
      %v1780 = vsel %vm1676, %v1131, 0
      %v1783 = vsel %vm1676, %v1132, 0
      %v1786 = vsel %vm1676, %v1133, 0
      %v1789 = vsel %vm1676, %v1134, 0
      %v1792 = vsel %vm1676, %v1135, 0
      %v1795 = vsel %vm1676, %v1136, 0
      %v1798 = vsel %vm1676, %v1137, 0
      %v1801 = vsel %vm1676, %v1138, 0
      %v1804 = vsel %vm1676, %v1139, 0
      %v1807 = vsel %vm1676, %v1140, 0
      %v1810 = vsel %vm1676, %v1141, 0
      %v1813 = vsel %vm1676, %v1142, 0
      %v1816 = vsel %vm1676, %v1143, 0
      %v1819 = vsel %vm1676, %v1144, 0
      %v1822 = vsel %vm1676, %v1145, 0
      %v1825 = vsel %vm1676, %v1146, 0
      %v1828 = vsel %vm1676, %v1147, 0
      %v1831 = vsel %vm1676, %v1148, 0
      %v1834 = vsel %vm1676, %v1149, 0
      %v1837 = vsel %vm1676, %v1150, 0
      %v1840 = vsel %vm1676, %v1151, 0
      %v1843 = vsel %vm1676, %v1152, 0
      %v1846 = vsel %vm1676, %v1153, 0
      %v1849 = vsel %vm1676, %v1154, 0
      %v1852 = vsel %vm1676, %v1155, 0
      %v1855 = vsel %vm1676, %v1156, 0
      %v1858 = vsel %vm1676, %v1157, 0
      %v1861 = vsel %vm1676, %v1158, 0
      %v1864 = vsel %vm1676, %v1159, 0
      %v1867 = vsel %vm1676, %v1160, 0
      %vm1869 = vcmask 1042432
      %v1871 = vsel %vm1869, %v1675, 0
      %1873 = vmatprep.subr.mxu0 0.0
      %1874 = vmatpush1.msra.mxu0 0.0
      %1875 = vmatprep.subr.mxu0 0.0
      %1876 = vmatpush1.msra.mxu0 0.0
      %1877 = vmatprep.subr.mxu0 0.0
      %1878 = vmatpush1.msra.mxu0 0.0
      %1879 = vmatprep.subr.mxu0 0.0
      %1880 = vmatpush1.msra.mxu0 0.0
      %1881 = vmatprep.subr.mxu0 0.0
      %1882 = vmatpush1.msra.mxu0 0.0
      %1883 = vmatprep.subr.mxu0 0.0
      %1884 = vmatpush1.msra.mxu0 0.0
      %1885 = vmatprep.subr.mxu0 0.0
      %1886 = vmatpush1.msra.mxu0 0.0
      %1887 = vmatprep.subr.mxu0 0.0
      %1888 = vmatpush1.msra.mxu0 0.0
      %1889 = vmatprep.subr.mxu0 0.0
      %1890 = vmatpush1.msra.mxu0 0.0
      %1891 = vmatprep.subr.mxu0 0.0
      %1892 = vmatpush1.msra.mxu0 0.0
      %1893 = vmatprep.subr.mxu0 0.0
      %1894 = vmatpush1.msra.mxu0 0.0
      %1895 = vmatprep.subr.mxu0 0.0
      %1896 = vmatpush1.msra.mxu0 0.0
      %1897 = vmatprep.subr.mxu0 0.0
      %1898 = vmatpush1.msra.mxu0 0.0
      %1899 = vmatprep.subr.mxu0 0.0
      %1900 = vmatpush1.msra.mxu0 0.0
      %1901 = vmatprep.subr.mxu0 0.0
      %1902 = vmatpush1.msra.mxu0 0.0
      %1903 = vmatprep.subr.mxu0 0.0
      %1904 = vmatpush1.msra.mxu0 %v1871
      %1905 = vmatprep.subr.mxu0 0.0
      %1906 = vmatpush2.msra.mxu0 0.0
      %1907 = vmatprep.subr.mxu0 0.0
      %1908 = vmatpush2.msra.mxu0 0.0
      %1909 = vmatprep.subr.mxu0 0.0
      %1910 = vmatpush2.msra.mxu0 0.0
      %1911 = vmatprep.subr.mxu0 0.0
      %1912 = vmatpush2.msra.mxu0 0.0
      %1913 = vmatprep.subr.mxu0 0.0
      %1914 = vmatpush2.msra.mxu0 0.0
      %1915 = vmatprep.subr.mxu0 0.0
      %1916 = vmatpush2.msra.mxu0 0.0
      %1917 = vmatprep.subr.mxu0 0.0
      %1918 = vmatpush2.msra.mxu0 0.0
      %1919 = vmatprep.subr.mxu0 0.0
      %1920 = vmatpush2.msra.mxu0 0.0
      %1921 = vmatprep.subr.mxu0 0.0
      %1922 = vmatpush2.msra.mxu0 0.0
      %1923 = vmatprep.subr.mxu0 0.0
      %1924 = vmatpush2.msra.mxu0 0.0
      %1925 = vmatprep.subr.mxu0 0.0
      %1926 = vmatpush2.msra.mxu0 0.0
      %1927 = vmatprep.subr.mxu0 0.0
      %1928 = vmatpush2.msra.mxu0 0.0
      %1929 = vmatprep.subr.mxu0 0.0
      %1930 = vmatpush2.msra.mxu0 0.0
      %1931 = vmatprep.subr.mxu0 0.0
      %1932 = vmatpush2.msra.mxu0 0.0
      %1933 = vmatprep.subr.mxu0 0.0
      %1934 = vmatpush2.msra.mxu0 0.0
      %1935 = vmatprep.subr.mxu0 0.0
      %1936 = vmatpush2.msra.mxu0 0.0
      %1937 = vmatprep.mubr.f32.mxu0 0.0
      %1938 = vmatmul.mubr.f32.gmra.mxu0 %v1678
      %v1939 = vpop.f32.mrf.mxu0
      %v1940 = vadd.f32 0.0, %v1939
      %v1941 = vpop.f32.mrf.mxu0
      %1942 = vmatprep.mubr.f32.mxu0 0.0
      %1943 = vmatmul.mubr.f32.gmra.mxu0 %v1681
      %v1944 = vpop.f32.mrf.mxu0
      %v1945 = vadd.f32 0.0, %v1944
      %v1946 = vpop.f32.mrf.mxu0
      %1947 = vmatprep.mubr.f32.mxu0 0.0
      %1948 = vmatmul.mubr.f32.gmra.mxu0 %v1684
      %v1949 = vpop.f32.mrf.mxu0
      %v1950 = vadd.f32 0.0, %v1949
      %v1951 = vpop.f32.mrf.mxu0
      %1952 = vmatprep.mubr.f32.mxu0 0.0
      %1953 = vmatmul.mubr.f32.gmra.mxu0 %v1687
      %v1954 = vpop.f32.mrf.mxu0
      %v1955 = vadd.f32 0.0, %v1954
      %v1956 = vpop.f32.mrf.mxu0
      %1957 = vmatprep.mubr.f32.mxu0 0.0
      %1958 = vmatmul.mubr.f32.gmra.mxu0 %v1690
      %v1959 = vpop.f32.mrf.mxu0
      %v1960 = vadd.f32 0.0, %v1959
      %v1961 = vpop.f32.mrf.mxu0
      %1962 = vmatprep.mubr.f32.mxu0 0.0
      %1963 = vmatmul.mubr.f32.gmra.mxu0 %v1693
      %v1964 = vpop.f32.mrf.mxu0
      %v1965 = vadd.f32 0.0, %v1964
      %v1966 = vpop.f32.mrf.mxu0
      %1967 = vmatprep.mubr.f32.mxu0 0.0
      %1968 = vmatmul.mubr.f32.gmra.mxu0 %v1696
      %v1969 = vpop.f32.mrf.mxu0
      %v1970 = vadd.f32 0.0, %v1969
      %v1971 = vpop.f32.mrf.mxu0
      %1972 = vmatprep.mubr.f32.mxu0 0.0
      %1973 = vmatmul.mubr.f32.gmra.mxu0 %v1699
      %v1974 = vpop.f32.mrf.mxu0
      %v1975 = vadd.f32 0.0, %v1974
      %v1976 = vpop.f32.mrf.mxu0
      %1977 = vmatprep.mubr.f32.mxu0 0.0
      %1978 = vmatmul.mubr.f32.gmra.mxu0 %v1702
      %v1979 = vpop.f32.mrf.mxu0
      %v1980 = vadd.f32 0.0, %v1979
      %v1981 = vpop.f32.mrf.mxu0
      %1982 = vmatprep.mubr.f32.mxu0 0.0
      %1983 = vmatmul.mubr.f32.gmra.mxu0 %v1705
      %v1984 = vpop.f32.mrf.mxu0
      %v1985 = vadd.f32 0.0, %v1984
      %v1986 = vpop.f32.mrf.mxu0
      %1987 = vmatprep.mubr.f32.mxu0 0.0
      %1988 = vmatmul.mubr.f32.gmra.mxu0 %v1708
      %v1989 = vpop.f32.mrf.mxu0
      %v1990 = vadd.f32 0.0, %v1989
      %v1991 = vpop.f32.mrf.mxu0
      %1992 = vmatprep.mubr.f32.mxu0 0.0
      %1993 = vmatmul.mubr.f32.gmra.mxu0 %v1711
      %v1994 = vpop.f32.mrf.mxu0
      %v1995 = vadd.f32 0.0, %v1994
      %v1996 = vpop.f32.mrf.mxu0
      %1997 = vmatprep.mubr.f32.mxu0 0.0
      %1998 = vmatmul.mubr.f32.gmra.mxu0 %v1714
      %v1999 = vpop.f32.mrf.mxu0
      %v2000 = vadd.f32 0.0, %v1999
      %v2001 = vpop.f32.mrf.mxu0
      %2002 = vmatprep.mubr.f32.mxu0 0.0
      %2003 = vmatmul.mubr.f32.gmra.mxu0 %v1717
      %v2004 = vpop.f32.mrf.mxu0
      %v2005 = vadd.f32 0.0, %v2004
      %v2006 = vpop.f32.mrf.mxu0
      %2007 = vmatprep.mubr.f32.mxu0 0.0
      %2008 = vmatmul.mubr.f32.gmra.mxu0 %v1720
      %v2009 = vpop.f32.mrf.mxu0
      %v2010 = vadd.f32 0.0, %v2009
      %v2011 = vpop.f32.mrf.mxu0
      %2012 = vmatprep.mubr.f32.mxu0 0.0
      %2013 = vmatmul.mubr.f32.gmra.mxu0 %v1723
      %v2014 = vpop.f32.mrf.mxu0
      %v2015 = vadd.f32 0.0, %v2014
      %v2016 = vpop.f32.mrf.mxu0
      %2017 = vmatprep.mubr.f32.mxu0 0.0
      %2018 = vmatmul.mubr.f32.gmra.mxu0 %v1726
      %v2019 = vpop.f32.mrf.mxu0
      %v2020 = vadd.f32 0.0, %v2019
      %v2021 = vpop.f32.mrf.mxu0
      %2022 = vmatprep.mubr.f32.mxu0 0.0
      %2023 = vmatmul.mubr.f32.gmra.mxu0 %v1729
      %v2024 = vpop.f32.mrf.mxu0
      %v2025 = vadd.f32 0.0, %v2024
      %v2026 = vpop.f32.mrf.mxu0
      %2027 = vmatprep.mubr.f32.mxu0 0.0
      %2028 = vmatmul.mubr.f32.gmra.mxu0 %v1732
      %v2029 = vpop.f32.mrf.mxu0
      %v2030 = vadd.f32 0.0, %v2029
      %v2031 = vpop.f32.mrf.mxu0
      %2032 = vmatprep.mubr.f32.mxu0 0.0
      %2033 = vmatmul.mubr.f32.gmra.mxu0 %v1735
      %v2034 = vpop.f32.mrf.mxu0
      %v2035 = vadd.f32 0.0, %v2034
      %v2036 = vpop.f32.mrf.mxu0
      %2037 = vmatprep.mubr.f32.mxu0 0.0
      %2038 = vmatmul.mubr.f32.gmra.mxu0 %v1738
      %v2039 = vpop.f32.mrf.mxu0
      %v2040 = vadd.f32 0.0, %v2039
      %v2041 = vpop.f32.mrf.mxu0
      %2042 = vmatprep.mubr.f32.mxu0 0.0
      %2043 = vmatmul.mubr.f32.gmra.mxu0 %v1741
      %v2044 = vpop.f32.mrf.mxu0
      %v2045 = vadd.f32 0.0, %v2044
      %v2046 = vpop.f32.mrf.mxu0
      %2047 = vmatprep.mubr.f32.mxu0 0.0
      %2048 = vmatmul.mubr.f32.gmra.mxu0 %v1744
      %v2049 = vpop.f32.mrf.mxu0
      %v2050 = vadd.f32 0.0, %v2049
      %v2051 = vpop.f32.mrf.mxu0
      %2052 = vmatprep.mubr.f32.mxu0 0.0
      %2053 = vmatmul.mubr.f32.gmra.mxu0 %v1747
      %v2054 = vpop.f32.mrf.mxu0
      %v2055 = vadd.f32 0.0, %v2054
      %v2056 = vpop.f32.mrf.mxu0
      %2057 = vmatprep.mubr.f32.mxu0 0.0
      %2058 = vmatmul.mubr.f32.gmra.mxu0 %v1750
      %v2059 = vpop.f32.mrf.mxu0
      %v2060 = vadd.f32 0.0, %v2059
      %v2061 = vpop.f32.mrf.mxu0
      %2062 = vmatprep.mubr.f32.mxu0 0.0
      %2063 = vmatmul.mubr.f32.gmra.mxu0 %v1753
      %v2064 = vpop.f32.mrf.mxu0
      %v2065 = vadd.f32 0.0, %v2064
      %v2066 = vpop.f32.mrf.mxu0
      %2067 = vmatprep.mubr.f32.mxu0 0.0
      %2068 = vmatmul.mubr.f32.gmra.mxu0 %v1756
      %v2069 = vpop.f32.mrf.mxu0
      %v2070 = vadd.f32 0.0, %v2069
      %v2071 = vpop.f32.mrf.mxu0
      %2072 = vmatprep.mubr.f32.mxu0 0.0
      %2073 = vmatmul.mubr.f32.gmra.mxu0 %v1759
      %v2074 = vpop.f32.mrf.mxu0
      %v2075 = vadd.f32 0.0, %v2074
      %v2076 = vpop.f32.mrf.mxu0
      %2077 = vmatprep.mubr.f32.mxu0 0.0
      %2078 = vmatmul.mubr.f32.gmra.mxu0 %v1762
      %v2079 = vpop.f32.mrf.mxu0
      %v2080 = vadd.f32 0.0, %v2079
      %v2081 = vpop.f32.mrf.mxu0
      %2082 = vmatprep.mubr.f32.mxu0 0.0
      %2083 = vmatmul.mubr.f32.gmra.mxu0 %v1765
      %v2084 = vpop.f32.mrf.mxu0
      %v2085 = vadd.f32 0.0, %v2084
      %v2086 = vpop.f32.mrf.mxu0
      %2087 = vmatprep.mubr.f32.mxu0 0.0
      %2088 = vmatmul.mubr.f32.gmra.mxu0 %v1768
      %v2089 = vpop.f32.mrf.mxu0
      %v2090 = vadd.f32 0.0, %v2089
      %v2091 = vpop.f32.mrf.mxu0
      %2092 = vmatprep.mubr.f32.mxu0 0.0
      %2093 = vmatmul.mubr.f32.gmra.mxu0 %v1771
      %v2094 = vpop.f32.mrf.mxu0
      %v2095 = vadd.f32 0.0, %v2094
      %v2096 = vpop.f32.mrf.mxu0
      %2097 = vmatprep.mubr.f32.mxu0 0.0
      %2098 = vmatmul.mubr.f32.gmra.mxu0 %v1774
      %v2099 = vpop.f32.mrf.mxu0
      %v2100 = vadd.f32 0.0, %v2099
      %v2101 = vpop.f32.mrf.mxu0
      %2102 = vmatprep.mubr.f32.mxu0 0.0
      %2103 = vmatmul.mubr.f32.gmra.mxu0 %v1777
      %v2104 = vpop.f32.mrf.mxu0
      %v2105 = vadd.f32 0.0, %v2104
      %v2106 = vpop.f32.mrf.mxu0
      %2107 = vmatprep.mubr.f32.mxu0 0.0
      %2108 = vmatmul.mubr.f32.gmra.mxu0 %v1780
      %v2109 = vpop.f32.mrf.mxu0
      %v2110 = vadd.f32 0.0, %v2109
      %v2111 = vpop.f32.mrf.mxu0
      %2112 = vmatprep.mubr.f32.mxu0 0.0
      %2113 = vmatmul.mubr.f32.gmra.mxu0 %v1783
      %v2114 = vpop.f32.mrf.mxu0
      %v2115 = vadd.f32 0.0, %v2114
      %v2116 = vpop.f32.mrf.mxu0
      %2117 = vmatprep.mubr.f32.mxu0 0.0
      %2118 = vmatmul.mubr.f32.gmra.mxu0 %v1786
      %v2119 = vpop.f32.mrf.mxu0
      %v2120 = vadd.f32 0.0, %v2119
      %v2121 = vpop.f32.mrf.mxu0
      %2122 = vmatprep.mubr.f32.mxu0 0.0
      %2123 = vmatmul.mubr.f32.gmra.mxu0 %v1789
      %v2124 = vpop.f32.mrf.mxu0
      %v2125 = vadd.f32 0.0, %v2124
      %v2126 = vpop.f32.mrf.mxu0
      %2127 = vmatprep.mubr.f32.mxu0 0.0
      %2128 = vmatmul.mubr.f32.gmra.mxu0 %v1792
      %v2129 = vpop.f32.mrf.mxu0
      %v2130 = vadd.f32 0.0, %v2129
      %v2131 = vpop.f32.mrf.mxu0
      %2132 = vmatprep.mubr.f32.mxu0 0.0
      %2133 = vmatmul.mubr.f32.gmra.mxu0 %v1795
      %v2134 = vpop.f32.mrf.mxu0
      %v2135 = vadd.f32 0.0, %v2134
      %v2136 = vpop.f32.mrf.mxu0
      %2137 = vmatprep.mubr.f32.mxu0 0.0
      %2138 = vmatmul.mubr.f32.gmra.mxu0 %v1798
      %v2139 = vpop.f32.mrf.mxu0
      %v2140 = vadd.f32 0.0, %v2139
      %v2141 = vpop.f32.mrf.mxu0
      %2142 = vmatprep.mubr.f32.mxu0 0.0
      %2143 = vmatmul.mubr.f32.gmra.mxu0 %v1801
      %v2144 = vpop.f32.mrf.mxu0
      %v2145 = vadd.f32 0.0, %v2144
      %v2146 = vpop.f32.mrf.mxu0
      %2147 = vmatprep.mubr.f32.mxu0 0.0
      %2148 = vmatmul.mubr.f32.gmra.mxu0 %v1804
      %v2149 = vpop.f32.mrf.mxu0
      %v2150 = vadd.f32 0.0, %v2149
      %v2151 = vpop.f32.mrf.mxu0
      %2152 = vmatprep.mubr.f32.mxu0 0.0
      %2153 = vmatmul.mubr.f32.gmra.mxu0 %v1807
      %v2154 = vpop.f32.mrf.mxu0
      %v2155 = vadd.f32 0.0, %v2154
      %v2156 = vpop.f32.mrf.mxu0
      %2157 = vmatprep.mubr.f32.mxu0 0.0
      %2158 = vmatmul.mubr.f32.gmra.mxu0 %v1810
      %v2159 = vpop.f32.mrf.mxu0
      %v2160 = vadd.f32 0.0, %v2159
      %v2161 = vpop.f32.mrf.mxu0
      %2162 = vmatprep.mubr.f32.mxu0 0.0
      %2163 = vmatmul.mubr.f32.gmra.mxu0 %v1813
      %v2164 = vpop.f32.mrf.mxu0
      %v2165 = vadd.f32 0.0, %v2164
      %v2166 = vpop.f32.mrf.mxu0
      %2167 = vmatprep.mubr.f32.mxu0 0.0
      %2168 = vmatmul.mubr.f32.gmra.mxu0 %v1816
      %v2169 = vpop.f32.mrf.mxu0
      %v2170 = vadd.f32 0.0, %v2169
      %v2171 = vpop.f32.mrf.mxu0
      %2172 = vmatprep.mubr.f32.mxu0 0.0
      %2173 = vmatmul.mubr.f32.gmra.mxu0 %v1819
      %v2174 = vpop.f32.mrf.mxu0
      %v2175 = vadd.f32 0.0, %v2174
      %v2176 = vpop.f32.mrf.mxu0
      %2177 = vmatprep.mubr.f32.mxu0 0.0
      %2178 = vmatmul.mubr.f32.gmra.mxu0 %v1822
      %v2179 = vpop.f32.mrf.mxu0
      %v2180 = vadd.f32 0.0, %v2179
      %v2181 = vpop.f32.mrf.mxu0
      %2182 = vmatprep.mubr.f32.mxu0 0.0
      %2183 = vmatmul.mubr.f32.gmra.mxu0 %v1825
      %v2184 = vpop.f32.mrf.mxu0
      %v2185 = vadd.f32 0.0, %v2184
      %v2186 = vpop.f32.mrf.mxu0
      %2187 = vmatprep.mubr.f32.mxu0 0.0
      %2188 = vmatmul.mubr.f32.gmra.mxu0 %v1828
      %v2189 = vpop.f32.mrf.mxu0
      %v2190 = vadd.f32 0.0, %v2189
      %v2191 = vpop.f32.mrf.mxu0
      %2192 = vmatprep.mubr.f32.mxu0 0.0
      %2193 = vmatmul.mubr.f32.gmra.mxu0 %v1831
      %v2194 = vpop.f32.mrf.mxu0
      %v2195 = vadd.f32 0.0, %v2194
      %v2196 = vpop.f32.mrf.mxu0
      %2197 = vmatprep.mubr.f32.mxu0 0.0
      %2198 = vmatmul.mubr.f32.gmra.mxu0 %v1834
      %v2199 = vpop.f32.mrf.mxu0
      %v2200 = vadd.f32 0.0, %v2199
      %v2201 = vpop.f32.mrf.mxu0
      %2202 = vmatprep.mubr.f32.mxu0 0.0
      %2203 = vmatmul.mubr.f32.gmra.mxu0 %v1837
      %v2204 = vpop.f32.mrf.mxu0
      %v2205 = vadd.f32 0.0, %v2204
      %v2206 = vpop.f32.mrf.mxu0
      %2207 = vmatprep.mubr.f32.mxu0 0.0
      %2208 = vmatmul.mubr.f32.gmra.mxu0 %v1840
      %v2209 = vpop.f32.mrf.mxu0
      %v2210 = vadd.f32 0.0, %v2209
      %v2211 = vpop.f32.mrf.mxu0
      %2212 = vmatprep.mubr.f32.mxu0 0.0
      %2213 = vmatmul.mubr.f32.gmra.mxu0 %v1843
      %v2214 = vpop.f32.mrf.mxu0
      %v2215 = vadd.f32 0.0, %v2214
      %v2216 = vpop.f32.mrf.mxu0
      %2217 = vmatprep.mubr.f32.mxu0 0.0
      %2218 = vmatmul.mubr.f32.gmra.mxu0 %v1846
      %v2219 = vpop.f32.mrf.mxu0
      %v2220 = vadd.f32 0.0, %v2219
      %v2221 = vpop.f32.mrf.mxu0
      %2222 = vmatprep.mubr.f32.mxu0 0.0
      %2223 = vmatmul.mubr.f32.gmra.mxu0 %v1849
      %v2224 = vpop.f32.mrf.mxu0
      %v2225 = vadd.f32 0.0, %v2224
      %v2226 = vpop.f32.mrf.mxu0
      %2227 = vmatprep.mubr.f32.mxu0 0.0
      %2228 = vmatmul.mubr.f32.gmra.mxu0 %v1852
      %v2229 = vpop.f32.mrf.mxu0
      %v2230 = vadd.f32 0.0, %v2229
      %v2231 = vpop.f32.mrf.mxu0
      %2232 = vmatprep.mubr.f32.mxu0 0.0
      %2233 = vmatmul.mubr.f32.gmra.mxu0 %v1855
      %v2234 = vpop.f32.mrf.mxu0
      %v2235 = vadd.f32 0.0, %v2234
      %v2236 = vpop.f32.mrf.mxu0
      %2237 = vmatprep.mubr.f32.mxu0 0.0
      %2238 = vmatmul.mubr.f32.gmra.mxu0 %v1858
      %v2239 = vpop.f32.mrf.mxu0
      %v2240 = vadd.f32 0.0, %v2239
      %v2241 = vpop.f32.mrf.mxu0
      %2242 = vmatprep.mubr.f32.mxu0 0.0
      %2243 = vmatmul.mubr.f32.gmra.mxu0 %v1861
      %v2244 = vpop.f32.mrf.mxu0
      %v2245 = vadd.f32 0.0, %v2244
      %v2246 = vpop.f32.mrf.mxu0
      %2247 = vmatprep.mubr.f32.mxu0 0.0
      %2248 = vmatmul.mubr.f32.gmra.mxu0 %v1864
      %v2249 = vpop.f32.mrf.mxu0
      %v2250 = vadd.f32 0.0, %v2249
      %v2251 = vpop.f32.mrf.mxu0
      %2252 = vmatprep.mubr.f32.mxu0 0.0
      %2253 = vmatmul.mubr.f32.gmra.mxu0 %v1867
      %v2254 = vpop.f32.mrf.mxu0
      %v2255 = vadd.f32 0.0, %v2254
      %v2256 = vpop.f32.mrf.mxu0
      %2257 = vdwg.mxu0
      %v2258 = vsel %vm1676, %v520, 0
      %v2260 = vsel %vm1676, %v521, 0
      %v2262 = vsel %vm1676, %v522, 0
      %v2264 = vsel %vm1676, %v523, 0
      %v2266 = vsel %vm1676, %v524, 0
      %v2268 = vsel %vm1676, %v525, 0
      %v2270 = vsel %vm1676, %v526, 0
      %v2272 = vsel %vm1676, %v527, 0
      %v2274 = vsel %vm1676, %v528, 0
      %v2276 = vsel %vm1676, %v529, 0
      %v2278 = vsel %vm1676, %v530, 0
      %v2280 = vsel %vm1676, %v531, 0
      %v2282 = vsel %vm1676, %v532, 0
      %v2284 = vsel %vm1676, %v533, 0
      %v2286 = vsel %vm1676, %v534, 0
      %v2288 = vsel %vm1676, %v535, 0
      %v2290 = vsel %vm1676, %v536, 0
      %v2292 = vsel %vm1676, %v537, 0
      %v2294 = vsel %vm1676, %v538, 0
      %v2296 = vsel %vm1676, %v539, 0
      %v2298 = vsel %vm1676, %v540, 0
      %v2300 = vsel %vm1676, %v541, 0
      %v2302 = vsel %vm1676, %v542, 0
      %v2304 = vsel %vm1676, %v543, 0
      %v2306 = vsel %vm1676, %v544, 0
      %v2308 = vsel %vm1676, %v545, 0
      %v2310 = vsel %vm1676, %v546, 0
      %v2312 = vsel %vm1676, %v547, 0
      %v2314 = vsel %vm1676, %v548, 0
      %v2316 = vsel %vm1676, %v549, 0
      %v2318 = vsel %vm1676, %v550, 0
      %v2320 = vsel %vm1676, %v551, 0
      %v2322 = vsel %vm1676, %v552, 0
      %v2324 = vsel %vm1676, %v553, 0
      %v2326 = vsel %vm1676, %v554, 0
      %v2328 = vsel %vm1676, %v555, 0
      %v2330 = vsel %vm1676, %v556, 0
      %v2332 = vsel %vm1676, %v557, 0
      %v2334 = vsel %vm1676, %v558, 0
      %v2336 = vsel %vm1676, %v559, 0
      %v2338 = vsel %vm1676, %v560, 0
      %v2340 = vsel %vm1676, %v561, 0
      %v2342 = vsel %vm1676, %v562, 0
      %v2344 = vsel %vm1676, %v563, 0
      %v2346 = vsel %vm1676, %v564, 0
      %v2348 = vsel %vm1676, %v565, 0
      %v2350 = vsel %vm1676, %v566, 0
      %v2352 = vsel %vm1676, %v567, 0
      %v2354 = vsel %vm1676, %v568, 0
      %v2356 = vsel %vm1676, %v569, 0
      %v2358 = vsel %vm1676, %v570, 0
      %v2360 = vsel %vm1676, %v571, 0
      %v2362 = vsel %vm1676, %v572, 0
      %v2364 = vsel %vm1676, %v573, 0
      %v2366 = vsel %vm1676, %v574, 0
      %v2368 = vsel %vm1676, %v575, 0
      %v2370 = vsel %vm1676, %v576, 0
      %v2372 = vsel %vm1676, %v577, 0
      %v2374 = vsel %vm1676, %v578, 0
      %v2376 = vsel %vm1676, %v579, 0
      %v2378 = vsel %vm1676, %v580, 0
      %v2380 = vsel %vm1676, %v581, 0
      %v2382 = vsel %vm1676, %v582, 0
      %v2384 = vsel %vm1676, %v583, 0
      %v2387 = vsel %vm1869, %v1673, 0
      %2389 = vmatprep.subr.mxu0 0.0
      %2390 = vmatpush1.msra.mxu0 0.0
      %2391 = vmatprep.subr.mxu0 0.0
      %2392 = vmatpush1.msra.mxu0 0.0
      %2393 = vmatprep.subr.mxu0 0.0
      %2394 = vmatpush1.msra.mxu0 0.0
      %2395 = vmatprep.subr.mxu0 0.0
      %2396 = vmatpush1.msra.mxu0 0.0
      %2397 = vmatprep.subr.mxu0 0.0
      %2398 = vmatpush1.msra.mxu0 0.0
      %2399 = vmatprep.subr.mxu0 0.0
      %2400 = vmatpush1.msra.mxu0 0.0
      %2401 = vmatprep.subr.mxu0 0.0
      %2402 = vmatpush1.msra.mxu0 0.0
      %2403 = vmatprep.subr.mxu0 0.0
      %2404 = vmatpush1.msra.mxu0 0.0
      %2405 = vmatprep.subr.mxu0 0.0
      %2406 = vmatpush1.msra.mxu0 0.0
      %2407 = vmatprep.subr.mxu0 0.0
      %2408 = vmatpush1.msra.mxu0 0.0
      %2409 = vmatprep.subr.mxu0 0.0
      %2410 = vmatpush1.msra.mxu0 0.0
      %2411 = vmatprep.subr.mxu0 0.0
      %2412 = vmatpush1.msra.mxu0 0.0
      %2413 = vmatprep.subr.mxu0 0.0
      %2414 = vmatpush1.msra.mxu0 0.0
      %2415 = vmatprep.subr.mxu0 0.0
      %2416 = vmatpush1.msra.mxu0 0.0
      %2417 = vmatprep.subr.mxu0 0.0
      %2418 = vmatpush1.msra.mxu0 0.0
      %2419 = vmatprep.subr.mxu0 0.0
      %2420 = vmatpush1.msra.mxu0 %v2387
      %2421 = vmatprep.subr.mxu0 0.0
      %2422 = vmatpush2.msra.mxu0 0.0
      %2423 = vmatprep.subr.mxu0 0.0
      %2424 = vmatpush2.msra.mxu0 0.0
      %2425 = vmatprep.subr.mxu0 0.0
      %2426 = vmatpush2.msra.mxu0 0.0
      %2427 = vmatprep.subr.mxu0 0.0
      %2428 = vmatpush2.msra.mxu0 0.0
      %2429 = vmatprep.subr.mxu0 0.0
      %2430 = vmatpush2.msra.mxu0 0.0
      %2431 = vmatprep.subr.mxu0 0.0
      %2432 = vmatpush2.msra.mxu0 0.0
      %2433 = vmatprep.subr.mxu0 0.0
      %2434 = vmatpush2.msra.mxu0 0.0
      %2435 = vmatprep.subr.mxu0 0.0
      %2436 = vmatpush2.msra.mxu0 0.0
      %2437 = vmatprep.subr.mxu0 0.0
      %2438 = vmatpush2.msra.mxu0 0.0
      %2439 = vmatprep.subr.mxu0 0.0
      %2440 = vmatpush2.msra.mxu0 0.0
      %2441 = vmatprep.subr.mxu0 0.0
      %2442 = vmatpush2.msra.mxu0 0.0
      %2443 = vmatprep.subr.mxu0 0.0
      %2444 = vmatpush2.msra.mxu0 0.0
      %2445 = vmatprep.subr.mxu0 0.0
      %2446 = vmatpush2.msra.mxu0 0.0
      %2447 = vmatprep.subr.mxu0 0.0
      %2448 = vmatpush2.msra.mxu0 0.0
      %2449 = vmatprep.subr.mxu0 0.0
      %2450 = vmatpush2.msra.mxu0 0.0
      %2451 = vmatprep.subr.mxu0 0.0
      %2452 = vmatpush2.msra.mxu0 0.0
      %2453 = vmatprep.mubr.f32.mxu0 0.0
      %2454 = vmatmul.mubr.f32.gmra.mxu0 %v2258
      %v2455 = vpop.f32.mrf.mxu0
      %v2456 = vadd.f32 %v1940, %v2455
      %v2457 = vpop.f32.mrf.mxu0
      %2458 = vmatprep.mubr.f32.mxu0 0.0
      %2459 = vmatmul.mubr.f32.gmra.mxu0 %v2260
      %v2460 = vpop.f32.mrf.mxu0
      %v2461 = vadd.f32 %v1945, %v2460
      %v2462 = vpop.f32.mrf.mxu0
      %2463 = vmatprep.mubr.f32.mxu0 0.0
      %2464 = vmatmul.mubr.f32.gmra.mxu0 %v2262
      %v2465 = vpop.f32.mrf.mxu0
      %v2466 = vadd.f32 %v1950, %v2465
      %v2467 = vpop.f32.mrf.mxu0
      %2468 = vmatprep.mubr.f32.mxu0 0.0
      %2469 = vmatmul.mubr.f32.gmra.mxu0 %v2264
      %v2470 = vpop.f32.mrf.mxu0
      %v2471 = vadd.f32 %v1955, %v2470
      %v2472 = vpop.f32.mrf.mxu0
      %2473 = vmatprep.mubr.f32.mxu0 0.0
      %2474 = vmatmul.mubr.f32.gmra.mxu0 %v2266
      %v2475 = vpop.f32.mrf.mxu0
      %v2476 = vadd.f32 %v1960, %v2475
      %v2477 = vpop.f32.mrf.mxu0
      %2478 = vmatprep.mubr.f32.mxu0 0.0
      %2479 = vmatmul.mubr.f32.gmra.mxu0 %v2268
      %v2480 = vpop.f32.mrf.mxu0
      %v2481 = vadd.f32 %v1965, %v2480
      %v2482 = vpop.f32.mrf.mxu0
      %2483 = vmatprep.mubr.f32.mxu0 0.0
      %2484 = vmatmul.mubr.f32.gmra.mxu0 %v2270
      %v2485 = vpop.f32.mrf.mxu0
      %v2486 = vadd.f32 %v1970, %v2485
      %v2487 = vpop.f32.mrf.mxu0
      %2488 = vmatprep.mubr.f32.mxu0 0.0
      %2489 = vmatmul.mubr.f32.gmra.mxu0 %v2272
      %v2490 = vpop.f32.mrf.mxu0
      %v2491 = vadd.f32 %v1975, %v2490
      %v2492 = vpop.f32.mrf.mxu0
      %2493 = vmatprep.mubr.f32.mxu0 0.0
      %2494 = vmatmul.mubr.f32.gmra.mxu0 %v2274
      %v2495 = vpop.f32.mrf.mxu0
      %v2496 = vadd.f32 %v1980, %v2495
      %v2497 = vpop.f32.mrf.mxu0
      %2498 = vmatprep.mubr.f32.mxu0 0.0
      %2499 = vmatmul.mubr.f32.gmra.mxu0 %v2276
      %v2500 = vpop.f32.mrf.mxu0
      %v2501 = vadd.f32 %v1985, %v2500
      %v2502 = vpop.f32.mrf.mxu0
      %2503 = vmatprep.mubr.f32.mxu0 0.0
      %2504 = vmatmul.mubr.f32.gmra.mxu0 %v2278
      %v2505 = vpop.f32.mrf.mxu0
      %v2506 = vadd.f32 %v1990, %v2505
      %v2507 = vpop.f32.mrf.mxu0
      %2508 = vmatprep.mubr.f32.mxu0 0.0
      %2509 = vmatmul.mubr.f32.gmra.mxu0 %v2280
      %v2510 = vpop.f32.mrf.mxu0
      %v2511 = vadd.f32 %v1995, %v2510
      %v2512 = vpop.f32.mrf.mxu0
      %2513 = vmatprep.mubr.f32.mxu0 0.0
      %2514 = vmatmul.mubr.f32.gmra.mxu0 %v2282
      %v2515 = vpop.f32.mrf.mxu0
      %v2516 = vadd.f32 %v2000, %v2515
      %v2517 = vpop.f32.mrf.mxu0
      %2518 = vmatprep.mubr.f32.mxu0 0.0
      %2519 = vmatmul.mubr.f32.gmra.mxu0 %v2284
      %v2520 = vpop.f32.mrf.mxu0
      %v2521 = vadd.f32 %v2005, %v2520
      %v2522 = vpop.f32.mrf.mxu0
      %2523 = vmatprep.mubr.f32.mxu0 0.0
      %2524 = vmatmul.mubr.f32.gmra.mxu0 %v2286
      %v2525 = vpop.f32.mrf.mxu0
      %v2526 = vadd.f32 %v2010, %v2525
      %v2527 = vpop.f32.mrf.mxu0
      %2528 = vmatprep.mubr.f32.mxu0 0.0
      %2529 = vmatmul.mubr.f32.gmra.mxu0 %v2288
      %v2530 = vpop.f32.mrf.mxu0
      %v2531 = vadd.f32 %v2015, %v2530
      %v2532 = vpop.f32.mrf.mxu0
      %2533 = vmatprep.mubr.f32.mxu0 0.0
      %2534 = vmatmul.mubr.f32.gmra.mxu0 %v2290
      %v2535 = vpop.f32.mrf.mxu0
      %v2536 = vadd.f32 %v2020, %v2535
      %v2537 = vpop.f32.mrf.mxu0
      %2538 = vmatprep.mubr.f32.mxu0 0.0
      %2539 = vmatmul.mubr.f32.gmra.mxu0 %v2292
      %v2540 = vpop.f32.mrf.mxu0
      %v2541 = vadd.f32 %v2025, %v2540
      %v2542 = vpop.f32.mrf.mxu0
      %2543 = vmatprep.mubr.f32.mxu0 0.0
      %2544 = vmatmul.mubr.f32.gmra.mxu0 %v2294
      %v2545 = vpop.f32.mrf.mxu0
      %v2546 = vadd.f32 %v2030, %v2545
      %v2547 = vpop.f32.mrf.mxu0
      %2548 = vmatprep.mubr.f32.mxu0 0.0
      %2549 = vmatmul.mubr.f32.gmra.mxu0 %v2296
      %v2550 = vpop.f32.mrf.mxu0
      %v2551 = vadd.f32 %v2035, %v2550
      %v2552 = vpop.f32.mrf.mxu0
      %2553 = vmatprep.mubr.f32.mxu0 0.0
      %2554 = vmatmul.mubr.f32.gmra.mxu0 %v2298
      %v2555 = vpop.f32.mrf.mxu0
      %v2556 = vadd.f32 %v2040, %v2555
      %v2557 = vpop.f32.mrf.mxu0
      %2558 = vmatprep.mubr.f32.mxu0 0.0
      %2559 = vmatmul.mubr.f32.gmra.mxu0 %v2300
      %v2560 = vpop.f32.mrf.mxu0
      %v2561 = vadd.f32 %v2045, %v2560
      %v2562 = vpop.f32.mrf.mxu0
      %2563 = vmatprep.mubr.f32.mxu0 0.0
      %2564 = vmatmul.mubr.f32.gmra.mxu0 %v2302
      %v2565 = vpop.f32.mrf.mxu0
      %v2566 = vadd.f32 %v2050, %v2565
      %v2567 = vpop.f32.mrf.mxu0
      %2568 = vmatprep.mubr.f32.mxu0 0.0
      %2569 = vmatmul.mubr.f32.gmra.mxu0 %v2304
      %v2570 = vpop.f32.mrf.mxu0
      %v2571 = vadd.f32 %v2055, %v2570
      %v2572 = vpop.f32.mrf.mxu0
      %2573 = vmatprep.mubr.f32.mxu0 0.0
      %2574 = vmatmul.mubr.f32.gmra.mxu0 %v2306
      %v2575 = vpop.f32.mrf.mxu0
      %v2576 = vadd.f32 %v2060, %v2575
      %v2577 = vpop.f32.mrf.mxu0
      %2578 = vmatprep.mubr.f32.mxu0 0.0
      %2579 = vmatmul.mubr.f32.gmra.mxu0 %v2308
      %v2580 = vpop.f32.mrf.mxu0
      %v2581 = vadd.f32 %v2065, %v2580
      %v2582 = vpop.f32.mrf.mxu0
      %2583 = vmatprep.mubr.f32.mxu0 0.0
      %2584 = vmatmul.mubr.f32.gmra.mxu0 %v2310
      %v2585 = vpop.f32.mrf.mxu0
      %v2586 = vadd.f32 %v2070, %v2585
      %v2587 = vpop.f32.mrf.mxu0
      %2588 = vmatprep.mubr.f32.mxu0 0.0
      %2589 = vmatmul.mubr.f32.gmra.mxu0 %v2312
      %v2590 = vpop.f32.mrf.mxu0
      %v2591 = vadd.f32 %v2075, %v2590
      %v2592 = vpop.f32.mrf.mxu0
      %2593 = vmatprep.mubr.f32.mxu0 0.0
      %2594 = vmatmul.mubr.f32.gmra.mxu0 %v2314
      %v2595 = vpop.f32.mrf.mxu0
      %v2596 = vadd.f32 %v2080, %v2595
      %v2597 = vpop.f32.mrf.mxu0
      %2598 = vmatprep.mubr.f32.mxu0 0.0
      %2599 = vmatmul.mubr.f32.gmra.mxu0 %v2316
      %v2600 = vpop.f32.mrf.mxu0
      %v2601 = vadd.f32 %v2085, %v2600
      %v2602 = vpop.f32.mrf.mxu0
      %2603 = vmatprep.mubr.f32.mxu0 0.0
      %2604 = vmatmul.mubr.f32.gmra.mxu0 %v2318
      %v2605 = vpop.f32.mrf.mxu0
      %v2606 = vadd.f32 %v2090, %v2605
      %v2607 = vpop.f32.mrf.mxu0
      %2608 = vmatprep.mubr.f32.mxu0 0.0
      %2609 = vmatmul.mubr.f32.gmra.mxu0 %v2320
      %v2610 = vpop.f32.mrf.mxu0
      %v2611 = vadd.f32 %v2095, %v2610
      %v2612 = vpop.f32.mrf.mxu0
      %2613 = vmatprep.mubr.f32.mxu0 0.0
      %2614 = vmatmul.mubr.f32.gmra.mxu0 %v2322
      %v2615 = vpop.f32.mrf.mxu0
      %v2616 = vadd.f32 %v2100, %v2615
      %v2617 = vpop.f32.mrf.mxu0
      %2618 = vmatprep.mubr.f32.mxu0 0.0
      %2619 = vmatmul.mubr.f32.gmra.mxu0 %v2324
      %v2620 = vpop.f32.mrf.mxu0
      %v2621 = vadd.f32 %v2105, %v2620
      %v2622 = vpop.f32.mrf.mxu0
      %2623 = vmatprep.mubr.f32.mxu0 0.0
      %2624 = vmatmul.mubr.f32.gmra.mxu0 %v2326
      %v2625 = vpop.f32.mrf.mxu0
      %v2626 = vadd.f32 %v2110, %v2625
      %v2627 = vpop.f32.mrf.mxu0
      %2628 = vmatprep.mubr.f32.mxu0 0.0
      %2629 = vmatmul.mubr.f32.gmra.mxu0 %v2328
      %v2630 = vpop.f32.mrf.mxu0
      %v2631 = vadd.f32 %v2115, %v2630
      %v2632 = vpop.f32.mrf.mxu0
      %2633 = vmatprep.mubr.f32.mxu0 0.0
      %2634 = vmatmul.mubr.f32.gmra.mxu0 %v2330
      %v2635 = vpop.f32.mrf.mxu0
      %v2636 = vadd.f32 %v2120, %v2635
      %v2637 = vpop.f32.mrf.mxu0
      %2638 = vmatprep.mubr.f32.mxu0 0.0
      %2639 = vmatmul.mubr.f32.gmra.mxu0 %v2332
      %v2640 = vpop.f32.mrf.mxu0
      %v2641 = vadd.f32 %v2125, %v2640
      %v2642 = vpop.f32.mrf.mxu0
      %2643 = vmatprep.mubr.f32.mxu0 0.0
      %2644 = vmatmul.mubr.f32.gmra.mxu0 %v2334
      %v2645 = vpop.f32.mrf.mxu0
      %v2646 = vadd.f32 %v2130, %v2645
      %v2647 = vpop.f32.mrf.mxu0
      %2648 = vmatprep.mubr.f32.mxu0 0.0
      %2649 = vmatmul.mubr.f32.gmra.mxu0 %v2336
      %v2650 = vpop.f32.mrf.mxu0
      %v2651 = vadd.f32 %v2135, %v2650
      %v2652 = vpop.f32.mrf.mxu0
      %2653 = vmatprep.mubr.f32.mxu0 0.0
      %2654 = vmatmul.mubr.f32.gmra.mxu0 %v2338
      %v2655 = vpop.f32.mrf.mxu0
      %v2656 = vadd.f32 %v2140, %v2655
      %v2657 = vpop.f32.mrf.mxu0
      %2658 = vmatprep.mubr.f32.mxu0 0.0
      %2659 = vmatmul.mubr.f32.gmra.mxu0 %v2340
      %v2660 = vpop.f32.mrf.mxu0
      %v2661 = vadd.f32 %v2145, %v2660
      %v2662 = vpop.f32.mrf.mxu0
      %2663 = vmatprep.mubr.f32.mxu0 0.0
      %2664 = vmatmul.mubr.f32.gmra.mxu0 %v2342
      %v2665 = vpop.f32.mrf.mxu0
      %v2666 = vadd.f32 %v2150, %v2665
      %v2667 = vpop.f32.mrf.mxu0
      %2668 = vmatprep.mubr.f32.mxu0 0.0
      %2669 = vmatmul.mubr.f32.gmra.mxu0 %v2344
      %v2670 = vpop.f32.mrf.mxu0
      %v2671 = vadd.f32 %v2155, %v2670
      %v2672 = vpop.f32.mrf.mxu0
      %2673 = vmatprep.mubr.f32.mxu0 0.0
      %2674 = vmatmul.mubr.f32.gmra.mxu0 %v2346
      %v2675 = vpop.f32.mrf.mxu0
      %v2676 = vadd.f32 %v2160, %v2675
      %v2677 = vpop.f32.mrf.mxu0
      %2678 = vmatprep.mubr.f32.mxu0 0.0
      %2679 = vmatmul.mubr.f32.gmra.mxu0 %v2348
      %v2680 = vpop.f32.mrf.mxu0
      %v2681 = vadd.f32 %v2165, %v2680
      %v2682 = vpop.f32.mrf.mxu0
      %2683 = vmatprep.mubr.f32.mxu0 0.0
      %2684 = vmatmul.mubr.f32.gmra.mxu0 %v2350
      %v2685 = vpop.f32.mrf.mxu0
      %v2686 = vadd.f32 %v2170, %v2685
      %v2687 = vpop.f32.mrf.mxu0
      %2688 = vmatprep.mubr.f32.mxu0 0.0
      %2689 = vmatmul.mubr.f32.gmra.mxu0 %v2352
      %v2690 = vpop.f32.mrf.mxu0
      %v2691 = vadd.f32 %v2175, %v2690
      %v2692 = vpop.f32.mrf.mxu0
      %2693 = vmatprep.mubr.f32.mxu0 0.0
      %2694 = vmatmul.mubr.f32.gmra.mxu0 %v2354
      %v2695 = vpop.f32.mrf.mxu0
      %v2696 = vadd.f32 %v2180, %v2695
      %v2697 = vpop.f32.mrf.mxu0
      %2698 = vmatprep.mubr.f32.mxu0 0.0
      %2699 = vmatmul.mubr.f32.gmra.mxu0 %v2356
      %v2700 = vpop.f32.mrf.mxu0
      %v2701 = vadd.f32 %v2185, %v2700
      %v2702 = vpop.f32.mrf.mxu0
      %2703 = vmatprep.mubr.f32.mxu0 0.0
      %2704 = vmatmul.mubr.f32.gmra.mxu0 %v2358
      %v2705 = vpop.f32.mrf.mxu0
      %v2706 = vadd.f32 %v2190, %v2705
      %v2707 = vpop.f32.mrf.mxu0
      %2708 = vmatprep.mubr.f32.mxu0 0.0
      %2709 = vmatmul.mubr.f32.gmra.mxu0 %v2360
      %v2710 = vpop.f32.mrf.mxu0
      %v2711 = vadd.f32 %v2195, %v2710
      %v2712 = vpop.f32.mrf.mxu0
      %2713 = vmatprep.mubr.f32.mxu0 0.0
      %2714 = vmatmul.mubr.f32.gmra.mxu0 %v2362
      %v2715 = vpop.f32.mrf.mxu0
      %v2716 = vadd.f32 %v2200, %v2715
      %v2717 = vpop.f32.mrf.mxu0
      %2718 = vmatprep.mubr.f32.mxu0 0.0
      %2719 = vmatmul.mubr.f32.gmra.mxu0 %v2364
      %v2720 = vpop.f32.mrf.mxu0
      %v2721 = vadd.f32 %v2205, %v2720
      %v2722 = vpop.f32.mrf.mxu0
      %2723 = vmatprep.mubr.f32.mxu0 0.0
      %2724 = vmatmul.mubr.f32.gmra.mxu0 %v2366
      %v2725 = vpop.f32.mrf.mxu0
      %v2726 = vadd.f32 %v2210, %v2725
      %v2727 = vpop.f32.mrf.mxu0
      %2728 = vmatprep.mubr.f32.mxu0 0.0
      %2729 = vmatmul.mubr.f32.gmra.mxu0 %v2368
      %v2730 = vpop.f32.mrf.mxu0
      %v2731 = vadd.f32 %v2215, %v2730
      %v2732 = vpop.f32.mrf.mxu0
      %2733 = vmatprep.mubr.f32.mxu0 0.0
      %2734 = vmatmul.mubr.f32.gmra.mxu0 %v2370
      %v2735 = vpop.f32.mrf.mxu0
      %v2736 = vadd.f32 %v2220, %v2735
      %v2737 = vpop.f32.mrf.mxu0
      %2738 = vmatprep.mubr.f32.mxu0 0.0
      %2739 = vmatmul.mubr.f32.gmra.mxu0 %v2372
      %v2740 = vpop.f32.mrf.mxu0
      %v2741 = vadd.f32 %v2225, %v2740
      %v2742 = vpop.f32.mrf.mxu0
      %2743 = vmatprep.mubr.f32.mxu0 0.0
      %2744 = vmatmul.mubr.f32.gmra.mxu0 %v2374
      %v2745 = vpop.f32.mrf.mxu0
      %v2746 = vadd.f32 %v2230, %v2745
      %v2747 = vpop.f32.mrf.mxu0
      %2748 = vmatprep.mubr.f32.mxu0 0.0
      %2749 = vmatmul.mubr.f32.gmra.mxu0 %v2376
      %v2750 = vpop.f32.mrf.mxu0
      %v2751 = vadd.f32 %v2235, %v2750
      %v2752 = vpop.f32.mrf.mxu0
      %2753 = vmatprep.mubr.f32.mxu0 0.0
      %2754 = vmatmul.mubr.f32.gmra.mxu0 %v2378
      %v2755 = vpop.f32.mrf.mxu0
      %v2756 = vadd.f32 %v2240, %v2755
      %v2757 = vpop.f32.mrf.mxu0
      %2758 = vmatprep.mubr.f32.mxu0 0.0
      %2759 = vmatmul.mubr.f32.gmra.mxu0 %v2380
      %v2760 = vpop.f32.mrf.mxu0
      %v2761 = vadd.f32 %v2245, %v2760
      %v2762 = vpop.f32.mrf.mxu0
      %2763 = vmatprep.mubr.f32.mxu0 0.0
      %2764 = vmatmul.mubr.f32.gmra.mxu0 %v2382
      %v2765 = vpop.f32.mrf.mxu0
      %v2766 = vadd.f32 %v2250, %v2765
      %v2767 = vpop.f32.mrf.mxu0
      %2768 = vmatprep.mubr.f32.mxu0 0.0
      %2769 = vmatmul.mubr.f32.gmra.mxu0 %v2384
      %v2770 = vpop.f32.mrf.mxu0
      %v2771 = vadd.f32 %v2255, %v2770
      %v2772 = vpop.f32.mrf.mxu0
      %2773 = vdwg.mxu0
      %s2774 = scalar_lea.vmem %s2, 8
      %v2775 = vld [vmem:[%s2774] sm:$0x7]
      %v2777 = vsel %vm1676, %v1161, 0
      %v2780 = vsel %vm1676, %v1162, 0
      %v2783 = vsel %vm1676, %v1163, 0
      %v2786 = vsel %vm1676, %v1164, 0
      %v2789 = vsel %vm1676, %v1165, 0
      %v2792 = vsel %vm1676, %v1166, 0
      %v2795 = vsel %vm1676, %v1167, 0
      %v2798 = vsel %vm1676, %v1168, 0
      %v2801 = vsel %vm1676, %v1169, 0
      %v2804 = vsel %vm1676, %v1170, 0
      %v2807 = vsel %vm1676, %v1171, 0
      %v2810 = vsel %vm1676, %v1172, 0
      %v2813 = vsel %vm1676, %v1173, 0
      %v2816 = vsel %vm1676, %v1174, 0
      %v2819 = vsel %vm1676, %v1175, 0
      %v2822 = vsel %vm1676, %v1176, 0
      %v2825 = vsel %vm1676, %v1177, 0
      %v2828 = vsel %vm1676, %v1178, 0
      %v2831 = vsel %vm1676, %v1179, 0
      %v2834 = vsel %vm1676, %v1180, 0
      %v2837 = vsel %vm1676, %v1181, 0
      %v2840 = vsel %vm1676, %v1182, 0
      %v2843 = vsel %vm1676, %v1183, 0
      %v2846 = vsel %vm1676, %v1184, 0
      %v2849 = vsel %vm1676, %v1185, 0
      %v2852 = vsel %vm1676, %v1186, 0
      %v2855 = vsel %vm1676, %v1187, 0
      %v2858 = vsel %vm1676, %v1188, 0
      %v2861 = vsel %vm1676, %v1189, 0
      %v2864 = vsel %vm1676, %v1190, 0
      %v2867 = vsel %vm1676, %v1191, 0
      %v2870 = vsel %vm1676, %v1192, 0
      %v2873 = vsel %vm1676, %v1193, 0
      %v2876 = vsel %vm1676, %v1194, 0
      %v2879 = vsel %vm1676, %v1195, 0
      %v2882 = vsel %vm1676, %v1196, 0
      %v2885 = vsel %vm1676, %v1197, 0
      %v2888 = vsel %vm1676, %v1198, 0
      %v2891 = vsel %vm1676, %v1199, 0
      %v2894 = vsel %vm1676, %v1200, 0
      %v2897 = vsel %vm1676, %v1201, 0
      %v2900 = vsel %vm1676, %v1202, 0
      %v2903 = vsel %vm1676, %v1203, 0
      %v2906 = vsel %vm1676, %v1204, 0
      %v2909 = vsel %vm1676, %v1205, 0
      %v2912 = vsel %vm1676, %v1206, 0
      %v2915 = vsel %vm1676, %v1207, 0
      %v2918 = vsel %vm1676, %v1208, 0
      %v2921 = vsel %vm1676, %v1209, 0
      %v2924 = vsel %vm1676, %v1210, 0
      %v2927 = vsel %vm1676, %v1211, 0
      %v2930 = vsel %vm1676, %v1212, 0
      %v2933 = vsel %vm1676, %v1213, 0
      %v2936 = vsel %vm1676, %v1214, 0
      %v2939 = vsel %vm1676, %v1215, 0
      %v2942 = vsel %vm1676, %v1216, 0
      %v2945 = vsel %vm1676, %v1217, 0
      %v2948 = vsel %vm1676, %v1218, 0
      %v2951 = vsel %vm1676, %v1219, 0
      %v2954 = vsel %vm1676, %v1220, 0
      %v2957 = vsel %vm1676, %v1221, 0
      %v2960 = vsel %vm1676, %v1222, 0
      %v2963 = vsel %vm1676, %v1223, 0
      %v2966 = vsel %vm1676, %v1224, 0
      %v2969 = vsel %vm1869, %v2775, 0
      %2971 = vmatprep.subr.mxu0 0.0
      %2972 = vmatpush1.msra.mxu0 0.0
      %2973 = vmatprep.subr.mxu0 0.0
      %2974 = vmatpush1.msra.mxu0 0.0
      %2975 = vmatprep.subr.mxu0 0.0
      %2976 = vmatpush1.msra.mxu0 0.0
      %2977 = vmatprep.subr.mxu0 0.0
      %2978 = vmatpush1.msra.mxu0 0.0
      %2979 = vmatprep.subr.mxu0 0.0
      %2980 = vmatpush1.msra.mxu0 0.0
      %2981 = vmatprep.subr.mxu0 0.0
      %2982 = vmatpush1.msra.mxu0 0.0
      %2983 = vmatprep.subr.mxu0 0.0
      %2984 = vmatpush1.msra.mxu0 0.0
      %2985 = vmatprep.subr.mxu0 0.0
      %2986 = vmatpush1.msra.mxu0 0.0
      %2987 = vmatprep.subr.mxu0 0.0
      %2988 = vmatpush1.msra.mxu0 0.0
      %2989 = vmatprep.subr.mxu0 0.0
      %2990 = vmatpush1.msra.mxu0 0.0
      %2991 = vmatprep.subr.mxu0 0.0
      %2992 = vmatpush1.msra.mxu0 0.0
      %2993 = vmatprep.subr.mxu0 0.0
      %2994 = vmatpush1.msra.mxu0 0.0
      %2995 = vmatprep.subr.mxu0 0.0
      %2996 = vmatpush1.msra.mxu0 0.0
      %2997 = vmatprep.subr.mxu0 0.0
      %2998 = vmatpush1.msra.mxu0 0.0
      %2999 = vmatprep.subr.mxu0 0.0
      %3000 = vmatpush1.msra.mxu0 0.0
      %3001 = vmatprep.subr.mxu0 0.0
      %3002 = vmatpush1.msra.mxu0 %v2969
      %3003 = vmatprep.subr.mxu0 0.0
      %3004 = vmatpush2.msra.mxu0 0.0
      %3005 = vmatprep.subr.mxu0 0.0
      %3006 = vmatpush2.msra.mxu0 0.0
      %3007 = vmatprep.subr.mxu0 0.0
      %3008 = vmatpush2.msra.mxu0 0.0
      %3009 = vmatprep.subr.mxu0 0.0
      %3010 = vmatpush2.msra.mxu0 0.0
      %3011 = vmatprep.subr.mxu0 0.0
      %3012 = vmatpush2.msra.mxu0 0.0
      %3013 = vmatprep.subr.mxu0 0.0
      %3014 = vmatpush2.msra.mxu0 0.0
      %3015 = vmatprep.subr.mxu0 0.0
      %3016 = vmatpush2.msra.mxu0 0.0
      %3017 = vmatprep.subr.mxu0 0.0
      %3018 = vmatpush2.msra.mxu0 0.0
      %3019 = vmatprep.subr.mxu0 0.0
      %3020 = vmatpush2.msra.mxu0 0.0
      %3021 = vmatprep.subr.mxu0 0.0
      %3022 = vmatpush2.msra.mxu0 0.0
      %3023 = vmatprep.subr.mxu0 0.0
      %3024 = vmatpush2.msra.mxu0 0.0
      %3025 = vmatprep.subr.mxu0 0.0
      %3026 = vmatpush2.msra.mxu0 0.0
      %3027 = vmatprep.subr.mxu0 0.0
      %3028 = vmatpush2.msra.mxu0 0.0
      %3029 = vmatprep.subr.mxu0 0.0
      %3030 = vmatpush2.msra.mxu0 0.0
      %3031 = vmatprep.subr.mxu0 0.0
      %3032 = vmatpush2.msra.mxu0 0.0
      %3033 = vmatprep.subr.mxu0 0.0
      %3034 = vmatpush2.msra.mxu0 0.0
      %3035 = vmatprep.mubr.f32.mxu0 0.0
      %3036 = vmatmul.mubr.f32.gmra.mxu0 %v2777
      %v3037 = vpop.f32.mrf.mxu0
      %v3038 = vadd.f32 0.0, %v3037
      %v3039 = vpop.f32.mrf.mxu0
      %3040 = vmatprep.mubr.f32.mxu0 0.0
      %3041 = vmatmul.mubr.f32.gmra.mxu0 %v2780
      %v3042 = vpop.f32.mrf.mxu0
      %v3043 = vadd.f32 0.0, %v3042
      %v3044 = vpop.f32.mrf.mxu0
      %3045 = vmatprep.mubr.f32.mxu0 0.0
      %3046 = vmatmul.mubr.f32.gmra.mxu0 %v2783
      %v3047 = vpop.f32.mrf.mxu0
      %v3048 = vadd.f32 0.0, %v3047
      %v3049 = vpop.f32.mrf.mxu0
      %3050 = vmatprep.mubr.f32.mxu0 0.0
      %3051 = vmatmul.mubr.f32.gmra.mxu0 %v2786
      %v3052 = vpop.f32.mrf.mxu0
      %v3053 = vadd.f32 0.0, %v3052
      %v3054 = vpop.f32.mrf.mxu0
      %3055 = vmatprep.mubr.f32.mxu0 0.0
      %3056 = vmatmul.mubr.f32.gmra.mxu0 %v2789
      %v3057 = vpop.f32.mrf.mxu0
      %v3058 = vadd.f32 0.0, %v3057
      %v3059 = vpop.f32.mrf.mxu0
      %3060 = vmatprep.mubr.f32.mxu0 0.0
      %3061 = vmatmul.mubr.f32.gmra.mxu0 %v2792
      %v3062 = vpop.f32.mrf.mxu0
      %v3063 = vadd.f32 0.0, %v3062
      %v3064 = vpop.f32.mrf.mxu0
      %3065 = vmatprep.mubr.f32.mxu0 0.0
      %3066 = vmatmul.mubr.f32.gmra.mxu0 %v2795
      %v3067 = vpop.f32.mrf.mxu0
      %v3068 = vadd.f32 0.0, %v3067
      %v3069 = vpop.f32.mrf.mxu0
      %3070 = vmatprep.mubr.f32.mxu0 0.0
      %3071 = vmatmul.mubr.f32.gmra.mxu0 %v2798
      %v3072 = vpop.f32.mrf.mxu0
      %v3073 = vadd.f32 0.0, %v3072
      %v3074 = vpop.f32.mrf.mxu0
      %3075 = vmatprep.mubr.f32.mxu0 0.0
      %3076 = vmatmul.mubr.f32.gmra.mxu0 %v2801
      %v3077 = vpop.f32.mrf.mxu0
      %v3078 = vadd.f32 0.0, %v3077
      %v3079 = vpop.f32.mrf.mxu0
      %3080 = vmatprep.mubr.f32.mxu0 0.0
      %3081 = vmatmul.mubr.f32.gmra.mxu0 %v2804
      %v3082 = vpop.f32.mrf.mxu0
      %v3083 = vadd.f32 0.0, %v3082
      %v3084 = vpop.f32.mrf.mxu0
      %3085 = vmatprep.mubr.f32.mxu0 0.0
      %3086 = vmatmul.mubr.f32.gmra.mxu0 %v2807
      %v3087 = vpop.f32.mrf.mxu0
      %v3088 = vadd.f32 0.0, %v3087
      %v3089 = vpop.f32.mrf.mxu0
      %3090 = vmatprep.mubr.f32.mxu0 0.0
      %3091 = vmatmul.mubr.f32.gmra.mxu0 %v2810
      %v3092 = vpop.f32.mrf.mxu0
      %v3093 = vadd.f32 0.0, %v3092
      %v3094 = vpop.f32.mrf.mxu0
      %3095 = vmatprep.mubr.f32.mxu0 0.0
      %3096 = vmatmul.mubr.f32.gmra.mxu0 %v2813
      %v3097 = vpop.f32.mrf.mxu0
      %v3098 = vadd.f32 0.0, %v3097
      %v3099 = vpop.f32.mrf.mxu0
      %3100 = vmatprep.mubr.f32.mxu0 0.0
      %3101 = vmatmul.mubr.f32.gmra.mxu0 %v2816
      %v3102 = vpop.f32.mrf.mxu0
      %v3103 = vadd.f32 0.0, %v3102
      %v3104 = vpop.f32.mrf.mxu0
      %3105 = vmatprep.mubr.f32.mxu0 0.0
      %3106 = vmatmul.mubr.f32.gmra.mxu0 %v2819
      %v3107 = vpop.f32.mrf.mxu0
      %v3108 = vadd.f32 0.0, %v3107
      %v3109 = vpop.f32.mrf.mxu0
      %3110 = vmatprep.mubr.f32.mxu0 0.0
      %3111 = vmatmul.mubr.f32.gmra.mxu0 %v2822
      %v3112 = vpop.f32.mrf.mxu0
      %v3113 = vadd.f32 0.0, %v3112
      %v3114 = vpop.f32.mrf.mxu0
      %3115 = vmatprep.mubr.f32.mxu0 0.0
      %3116 = vmatmul.mubr.f32.gmra.mxu0 %v2825
      %v3117 = vpop.f32.mrf.mxu0
      %v3118 = vadd.f32 0.0, %v3117
      %v3119 = vpop.f32.mrf.mxu0
      %3120 = vmatprep.mubr.f32.mxu0 0.0
      %3121 = vmatmul.mubr.f32.gmra.mxu0 %v2828
      %v3122 = vpop.f32.mrf.mxu0
      %v3123 = vadd.f32 0.0, %v3122
      %v3124 = vpop.f32.mrf.mxu0
      %3125 = vmatprep.mubr.f32.mxu0 0.0
      %3126 = vmatmul.mubr.f32.gmra.mxu0 %v2831
      %v3127 = vpop.f32.mrf.mxu0
      %v3128 = vadd.f32 0.0, %v3127
      %v3129 = vpop.f32.mrf.mxu0
      %3130 = vmatprep.mubr.f32.mxu0 0.0
      %3131 = vmatmul.mubr.f32.gmra.mxu0 %v2834
      %v3132 = vpop.f32.mrf.mxu0
      %v3133 = vadd.f32 0.0, %v3132
      %v3134 = vpop.f32.mrf.mxu0
      %3135 = vmatprep.mubr.f32.mxu0 0.0
      %3136 = vmatmul.mubr.f32.gmra.mxu0 %v2837
      %v3137 = vpop.f32.mrf.mxu0
      %v3138 = vadd.f32 0.0, %v3137
      %v3139 = vpop.f32.mrf.mxu0
      %3140 = vmatprep.mubr.f32.mxu0 0.0
      %3141 = vmatmul.mubr.f32.gmra.mxu0 %v2840
      %v3142 = vpop.f32.mrf.mxu0
      %v3143 = vadd.f32 0.0, %v3142
      %v3144 = vpop.f32.mrf.mxu0
      %3145 = vmatprep.mubr.f32.mxu0 0.0
      %3146 = vmatmul.mubr.f32.gmra.mxu0 %v2843
      %v3147 = vpop.f32.mrf.mxu0
      %v3148 = vadd.f32 0.0, %v3147
      %v3149 = vpop.f32.mrf.mxu0
      %3150 = vmatprep.mubr.f32.mxu0 0.0
      %3151 = vmatmul.mubr.f32.gmra.mxu0 %v2846
      %v3152 = vpop.f32.mrf.mxu0
      %v3153 = vadd.f32 0.0, %v3152
      %v3154 = vpop.f32.mrf.mxu0
      %3155 = vmatprep.mubr.f32.mxu0 0.0
      %3156 = vmatmul.mubr.f32.gmra.mxu0 %v2849
      %v3157 = vpop.f32.mrf.mxu0
      %v3158 = vadd.f32 0.0, %v3157
      %v3159 = vpop.f32.mrf.mxu0
      %3160 = vmatprep.mubr.f32.mxu0 0.0
      %3161 = vmatmul.mubr.f32.gmra.mxu0 %v2852
      %v3162 = vpop.f32.mrf.mxu0
      %v3163 = vadd.f32 0.0, %v3162
      %v3164 = vpop.f32.mrf.mxu0
      %3165 = vmatprep.mubr.f32.mxu0 0.0
      %3166 = vmatmul.mubr.f32.gmra.mxu0 %v2855
      %v3167 = vpop.f32.mrf.mxu0
      %v3168 = vadd.f32 0.0, %v3167
      %v3169 = vpop.f32.mrf.mxu0
      %3170 = vmatprep.mubr.f32.mxu0 0.0
      %3171 = vmatmul.mubr.f32.gmra.mxu0 %v2858
      %v3172 = vpop.f32.mrf.mxu0
      %v3173 = vadd.f32 0.0, %v3172
      %v3174 = vpop.f32.mrf.mxu0
      %3175 = vmatprep.mubr.f32.mxu0 0.0
      %3176 = vmatmul.mubr.f32.gmra.mxu0 %v2861
      %v3177 = vpop.f32.mrf.mxu0
      %v3178 = vadd.f32 0.0, %v3177
      %v3179 = vpop.f32.mrf.mxu0
      %3180 = vmatprep.mubr.f32.mxu0 0.0
      %3181 = vmatmul.mubr.f32.gmra.mxu0 %v2864
      %v3182 = vpop.f32.mrf.mxu0
      %v3183 = vadd.f32 0.0, %v3182
      %v3184 = vpop.f32.mrf.mxu0
      %3185 = vmatprep.mubr.f32.mxu0 0.0
      %3186 = vmatmul.mubr.f32.gmra.mxu0 %v2867
      %v3187 = vpop.f32.mrf.mxu0
      %v3188 = vadd.f32 0.0, %v3187
      %v3189 = vpop.f32.mrf.mxu0
      %3190 = vmatprep.mubr.f32.mxu0 0.0
      %3191 = vmatmul.mubr.f32.gmra.mxu0 %v2870
      %v3192 = vpop.f32.mrf.mxu0
      %v3193 = vadd.f32 0.0, %v3192
      %v3194 = vpop.f32.mrf.mxu0
      %3195 = vmatprep.mubr.f32.mxu0 0.0
      %3196 = vmatmul.mubr.f32.gmra.mxu0 %v2873
      %v3197 = vpop.f32.mrf.mxu0
      %v3198 = vadd.f32 0.0, %v3197
      %v3199 = vpop.f32.mrf.mxu0
      %3200 = vmatprep.mubr.f32.mxu0 0.0
      %3201 = vmatmul.mubr.f32.gmra.mxu0 %v2876
      %v3202 = vpop.f32.mrf.mxu0
      %v3203 = vadd.f32 0.0, %v3202
      %v3204 = vpop.f32.mrf.mxu0
      %3205 = vmatprep.mubr.f32.mxu0 0.0
      %3206 = vmatmul.mubr.f32.gmra.mxu0 %v2879
      %v3207 = vpop.f32.mrf.mxu0
      %v3208 = vadd.f32 0.0, %v3207
      %v3209 = vpop.f32.mrf.mxu0
      %3210 = vmatprep.mubr.f32.mxu0 0.0
      %3211 = vmatmul.mubr.f32.gmra.mxu0 %v2882
      %v3212 = vpop.f32.mrf.mxu0
      %v3213 = vadd.f32 0.0, %v3212
      %v3214 = vpop.f32.mrf.mxu0
      %3215 = vmatprep.mubr.f32.mxu0 0.0
      %3216 = vmatmul.mubr.f32.gmra.mxu0 %v2885
      %v3217 = vpop.f32.mrf.mxu0
      %v3218 = vadd.f32 0.0, %v3217
      %v3219 = vpop.f32.mrf.mxu0
      %3220 = vmatprep.mubr.f32.mxu0 0.0
      %3221 = vmatmul.mubr.f32.gmra.mxu0 %v2888
      %v3222 = vpop.f32.mrf.mxu0
      %v3223 = vadd.f32 0.0, %v3222
      %v3224 = vpop.f32.mrf.mxu0
      %3225 = vmatprep.mubr.f32.mxu0 0.0
      %3226 = vmatmul.mubr.f32.gmra.mxu0 %v2891
      %v3227 = vpop.f32.mrf.mxu0
      %v3228 = vadd.f32 0.0, %v3227
      %v3229 = vpop.f32.mrf.mxu0
      %3230 = vmatprep.mubr.f32.mxu0 0.0
      %3231 = vmatmul.mubr.f32.gmra.mxu0 %v2894
      %v3232 = vpop.f32.mrf.mxu0
      %v3233 = vadd.f32 0.0, %v3232
      %v3234 = vpop.f32.mrf.mxu0
      %3235 = vmatprep.mubr.f32.mxu0 0.0
      %3236 = vmatmul.mubr.f32.gmra.mxu0 %v2897
      %v3237 = vpop.f32.mrf.mxu0
      %v3238 = vadd.f32 0.0, %v3237
      %v3239 = vpop.f32.mrf.mxu0
      %3240 = vmatprep.mubr.f32.mxu0 0.0
      %3241 = vmatmul.mubr.f32.gmra.mxu0 %v2900
      %v3242 = vpop.f32.mrf.mxu0
      %v3243 = vadd.f32 0.0, %v3242
      %v3244 = vpop.f32.mrf.mxu0
      %3245 = vmatprep.mubr.f32.mxu0 0.0
      %3246 = vmatmul.mubr.f32.gmra.mxu0 %v2903
      %v3247 = vpop.f32.mrf.mxu0
      %v3248 = vadd.f32 0.0, %v3247
      %v3249 = vpop.f32.mrf.mxu0
      %3250 = vmatprep.mubr.f32.mxu0 0.0
      %3251 = vmatmul.mubr.f32.gmra.mxu0 %v2906
      %v3252 = vpop.f32.mrf.mxu0
      %v3253 = vadd.f32 0.0, %v3252
      %v3254 = vpop.f32.mrf.mxu0
      %3255 = vmatprep.mubr.f32.mxu0 0.0
      %3256 = vmatmul.mubr.f32.gmra.mxu0 %v2909
      %v3257 = vpop.f32.mrf.mxu0
      %v3258 = vadd.f32 0.0, %v3257
      %v3259 = vpop.f32.mrf.mxu0
      %3260 = vmatprep.mubr.f32.mxu0 0.0
      %3261 = vmatmul.mubr.f32.gmra.mxu0 %v2912
      %v3262 = vpop.f32.mrf.mxu0
      %v3263 = vadd.f32 0.0, %v3262
      %v3264 = vpop.f32.mrf.mxu0
      %3265 = vmatprep.mubr.f32.mxu0 0.0
      %3266 = vmatmul.mubr.f32.gmra.mxu0 %v2915
      %v3267 = vpop.f32.mrf.mxu0
      %v3268 = vadd.f32 0.0, %v3267
      %v3269 = vpop.f32.mrf.mxu0
      %3270 = vmatprep.mubr.f32.mxu0 0.0
      %3271 = vmatmul.mubr.f32.gmra.mxu0 %v2918
      %v3272 = vpop.f32.mrf.mxu0
      %v3273 = vadd.f32 0.0, %v3272
      %v3274 = vpop.f32.mrf.mxu0
      %3275 = vmatprep.mubr.f32.mxu0 0.0
      %3276 = vmatmul.mubr.f32.gmra.mxu0 %v2921
      %v3277 = vpop.f32.mrf.mxu0
      %v3278 = vadd.f32 0.0, %v3277
      %v3279 = vpop.f32.mrf.mxu0
      %3280 = vmatprep.mubr.f32.mxu0 0.0
      %3281 = vmatmul.mubr.f32.gmra.mxu0 %v2924
      %v3282 = vpop.f32.mrf.mxu0
      %v3283 = vadd.f32 0.0, %v3282
      %v3284 = vpop.f32.mrf.mxu0
      %3285 = vmatprep.mubr.f32.mxu0 0.0
      %3286 = vmatmul.mubr.f32.gmra.mxu0 %v2927
      %v3287 = vpop.f32.mrf.mxu0
      %v3288 = vadd.f32 0.0, %v3287
      %v3289 = vpop.f32.mrf.mxu0
      %3290 = vmatprep.mubr.f32.mxu0 0.0
      %3291 = vmatmul.mubr.f32.gmra.mxu0 %v2930
      %v3292 = vpop.f32.mrf.mxu0
      %v3293 = vadd.f32 0.0, %v3292
      %v3294 = vpop.f32.mrf.mxu0
      %3295 = vmatprep.mubr.f32.mxu0 0.0
      %3296 = vmatmul.mubr.f32.gmra.mxu0 %v2933
      %v3297 = vpop.f32.mrf.mxu0
      %v3298 = vadd.f32 0.0, %v3297
      %v3299 = vpop.f32.mrf.mxu0
      %3300 = vmatprep.mubr.f32.mxu0 0.0
      %3301 = vmatmul.mubr.f32.gmra.mxu0 %v2936
      %v3302 = vpop.f32.mrf.mxu0
      %v3303 = vadd.f32 0.0, %v3302
      %v3304 = vpop.f32.mrf.mxu0
      %3305 = vmatprep.mubr.f32.mxu0 0.0
      %3306 = vmatmul.mubr.f32.gmra.mxu0 %v2939
      %v3307 = vpop.f32.mrf.mxu0
      %v3308 = vadd.f32 0.0, %v3307
      %v3309 = vpop.f32.mrf.mxu0
      %3310 = vmatprep.mubr.f32.mxu0 0.0
      %3311 = vmatmul.mubr.f32.gmra.mxu0 %v2942
      %v3312 = vpop.f32.mrf.mxu0
      %v3313 = vadd.f32 0.0, %v3312
      %v3314 = vpop.f32.mrf.mxu0
      %3315 = vmatprep.mubr.f32.mxu0 0.0
      %3316 = vmatmul.mubr.f32.gmra.mxu0 %v2945
      %v3317 = vpop.f32.mrf.mxu0
      %v3318 = vadd.f32 0.0, %v3317
      %v3319 = vpop.f32.mrf.mxu0
      %3320 = vmatprep.mubr.f32.mxu0 0.0
      %3321 = vmatmul.mubr.f32.gmra.mxu0 %v2948
      %v3322 = vpop.f32.mrf.mxu0
      %v3323 = vadd.f32 0.0, %v3322
      %v3324 = vpop.f32.mrf.mxu0
      %3325 = vmatprep.mubr.f32.mxu0 0.0
      %3326 = vmatmul.mubr.f32.gmra.mxu0 %v2951
      %v3327 = vpop.f32.mrf.mxu0
      %v3328 = vadd.f32 0.0, %v3327
      %v3329 = vpop.f32.mrf.mxu0
      %3330 = vmatprep.mubr.f32.mxu0 0.0
      %3331 = vmatmul.mubr.f32.gmra.mxu0 %v2954
      %v3332 = vpop.f32.mrf.mxu0
      %v3333 = vadd.f32 0.0, %v3332
      %v3334 = vpop.f32.mrf.mxu0
      %3335 = vmatprep.mubr.f32.mxu0 0.0
      %3336 = vmatmul.mubr.f32.gmra.mxu0 %v2957
      %v3337 = vpop.f32.mrf.mxu0
      %v3338 = vadd.f32 0.0, %v3337
      %v3339 = vpop.f32.mrf.mxu0
      %3340 = vmatprep.mubr.f32.mxu0 0.0
      %3341 = vmatmul.mubr.f32.gmra.mxu0 %v2960
      %v3342 = vpop.f32.mrf.mxu0
      %v3343 = vadd.f32 0.0, %v3342
      %v3344 = vpop.f32.mrf.mxu0
      %3345 = vmatprep.mubr.f32.mxu0 0.0
      %3346 = vmatmul.mubr.f32.gmra.mxu0 %v2963
      %v3347 = vpop.f32.mrf.mxu0
      %v3348 = vadd.f32 0.0, %v3347
      %v3349 = vpop.f32.mrf.mxu0
      %3350 = vmatprep.mubr.f32.mxu0 0.0
      %3351 = vmatmul.mubr.f32.gmra.mxu0 %v2966
      %v3352 = vpop.f32.mrf.mxu0
      %v3353 = vadd.f32 0.0, %v3352
      %v3354 = vpop.f32.mrf.mxu0
      %3355 = vdwg.mxu0
      %v3356 = vadd.f32 %v2456, %v3038
      %v3357 = vadd.f32 %v2461, %v3043
      %v3358 = vadd.f32 %v2466, %v3048
      %v3359 = vadd.f32 %v2471, %v3053
      %v3360 = vadd.f32 %v2476, %v3058
      %v3361 = vadd.f32 %v2481, %v3063
      %v3362 = vadd.f32 %v2486, %v3068
      %v3363 = vadd.f32 %v2491, %v3073
      %v3364 = vadd.f32 %v2496, %v3078
      %v3365 = vadd.f32 %v2501, %v3083
      %v3366 = vadd.f32 %v2506, %v3088
      %v3367 = vadd.f32 %v2511, %v3093
      %v3368 = vadd.f32 %v2516, %v3098
      %v3369 = vadd.f32 %v2521, %v3103
      %v3370 = vadd.f32 %v2526, %v3108
      %v3371 = vadd.f32 %v2531, %v3113
      %v3372 = vadd.f32 %v2536, %v3118
      %v3373 = vadd.f32 %v2541, %v3123
      %v3374 = vadd.f32 %v2546, %v3128
      %v3375 = vadd.f32 %v2551, %v3133
      %v3376 = vadd.f32 %v2556, %v3138
      %v3377 = vadd.f32 %v2561, %v3143
      %v3378 = vadd.f32 %v2566, %v3148
      %v3379 = vadd.f32 %v2571, %v3153
      %v3380 = vadd.f32 %v2576, %v3158
      %v3381 = vadd.f32 %v2581, %v3163
      %v3382 = vadd.f32 %v2586, %v3168
      %v3383 = vadd.f32 %v2591, %v3173
      %v3384 = vadd.f32 %v2596, %v3178
      %v3385 = vadd.f32 %v2601, %v3183
      %v3386 = vadd.f32 %v2606, %v3188
      %v3387 = vadd.f32 %v2611, %v3193
      %v3388 = vadd.f32 %v2616, %v3198
      %v3389 = vadd.f32 %v2621, %v3203
      %v3390 = vadd.f32 %v2626, %v3208
      %v3391 = vadd.f32 %v2631, %v3213
      %v3392 = vadd.f32 %v2636, %v3218
      %v3393 = vadd.f32 %v2641, %v3223
      %v3394 = vadd.f32 %v2646, %v3228
      %v3395 = vadd.f32 %v2651, %v3233
      %v3396 = vadd.f32 %v2656, %v3238
      %v3397 = vadd.f32 %v2661, %v3243
      %v3398 = vadd.f32 %v2666, %v3248
      %v3399 = vadd.f32 %v2671, %v3253
      %v3400 = vadd.f32 %v2676, %v3258
      %v3401 = vadd.f32 %v2681, %v3263
      %v3402 = vadd.f32 %v2686, %v3268
      %v3403 = vadd.f32 %v2691, %v3273
      %v3404 = vadd.f32 %v2696, %v3278
      %v3405 = vadd.f32 %v2701, %v3283
      %v3406 = vadd.f32 %v2706, %v3288
      %v3407 = vadd.f32 %v2711, %v3293
      %v3408 = vadd.f32 %v2716, %v3298
      %v3409 = vadd.f32 %v2721, %v3303
      %v3410 = vadd.f32 %v2726, %v3308
      %v3411 = vadd.f32 %v2731, %v3313
      %v3412 = vadd.f32 %v2736, %v3318
      %v3413 = vadd.f32 %v2741, %v3323
      %v3414 = vadd.f32 %v2746, %v3328
      %v3415 = vadd.f32 %v2751, %v3333
      %v3416 = vadd.f32 %v2756, %v3338
      %v3417 = vadd.f32 %v2761, %v3343
      %v3418 = vadd.f32 %v2766, %v3348
      %v3419 = vadd.f32 %v2771, %v3353
      %s3420 = scalar_lea.vmem %s2, 12
      %v3421 = vld [vmem:[%s3420] sm:$0x7]
      %v3423 = vsel %vm1676, %v1225, 0
      %v3426 = vsel %vm1676, %v1226, 0
      %v3429 = vsel %vm1676, %v1227, 0
      %v3432 = vsel %vm1676, %v1228, 0
      %v3435 = vsel %vm1676, %v1229, 0
      %v3438 = vsel %vm1676, %v1230, 0
      %v3441 = vsel %vm1676, %v1231, 0
      %v3444 = vsel %vm1676, %v1232, 0
      %v3447 = vsel %vm1676, %v1233, 0
      %v3450 = vsel %vm1676, %v1234, 0
      %v3453 = vsel %vm1676, %v1235, 0
      %v3456 = vsel %vm1676, %v1236, 0
      %v3459 = vsel %vm1676, %v1237, 0
      %v3462 = vsel %vm1676, %v1238, 0
      %v3465 = vsel %vm1676, %v1239, 0
      %v3468 = vsel %vm1676, %v1240, 0
      %v3471 = vsel %vm1676, %v1241, 0
      %v3474 = vsel %vm1676, %v1242, 0
      %v3477 = vsel %vm1676, %v1243, 0
      %v3480 = vsel %vm1676, %v1244, 0
      %v3483 = vsel %vm1676, %v1245, 0
      %v3486 = vsel %vm1676, %v1246, 0
      %v3489 = vsel %vm1676, %v1247, 0
      %v3492 = vsel %vm1676, %v1248, 0
      %v3495 = vsel %vm1676, %v1249, 0
      %v3498 = vsel %vm1676, %v1250, 0
      %v3501 = vsel %vm1676, %v1251, 0
      %v3504 = vsel %vm1676, %v1252, 0
      %v3507 = vsel %vm1676, %v1253, 0
      %v3510 = vsel %vm1676, %v1254, 0
      %v3513 = vsel %vm1676, %v1255, 0
      %v3516 = vsel %vm1676, %v1256, 0
      %v3519 = vsel %vm1676, %v1257, 0
      %v3522 = vsel %vm1676, %v1258, 0
      %v3525 = vsel %vm1676, %v1259, 0
      %v3528 = vsel %vm1676, %v1260, 0
      %v3531 = vsel %vm1676, %v1261, 0
      %v3534 = vsel %vm1676, %v1262, 0
      %v3537 = vsel %vm1676, %v1263, 0
      %v3540 = vsel %vm1676, %v1264, 0
      %v3543 = vsel %vm1676, %v1265, 0
      %v3546 = vsel %vm1676, %v1266, 0
      %v3549 = vsel %vm1676, %v1267, 0
      %v3552 = vsel %vm1676, %v1268, 0
      %v3555 = vsel %vm1676, %v1269, 0
      %v3558 = vsel %vm1676, %v1270, 0
      %v3561 = vsel %vm1676, %v1271, 0
      %v3564 = vsel %vm1676, %v1272, 0
      %v3567 = vsel %vm1676, %v1273, 0
      %v3570 = vsel %vm1676, %v1274, 0
      %v3573 = vsel %vm1676, %v1275, 0
      %v3576 = vsel %vm1676, %v1276, 0
      %v3579 = vsel %vm1676, %v1277, 0
      %v3582 = vsel %vm1676, %v1278, 0
      %v3585 = vsel %vm1676, %v1279, 0
      %v3588 = vsel %vm1676, %v1280, 0
      %v3591 = vsel %vm1676, %v1281, 0
      %v3594 = vsel %vm1676, %v1282, 0
      %v3597 = vsel %vm1676, %v1283, 0
      %v3600 = vsel %vm1676, %v1284, 0
      %v3603 = vsel %vm1676, %v1285, 0
      %v3606 = vsel %vm1676, %v1286, 0
      %v3609 = vsel %vm1676, %v1287, 0
      %v3612 = vsel %vm1676, %v1288, 0
      %v3615 = vsel %vm1869, %v3421, 0
      %3617 = vmatprep.subr.mxu0 0.0
      %3618 = vmatpush1.msra.mxu0 0.0
      %3619 = vmatprep.subr.mxu0 0.0
      %3620 = vmatpush1.msra.mxu0 0.0
      %3621 = vmatprep.subr.mxu0 0.0
      %3622 = vmatpush1.msra.mxu0 0.0
      %3623 = vmatprep.subr.mxu0 0.0
      %3624 = vmatpush1.msra.mxu0 0.0
      %3625 = vmatprep.subr.mxu0 0.0
      %3626 = vmatpush1.msra.mxu0 0.0
      %3627 = vmatprep.subr.mxu0 0.0
      %3628 = vmatpush1.msra.mxu0 0.0
      %3629 = vmatprep.subr.mxu0 0.0
      %3630 = vmatpush1.msra.mxu0 0.0
      %3631 = vmatprep.subr.mxu0 0.0
      %3632 = vmatpush1.msra.mxu0 0.0
      %3633 = vmatprep.subr.mxu0 0.0
      %3634 = vmatpush1.msra.mxu0 0.0
      %3635 = vmatprep.subr.mxu0 0.0
      %3636 = vmatpush1.msra.mxu0 0.0
      %3637 = vmatprep.subr.mxu0 0.0
      %3638 = vmatpush1.msra.mxu0 0.0
      %3639 = vmatprep.subr.mxu0 0.0
      %3640 = vmatpush1.msra.mxu0 0.0
      %3641 = vmatprep.subr.mxu0 0.0
      %3642 = vmatpush1.msra.mxu0 0.0
      %3643 = vmatprep.subr.mxu0 0.0
      %3644 = vmatpush1.msra.mxu0 0.0
      %3645 = vmatprep.subr.mxu0 0.0
      %3646 = vmatpush1.msra.mxu0 0.0
      %3647 = vmatprep.subr.mxu0 0.0
      %3648 = vmatpush1.msra.mxu0 %v3615
      %3649 = vmatprep.subr.mxu0 0.0
      %3650 = vmatpush2.msra.mxu0 0.0
      %3651 = vmatprep.subr.mxu0 0.0
      %3652 = vmatpush2.msra.mxu0 0.0
      %3653 = vmatprep.subr.mxu0 0.0
      %3654 = vmatpush2.msra.mxu0 0.0
      %3655 = vmatprep.subr.mxu0 0.0
      %3656 = vmatpush2.msra.mxu0 0.0
      %3657 = vmatprep.subr.mxu0 0.0
      %3658 = vmatpush2.msra.mxu0 0.0
      %3659 = vmatprep.subr.mxu0 0.0
      %3660 = vmatpush2.msra.mxu0 0.0
      %3661 = vmatprep.subr.mxu0 0.0
      %3662 = vmatpush2.msra.mxu0 0.0
      %3663 = vmatprep.subr.mxu0 0.0
      %3664 = vmatpush2.msra.mxu0 0.0
      %3665 = vmatprep.subr.mxu0 0.0
      %3666 = vmatpush2.msra.mxu0 0.0
      %3667 = vmatprep.subr.mxu0 0.0
      %3668 = vmatpush2.msra.mxu0 0.0
      %3669 = vmatprep.subr.mxu0 0.0
      %3670 = vmatpush2.msra.mxu0 0.0
      %3671 = vmatprep.subr.mxu0 0.0
      %3672 = vmatpush2.msra.mxu0 0.0
      %3673 = vmatprep.subr.mxu0 0.0
      %3674 = vmatpush2.msra.mxu0 0.0
      %3675 = vmatprep.subr.mxu0 0.0
      %3676 = vmatpush2.msra.mxu0 0.0
      %3677 = vmatprep.subr.mxu0 0.0
      %3678 = vmatpush2.msra.mxu0 0.0
      %3679 = vmatprep.subr.mxu0 0.0
      %3680 = vmatpush2.msra.mxu0 0.0
      %3681 = vmatprep.mubr.f32.mxu0 0.0
      %3682 = vmatmul.mubr.f32.gmra.mxu0 %v3423
      %v3683 = vpop.f32.mrf.mxu0
      %v3684 = vadd.f32 0.0, %v3683
      %v3685 = vpop.f32.mrf.mxu0
      %3686 = vmatprep.mubr.f32.mxu0 0.0
      %3687 = vmatmul.mubr.f32.gmra.mxu0 %v3426
      %v3688 = vpop.f32.mrf.mxu0
      %v3689 = vadd.f32 0.0, %v3688
      %v3690 = vpop.f32.mrf.mxu0
      %3691 = vmatprep.mubr.f32.mxu0 0.0
      %3692 = vmatmul.mubr.f32.gmra.mxu0 %v3429
      %v3693 = vpop.f32.mrf.mxu0
      %v3694 = vadd.f32 0.0, %v3693
      %v3695 = vpop.f32.mrf.mxu0
      %3696 = vmatprep.mubr.f32.mxu0 0.0
      %3697 = vmatmul.mubr.f32.gmra.mxu0 %v3432
      %v3698 = vpop.f32.mrf.mxu0
      %v3699 = vadd.f32 0.0, %v3698
      %v3700 = vpop.f32.mrf.mxu0
      %3701 = vmatprep.mubr.f32.mxu0 0.0
      %3702 = vmatmul.mubr.f32.gmra.mxu0 %v3435
      %v3703 = vpop.f32.mrf.mxu0
      %v3704 = vadd.f32 0.0, %v3703
      %v3705 = vpop.f32.mrf.mxu0
      %3706 = vmatprep.mubr.f32.mxu0 0.0
      %3707 = vmatmul.mubr.f32.gmra.mxu0 %v3438
      %v3708 = vpop.f32.mrf.mxu0
      %v3709 = vadd.f32 0.0, %v3708
      %v3710 = vpop.f32.mrf.mxu0
      %3711 = vmatprep.mubr.f32.mxu0 0.0
      %3712 = vmatmul.mubr.f32.gmra.mxu0 %v3441
      %v3713 = vpop.f32.mrf.mxu0
      %v3714 = vadd.f32 0.0, %v3713
      %v3715 = vpop.f32.mrf.mxu0
      %3716 = vmatprep.mubr.f32.mxu0 0.0
      %3717 = vmatmul.mubr.f32.gmra.mxu0 %v3444
      %v3718 = vpop.f32.mrf.mxu0
      %v3719 = vadd.f32 0.0, %v3718
      %v3720 = vpop.f32.mrf.mxu0
      %3721 = vmatprep.mubr.f32.mxu0 0.0
      %3722 = vmatmul.mubr.f32.gmra.mxu0 %v3447
      %v3723 = vpop.f32.mrf.mxu0
      %v3724 = vadd.f32 0.0, %v3723
      %v3725 = vpop.f32.mrf.mxu0
      %3726 = vmatprep.mubr.f32.mxu0 0.0
      %3727 = vmatmul.mubr.f32.gmra.mxu0 %v3450
      %v3728 = vpop.f32.mrf.mxu0
      %v3729 = vadd.f32 0.0, %v3728
      %v3730 = vpop.f32.mrf.mxu0
      %3731 = vmatprep.mubr.f32.mxu0 0.0
      %3732 = vmatmul.mubr.f32.gmra.mxu0 %v3453
      %v3733 = vpop.f32.mrf.mxu0
      %v3734 = vadd.f32 0.0, %v3733
      %v3735 = vpop.f32.mrf.mxu0
      %3736 = vmatprep.mubr.f32.mxu0 0.0
      %3737 = vmatmul.mubr.f32.gmra.mxu0 %v3456
      %v3738 = vpop.f32.mrf.mxu0
      %v3739 = vadd.f32 0.0, %v3738
      %v3740 = vpop.f32.mrf.mxu0
      %3741 = vmatprep.mubr.f32.mxu0 0.0
      %3742 = vmatmul.mubr.f32.gmra.mxu0 %v3459
      %v3743 = vpop.f32.mrf.mxu0
      %v3744 = vadd.f32 0.0, %v3743
      %v3745 = vpop.f32.mrf.mxu0
      %3746 = vmatprep.mubr.f32.mxu0 0.0
      %3747 = vmatmul.mubr.f32.gmra.mxu0 %v3462
      %v3748 = vpop.f32.mrf.mxu0
      %v3749 = vadd.f32 0.0, %v3748
      %v3750 = vpop.f32.mrf.mxu0
      %3751 = vmatprep.mubr.f32.mxu0 0.0
      %3752 = vmatmul.mubr.f32.gmra.mxu0 %v3465
      %v3753 = vpop.f32.mrf.mxu0
      %v3754 = vadd.f32 0.0, %v3753
      %v3755 = vpop.f32.mrf.mxu0
      %3756 = vmatprep.mubr.f32.mxu0 0.0
      %3757 = vmatmul.mubr.f32.gmra.mxu0 %v3468
      %v3758 = vpop.f32.mrf.mxu0
      %v3759 = vadd.f32 0.0, %v3758
      %v3760 = vpop.f32.mrf.mxu0
      %3761 = vmatprep.mubr.f32.mxu0 0.0
      %3762 = vmatmul.mubr.f32.gmra.mxu0 %v3471
      %v3763 = vpop.f32.mrf.mxu0
      %v3764 = vadd.f32 0.0, %v3763
      %v3765 = vpop.f32.mrf.mxu0
      %3766 = vmatprep.mubr.f32.mxu0 0.0
      %3767 = vmatmul.mubr.f32.gmra.mxu0 %v3474
      %v3768 = vpop.f32.mrf.mxu0
      %v3769 = vadd.f32 0.0, %v3768
      %v3770 = vpop.f32.mrf.mxu0
      %3771 = vmatprep.mubr.f32.mxu0 0.0
      %3772 = vmatmul.mubr.f32.gmra.mxu0 %v3477
      %v3773 = vpop.f32.mrf.mxu0
      %v3774 = vadd.f32 0.0, %v3773
      %v3775 = vpop.f32.mrf.mxu0
      %3776 = vmatprep.mubr.f32.mxu0 0.0
      %3777 = vmatmul.mubr.f32.gmra.mxu0 %v3480
      %v3778 = vpop.f32.mrf.mxu0
      %v3779 = vadd.f32 0.0, %v3778
      %v3780 = vpop.f32.mrf.mxu0
      %3781 = vmatprep.mubr.f32.mxu0 0.0
      %3782 = vmatmul.mubr.f32.gmra.mxu0 %v3483
      %v3783 = vpop.f32.mrf.mxu0
      %v3784 = vadd.f32 0.0, %v3783
      %v3785 = vpop.f32.mrf.mxu0
      %3786 = vmatprep.mubr.f32.mxu0 0.0
      %3787 = vmatmul.mubr.f32.gmra.mxu0 %v3486
      %v3788 = vpop.f32.mrf.mxu0
      %v3789 = vadd.f32 0.0, %v3788
      %v3790 = vpop.f32.mrf.mxu0
      %3791 = vmatprep.mubr.f32.mxu0 0.0
      %3792 = vmatmul.mubr.f32.gmra.mxu0 %v3489
      %v3793 = vpop.f32.mrf.mxu0
      %v3794 = vadd.f32 0.0, %v3793
      %v3795 = vpop.f32.mrf.mxu0
      %3796 = vmatprep.mubr.f32.mxu0 0.0
      %3797 = vmatmul.mubr.f32.gmra.mxu0 %v3492
      %v3798 = vpop.f32.mrf.mxu0
      %v3799 = vadd.f32 0.0, %v3798
      %v3800 = vpop.f32.mrf.mxu0
      %3801 = vmatprep.mubr.f32.mxu0 0.0
      %3802 = vmatmul.mubr.f32.gmra.mxu0 %v3495
      %v3803 = vpop.f32.mrf.mxu0
      %v3804 = vadd.f32 0.0, %v3803
      %v3805 = vpop.f32.mrf.mxu0
      %3806 = vmatprep.mubr.f32.mxu0 0.0
      %3807 = vmatmul.mubr.f32.gmra.mxu0 %v3498
      %v3808 = vpop.f32.mrf.mxu0
      %v3809 = vadd.f32 0.0, %v3808
      %v3810 = vpop.f32.mrf.mxu0
      %3811 = vmatprep.mubr.f32.mxu0 0.0
      %3812 = vmatmul.mubr.f32.gmra.mxu0 %v3501
      %v3813 = vpop.f32.mrf.mxu0
      %v3814 = vadd.f32 0.0, %v3813
      %v3815 = vpop.f32.mrf.mxu0
      %3816 = vmatprep.mubr.f32.mxu0 0.0
      %3817 = vmatmul.mubr.f32.gmra.mxu0 %v3504
      %v3818 = vpop.f32.mrf.mxu0
      %v3819 = vadd.f32 0.0, %v3818
      %v3820 = vpop.f32.mrf.mxu0
      %3821 = vmatprep.mubr.f32.mxu0 0.0
      %3822 = vmatmul.mubr.f32.gmra.mxu0 %v3507
      %v3823 = vpop.f32.mrf.mxu0
      %v3824 = vadd.f32 0.0, %v3823
      %v3825 = vpop.f32.mrf.mxu0
      %3826 = vmatprep.mubr.f32.mxu0 0.0
      %3827 = vmatmul.mubr.f32.gmra.mxu0 %v3510
      %v3828 = vpop.f32.mrf.mxu0
      %v3829 = vadd.f32 0.0, %v3828
      %v3830 = vpop.f32.mrf.mxu0
      %3831 = vmatprep.mubr.f32.mxu0 0.0
      %3832 = vmatmul.mubr.f32.gmra.mxu0 %v3513
      %v3833 = vpop.f32.mrf.mxu0
      %v3834 = vadd.f32 0.0, %v3833
      %v3835 = vpop.f32.mrf.mxu0
      %3836 = vmatprep.mubr.f32.mxu0 0.0
      %3837 = vmatmul.mubr.f32.gmra.mxu0 %v3516
      %v3838 = vpop.f32.mrf.mxu0
      %v3839 = vadd.f32 0.0, %v3838
      %v3840 = vpop.f32.mrf.mxu0
      %3841 = vmatprep.mubr.f32.mxu0 0.0
      %3842 = vmatmul.mubr.f32.gmra.mxu0 %v3519
      %v3843 = vpop.f32.mrf.mxu0
      %v3844 = vadd.f32 0.0, %v3843
      %v3845 = vpop.f32.mrf.mxu0
      %3846 = vmatprep.mubr.f32.mxu0 0.0
      %3847 = vmatmul.mubr.f32.gmra.mxu0 %v3522
      %v3848 = vpop.f32.mrf.mxu0
      %v3849 = vadd.f32 0.0, %v3848
      %v3850 = vpop.f32.mrf.mxu0
      %3851 = vmatprep.mubr.f32.mxu0 0.0
      %3852 = vmatmul.mubr.f32.gmra.mxu0 %v3525
      %v3853 = vpop.f32.mrf.mxu0
      %v3854 = vadd.f32 0.0, %v3853
      %v3855 = vpop.f32.mrf.mxu0
      %3856 = vmatprep.mubr.f32.mxu0 0.0
      %3857 = vmatmul.mubr.f32.gmra.mxu0 %v3528
      %v3858 = vpop.f32.mrf.mxu0
      %v3859 = vadd.f32 0.0, %v3858
      %v3860 = vpop.f32.mrf.mxu0
      %3861 = vmatprep.mubr.f32.mxu0 0.0
      %3862 = vmatmul.mubr.f32.gmra.mxu0 %v3531
      %v3863 = vpop.f32.mrf.mxu0
      %v3864 = vadd.f32 0.0, %v3863
      %v3865 = vpop.f32.mrf.mxu0
      %3866 = vmatprep.mubr.f32.mxu0 0.0
      %3867 = vmatmul.mubr.f32.gmra.mxu0 %v3534
      %v3868 = vpop.f32.mrf.mxu0
      %v3869 = vadd.f32 0.0, %v3868
      %v3870 = vpop.f32.mrf.mxu0
      %3871 = vmatprep.mubr.f32.mxu0 0.0
      %3872 = vmatmul.mubr.f32.gmra.mxu0 %v3537
      %v3873 = vpop.f32.mrf.mxu0
      %v3874 = vadd.f32 0.0, %v3873
      %v3875 = vpop.f32.mrf.mxu0
      %3876 = vmatprep.mubr.f32.mxu0 0.0
      %3877 = vmatmul.mubr.f32.gmra.mxu0 %v3540
      %v3878 = vpop.f32.mrf.mxu0
      %v3879 = vadd.f32 0.0, %v3878
      %v3880 = vpop.f32.mrf.mxu0
      %3881 = vmatprep.mubr.f32.mxu0 0.0
      %3882 = vmatmul.mubr.f32.gmra.mxu0 %v3543
      %v3883 = vpop.f32.mrf.mxu0
      %v3884 = vadd.f32 0.0, %v3883
      %v3885 = vpop.f32.mrf.mxu0
      %3886 = vmatprep.mubr.f32.mxu0 0.0
      %3887 = vmatmul.mubr.f32.gmra.mxu0 %v3546
      %v3888 = vpop.f32.mrf.mxu0
      %v3889 = vadd.f32 0.0, %v3888
      %v3890 = vpop.f32.mrf.mxu0
      %3891 = vmatprep.mubr.f32.mxu0 0.0
      %3892 = vmatmul.mubr.f32.gmra.mxu0 %v3549
      %v3893 = vpop.f32.mrf.mxu0
      %v3894 = vadd.f32 0.0, %v3893
      %v3895 = vpop.f32.mrf.mxu0
      %3896 = vmatprep.mubr.f32.mxu0 0.0
      %3897 = vmatmul.mubr.f32.gmra.mxu0 %v3552
      %v3898 = vpop.f32.mrf.mxu0
      %v3899 = vadd.f32 0.0, %v3898
      %v3900 = vpop.f32.mrf.mxu0
      %3901 = vmatprep.mubr.f32.mxu0 0.0
      %3902 = vmatmul.mubr.f32.gmra.mxu0 %v3555
      %v3903 = vpop.f32.mrf.mxu0
      %v3904 = vadd.f32 0.0, %v3903
      %v3905 = vpop.f32.mrf.mxu0
      %3906 = vmatprep.mubr.f32.mxu0 0.0
      %3907 = vmatmul.mubr.f32.gmra.mxu0 %v3558
      %v3908 = vpop.f32.mrf.mxu0
      %v3909 = vadd.f32 0.0, %v3908
      %v3910 = vpop.f32.mrf.mxu0
      %3911 = vmatprep.mubr.f32.mxu0 0.0
      %3912 = vmatmul.mubr.f32.gmra.mxu0 %v3561
      %v3913 = vpop.f32.mrf.mxu0
      %v3914 = vadd.f32 0.0, %v3913
      %v3915 = vpop.f32.mrf.mxu0
      %3916 = vmatprep.mubr.f32.mxu0 0.0
      %3917 = vmatmul.mubr.f32.gmra.mxu0 %v3564
      %v3918 = vpop.f32.mrf.mxu0
      %v3919 = vadd.f32 0.0, %v3918
      %v3920 = vpop.f32.mrf.mxu0
      %3921 = vmatprep.mubr.f32.mxu0 0.0
      %3922 = vmatmul.mubr.f32.gmra.mxu0 %v3567
      %v3923 = vpop.f32.mrf.mxu0
      %v3924 = vadd.f32 0.0, %v3923
      %v3925 = vpop.f32.mrf.mxu0
      %3926 = vmatprep.mubr.f32.mxu0 0.0
      %3927 = vmatmul.mubr.f32.gmra.mxu0 %v3570
      %v3928 = vpop.f32.mrf.mxu0
      %v3929 = vadd.f32 0.0, %v3928
      %v3930 = vpop.f32.mrf.mxu0
      %3931 = vmatprep.mubr.f32.mxu0 0.0
      %3932 = vmatmul.mubr.f32.gmra.mxu0 %v3573
      %v3933 = vpop.f32.mrf.mxu0
      %v3934 = vadd.f32 0.0, %v3933
      %v3935 = vpop.f32.mrf.mxu0
      %3936 = vmatprep.mubr.f32.mxu0 0.0
      %3937 = vmatmul.mubr.f32.gmra.mxu0 %v3576
      %v3938 = vpop.f32.mrf.mxu0
      %v3939 = vadd.f32 0.0, %v3938
      %v3940 = vpop.f32.mrf.mxu0
      %3941 = vmatprep.mubr.f32.mxu0 0.0
      %3942 = vmatmul.mubr.f32.gmra.mxu0 %v3579
      %v3943 = vpop.f32.mrf.mxu0
      %v3944 = vadd.f32 0.0, %v3943
      %v3945 = vpop.f32.mrf.mxu0
      %3946 = vmatprep.mubr.f32.mxu0 0.0
      %3947 = vmatmul.mubr.f32.gmra.mxu0 %v3582
      %v3948 = vpop.f32.mrf.mxu0
      %v3949 = vadd.f32 0.0, %v3948
      %v3950 = vpop.f32.mrf.mxu0
      %3951 = vmatprep.mubr.f32.mxu0 0.0
      %3952 = vmatmul.mubr.f32.gmra.mxu0 %v3585
      %v3953 = vpop.f32.mrf.mxu0
      %v3954 = vadd.f32 0.0, %v3953
      %v3955 = vpop.f32.mrf.mxu0
      %3956 = vmatprep.mubr.f32.mxu0 0.0
      %3957 = vmatmul.mubr.f32.gmra.mxu0 %v3588
      %v3958 = vpop.f32.mrf.mxu0
      %v3959 = vadd.f32 0.0, %v3958
      %v3960 = vpop.f32.mrf.mxu0
      %3961 = vmatprep.mubr.f32.mxu0 0.0
      %3962 = vmatmul.mubr.f32.gmra.mxu0 %v3591
      %v3963 = vpop.f32.mrf.mxu0
      %v3964 = vadd.f32 0.0, %v3963
      %v3965 = vpop.f32.mrf.mxu0
      %3966 = vmatprep.mubr.f32.mxu0 0.0
      %3967 = vmatmul.mubr.f32.gmra.mxu0 %v3594
      %v3968 = vpop.f32.mrf.mxu0
      %v3969 = vadd.f32 0.0, %v3968
      %v3970 = vpop.f32.mrf.mxu0
      %3971 = vmatprep.mubr.f32.mxu0 0.0
      %3972 = vmatmul.mubr.f32.gmra.mxu0 %v3597
      %v3973 = vpop.f32.mrf.mxu0
      %v3974 = vadd.f32 0.0, %v3973
      %v3975 = vpop.f32.mrf.mxu0
      %3976 = vmatprep.mubr.f32.mxu0 0.0
      %3977 = vmatmul.mubr.f32.gmra.mxu0 %v3600
      %v3978 = vpop.f32.mrf.mxu0
      %v3979 = vadd.f32 0.0, %v3978
      %v3980 = vpop.f32.mrf.mxu0
      %3981 = vmatprep.mubr.f32.mxu0 0.0
      %3982 = vmatmul.mubr.f32.gmra.mxu0 %v3603
      %v3983 = vpop.f32.mrf.mxu0
      %v3984 = vadd.f32 0.0, %v3983
      %v3985 = vpop.f32.mrf.mxu0
      %3986 = vmatprep.mubr.f32.mxu0 0.0
      %3987 = vmatmul.mubr.f32.gmra.mxu0 %v3606
      %v3988 = vpop.f32.mrf.mxu0
      %v3989 = vadd.f32 0.0, %v3988
      %v3990 = vpop.f32.mrf.mxu0
      %3991 = vmatprep.mubr.f32.mxu0 0.0
      %3992 = vmatmul.mubr.f32.gmra.mxu0 %v3609
      %v3993 = vpop.f32.mrf.mxu0
      %v3994 = vadd.f32 0.0, %v3993
      %v3995 = vpop.f32.mrf.mxu0
      %3996 = vmatprep.mubr.f32.mxu0 0.0
      %3997 = vmatmul.mubr.f32.gmra.mxu0 %v3612
      %v3998 = vpop.f32.mrf.mxu0
      %v3999 = vadd.f32 0.0, %v3998
      %v4000 = vpop.f32.mrf.mxu0
      %4001 = vdwg.mxu0
      %v4002 = vadd.f32 %v3356, %v3684
      %v4003 = vadd.f32 %v3357, %v3689
      %v4004 = vadd.f32 %v3358, %v3694
      %v4005 = vadd.f32 %v3359, %v3699
      %v4006 = vadd.f32 %v3360, %v3704
      %v4007 = vadd.f32 %v3361, %v3709
      %v4008 = vadd.f32 %v3362, %v3714
      %v4009 = vadd.f32 %v3363, %v3719
      %v4010 = vadd.f32 %v3364, %v3724
      %v4011 = vadd.f32 %v3365, %v3729
      %v4012 = vadd.f32 %v3366, %v3734
      %v4013 = vadd.f32 %v3367, %v3739
      %v4014 = vadd.f32 %v3368, %v3744
      %v4015 = vadd.f32 %v3369, %v3749
      %v4016 = vadd.f32 %v3370, %v3754
      %v4017 = vadd.f32 %v3371, %v3759
      %v4018 = vadd.f32 %v3372, %v3764
      %v4019 = vadd.f32 %v3373, %v3769
      %v4020 = vadd.f32 %v3374, %v3774
      %v4021 = vadd.f32 %v3375, %v3779
      %v4022 = vadd.f32 %v3376, %v3784
      %v4023 = vadd.f32 %v3377, %v3789
      %v4024 = vadd.f32 %v3378, %v3794
      %v4025 = vadd.f32 %v3379, %v3799
      %v4026 = vadd.f32 %v3380, %v3804
      %v4027 = vadd.f32 %v3381, %v3809
      %v4028 = vadd.f32 %v3382, %v3814
      %v4029 = vadd.f32 %v3383, %v3819
      %v4030 = vadd.f32 %v3384, %v3824
      %v4031 = vadd.f32 %v3385, %v3829
      %v4032 = vadd.f32 %v3386, %v3834
      %v4033 = vadd.f32 %v3387, %v3839
      %v4034 = vadd.f32 %v3388, %v3844
      %v4035 = vadd.f32 %v3389, %v3849
      %v4036 = vadd.f32 %v3390, %v3854
      %v4037 = vadd.f32 %v3391, %v3859
      %v4038 = vadd.f32 %v3392, %v3864
      %v4039 = vadd.f32 %v3393, %v3869
      %v4040 = vadd.f32 %v3394, %v3874
      %v4041 = vadd.f32 %v3395, %v3879
      %v4042 = vadd.f32 %v3396, %v3884
      %v4043 = vadd.f32 %v3397, %v3889
      %v4044 = vadd.f32 %v3398, %v3894
      %v4045 = vadd.f32 %v3399, %v3899
      %v4046 = vadd.f32 %v3400, %v3904
      %v4047 = vadd.f32 %v3401, %v3909
      %v4048 = vadd.f32 %v3402, %v3914
      %v4049 = vadd.f32 %v3403, %v3919
      %v4050 = vadd.f32 %v3404, %v3924
      %v4051 = vadd.f32 %v3405, %v3929
      %v4052 = vadd.f32 %v3406, %v3934
      %v4053 = vadd.f32 %v3407, %v3939
      %v4054 = vadd.f32 %v3408, %v3944
      %v4055 = vadd.f32 %v3409, %v3949
      %v4056 = vadd.f32 %v3410, %v3954
      %v4057 = vadd.f32 %v3411, %v3959
      %v4058 = vadd.f32 %v3412, %v3964
      %v4059 = vadd.f32 %v3413, %v3969
      %v4060 = vadd.f32 %v3414, %v3974
      %v4061 = vadd.f32 %v3415, %v3979
      %v4062 = vadd.f32 %v3416, %v3984
      %v4063 = vadd.f32 %v3417, %v3989
      %v4064 = vadd.f32 %v3418, %v3994
      %v4065 = vadd.f32 %v3419, %v3999
      %s4066 = scalar_lea.vmem %s2, 16
      %v4067 = vld [vmem:[%s4066] sm:$0x7]
      %v4069 = vsel %vm1676, %v1289, 0
      %v4072 = vsel %vm1676, %v1290, 0
      %v4075 = vsel %vm1676, %v1291, 0
      %v4078 = vsel %vm1676, %v1292, 0
      %v4081 = vsel %vm1676, %v1293, 0
      %v4084 = vsel %vm1676, %v1294, 0
      %v4087 = vsel %vm1676, %v1295, 0
      %v4090 = vsel %vm1676, %v1296, 0
      %v4093 = vsel %vm1676, %v1297, 0
      %v4096 = vsel %vm1676, %v1298, 0
      %v4099 = vsel %vm1676, %v1299, 0
      %v4102 = vsel %vm1676, %v1300, 0
      %v4105 = vsel %vm1676, %v1301, 0
      %v4108 = vsel %vm1676, %v1302, 0
      %v4111 = vsel %vm1676, %v1303, 0
      %v4114 = vsel %vm1676, %v1304, 0
      %v4117 = vsel %vm1676, %v1305, 0
      %v4120 = vsel %vm1676, %v1306, 0
      %v4123 = vsel %vm1676, %v1307, 0
      %v4126 = vsel %vm1676, %v1308, 0
      %v4129 = vsel %vm1676, %v1309, 0
      %v4132 = vsel %vm1676, %v1310, 0
      %v4135 = vsel %vm1676, %v1311, 0
      %v4138 = vsel %vm1676, %v1312, 0
      %v4141 = vsel %vm1676, %v1313, 0
      %v4144 = vsel %vm1676, %v1314, 0
      %v4147 = vsel %vm1676, %v1315, 0
      %v4150 = vsel %vm1676, %v1316, 0
      %v4153 = vsel %vm1676, %v1317, 0
      %v4156 = vsel %vm1676, %v1318, 0
      %v4159 = vsel %vm1676, %v1319, 0
      %v4162 = vsel %vm1676, %v1320, 0
      %v4165 = vsel %vm1676, %v1321, 0
      %v4168 = vsel %vm1676, %v1322, 0
      %v4171 = vsel %vm1676, %v1323, 0
      %v4174 = vsel %vm1676, %v1324, 0
      %v4177 = vsel %vm1676, %v1325, 0
      %v4180 = vsel %vm1676, %v1326, 0
      %v4183 = vsel %vm1676, %v1327, 0
      %v4186 = vsel %vm1676, %v1328, 0
      %v4189 = vsel %vm1676, %v1329, 0
      %v4192 = vsel %vm1676, %v1330, 0
      %v4195 = vsel %vm1676, %v1331, 0
      %v4198 = vsel %vm1676, %v1332, 0
      %v4201 = vsel %vm1676, %v1333, 0
      %v4204 = vsel %vm1676, %v1334, 0
      %v4207 = vsel %vm1676, %v1335, 0
      %v4210 = vsel %vm1676, %v1336, 0
      %v4213 = vsel %vm1676, %v1337, 0
      %v4216 = vsel %vm1676, %v1338, 0
      %v4219 = vsel %vm1676, %v1339, 0
      %v4222 = vsel %vm1676, %v1340, 0
      %v4225 = vsel %vm1676, %v1341, 0
      %v4228 = vsel %vm1676, %v1342, 0
      %v4231 = vsel %vm1676, %v1343, 0
      %v4234 = vsel %vm1676, %v1344, 0
      %v4237 = vsel %vm1676, %v1345, 0
      %v4240 = vsel %vm1676, %v1346, 0
      %v4243 = vsel %vm1676, %v1347, 0
      %v4246 = vsel %vm1676, %v1348, 0
      %v4249 = vsel %vm1676, %v1349, 0
      %v4252 = vsel %vm1676, %v1350, 0
      %v4255 = vsel %vm1676, %v1351, 0
      %v4258 = vsel %vm1676, %v1352, 0
      %v4261 = vsel %vm1869, %v4067, 0
      %4263 = vmatprep.subr.mxu0 0.0
      %4264 = vmatpush1.msra.mxu0 0.0
      %4265 = vmatprep.subr.mxu0 0.0
      %4266 = vmatpush1.msra.mxu0 0.0
      %4267 = vmatprep.subr.mxu0 0.0
      %4268 = vmatpush1.msra.mxu0 0.0
      %4269 = vmatprep.subr.mxu0 0.0
      %4270 = vmatpush1.msra.mxu0 0.0
      %4271 = vmatprep.subr.mxu0 0.0
      %4272 = vmatpush1.msra.mxu0 0.0
      %4273 = vmatprep.subr.mxu0 0.0
      %4274 = vmatpush1.msra.mxu0 0.0
      %4275 = vmatprep.subr.mxu0 0.0
      %4276 = vmatpush1.msra.mxu0 0.0
      %4277 = vmatprep.subr.mxu0 0.0
      %4278 = vmatpush1.msra.mxu0 0.0
      %4279 = vmatprep.subr.mxu0 0.0
      %4280 = vmatpush1.msra.mxu0 0.0
      %4281 = vmatprep.subr.mxu0 0.0
      %4282 = vmatpush1.msra.mxu0 0.0
      %4283 = vmatprep.subr.mxu0 0.0
      %4284 = vmatpush1.msra.mxu0 0.0
      %4285 = vmatprep.subr.mxu0 0.0
      %4286 = vmatpush1.msra.mxu0 0.0
      %4287 = vmatprep.subr.mxu0 0.0
      %4288 = vmatpush1.msra.mxu0 0.0
      %4289 = vmatprep.subr.mxu0 0.0
      %4290 = vmatpush1.msra.mxu0 0.0
      %4291 = vmatprep.subr.mxu0 0.0
      %4292 = vmatpush1.msra.mxu0 0.0
      %4293 = vmatprep.subr.mxu0 0.0
      %4294 = vmatpush1.msra.mxu0 %v4261
      %4295 = vmatprep.subr.mxu0 0.0
      %4296 = vmatpush2.msra.mxu0 0.0
      %4297 = vmatprep.subr.mxu0 0.0
      %4298 = vmatpush2.msra.mxu0 0.0
      %4299 = vmatprep.subr.mxu0 0.0
      %4300 = vmatpush2.msra.mxu0 0.0
      %4301 = vmatprep.subr.mxu0 0.0
      %4302 = vmatpush2.msra.mxu0 0.0
      %4303 = vmatprep.subr.mxu0 0.0
      %4304 = vmatpush2.msra.mxu0 0.0
      %4305 = vmatprep.subr.mxu0 0.0
      %4306 = vmatpush2.msra.mxu0 0.0
      %4307 = vmatprep.subr.mxu0 0.0
      %4308 = vmatpush2.msra.mxu0 0.0
      %4309 = vmatprep.subr.mxu0 0.0
      %4310 = vmatpush2.msra.mxu0 0.0
      %4311 = vmatprep.subr.mxu0 0.0
      %4312 = vmatpush2.msra.mxu0 0.0
      %4313 = vmatprep.subr.mxu0 0.0
      %4314 = vmatpush2.msra.mxu0 0.0
      %4315 = vmatprep.subr.mxu0 0.0
      %4316 = vmatpush2.msra.mxu0 0.0
      %4317 = vmatprep.subr.mxu0 0.0
      %4318 = vmatpush2.msra.mxu0 0.0
      %4319 = vmatprep.subr.mxu0 0.0
      %4320 = vmatpush2.msra.mxu0 0.0
      %4321 = vmatprep.subr.mxu0 0.0
      %4322 = vmatpush2.msra.mxu0 0.0
      %4323 = vmatprep.subr.mxu0 0.0
      %4324 = vmatpush2.msra.mxu0 0.0
      %4325 = vmatprep.subr.mxu0 0.0
      %4326 = vmatpush2.msra.mxu0 0.0
      %4327 = vmatprep.mubr.f32.mxu0 0.0
      %4328 = vmatmul.mubr.f32.gmra.mxu0 %v4069
      %v4329 = vpop.f32.mrf.mxu0
      %v4330 = vadd.f32 0.0, %v4329
      %v4331 = vpop.f32.mrf.mxu0
      %4332 = vmatprep.mubr.f32.mxu0 0.0
      %4333 = vmatmul.mubr.f32.gmra.mxu0 %v4072
      %v4334 = vpop.f32.mrf.mxu0
      %v4335 = vadd.f32 0.0, %v4334
      %v4336 = vpop.f32.mrf.mxu0
      %4337 = vmatprep.mubr.f32.mxu0 0.0
      %4338 = vmatmul.mubr.f32.gmra.mxu0 %v4075
      %v4339 = vpop.f32.mrf.mxu0
      %v4340 = vadd.f32 0.0, %v4339
      %v4341 = vpop.f32.mrf.mxu0
      %4342 = vmatprep.mubr.f32.mxu0 0.0
      %4343 = vmatmul.mubr.f32.gmra.mxu0 %v4078
      %v4344 = vpop.f32.mrf.mxu0
      %v4345 = vadd.f32 0.0, %v4344
      %v4346 = vpop.f32.mrf.mxu0
      %4347 = vmatprep.mubr.f32.mxu0 0.0
      %4348 = vmatmul.mubr.f32.gmra.mxu0 %v4081
      %v4349 = vpop.f32.mrf.mxu0
      %v4350 = vadd.f32 0.0, %v4349
      %v4351 = vpop.f32.mrf.mxu0
      %4352 = vmatprep.mubr.f32.mxu0 0.0
      %4353 = vmatmul.mubr.f32.gmra.mxu0 %v4084
      %v4354 = vpop.f32.mrf.mxu0
      %v4355 = vadd.f32 0.0, %v4354
      %v4356 = vpop.f32.mrf.mxu0
      %4357 = vmatprep.mubr.f32.mxu0 0.0
      %4358 = vmatmul.mubr.f32.gmra.mxu0 %v4087
      %v4359 = vpop.f32.mrf.mxu0
      %v4360 = vadd.f32 0.0, %v4359
      %v4361 = vpop.f32.mrf.mxu0
      %4362 = vmatprep.mubr.f32.mxu0 0.0
      %4363 = vmatmul.mubr.f32.gmra.mxu0 %v4090
      %v4364 = vpop.f32.mrf.mxu0
      %v4365 = vadd.f32 0.0, %v4364
      %v4366 = vpop.f32.mrf.mxu0
      %4367 = vmatprep.mubr.f32.mxu0 0.0
      %4368 = vmatmul.mubr.f32.gmra.mxu0 %v4093
      %v4369 = vpop.f32.mrf.mxu0
      %v4370 = vadd.f32 0.0, %v4369
      %v4371 = vpop.f32.mrf.mxu0
      %4372 = vmatprep.mubr.f32.mxu0 0.0
      %4373 = vmatmul.mubr.f32.gmra.mxu0 %v4096
      %v4374 = vpop.f32.mrf.mxu0
      %v4375 = vadd.f32 0.0, %v4374
      %v4376 = vpop.f32.mrf.mxu0
      %4377 = vmatprep.mubr.f32.mxu0 0.0
      %4378 = vmatmul.mubr.f32.gmra.mxu0 %v4099
      %v4379 = vpop.f32.mrf.mxu0
      %v4380 = vadd.f32 0.0, %v4379
      %v4381 = vpop.f32.mrf.mxu0
      %4382 = vmatprep.mubr.f32.mxu0 0.0
      %4383 = vmatmul.mubr.f32.gmra.mxu0 %v4102
      %v4384 = vpop.f32.mrf.mxu0
      %v4385 = vadd.f32 0.0, %v4384
      %v4386 = vpop.f32.mrf.mxu0
      %4387 = vmatprep.mubr.f32.mxu0 0.0
      %4388 = vmatmul.mubr.f32.gmra.mxu0 %v4105
      %v4389 = vpop.f32.mrf.mxu0
      %v4390 = vadd.f32 0.0, %v4389
      %v4391 = vpop.f32.mrf.mxu0
      %4392 = vmatprep.mubr.f32.mxu0 0.0
      %4393 = vmatmul.mubr.f32.gmra.mxu0 %v4108
      %v4394 = vpop.f32.mrf.mxu0
      %v4395 = vadd.f32 0.0, %v4394
      %v4396 = vpop.f32.mrf.mxu0
      %4397 = vmatprep.mubr.f32.mxu0 0.0
      %4398 = vmatmul.mubr.f32.gmra.mxu0 %v4111
      %v4399 = vpop.f32.mrf.mxu0
      %v4400 = vadd.f32 0.0, %v4399
      %v4401 = vpop.f32.mrf.mxu0
      %4402 = vmatprep.mubr.f32.mxu0 0.0
      %4403 = vmatmul.mubr.f32.gmra.mxu0 %v4114
      %v4404 = vpop.f32.mrf.mxu0
      %v4405 = vadd.f32 0.0, %v4404
      %v4406 = vpop.f32.mrf.mxu0
      %4407 = vmatprep.mubr.f32.mxu0 0.0
      %4408 = vmatmul.mubr.f32.gmra.mxu0 %v4117
      %v4409 = vpop.f32.mrf.mxu0
      %v4410 = vadd.f32 0.0, %v4409
      %v4411 = vpop.f32.mrf.mxu0
      %4412 = vmatprep.mubr.f32.mxu0 0.0
      %4413 = vmatmul.mubr.f32.gmra.mxu0 %v4120
      %v4414 = vpop.f32.mrf.mxu0
      %v4415 = vadd.f32 0.0, %v4414
      %v4416 = vpop.f32.mrf.mxu0
      %4417 = vmatprep.mubr.f32.mxu0 0.0
      %4418 = vmatmul.mubr.f32.gmra.mxu0 %v4123
      %v4419 = vpop.f32.mrf.mxu0
      %v4420 = vadd.f32 0.0, %v4419
      %v4421 = vpop.f32.mrf.mxu0
      %4422 = vmatprep.mubr.f32.mxu0 0.0
      %4423 = vmatmul.mubr.f32.gmra.mxu0 %v4126
      %v4424 = vpop.f32.mrf.mxu0
      %v4425 = vadd.f32 0.0, %v4424
      %v4426 = vpop.f32.mrf.mxu0
      %4427 = vmatprep.mubr.f32.mxu0 0.0
      %4428 = vmatmul.mubr.f32.gmra.mxu0 %v4129
      %v4429 = vpop.f32.mrf.mxu0
      %v4430 = vadd.f32 0.0, %v4429
      %v4431 = vpop.f32.mrf.mxu0
      %4432 = vmatprep.mubr.f32.mxu0 0.0
      %4433 = vmatmul.mubr.f32.gmra.mxu0 %v4132
      %v4434 = vpop.f32.mrf.mxu0
      %v4435 = vadd.f32 0.0, %v4434
      %v4436 = vpop.f32.mrf.mxu0
      %4437 = vmatprep.mubr.f32.mxu0 0.0
      %4438 = vmatmul.mubr.f32.gmra.mxu0 %v4135
      %v4439 = vpop.f32.mrf.mxu0
      %v4440 = vadd.f32 0.0, %v4439
      %v4441 = vpop.f32.mrf.mxu0
      %4442 = vmatprep.mubr.f32.mxu0 0.0
      %4443 = vmatmul.mubr.f32.gmra.mxu0 %v4138
      %v4444 = vpop.f32.mrf.mxu0
      %v4445 = vadd.f32 0.0, %v4444
      %v4446 = vpop.f32.mrf.mxu0
      %4447 = vmatprep.mubr.f32.mxu0 0.0
      %4448 = vmatmul.mubr.f32.gmra.mxu0 %v4141
      %v4449 = vpop.f32.mrf.mxu0
      %v4450 = vadd.f32 0.0, %v4449
      %v4451 = vpop.f32.mrf.mxu0
      %4452 = vmatprep.mubr.f32.mxu0 0.0
      %4453 = vmatmul.mubr.f32.gmra.mxu0 %v4144
      %v4454 = vpop.f32.mrf.mxu0
      %v4455 = vadd.f32 0.0, %v4454
      %v4456 = vpop.f32.mrf.mxu0
      %4457 = vmatprep.mubr.f32.mxu0 0.0
      %4458 = vmatmul.mubr.f32.gmra.mxu0 %v4147
      %v4459 = vpop.f32.mrf.mxu0
      %v4460 = vadd.f32 0.0, %v4459
      %v4461 = vpop.f32.mrf.mxu0
      %4462 = vmatprep.mubr.f32.mxu0 0.0
      %4463 = vmatmul.mubr.f32.gmra.mxu0 %v4150
      %v4464 = vpop.f32.mrf.mxu0
      %v4465 = vadd.f32 0.0, %v4464
      %v4466 = vpop.f32.mrf.mxu0
      %4467 = vmatprep.mubr.f32.mxu0 0.0
      %4468 = vmatmul.mubr.f32.gmra.mxu0 %v4153
      %v4469 = vpop.f32.mrf.mxu0
      %v4470 = vadd.f32 0.0, %v4469
      %v4471 = vpop.f32.mrf.mxu0
      %4472 = vmatprep.mubr.f32.mxu0 0.0
      %4473 = vmatmul.mubr.f32.gmra.mxu0 %v4156
      %v4474 = vpop.f32.mrf.mxu0
      %v4475 = vadd.f32 0.0, %v4474
      %v4476 = vpop.f32.mrf.mxu0
      %4477 = vmatprep.mubr.f32.mxu0 0.0
      %4478 = vmatmul.mubr.f32.gmra.mxu0 %v4159
      %v4479 = vpop.f32.mrf.mxu0
      %v4480 = vadd.f32 0.0, %v4479
      %v4481 = vpop.f32.mrf.mxu0
      %4482 = vmatprep.mubr.f32.mxu0 0.0
      %4483 = vmatmul.mubr.f32.gmra.mxu0 %v4162
      %v4484 = vpop.f32.mrf.mxu0
      %v4485 = vadd.f32 0.0, %v4484
      %v4486 = vpop.f32.mrf.mxu0
      %4487 = vmatprep.mubr.f32.mxu0 0.0
      %4488 = vmatmul.mubr.f32.gmra.mxu0 %v4165
      %v4489 = vpop.f32.mrf.mxu0
      %v4490 = vadd.f32 0.0, %v4489
      %v4491 = vpop.f32.mrf.mxu0
      %4492 = vmatprep.mubr.f32.mxu0 0.0
      %4493 = vmatmul.mubr.f32.gmra.mxu0 %v4168
      %v4494 = vpop.f32.mrf.mxu0
      %v4495 = vadd.f32 0.0, %v4494
      %v4496 = vpop.f32.mrf.mxu0
      %4497 = vmatprep.mubr.f32.mxu0 0.0
      %4498 = vmatmul.mubr.f32.gmra.mxu0 %v4171
      %v4499 = vpop.f32.mrf.mxu0
      %v4500 = vadd.f32 0.0, %v4499
      %v4501 = vpop.f32.mrf.mxu0
      %4502 = vmatprep.mubr.f32.mxu0 0.0
      %4503 = vmatmul.mubr.f32.gmra.mxu0 %v4174
      %v4504 = vpop.f32.mrf.mxu0
      %v4505 = vadd.f32 0.0, %v4504
      %v4506 = vpop.f32.mrf.mxu0
      %4507 = vmatprep.mubr.f32.mxu0 0.0
      %4508 = vmatmul.mubr.f32.gmra.mxu0 %v4177
      %v4509 = vpop.f32.mrf.mxu0
      %v4510 = vadd.f32 0.0, %v4509
      %v4511 = vpop.f32.mrf.mxu0
      %4512 = vmatprep.mubr.f32.mxu0 0.0
      %4513 = vmatmul.mubr.f32.gmra.mxu0 %v4180
      %v4514 = vpop.f32.mrf.mxu0
      %v4515 = vadd.f32 0.0, %v4514
      %v4516 = vpop.f32.mrf.mxu0
      %4517 = vmatprep.mubr.f32.mxu0 0.0
      %4518 = vmatmul.mubr.f32.gmra.mxu0 %v4183
      %v4519 = vpop.f32.mrf.mxu0
      %v4520 = vadd.f32 0.0, %v4519
      %v4521 = vpop.f32.mrf.mxu0
      %4522 = vmatprep.mubr.f32.mxu0 0.0
      %4523 = vmatmul.mubr.f32.gmra.mxu0 %v4186
      %v4524 = vpop.f32.mrf.mxu0
      %v4525 = vadd.f32 0.0, %v4524
      %v4526 = vpop.f32.mrf.mxu0
      %4527 = vmatprep.mubr.f32.mxu0 0.0
      %4528 = vmatmul.mubr.f32.gmra.mxu0 %v4189
      %v4529 = vpop.f32.mrf.mxu0
      %v4530 = vadd.f32 0.0, %v4529
      %v4531 = vpop.f32.mrf.mxu0
      %4532 = vmatprep.mubr.f32.mxu0 0.0
      %4533 = vmatmul.mubr.f32.gmra.mxu0 %v4192
      %v4534 = vpop.f32.mrf.mxu0
      %v4535 = vadd.f32 0.0, %v4534
      %v4536 = vpop.f32.mrf.mxu0
      %4537 = vmatprep.mubr.f32.mxu0 0.0
      %4538 = vmatmul.mubr.f32.gmra.mxu0 %v4195
      %v4539 = vpop.f32.mrf.mxu0
      %v4540 = vadd.f32 0.0, %v4539
      %v4541 = vpop.f32.mrf.mxu0
      %4542 = vmatprep.mubr.f32.mxu0 0.0
      %4543 = vmatmul.mubr.f32.gmra.mxu0 %v4198
      %v4544 = vpop.f32.mrf.mxu0
      %v4545 = vadd.f32 0.0, %v4544
      %v4546 = vpop.f32.mrf.mxu0
      %4547 = vmatprep.mubr.f32.mxu0 0.0
      %4548 = vmatmul.mubr.f32.gmra.mxu0 %v4201
      %v4549 = vpop.f32.mrf.mxu0
      %v4550 = vadd.f32 0.0, %v4549
      %v4551 = vpop.f32.mrf.mxu0
      %4552 = vmatprep.mubr.f32.mxu0 0.0
      %4553 = vmatmul.mubr.f32.gmra.mxu0 %v4204
      %v4554 = vpop.f32.mrf.mxu0
      %v4555 = vadd.f32 0.0, %v4554
      %v4556 = vpop.f32.mrf.mxu0
      %4557 = vmatprep.mubr.f32.mxu0 0.0
      %4558 = vmatmul.mubr.f32.gmra.mxu0 %v4207
      %v4559 = vpop.f32.mrf.mxu0
      %v4560 = vadd.f32 0.0, %v4559
      %v4561 = vpop.f32.mrf.mxu0
      %4562 = vmatprep.mubr.f32.mxu0 0.0
      %4563 = vmatmul.mubr.f32.gmra.mxu0 %v4210
      %v4564 = vpop.f32.mrf.mxu0
      %v4565 = vadd.f32 0.0, %v4564
      %v4566 = vpop.f32.mrf.mxu0
      %4567 = vmatprep.mubr.f32.mxu0 0.0
      %4568 = vmatmul.mubr.f32.gmra.mxu0 %v4213
      %v4569 = vpop.f32.mrf.mxu0
      %v4570 = vadd.f32 0.0, %v4569
      %v4571 = vpop.f32.mrf.mxu0
      %4572 = vmatprep.mubr.f32.mxu0 0.0
      %4573 = vmatmul.mubr.f32.gmra.mxu0 %v4216
      %v4574 = vpop.f32.mrf.mxu0
      %v4575 = vadd.f32 0.0, %v4574
      %v4576 = vpop.f32.mrf.mxu0
      %4577 = vmatprep.mubr.f32.mxu0 0.0
      %4578 = vmatmul.mubr.f32.gmra.mxu0 %v4219
      %v4579 = vpop.f32.mrf.mxu0
      %v4580 = vadd.f32 0.0, %v4579
      %v4581 = vpop.f32.mrf.mxu0
      %4582 = vmatprep.mubr.f32.mxu0 0.0
      %4583 = vmatmul.mubr.f32.gmra.mxu0 %v4222
      %v4584 = vpop.f32.mrf.mxu0
      %v4585 = vadd.f32 0.0, %v4584
      %v4586 = vpop.f32.mrf.mxu0
      %4587 = vmatprep.mubr.f32.mxu0 0.0
      %4588 = vmatmul.mubr.f32.gmra.mxu0 %v4225
      %v4589 = vpop.f32.mrf.mxu0
      %v4590 = vadd.f32 0.0, %v4589
      %v4591 = vpop.f32.mrf.mxu0
      %4592 = vmatprep.mubr.f32.mxu0 0.0
      %4593 = vmatmul.mubr.f32.gmra.mxu0 %v4228
      %v4594 = vpop.f32.mrf.mxu0
      %v4595 = vadd.f32 0.0, %v4594
      %v4596 = vpop.f32.mrf.mxu0
      %4597 = vmatprep.mubr.f32.mxu0 0.0
      %4598 = vmatmul.mubr.f32.gmra.mxu0 %v4231
      %v4599 = vpop.f32.mrf.mxu0
      %v4600 = vadd.f32 0.0, %v4599
      %v4601 = vpop.f32.mrf.mxu0
      %4602 = vmatprep.mubr.f32.mxu0 0.0
      %4603 = vmatmul.mubr.f32.gmra.mxu0 %v4234
      %v4604 = vpop.f32.mrf.mxu0
      %v4605 = vadd.f32 0.0, %v4604
      %v4606 = vpop.f32.mrf.mxu0
      %4607 = vmatprep.mubr.f32.mxu0 0.0
      %4608 = vmatmul.mubr.f32.gmra.mxu0 %v4237
      %v4609 = vpop.f32.mrf.mxu0
      %v4610 = vadd.f32 0.0, %v4609
      %v4611 = vpop.f32.mrf.mxu0
      %4612 = vmatprep.mubr.f32.mxu0 0.0
      %4613 = vmatmul.mubr.f32.gmra.mxu0 %v4240
      %v4614 = vpop.f32.mrf.mxu0
      %v4615 = vadd.f32 0.0, %v4614
      %v4616 = vpop.f32.mrf.mxu0
      %4617 = vmatprep.mubr.f32.mxu0 0.0
      %4618 = vmatmul.mubr.f32.gmra.mxu0 %v4243
      %v4619 = vpop.f32.mrf.mxu0
      %v4620 = vadd.f32 0.0, %v4619
      %v4621 = vpop.f32.mrf.mxu0
      %4622 = vmatprep.mubr.f32.mxu0 0.0
      %4623 = vmatmul.mubr.f32.gmra.mxu0 %v4246
      %v4624 = vpop.f32.mrf.mxu0
      %v4625 = vadd.f32 0.0, %v4624
      %v4626 = vpop.f32.mrf.mxu0
      %4627 = vmatprep.mubr.f32.mxu0 0.0
      %4628 = vmatmul.mubr.f32.gmra.mxu0 %v4249
      %v4629 = vpop.f32.mrf.mxu0
      %v4630 = vadd.f32 0.0, %v4629
      %v4631 = vpop.f32.mrf.mxu0
      %4632 = vmatprep.mubr.f32.mxu0 0.0
      %4633 = vmatmul.mubr.f32.gmra.mxu0 %v4252
      %v4634 = vpop.f32.mrf.mxu0
      %v4635 = vadd.f32 0.0, %v4634
      %v4636 = vpop.f32.mrf.mxu0
      %4637 = vmatprep.mubr.f32.mxu0 0.0
      %4638 = vmatmul.mubr.f32.gmra.mxu0 %v4255
      %v4639 = vpop.f32.mrf.mxu0
      %v4640 = vadd.f32 0.0, %v4639
      %v4641 = vpop.f32.mrf.mxu0
      %4642 = vmatprep.mubr.f32.mxu0 0.0
      %4643 = vmatmul.mubr.f32.gmra.mxu0 %v4258
      %v4644 = vpop.f32.mrf.mxu0
      %v4645 = vadd.f32 0.0, %v4644
      %v4646 = vpop.f32.mrf.mxu0
      %4647 = vdwg.mxu0
      %v4648 = vadd.f32 %v4002, %v4330
      %v4649 = vadd.f32 %v4003, %v4335
      %v4650 = vadd.f32 %v4004, %v4340
      %v4651 = vadd.f32 %v4005, %v4345
      %v4652 = vadd.f32 %v4006, %v4350
      %v4653 = vadd.f32 %v4007, %v4355
      %v4654 = vadd.f32 %v4008, %v4360
      %v4655 = vadd.f32 %v4009, %v4365
      %v4656 = vadd.f32 %v4010, %v4370
      %v4657 = vadd.f32 %v4011, %v4375
      %v4658 = vadd.f32 %v4012, %v4380
      %v4659 = vadd.f32 %v4013, %v4385
      %v4660 = vadd.f32 %v4014, %v4390
      %v4661 = vadd.f32 %v4015, %v4395
      %v4662 = vadd.f32 %v4016, %v4400
      %v4663 = vadd.f32 %v4017, %v4405
      %v4664 = vadd.f32 %v4018, %v4410
      %v4665 = vadd.f32 %v4019, %v4415
      %v4666 = vadd.f32 %v4020, %v4420
      %v4667 = vadd.f32 %v4021, %v4425
      %v4668 = vadd.f32 %v4022, %v4430
      %v4669 = vadd.f32 %v4023, %v4435
      %v4670 = vadd.f32 %v4024, %v4440
      %v4671 = vadd.f32 %v4025, %v4445
      %v4672 = vadd.f32 %v4026, %v4450
      %v4673 = vadd.f32 %v4027, %v4455
      %v4674 = vadd.f32 %v4028, %v4460
      %v4675 = vadd.f32 %v4029, %v4465
      %v4676 = vadd.f32 %v4030, %v4470
      %v4677 = vadd.f32 %v4031, %v4475
      %v4678 = vadd.f32 %v4032, %v4480
      %v4679 = vadd.f32 %v4033, %v4485
      %v4680 = vadd.f32 %v4034, %v4490
      %v4681 = vadd.f32 %v4035, %v4495
      %v4682 = vadd.f32 %v4036, %v4500
      %v4683 = vadd.f32 %v4037, %v4505
      %v4684 = vadd.f32 %v4038, %v4510
      %v4685 = vadd.f32 %v4039, %v4515
      %v4686 = vadd.f32 %v4040, %v4520
      %v4687 = vadd.f32 %v4041, %v4525
      %v4688 = vadd.f32 %v4042, %v4530
      %v4689 = vadd.f32 %v4043, %v4535
      %v4690 = vadd.f32 %v4044, %v4540
      %v4691 = vadd.f32 %v4045, %v4545
      %v4692 = vadd.f32 %v4046, %v4550
      %v4693 = vadd.f32 %v4047, %v4555
      %v4694 = vadd.f32 %v4048, %v4560
      %v4695 = vadd.f32 %v4049, %v4565
      %v4696 = vadd.f32 %v4050, %v4570
      %v4697 = vadd.f32 %v4051, %v4575
      %v4698 = vadd.f32 %v4052, %v4580
      %v4699 = vadd.f32 %v4053, %v4585
      %v4700 = vadd.f32 %v4054, %v4590
      %v4701 = vadd.f32 %v4055, %v4595
      %v4702 = vadd.f32 %v4056, %v4600
      %v4703 = vadd.f32 %v4057, %v4605
      %v4704 = vadd.f32 %v4058, %v4610
      %v4705 = vadd.f32 %v4059, %v4615
      %v4706 = vadd.f32 %v4060, %v4620
      %v4707 = vadd.f32 %v4061, %v4625
      %v4708 = vadd.f32 %v4062, %v4630
      %v4709 = vadd.f32 %v4063, %v4635
      %v4710 = vadd.f32 %v4064, %v4640
      %v4711 = vadd.f32 %v4065, %v4645
      %s4712 = scalar_lea.vmem %s2, 20
      %v4713 = vld [vmem:[%s4712] sm:$0x7]
      %v4715 = vsel %vm1676, %v1353, 0
      %v4718 = vsel %vm1676, %v1354, 0
      %v4721 = vsel %vm1676, %v1355, 0
      %v4724 = vsel %vm1676, %v1356, 0
      %v4727 = vsel %vm1676, %v1357, 0
      %v4730 = vsel %vm1676, %v1358, 0
      %v4733 = vsel %vm1676, %v1359, 0
      %v4736 = vsel %vm1676, %v1360, 0
      %v4739 = vsel %vm1676, %v1361, 0
      %v4742 = vsel %vm1676, %v1362, 0
      %v4745 = vsel %vm1676, %v1363, 0
      %v4748 = vsel %vm1676, %v1364, 0
      %v4751 = vsel %vm1676, %v1365, 0
      %v4754 = vsel %vm1676, %v1366, 0
      %v4757 = vsel %vm1676, %v1367, 0
      %v4760 = vsel %vm1676, %v1368, 0
      %v4763 = vsel %vm1676, %v1369, 0
      %v4766 = vsel %vm1676, %v1370, 0
      %v4769 = vsel %vm1676, %v1371, 0
      %v4772 = vsel %vm1676, %v1372, 0
      %v4775 = vsel %vm1676, %v1373, 0
      %v4778 = vsel %vm1676, %v1374, 0
      %v4781 = vsel %vm1676, %v1375, 0
      %v4784 = vsel %vm1676, %v1376, 0
      %v4787 = vsel %vm1676, %v1377, 0
      %v4790 = vsel %vm1676, %v1378, 0
      %v4793 = vsel %vm1676, %v1379, 0
      %v4796 = vsel %vm1676, %v1380, 0
      %v4799 = vsel %vm1676, %v1381, 0
      %v4802 = vsel %vm1676, %v1382, 0
      %v4805 = vsel %vm1676, %v1383, 0
      %v4808 = vsel %vm1676, %v1384, 0
      %v4811 = vsel %vm1676, %v1385, 0
      %v4814 = vsel %vm1676, %v1386, 0
      %v4817 = vsel %vm1676, %v1387, 0
      %v4820 = vsel %vm1676, %v1388, 0
      %v4823 = vsel %vm1676, %v1389, 0
      %v4826 = vsel %vm1676, %v1390, 0
      %v4829 = vsel %vm1676, %v1391, 0
      %v4832 = vsel %vm1676, %v1392, 0
      %v4835 = vsel %vm1676, %v1393, 0
      %v4838 = vsel %vm1676, %v1394, 0
      %v4841 = vsel %vm1676, %v1395, 0
      %v4844 = vsel %vm1676, %v1396, 0
      %v4847 = vsel %vm1676, %v1397, 0
      %v4850 = vsel %vm1676, %v1398, 0
      %v4853 = vsel %vm1676, %v1399, 0
      %v4856 = vsel %vm1676, %v1400, 0
      %v4859 = vsel %vm1676, %v1401, 0
      %v4862 = vsel %vm1676, %v1402, 0
      %v4865 = vsel %vm1676, %v1403, 0
      %v4868 = vsel %vm1676, %v1404, 0
      %v4871 = vsel %vm1676, %v1405, 0
      %v4874 = vsel %vm1676, %v1406, 0
      %v4877 = vsel %vm1676, %v1407, 0
      %v4880 = vsel %vm1676, %v1408, 0
      %v4883 = vsel %vm1676, %v1409, 0
      %v4886 = vsel %vm1676, %v1410, 0
      %v4889 = vsel %vm1676, %v1411, 0
      %v4892 = vsel %vm1676, %v1412, 0
      %v4895 = vsel %vm1676, %v1413, 0
      %v4898 = vsel %vm1676, %v1414, 0
      %v4901 = vsel %vm1676, %v1415, 0
      %v4904 = vsel %vm1676, %v1416, 0
      %v4907 = vsel %vm1869, %v4713, 0
      %4909 = vmatprep.subr.mxu0 0.0
      %4910 = vmatpush1.msra.mxu0 0.0
      %4911 = vmatprep.subr.mxu0 0.0
      %4912 = vmatpush1.msra.mxu0 0.0
      %4913 = vmatprep.subr.mxu0 0.0
      %4914 = vmatpush1.msra.mxu0 0.0
      %4915 = vmatprep.subr.mxu0 0.0
      %4916 = vmatpush1.msra.mxu0 0.0
      %4917 = vmatprep.subr.mxu0 0.0
      %4918 = vmatpush1.msra.mxu0 0.0
      %4919 = vmatprep.subr.mxu0 0.0
      %4920 = vmatpush1.msra.mxu0 0.0
      %4921 = vmatprep.subr.mxu0 0.0
      %4922 = vmatpush1.msra.mxu0 0.0
      %4923 = vmatprep.subr.mxu0 0.0
      %4924 = vmatpush1.msra.mxu0 0.0
      %4925 = vmatprep.subr.mxu0 0.0
      %4926 = vmatpush1.msra.mxu0 0.0
      %4927 = vmatprep.subr.mxu0 0.0
      %4928 = vmatpush1.msra.mxu0 0.0
      %4929 = vmatprep.subr.mxu0 0.0
      %4930 = vmatpush1.msra.mxu0 0.0
      %4931 = vmatprep.subr.mxu0 0.0
      %4932 = vmatpush1.msra.mxu0 0.0
      %4933 = vmatprep.subr.mxu0 0.0
      %4934 = vmatpush1.msra.mxu0 0.0
      %4935 = vmatprep.subr.mxu0 0.0
      %4936 = vmatpush1.msra.mxu0 0.0
      %4937 = vmatprep.subr.mxu0 0.0
      %4938 = vmatpush1.msra.mxu0 0.0
      %4939 = vmatprep.subr.mxu0 0.0
      %4940 = vmatpush1.msra.mxu0 %v4907
      %4941 = vmatprep.subr.mxu0 0.0
      %4942 = vmatpush2.msra.mxu0 0.0
      %4943 = vmatprep.subr.mxu0 0.0
      %4944 = vmatpush2.msra.mxu0 0.0
      %4945 = vmatprep.subr.mxu0 0.0
      %4946 = vmatpush2.msra.mxu0 0.0
      %4947 = vmatprep.subr.mxu0 0.0
      %4948 = vmatpush2.msra.mxu0 0.0
      %4949 = vmatprep.subr.mxu0 0.0
      %4950 = vmatpush2.msra.mxu0 0.0
      %4951 = vmatprep.subr.mxu0 0.0
      %4952 = vmatpush2.msra.mxu0 0.0
      %4953 = vmatprep.subr.mxu0 0.0
      %4954 = vmatpush2.msra.mxu0 0.0
      %4955 = vmatprep.subr.mxu0 0.0
      %4956 = vmatpush2.msra.mxu0 0.0
      %4957 = vmatprep.subr.mxu0 0.0
      %4958 = vmatpush2.msra.mxu0 0.0
      %4959 = vmatprep.subr.mxu0 0.0
      %4960 = vmatpush2.msra.mxu0 0.0
      %4961 = vmatprep.subr.mxu0 0.0
      %4962 = vmatpush2.msra.mxu0 0.0
      %4963 = vmatprep.subr.mxu0 0.0
      %4964 = vmatpush2.msra.mxu0 0.0
      %4965 = vmatprep.subr.mxu0 0.0
      %4966 = vmatpush2.msra.mxu0 0.0
      %4967 = vmatprep.subr.mxu0 0.0
      %4968 = vmatpush2.msra.mxu0 0.0
      %4969 = vmatprep.subr.mxu0 0.0
      %4970 = vmatpush2.msra.mxu0 0.0
      %4971 = vmatprep.subr.mxu0 0.0
      %4972 = vmatpush2.msra.mxu0 0.0
      %4973 = vmatprep.mubr.f32.mxu0 0.0
      %4974 = vmatmul.mubr.f32.gmra.mxu0 %v4715
      %v4975 = vpop.f32.mrf.mxu0
      %v4976 = vadd.f32 0.0, %v4975
      %v4977 = vpop.f32.mrf.mxu0
      %4978 = vmatprep.mubr.f32.mxu0 0.0
      %4979 = vmatmul.mubr.f32.gmra.mxu0 %v4718
      %v4980 = vpop.f32.mrf.mxu0
      %v4981 = vadd.f32 0.0, %v4980
      %v4982 = vpop.f32.mrf.mxu0
      %4983 = vmatprep.mubr.f32.mxu0 0.0
      %4984 = vmatmul.mubr.f32.gmra.mxu0 %v4721
      %v4985 = vpop.f32.mrf.mxu0
      %v4986 = vadd.f32 0.0, %v4985
      %v4987 = vpop.f32.mrf.mxu0
      %4988 = vmatprep.mubr.f32.mxu0 0.0
      %4989 = vmatmul.mubr.f32.gmra.mxu0 %v4724
      %v4990 = vpop.f32.mrf.mxu0
      %v4991 = vadd.f32 0.0, %v4990
      %v4992 = vpop.f32.mrf.mxu0
      %4993 = vmatprep.mubr.f32.mxu0 0.0
      %4994 = vmatmul.mubr.f32.gmra.mxu0 %v4727
      %v4995 = vpop.f32.mrf.mxu0
      %v4996 = vadd.f32 0.0, %v4995
      %v4997 = vpop.f32.mrf.mxu0
      %4998 = vmatprep.mubr.f32.mxu0 0.0
      %4999 = vmatmul.mubr.f32.gmra.mxu0 %v4730
      %v5000 = vpop.f32.mrf.mxu0
      %v5001 = vadd.f32 0.0, %v5000
      %v5002 = vpop.f32.mrf.mxu0
      %5003 = vmatprep.mubr.f32.mxu0 0.0
      %5004 = vmatmul.mubr.f32.gmra.mxu0 %v4733
      %v5005 = vpop.f32.mrf.mxu0
      %v5006 = vadd.f32 0.0, %v5005
      %v5007 = vpop.f32.mrf.mxu0
      %5008 = vmatprep.mubr.f32.mxu0 0.0
      %5009 = vmatmul.mubr.f32.gmra.mxu0 %v4736
      %v5010 = vpop.f32.mrf.mxu0
      %v5011 = vadd.f32 0.0, %v5010
      %v5012 = vpop.f32.mrf.mxu0
      %5013 = vmatprep.mubr.f32.mxu0 0.0
      %5014 = vmatmul.mubr.f32.gmra.mxu0 %v4739
      %v5015 = vpop.f32.mrf.mxu0
      %v5016 = vadd.f32 0.0, %v5015
      %v5017 = vpop.f32.mrf.mxu0
      %5018 = vmatprep.mubr.f32.mxu0 0.0
      %5019 = vmatmul.mubr.f32.gmra.mxu0 %v4742
      %v5020 = vpop.f32.mrf.mxu0
      %v5021 = vadd.f32 0.0, %v5020
      %v5022 = vpop.f32.mrf.mxu0
      %5023 = vmatprep.mubr.f32.mxu0 0.0
      %5024 = vmatmul.mubr.f32.gmra.mxu0 %v4745
      %v5025 = vpop.f32.mrf.mxu0
      %v5026 = vadd.f32 0.0, %v5025
      %v5027 = vpop.f32.mrf.mxu0
      %5028 = vmatprep.mubr.f32.mxu0 0.0
      %5029 = vmatmul.mubr.f32.gmra.mxu0 %v4748
      %v5030 = vpop.f32.mrf.mxu0
      %v5031 = vadd.f32 0.0, %v5030
      %v5032 = vpop.f32.mrf.mxu0
      %5033 = vmatprep.mubr.f32.mxu0 0.0
      %5034 = vmatmul.mubr.f32.gmra.mxu0 %v4751
      %v5035 = vpop.f32.mrf.mxu0
      %v5036 = vadd.f32 0.0, %v5035
      %v5037 = vpop.f32.mrf.mxu0
      %5038 = vmatprep.mubr.f32.mxu0 0.0
      %5039 = vmatmul.mubr.f32.gmra.mxu0 %v4754
      %v5040 = vpop.f32.mrf.mxu0
      %v5041 = vadd.f32 0.0, %v5040
      %v5042 = vpop.f32.mrf.mxu0
      %5043 = vmatprep.mubr.f32.mxu0 0.0
      %5044 = vmatmul.mubr.f32.gmra.mxu0 %v4757
      %v5045 = vpop.f32.mrf.mxu0
      %v5046 = vadd.f32 0.0, %v5045
      %v5047 = vpop.f32.mrf.mxu0
      %5048 = vmatprep.mubr.f32.mxu0 0.0
      %5049 = vmatmul.mubr.f32.gmra.mxu0 %v4760
      %v5050 = vpop.f32.mrf.mxu0
      %v5051 = vadd.f32 0.0, %v5050
      %v5052 = vpop.f32.mrf.mxu0
      %5053 = vmatprep.mubr.f32.mxu0 0.0
      %5054 = vmatmul.mubr.f32.gmra.mxu0 %v4763
      %v5055 = vpop.f32.mrf.mxu0
      %v5056 = vadd.f32 0.0, %v5055
      %v5057 = vpop.f32.mrf.mxu0
      %5058 = vmatprep.mubr.f32.mxu0 0.0
      %5059 = vmatmul.mubr.f32.gmra.mxu0 %v4766
      %v5060 = vpop.f32.mrf.mxu0
      %v5061 = vadd.f32 0.0, %v5060
      %v5062 = vpop.f32.mrf.mxu0
      %5063 = vmatprep.mubr.f32.mxu0 0.0
      %5064 = vmatmul.mubr.f32.gmra.mxu0 %v4769
      %v5065 = vpop.f32.mrf.mxu0
      %v5066 = vadd.f32 0.0, %v5065
      %v5067 = vpop.f32.mrf.mxu0
      %5068 = vmatprep.mubr.f32.mxu0 0.0
      %5069 = vmatmul.mubr.f32.gmra.mxu0 %v4772
      %v5070 = vpop.f32.mrf.mxu0
      %v5071 = vadd.f32 0.0, %v5070
      %v5072 = vpop.f32.mrf.mxu0
      %5073 = vmatprep.mubr.f32.mxu0 0.0
      %5074 = vmatmul.mubr.f32.gmra.mxu0 %v4775
      %v5075 = vpop.f32.mrf.mxu0
      %v5076 = vadd.f32 0.0, %v5075
      %v5077 = vpop.f32.mrf.mxu0
      %5078 = vmatprep.mubr.f32.mxu0 0.0
      %5079 = vmatmul.mubr.f32.gmra.mxu0 %v4778
      %v5080 = vpop.f32.mrf.mxu0
      %v5081 = vadd.f32 0.0, %v5080
      %v5082 = vpop.f32.mrf.mxu0
      %5083 = vmatprep.mubr.f32.mxu0 0.0
      %5084 = vmatmul.mubr.f32.gmra.mxu0 %v4781
      %v5085 = vpop.f32.mrf.mxu0
      %v5086 = vadd.f32 0.0, %v5085
      %v5087 = vpop.f32.mrf.mxu0
      %5088 = vmatprep.mubr.f32.mxu0 0.0
      %5089 = vmatmul.mubr.f32.gmra.mxu0 %v4784
      %v5090 = vpop.f32.mrf.mxu0
      %v5091 = vadd.f32 0.0, %v5090
      %v5092 = vpop.f32.mrf.mxu0
      %5093 = vmatprep.mubr.f32.mxu0 0.0
      %5094 = vmatmul.mubr.f32.gmra.mxu0 %v4787
      %v5095 = vpop.f32.mrf.mxu0
      %v5096 = vadd.f32 0.0, %v5095
      %v5097 = vpop.f32.mrf.mxu0
      %5098 = vmatprep.mubr.f32.mxu0 0.0
      %5099 = vmatmul.mubr.f32.gmra.mxu0 %v4790
      %v5100 = vpop.f32.mrf.mxu0
      %v5101 = vadd.f32 0.0, %v5100
      %v5102 = vpop.f32.mrf.mxu0
      %5103 = vmatprep.mubr.f32.mxu0 0.0
      %5104 = vmatmul.mubr.f32.gmra.mxu0 %v4793
      %v5105 = vpop.f32.mrf.mxu0
      %v5106 = vadd.f32 0.0, %v5105
      %v5107 = vpop.f32.mrf.mxu0
      %5108 = vmatprep.mubr.f32.mxu0 0.0
      %5109 = vmatmul.mubr.f32.gmra.mxu0 %v4796
      %v5110 = vpop.f32.mrf.mxu0
      %v5111 = vadd.f32 0.0, %v5110
      %v5112 = vpop.f32.mrf.mxu0
      %5113 = vmatprep.mubr.f32.mxu0 0.0
      %5114 = vmatmul.mubr.f32.gmra.mxu0 %v4799
      %v5115 = vpop.f32.mrf.mxu0
      %v5116 = vadd.f32 0.0, %v5115
      %v5117 = vpop.f32.mrf.mxu0
      %5118 = vmatprep.mubr.f32.mxu0 0.0
      %5119 = vmatmul.mubr.f32.gmra.mxu0 %v4802
      %v5120 = vpop.f32.mrf.mxu0
      %v5121 = vadd.f32 0.0, %v5120
      %v5122 = vpop.f32.mrf.mxu0
      %5123 = vmatprep.mubr.f32.mxu0 0.0
      %5124 = vmatmul.mubr.f32.gmra.mxu0 %v4805
      %v5125 = vpop.f32.mrf.mxu0
      %v5126 = vadd.f32 0.0, %v5125
      %v5127 = vpop.f32.mrf.mxu0
      %5128 = vmatprep.mubr.f32.mxu0 0.0
      %5129 = vmatmul.mubr.f32.gmra.mxu0 %v4808
      %v5130 = vpop.f32.mrf.mxu0
      %v5131 = vadd.f32 0.0, %v5130
      %v5132 = vpop.f32.mrf.mxu0
      %5133 = vmatprep.mubr.f32.mxu0 0.0
      %5134 = vmatmul.mubr.f32.gmra.mxu0 %v4811
      %v5135 = vpop.f32.mrf.mxu0
      %v5136 = vadd.f32 0.0, %v5135
      %v5137 = vpop.f32.mrf.mxu0
      %5138 = vmatprep.mubr.f32.mxu0 0.0
      %5139 = vmatmul.mubr.f32.gmra.mxu0 %v4814
      %v5140 = vpop.f32.mrf.mxu0
      %v5141 = vadd.f32 0.0, %v5140
      %v5142 = vpop.f32.mrf.mxu0
      %5143 = vmatprep.mubr.f32.mxu0 0.0
      %5144 = vmatmul.mubr.f32.gmra.mxu0 %v4817
      %v5145 = vpop.f32.mrf.mxu0
      %v5146 = vadd.f32 0.0, %v5145
      %v5147 = vpop.f32.mrf.mxu0
      %5148 = vmatprep.mubr.f32.mxu0 0.0
      %5149 = vmatmul.mubr.f32.gmra.mxu0 %v4820
      %v5150 = vpop.f32.mrf.mxu0
      %v5151 = vadd.f32 0.0, %v5150
      %v5152 = vpop.f32.mrf.mxu0
      %5153 = vmatprep.mubr.f32.mxu0 0.0
      %5154 = vmatmul.mubr.f32.gmra.mxu0 %v4823
      %v5155 = vpop.f32.mrf.mxu0
      %v5156 = vadd.f32 0.0, %v5155
      %v5157 = vpop.f32.mrf.mxu0
      %5158 = vmatprep.mubr.f32.mxu0 0.0
      %5159 = vmatmul.mubr.f32.gmra.mxu0 %v4826
      %v5160 = vpop.f32.mrf.mxu0
      %v5161 = vadd.f32 0.0, %v5160
      %v5162 = vpop.f32.mrf.mxu0
      %5163 = vmatprep.mubr.f32.mxu0 0.0
      %5164 = vmatmul.mubr.f32.gmra.mxu0 %v4829
      %v5165 = vpop.f32.mrf.mxu0
      %v5166 = vadd.f32 0.0, %v5165
      %v5167 = vpop.f32.mrf.mxu0
      %5168 = vmatprep.mubr.f32.mxu0 0.0
      %5169 = vmatmul.mubr.f32.gmra.mxu0 %v4832
      %v5170 = vpop.f32.mrf.mxu0
      %v5171 = vadd.f32 0.0, %v5170
      %v5172 = vpop.f32.mrf.mxu0
      %5173 = vmatprep.mubr.f32.mxu0 0.0
      %5174 = vmatmul.mubr.f32.gmra.mxu0 %v4835
      %v5175 = vpop.f32.mrf.mxu0
      %v5176 = vadd.f32 0.0, %v5175
      %v5177 = vpop.f32.mrf.mxu0
      %5178 = vmatprep.mubr.f32.mxu0 0.0
      %5179 = vmatmul.mubr.f32.gmra.mxu0 %v4838
      %v5180 = vpop.f32.mrf.mxu0
      %v5181 = vadd.f32 0.0, %v5180
      %v5182 = vpop.f32.mrf.mxu0
      %5183 = vmatprep.mubr.f32.mxu0 0.0
      %5184 = vmatmul.mubr.f32.gmra.mxu0 %v4841
      %v5185 = vpop.f32.mrf.mxu0
      %v5186 = vadd.f32 0.0, %v5185
      %v5187 = vpop.f32.mrf.mxu0
      %5188 = vmatprep.mubr.f32.mxu0 0.0
      %5189 = vmatmul.mubr.f32.gmra.mxu0 %v4844
      %v5190 = vpop.f32.mrf.mxu0
      %v5191 = vadd.f32 0.0, %v5190
      %v5192 = vpop.f32.mrf.mxu0
      %5193 = vmatprep.mubr.f32.mxu0 0.0
      %5194 = vmatmul.mubr.f32.gmra.mxu0 %v4847
      %v5195 = vpop.f32.mrf.mxu0
      %v5196 = vadd.f32 0.0, %v5195
      %v5197 = vpop.f32.mrf.mxu0
      %5198 = vmatprep.mubr.f32.mxu0 0.0
      %5199 = vmatmul.mubr.f32.gmra.mxu0 %v4850
      %v5200 = vpop.f32.mrf.mxu0
      %v5201 = vadd.f32 0.0, %v5200
      %v5202 = vpop.f32.mrf.mxu0
      %5203 = vmatprep.mubr.f32.mxu0 0.0
      %5204 = vmatmul.mubr.f32.gmra.mxu0 %v4853
      %v5205 = vpop.f32.mrf.mxu0
      %v5206 = vadd.f32 0.0, %v5205
      %v5207 = vpop.f32.mrf.mxu0
      %5208 = vmatprep.mubr.f32.mxu0 0.0
      %5209 = vmatmul.mubr.f32.gmra.mxu0 %v4856
      %v5210 = vpop.f32.mrf.mxu0
      %v5211 = vadd.f32 0.0, %v5210
      %v5212 = vpop.f32.mrf.mxu0
      %5213 = vmatprep.mubr.f32.mxu0 0.0
      %5214 = vmatmul.mubr.f32.gmra.mxu0 %v4859
      %v5215 = vpop.f32.mrf.mxu0
      %v5216 = vadd.f32 0.0, %v5215
      %v5217 = vpop.f32.mrf.mxu0
      %5218 = vmatprep.mubr.f32.mxu0 0.0
      %5219 = vmatmul.mubr.f32.gmra.mxu0 %v4862
      %v5220 = vpop.f32.mrf.mxu0
      %v5221 = vadd.f32 0.0, %v5220
      %v5222 = vpop.f32.mrf.mxu0
      %5223 = vmatprep.mubr.f32.mxu0 0.0
      %5224 = vmatmul.mubr.f32.gmra.mxu0 %v4865
      %v5225 = vpop.f32.mrf.mxu0
      %v5226 = vadd.f32 0.0, %v5225
      %v5227 = vpop.f32.mrf.mxu0
      %5228 = vmatprep.mubr.f32.mxu0 0.0
      %5229 = vmatmul.mubr.f32.gmra.mxu0 %v4868
      %v5230 = vpop.f32.mrf.mxu0
      %v5231 = vadd.f32 0.0, %v5230
      %v5232 = vpop.f32.mrf.mxu0
      %5233 = vmatprep.mubr.f32.mxu0 0.0
      %5234 = vmatmul.mubr.f32.gmra.mxu0 %v4871
      %v5235 = vpop.f32.mrf.mxu0
      %v5236 = vadd.f32 0.0, %v5235
      %v5237 = vpop.f32.mrf.mxu0
      %5238 = vmatprep.mubr.f32.mxu0 0.0
      %5239 = vmatmul.mubr.f32.gmra.mxu0 %v4874
      %v5240 = vpop.f32.mrf.mxu0
      %v5241 = vadd.f32 0.0, %v5240
      %v5242 = vpop.f32.mrf.mxu0
      %5243 = vmatprep.mubr.f32.mxu0 0.0
      %5244 = vmatmul.mubr.f32.gmra.mxu0 %v4877
      %v5245 = vpop.f32.mrf.mxu0
      %v5246 = vadd.f32 0.0, %v5245
      %v5247 = vpop.f32.mrf.mxu0
      %5248 = vmatprep.mubr.f32.mxu0 0.0
      %5249 = vmatmul.mubr.f32.gmra.mxu0 %v4880
      %v5250 = vpop.f32.mrf.mxu0
      %v5251 = vadd.f32 0.0, %v5250
      %v5252 = vpop.f32.mrf.mxu0
      %5253 = vmatprep.mubr.f32.mxu0 0.0
      %5254 = vmatmul.mubr.f32.gmra.mxu0 %v4883
      %v5255 = vpop.f32.mrf.mxu0
      %v5256 = vadd.f32 0.0, %v5255
      %v5257 = vpop.f32.mrf.mxu0
      %5258 = vmatprep.mubr.f32.mxu0 0.0
      %5259 = vmatmul.mubr.f32.gmra.mxu0 %v4886
      %v5260 = vpop.f32.mrf.mxu0
      %v5261 = vadd.f32 0.0, %v5260
      %v5262 = vpop.f32.mrf.mxu0
      %5263 = vmatprep.mubr.f32.mxu0 0.0
      %5264 = vmatmul.mubr.f32.gmra.mxu0 %v4889
      %v5265 = vpop.f32.mrf.mxu0
      %v5266 = vadd.f32 0.0, %v5265
      %v5267 = vpop.f32.mrf.mxu0
      %5268 = vmatprep.mubr.f32.mxu0 0.0
      %5269 = vmatmul.mubr.f32.gmra.mxu0 %v4892
      %v5270 = vpop.f32.mrf.mxu0
      %v5271 = vadd.f32 0.0, %v5270
      %v5272 = vpop.f32.mrf.mxu0
      %5273 = vmatprep.mubr.f32.mxu0 0.0
      %5274 = vmatmul.mubr.f32.gmra.mxu0 %v4895
      %v5275 = vpop.f32.mrf.mxu0
      %v5276 = vadd.f32 0.0, %v5275
      %v5277 = vpop.f32.mrf.mxu0
      %5278 = vmatprep.mubr.f32.mxu0 0.0
      %5279 = vmatmul.mubr.f32.gmra.mxu0 %v4898
      %v5280 = vpop.f32.mrf.mxu0
      %v5281 = vadd.f32 0.0, %v5280
      %v5282 = vpop.f32.mrf.mxu0
      %5283 = vmatprep.mubr.f32.mxu0 0.0
      %5284 = vmatmul.mubr.f32.gmra.mxu0 %v4901
      %v5285 = vpop.f32.mrf.mxu0
      %v5286 = vadd.f32 0.0, %v5285
      %v5287 = vpop.f32.mrf.mxu0
      %5288 = vmatprep.mubr.f32.mxu0 0.0
      %5289 = vmatmul.mubr.f32.gmra.mxu0 %v4904
      %v5290 = vpop.f32.mrf.mxu0
      %v5291 = vadd.f32 0.0, %v5290
      %v5292 = vpop.f32.mrf.mxu0
      %5293 = vdwg.mxu0
      %v5294 = vadd.f32 %v4648, %v4976
      %v5295 = vadd.f32 %v4649, %v4981
      %v5296 = vadd.f32 %v4650, %v4986
      %v5297 = vadd.f32 %v4651, %v4991
      %v5298 = vadd.f32 %v4652, %v4996
      %v5299 = vadd.f32 %v4653, %v5001
      %v5300 = vadd.f32 %v4654, %v5006
      %v5301 = vadd.f32 %v4655, %v5011
      %v5302 = vadd.f32 %v4656, %v5016
      %v5303 = vadd.f32 %v4657, %v5021
      %v5304 = vadd.f32 %v4658, %v5026
      %v5305 = vadd.f32 %v4659, %v5031
      %v5306 = vadd.f32 %v4660, %v5036
      %v5307 = vadd.f32 %v4661, %v5041
      %v5308 = vadd.f32 %v4662, %v5046
      %v5309 = vadd.f32 %v4663, %v5051
      %v5310 = vadd.f32 %v4664, %v5056
      %v5311 = vadd.f32 %v4665, %v5061
      %v5312 = vadd.f32 %v4666, %v5066
      %v5313 = vadd.f32 %v4667, %v5071
      %v5314 = vadd.f32 %v4668, %v5076
      %v5315 = vadd.f32 %v4669, %v5081
      %v5316 = vadd.f32 %v4670, %v5086
      %v5317 = vadd.f32 %v4671, %v5091
      %v5318 = vadd.f32 %v4672, %v5096
      %v5319 = vadd.f32 %v4673, %v5101
      %v5320 = vadd.f32 %v4674, %v5106
      %v5321 = vadd.f32 %v4675, %v5111
      %v5322 = vadd.f32 %v4676, %v5116
      %v5323 = vadd.f32 %v4677, %v5121
      %v5324 = vadd.f32 %v4678, %v5126
      %v5325 = vadd.f32 %v4679, %v5131
      %v5326 = vadd.f32 %v4680, %v5136
      %v5327 = vadd.f32 %v4681, %v5141
      %v5328 = vadd.f32 %v4682, %v5146
      %v5329 = vadd.f32 %v4683, %v5151
      %v5330 = vadd.f32 %v4684, %v5156
      %v5331 = vadd.f32 %v4685, %v5161
      %v5332 = vadd.f32 %v4686, %v5166
      %v5333 = vadd.f32 %v4687, %v5171
      %v5334 = vadd.f32 %v4688, %v5176
      %v5335 = vadd.f32 %v4689, %v5181
      %v5336 = vadd.f32 %v4690, %v5186
      %v5337 = vadd.f32 %v4691, %v5191
      %v5338 = vadd.f32 %v4692, %v5196
      %v5339 = vadd.f32 %v4693, %v5201
      %v5340 = vadd.f32 %v4694, %v5206
      %v5341 = vadd.f32 %v4695, %v5211
      %v5342 = vadd.f32 %v4696, %v5216
      %v5343 = vadd.f32 %v4697, %v5221
      %v5344 = vadd.f32 %v4698, %v5226
      %v5345 = vadd.f32 %v4699, %v5231
      %v5346 = vadd.f32 %v4700, %v5236
      %v5347 = vadd.f32 %v4701, %v5241
      %v5348 = vadd.f32 %v4702, %v5246
      %v5349 = vadd.f32 %v4703, %v5251
      %v5350 = vadd.f32 %v4704, %v5256
      %v5351 = vadd.f32 %v4705, %v5261
      %v5352 = vadd.f32 %v4706, %v5266
      %v5353 = vadd.f32 %v4707, %v5271
      %v5354 = vadd.f32 %v4708, %v5276
      %v5355 = vadd.f32 %v4709, %v5281
      %v5356 = vadd.f32 %v4710, %v5286
      %v5357 = vadd.f32 %v4711, %v5291
      %v5358 = vld [vmem:[%s3] sm:$0x1]
      %5360 = vset.pattern.permute.xlu0 0
      %5361 = vperm.xlu0 %5360, %v1609
      %v5362 = vpop.permute.xlu0 %5361
      %5365 = vset.pattern.permute.xlu0 0
      %5366 = vperm.xlu0 %5365, %v1610
      %v5367 = vpop.permute.xlu0 %5366
      %5370 = vset.pattern.permute.xlu0 0
      %5371 = vperm.xlu0 %5370, %v1611
      %v5372 = vpop.permute.xlu0 %5371
      %5375 = vset.pattern.permute.xlu0 0
      %5376 = vperm.xlu0 %5375, %v1612
      %v5377 = vpop.permute.xlu0 %5376
      %5380 = vset.pattern.permute.xlu0 0
      %5381 = vperm.xlu0 %5380, %v1613
      %v5382 = vpop.permute.xlu0 %5381
      %5385 = vset.pattern.permute.xlu0 0
      %5386 = vperm.xlu0 %5385, %v1614
      %v5387 = vpop.permute.xlu0 %5386
      %5390 = vset.pattern.permute.xlu0 0
      %5391 = vperm.xlu0 %5390, %v1615
      %v5392 = vpop.permute.xlu0 %5391
      %5395 = vset.pattern.permute.xlu0 0
      %5396 = vperm.xlu0 %5395, %v1616
      %v5397 = vpop.permute.xlu0 %5396
      %5400 = vset.pattern.permute.xlu0 0
      %5401 = vperm.xlu0 %5400, %v1617
      %v5402 = vpop.permute.xlu0 %5401
      %5405 = vset.pattern.permute.xlu0 0
      %5406 = vperm.xlu0 %5405, %v1618
      %v5407 = vpop.permute.xlu0 %5406
      %5410 = vset.pattern.permute.xlu0 0
      %5411 = vperm.xlu0 %5410, %v1619
      %v5412 = vpop.permute.xlu0 %5411
      %5415 = vset.pattern.permute.xlu0 0
      %5416 = vperm.xlu0 %5415, %v1620
      %v5417 = vpop.permute.xlu0 %5416
      %5420 = vset.pattern.permute.xlu0 0
      %5421 = vperm.xlu0 %5420, %v1621
      %v5422 = vpop.permute.xlu0 %5421
      %5425 = vset.pattern.permute.xlu0 0
      %5426 = vperm.xlu0 %5425, %v1622
      %v5427 = vpop.permute.xlu0 %5426
      %5430 = vset.pattern.permute.xlu0 0
      %5431 = vperm.xlu0 %5430, %v1623
      %v5432 = vpop.permute.xlu0 %5431
      %5435 = vset.pattern.permute.xlu0 0
      %5436 = vperm.xlu0 %5435, %v1624
      %v5437 = vpop.permute.xlu0 %5436
      %5440 = vset.pattern.permute.xlu0 0
      %5441 = vperm.xlu0 %5440, %v1625
      %v5442 = vpop.permute.xlu0 %5441
      %5445 = vset.pattern.permute.xlu0 0
      %5446 = vperm.xlu0 %5445, %v1626
      %v5447 = vpop.permute.xlu0 %5446
      %5450 = vset.pattern.permute.xlu0 0
      %5451 = vperm.xlu0 %5450, %v1627
      %v5452 = vpop.permute.xlu0 %5451
      %5455 = vset.pattern.permute.xlu0 0
      %5456 = vperm.xlu0 %5455, %v1628
      %v5457 = vpop.permute.xlu0 %5456
      %5460 = vset.pattern.permute.xlu0 0
      %5461 = vperm.xlu0 %5460, %v1629
      %v5462 = vpop.permute.xlu0 %5461
      %5465 = vset.pattern.permute.xlu0 0
      %5466 = vperm.xlu0 %5465, %v1630
      %v5467 = vpop.permute.xlu0 %5466
      %5470 = vset.pattern.permute.xlu0 0
      %5471 = vperm.xlu0 %5470, %v1631
      %v5472 = vpop.permute.xlu0 %5471
      %5475 = vset.pattern.permute.xlu0 0
      %5476 = vperm.xlu0 %5475, %v1632
      %v5477 = vpop.permute.xlu0 %5476
      %5480 = vset.pattern.permute.xlu0 0
      %5481 = vperm.xlu0 %5480, %v1633
      %v5482 = vpop.permute.xlu0 %5481
      %5485 = vset.pattern.permute.xlu0 0
      %5486 = vperm.xlu0 %5485, %v1634
      %v5487 = vpop.permute.xlu0 %5486
      %5490 = vset.pattern.permute.xlu0 0
      %5491 = vperm.xlu0 %5490, %v1635
      %v5492 = vpop.permute.xlu0 %5491
      %5495 = vset.pattern.permute.xlu0 0
      %5496 = vperm.xlu0 %5495, %v1636
      %v5497 = vpop.permute.xlu0 %5496
      %5500 = vset.pattern.permute.xlu0 0
      %5501 = vperm.xlu0 %5500, %v1637
      %v5502 = vpop.permute.xlu0 %5501
      %5505 = vset.pattern.permute.xlu0 0
      %5506 = vperm.xlu0 %5505, %v1638
      %v5507 = vpop.permute.xlu0 %5506
      %5510 = vset.pattern.permute.xlu0 0
      %5511 = vperm.xlu0 %5510, %v1639
      %v5512 = vpop.permute.xlu0 %5511
      %5515 = vset.pattern.permute.xlu0 0
      %5516 = vperm.xlu0 %5515, %v1640
      %v5517 = vpop.permute.xlu0 %5516
      %5520 = vset.pattern.permute.xlu0 0
      %5521 = vperm.xlu0 %5520, %v1641
      %v5522 = vpop.permute.xlu0 %5521
      %5525 = vset.pattern.permute.xlu0 0
      %5526 = vperm.xlu0 %5525, %v1642
      %v5527 = vpop.permute.xlu0 %5526
      %5530 = vset.pattern.permute.xlu0 0
      %5531 = vperm.xlu0 %5530, %v1643
      %v5532 = vpop.permute.xlu0 %5531
      %5535 = vset.pattern.permute.xlu0 0
      %5536 = vperm.xlu0 %5535, %v1644
      %v5537 = vpop.permute.xlu0 %5536
      %5540 = vset.pattern.permute.xlu0 0
      %5541 = vperm.xlu0 %5540, %v1645
      %v5542 = vpop.permute.xlu0 %5541
      %5545 = vset.pattern.permute.xlu0 0
      %5546 = vperm.xlu0 %5545, %v1646
      %v5547 = vpop.permute.xlu0 %5546
      %5550 = vset.pattern.permute.xlu0 0
      %5551 = vperm.xlu0 %5550, %v1647
      %v5552 = vpop.permute.xlu0 %5551
      %5555 = vset.pattern.permute.xlu0 0
      %5556 = vperm.xlu0 %5555, %v1648
      %v5557 = vpop.permute.xlu0 %5556
      %5560 = vset.pattern.permute.xlu0 0
      %5561 = vperm.xlu0 %5560, %v1649
      %v5562 = vpop.permute.xlu0 %5561
      %5565 = vset.pattern.permute.xlu0 0
      %5566 = vperm.xlu0 %5565, %v1650
      %v5567 = vpop.permute.xlu0 %5566
      %5570 = vset.pattern.permute.xlu0 0
      %5571 = vperm.xlu0 %5570, %v1651
      %v5572 = vpop.permute.xlu0 %5571
      %5575 = vset.pattern.permute.xlu0 0
      %5576 = vperm.xlu0 %5575, %v1652
      %v5577 = vpop.permute.xlu0 %5576
      %5580 = vset.pattern.permute.xlu0 0
      %5581 = vperm.xlu0 %5580, %v1653
      %v5582 = vpop.permute.xlu0 %5581
      %5585 = vset.pattern.permute.xlu0 0
      %5586 = vperm.xlu0 %5585, %v1654
      %v5587 = vpop.permute.xlu0 %5586
      %5590 = vset.pattern.permute.xlu0 0
      %5591 = vperm.xlu0 %5590, %v1655
      %v5592 = vpop.permute.xlu0 %5591
      %5595 = vset.pattern.permute.xlu0 0
      %5596 = vperm.xlu0 %5595, %v1656
      %v5597 = vpop.permute.xlu0 %5596
      %5600 = vset.pattern.permute.xlu0 0
      %5601 = vperm.xlu0 %5600, %v1657
      %v5602 = vpop.permute.xlu0 %5601
      %5605 = vset.pattern.permute.xlu0 0
      %5606 = vperm.xlu0 %5605, %v1658
      %v5607 = vpop.permute.xlu0 %5606
      %5610 = vset.pattern.permute.xlu0 0
      %5611 = vperm.xlu0 %5610, %v1659
      %v5612 = vpop.permute.xlu0 %5611
      %5615 = vset.pattern.permute.xlu0 0
      %5616 = vperm.xlu0 %5615, %v1660
      %v5617 = vpop.permute.xlu0 %5616
      %5620 = vset.pattern.permute.xlu0 0
      %5621 = vperm.xlu0 %5620, %v1661
      %v5622 = vpop.permute.xlu0 %5621
      %5625 = vset.pattern.permute.xlu0 0
      %5626 = vperm.xlu0 %5625, %v1662
      %v5627 = vpop.permute.xlu0 %5626
      %5630 = vset.pattern.permute.xlu0 0
      %5631 = vperm.xlu0 %5630, %v1663
      %v5632 = vpop.permute.xlu0 %5631
      %5635 = vset.pattern.permute.xlu0 0
      %5636 = vperm.xlu0 %5635, %v1664
      %v5637 = vpop.permute.xlu0 %5636
      %5640 = vset.pattern.permute.xlu0 0
      %5641 = vperm.xlu0 %5640, %v1665
      %v5642 = vpop.permute.xlu0 %5641
      %5645 = vset.pattern.permute.xlu0 0
      %5646 = vperm.xlu0 %5645, %v1666
      %v5647 = vpop.permute.xlu0 %5646
      %5650 = vset.pattern.permute.xlu0 0
      %5651 = vperm.xlu0 %5650, %v1667
      %v5652 = vpop.permute.xlu0 %5651
      %5655 = vset.pattern.permute.xlu0 0
      %5656 = vperm.xlu0 %5655, %v1668
      %v5657 = vpop.permute.xlu0 %5656
      %5660 = vset.pattern.permute.xlu0 0
      %5661 = vperm.xlu0 %5660, %v1669
      %v5662 = vpop.permute.xlu0 %5661
      %5665 = vset.pattern.permute.xlu0 0
      %5666 = vperm.xlu0 %5665, %v1670
      %v5667 = vpop.permute.xlu0 %5666
      %5670 = vset.pattern.permute.xlu0 0
      %5671 = vperm.xlu0 %5670, %v1671
      %v5672 = vpop.permute.xlu0 %5671
      %5675 = vset.pattern.permute.xlu0 0
      %5676 = vperm.xlu0 %5675, %v1672
      %v5677 = vpop.permute.xlu0 %5676
      %v5680 = vlaneseq
      %v5681 = vshrl.u32 %v5680, 7
      %v5682 = vsub.s32 0, %v5681
      %v5683 = vrot.slane %v5358, %v5682
      %v5685 = vmul.f32 %v5362, %v5683
      %v5686 = vmul.f32 %v5367, %v5683
      %v5687 = vmul.f32 %v5372, %v5683
      %v5688 = vmul.f32 %v5377, %v5683
      %v5689 = vmul.f32 %v5382, %v5683
      %v5690 = vmul.f32 %v5387, %v5683
      %v5691 = vmul.f32 %v5392, %v5683
      %v5692 = vmul.f32 %v5397, %v5683
      %v5693 = vmul.f32 %v5402, %v5683
      %v5694 = vmul.f32 %v5407, %v5683
      %v5695 = vmul.f32 %v5412, %v5683
      %v5696 = vmul.f32 %v5417, %v5683
      %v5697 = vmul.f32 %v5422, %v5683
      %v5698 = vmul.f32 %v5427, %v5683
      %v5699 = vmul.f32 %v5432, %v5683
      %v5700 = vmul.f32 %v5437, %v5683
      %v5701 = vmul.f32 %v5442, %v5683
      %v5702 = vmul.f32 %v5447, %v5683
      %v5703 = vmul.f32 %v5452, %v5683
      %v5704 = vmul.f32 %v5457, %v5683
      %v5705 = vmul.f32 %v5462, %v5683
      %v5706 = vmul.f32 %v5467, %v5683
      %v5707 = vmul.f32 %v5472, %v5683
      %v5708 = vmul.f32 %v5477, %v5683
      %v5709 = vmul.f32 %v5482, %v5683
      %v5710 = vmul.f32 %v5487, %v5683
      %v5711 = vmul.f32 %v5492, %v5683
      %v5712 = vmul.f32 %v5497, %v5683
      %v5713 = vmul.f32 %v5502, %v5683
      %v5714 = vmul.f32 %v5507, %v5683
      %v5715 = vmul.f32 %v5512, %v5683
      %v5716 = vmul.f32 %v5517, %v5683
      %v5717 = vmul.f32 %v5522, %v5683
      %v5718 = vmul.f32 %v5527, %v5683
      %v5719 = vmul.f32 %v5532, %v5683
      %v5720 = vmul.f32 %v5537, %v5683
      %v5721 = vmul.f32 %v5542, %v5683
      %v5722 = vmul.f32 %v5547, %v5683
      %v5723 = vmul.f32 %v5552, %v5683
      %v5724 = vmul.f32 %v5557, %v5683
      %v5725 = vmul.f32 %v5562, %v5683
      %v5726 = vmul.f32 %v5567, %v5683
      %v5727 = vmul.f32 %v5572, %v5683
      %v5728 = vmul.f32 %v5577, %v5683
      %v5729 = vmul.f32 %v5582, %v5683
      %v5730 = vmul.f32 %v5587, %v5683
      %v5731 = vmul.f32 %v5592, %v5683
      %v5732 = vmul.f32 %v5597, %v5683
      %v5733 = vmul.f32 %v5602, %v5683
      %v5734 = vmul.f32 %v5607, %v5683
      %v5735 = vmul.f32 %v5612, %v5683
      %v5736 = vmul.f32 %v5617, %v5683
      %v5737 = vmul.f32 %v5622, %v5683
      %v5738 = vmul.f32 %v5627, %v5683
      %v5739 = vmul.f32 %v5632, %v5683
      %v5740 = vmul.f32 %v5637, %v5683
      %v5741 = vmul.f32 %v5642, %v5683
      %v5742 = vmul.f32 %v5647, %v5683
      %v5743 = vmul.f32 %v5652, %v5683
      %v5744 = vmul.f32 %v5657, %v5683
      %v5745 = vmul.f32 %v5662, %v5683
      %v5746 = vmul.f32 %v5667, %v5683
      %v5747 = vmul.f32 %v5672, %v5683
      %v5748 = vmul.f32 %v5677, %v5683
      %v5749 = vadd.f32 %v5294, %v5685
      %v5750 = vadd.f32 %v5295, %v5686
      %v5751 = vadd.f32 %v5296, %v5687
      %v5752 = vadd.f32 %v5297, %v5688
      %v5753 = vadd.f32 %v5298, %v5689
      %v5754 = vadd.f32 %v5299, %v5690
      %v5755 = vadd.f32 %v5300, %v5691
      %v5756 = vadd.f32 %v5301, %v5692
      %v5757 = vadd.f32 %v5302, %v5693
      %v5758 = vadd.f32 %v5303, %v5694
      %v5759 = vadd.f32 %v5304, %v5695
      %v5760 = vadd.f32 %v5305, %v5696
      %v5761 = vadd.f32 %v5306, %v5697
      %v5762 = vadd.f32 %v5307, %v5698
      %v5763 = vadd.f32 %v5308, %v5699
      %v5764 = vadd.f32 %v5309, %v5700
      %v5765 = vadd.f32 %v5310, %v5701
      %v5766 = vadd.f32 %v5311, %v5702
      %v5767 = vadd.f32 %v5312, %v5703
      %v5768 = vadd.f32 %v5313, %v5704
      %v5769 = vadd.f32 %v5314, %v5705
      %v5770 = vadd.f32 %v5315, %v5706
      %v5771 = vadd.f32 %v5316, %v5707
      %v5772 = vadd.f32 %v5317, %v5708
      %v5773 = vadd.f32 %v5318, %v5709
      %v5774 = vadd.f32 %v5319, %v5710
      %v5775 = vadd.f32 %v5320, %v5711
      %v5776 = vadd.f32 %v5321, %v5712
      %v5777 = vadd.f32 %v5322, %v5713
      %v5778 = vadd.f32 %v5323, %v5714
      %v5779 = vadd.f32 %v5324, %v5715
      %v5780 = vadd.f32 %v5325, %v5716
      %v5781 = vadd.f32 %v5326, %v5717
      %v5782 = vadd.f32 %v5327, %v5718
      %v5783 = vadd.f32 %v5328, %v5719
      %v5784 = vadd.f32 %v5329, %v5720
      %v5785 = vadd.f32 %v5330, %v5721
      %v5786 = vadd.f32 %v5331, %v5722
      %v5787 = vadd.f32 %v5332, %v5723
      %v5788 = vadd.f32 %v5333, %v5724
      %v5789 = vadd.f32 %v5334, %v5725
      %v5790 = vadd.f32 %v5335, %v5726
      %v5791 = vadd.f32 %v5336, %v5727
      %v5792 = vadd.f32 %v5337, %v5728
      %v5793 = vadd.f32 %v5338, %v5729
      %v5794 = vadd.f32 %v5339, %v5730
      %v5795 = vadd.f32 %v5340, %v5731
      %v5796 = vadd.f32 %v5341, %v5732
      %v5797 = vadd.f32 %v5342, %v5733
      %v5798 = vadd.f32 %v5343, %v5734
      %v5799 = vadd.f32 %v5344, %v5735
      %v5800 = vadd.f32 %v5345, %v5736
      %v5801 = vadd.f32 %v5346, %v5737
      %v5802 = vadd.f32 %v5347, %v5738
      %v5803 = vadd.f32 %v5348, %v5739
      %v5804 = vadd.f32 %v5349, %v5740
      %v5805 = vadd.f32 %v5350, %v5741
      %v5806 = vadd.f32 %v5351, %v5742
      %v5807 = vadd.f32 %v5352, %v5743
      %v5808 = vadd.f32 %v5353, %v5744
      %v5809 = vadd.f32 %v5354, %v5745
      %v5810 = vadd.f32 %v5355, %v5746
      %v5811 = vadd.f32 %v5356, %v5747
      %v5812 = vadd.f32 %v5357, %v5748
      %v5813 = vld [vmem:[%s4] sm:$0x1]
      %v5815 = vlaneseq
      %v5816 = vshrl.u32 %v5815, 7
      %v5817 = vsub.s32 0, %v5816
      %v5818 = vrot.slane %v5813, %v5817
      %v5820 = vadd.f32 %v5749, %v5818
      %v5821 = vadd.f32 %v5750, %v5818
      %v5822 = vadd.f32 %v5751, %v5818
      %v5823 = vadd.f32 %v5752, %v5818
      %v5824 = vadd.f32 %v5753, %v5818
      %v5825 = vadd.f32 %v5754, %v5818
      %v5826 = vadd.f32 %v5755, %v5818
      %v5827 = vadd.f32 %v5756, %v5818
      %v5828 = vadd.f32 %v5757, %v5818
      %v5829 = vadd.f32 %v5758, %v5818
      %v5830 = vadd.f32 %v5759, %v5818
      %v5831 = vadd.f32 %v5760, %v5818
      %v5832 = vadd.f32 %v5761, %v5818
      %v5833 = vadd.f32 %v5762, %v5818
      %v5834 = vadd.f32 %v5763, %v5818
      %v5835 = vadd.f32 %v5764, %v5818
      %v5836 = vadd.f32 %v5765, %v5818
      %v5837 = vadd.f32 %v5766, %v5818
      %v5838 = vadd.f32 %v5767, %v5818
      %v5839 = vadd.f32 %v5768, %v5818
      %v5840 = vadd.f32 %v5769, %v5818
      %v5841 = vadd.f32 %v5770, %v5818
      %v5842 = vadd.f32 %v5771, %v5818
      %v5843 = vadd.f32 %v5772, %v5818
      %v5844 = vadd.f32 %v5773, %v5818
      %v5845 = vadd.f32 %v5774, %v5818
      %v5846 = vadd.f32 %v5775, %v5818
      %v5847 = vadd.f32 %v5776, %v5818
      %v5848 = vadd.f32 %v5777, %v5818
      %v5849 = vadd.f32 %v5778, %v5818
      %v5850 = vadd.f32 %v5779, %v5818
      %v5851 = vadd.f32 %v5780, %v5818
      %v5852 = vadd.f32 %v5781, %v5818
      %v5853 = vadd.f32 %v5782, %v5818
      %v5854 = vadd.f32 %v5783, %v5818
      %v5855 = vadd.f32 %v5784, %v5818
      %v5856 = vadd.f32 %v5785, %v5818
      %v5857 = vadd.f32 %v5786, %v5818
      %v5858 = vadd.f32 %v5787, %v5818
      %v5859 = vadd.f32 %v5788, %v5818
      %v5860 = vadd.f32 %v5789, %v5818
      %v5861 = vadd.f32 %v5790, %v5818
      %v5862 = vadd.f32 %v5791, %v5818
      %v5863 = vadd.f32 %v5792, %v5818
      %v5864 = vadd.f32 %v5793, %v5818
      %v5865 = vadd.f32 %v5794, %v5818
      %v5866 = vadd.f32 %v5795, %v5818
      %v5867 = vadd.f32 %v5796, %v5818
      %v5868 = vadd.f32 %v5797, %v5818
      %v5869 = vadd.f32 %v5798, %v5818
      %v5870 = vadd.f32 %v5799, %v5818
      %v5871 = vadd.f32 %v5800, %v5818
      %v5872 = vadd.f32 %v5801, %v5818
      %v5873 = vadd.f32 %v5802, %v5818
      %v5874 = vadd.f32 %v5803, %v5818
      %v5875 = vadd.f32 %v5804, %v5818
      %v5876 = vadd.f32 %v5805, %v5818
      %v5877 = vadd.f32 %v5806, %v5818
      %v5878 = vadd.f32 %v5807, %v5818
      %v5879 = vadd.f32 %v5808, %v5818
      %v5880 = vadd.f32 %v5809, %v5818
      %v5881 = vadd.f32 %v5810, %v5818
      %v5882 = vadd.f32 %v5811, %v5818
      %v5883 = vadd.f32 %v5812, %v5818
      %v5884 = vmax.f32 %v5820, 0.0
      %v5885 = vmax.f32 %v5821, 0.0
      %v5886 = vmax.f32 %v5822, 0.0
      %v5887 = vmax.f32 %v5823, 0.0
      %v5888 = vmax.f32 %v5824, 0.0
      %v5889 = vmax.f32 %v5825, 0.0
      %v5890 = vmax.f32 %v5826, 0.0
      %v5891 = vmax.f32 %v5827, 0.0
      %v5892 = vmax.f32 %v5828, 0.0
      %v5893 = vmax.f32 %v5829, 0.0
      %v5894 = vmax.f32 %v5830, 0.0
      %v5895 = vmax.f32 %v5831, 0.0
      %v5896 = vmax.f32 %v5832, 0.0
      %v5897 = vmax.f32 %v5833, 0.0
      %v5898 = vmax.f32 %v5834, 0.0
      %v5899 = vmax.f32 %v5835, 0.0
      %v5900 = vmax.f32 %v5836, 0.0
      %v5901 = vmax.f32 %v5837, 0.0
      %v5902 = vmax.f32 %v5838, 0.0
      %v5903 = vmax.f32 %v5839, 0.0
      %v5904 = vmax.f32 %v5840, 0.0
      %v5905 = vmax.f32 %v5841, 0.0
      %v5906 = vmax.f32 %v5842, 0.0
      %v5907 = vmax.f32 %v5843, 0.0
      %v5908 = vmax.f32 %v5844, 0.0
      %v5909 = vmax.f32 %v5845, 0.0
      %v5910 = vmax.f32 %v5846, 0.0
      %v5911 = vmax.f32 %v5847, 0.0
      %v5912 = vmax.f32 %v5848, 0.0
      %v5913 = vmax.f32 %v5849, 0.0
      %v5914 = vmax.f32 %v5850, 0.0
      %v5915 = vmax.f32 %v5851, 0.0
      %v5916 = vmax.f32 %v5852, 0.0
      %v5917 = vmax.f32 %v5853, 0.0
      %v5918 = vmax.f32 %v5854, 0.0
      %v5919 = vmax.f32 %v5855, 0.0
      %v5920 = vmax.f32 %v5856, 0.0
      %v5921 = vmax.f32 %v5857, 0.0
      %v5922 = vmax.f32 %v5858, 0.0
      %v5923 = vmax.f32 %v5859, 0.0
      %v5924 = vmax.f32 %v5860, 0.0
      %v5925 = vmax.f32 %v5861, 0.0
      %v5926 = vmax.f32 %v5862, 0.0
      %v5927 = vmax.f32 %v5863, 0.0
      %v5928 = vmax.f32 %v5864, 0.0
      %v5929 = vmax.f32 %v5865, 0.0
      %v5930 = vmax.f32 %v5866, 0.0
      %v5931 = vmax.f32 %v5867, 0.0
      %v5932 = vmax.f32 %v5868, 0.0
      %v5933 = vmax.f32 %v5869, 0.0
      %v5934 = vmax.f32 %v5870, 0.0
      %v5935 = vmax.f32 %v5871, 0.0
      %v5936 = vmax.f32 %v5872, 0.0
      %v5937 = vmax.f32 %v5873, 0.0
      %v5938 = vmax.f32 %v5874, 0.0
      %v5939 = vmax.f32 %v5875, 0.0
      %v5940 = vmax.f32 %v5876, 0.0
      %v5941 = vmax.f32 %v5877, 0.0
      %v5942 = vmax.f32 %v5878, 0.0
      %v5943 = vmax.f32 %v5879, 0.0
      %v5944 = vmax.f32 %v5880, 0.0
      %v5945 = vmax.f32 %v5881, 0.0
      %v5946 = vmax.f32 %v5882, 0.0
      %v5947 = vmax.f32 %v5883, 0.0
      %v5948 = vld [vmem:[%s5] sm:$0xff]
      %v5949 = vld [vmem:[%s5 + $0x8] sm:$0xff]
      %v5950 = vld [vmem:[%s5 + $0x10] sm:$0xff]
      %v5951 = vld [vmem:[%s5 + $0x18] sm:$0xff]
      %v5952 = vld [vmem:[%s6] sm:$0x1]
      %v5954 = vlaneseq
      %v5955 = vshrl.u32 %v5954, 7
      %v5956 = vsub.s32 0, %v5955
      %v5957 = vrot.slane %v5952, %v5956
      %vm5959 = vcmask 261120
      %v5961 = vsel %vm5959, %v5884, 0
      %v5964 = vsel %vm5959, %v5885, 0
      %v5967 = vsel %vm5959, %v5886, 0
      %v5970 = vsel %vm5959, %v5887, 0
      %v5973 = vsel %vm5959, %v5888, 0
      %v5976 = vsel %vm5959, %v5889, 0
      %v5979 = vsel %vm5959, %v5890, 0
      %v5982 = vsel %vm5959, %v5891, 0
      %v5985 = vsel %vm5959, %v5892, 0
      %v5988 = vsel %vm5959, %v5893, 0
      %v5991 = vsel %vm5959, %v5894, 0
      %v5994 = vsel %vm5959, %v5895, 0
      %v5997 = vsel %vm5959, %v5896, 0
      %v6000 = vsel %vm5959, %v5897, 0
      %v6003 = vsel %vm5959, %v5898, 0
      %v6006 = vsel %vm5959, %v5899, 0
      %v6009 = vsel %vm5959, %v5900, 0
      %v6012 = vsel %vm5959, %v5901, 0
      %v6015 = vsel %vm5959, %v5902, 0
      %v6018 = vsel %vm5959, %v5903, 0
      %v6021 = vsel %vm5959, %v5904, 0
      %v6024 = vsel %vm5959, %v5905, 0
      %v6027 = vsel %vm5959, %v5906, 0
      %v6030 = vsel %vm5959, %v5907, 0
      %v6033 = vsel %vm5959, %v5908, 0
      %v6036 = vsel %vm5959, %v5909, 0
      %v6039 = vsel %vm5959, %v5910, 0
      %v6042 = vsel %vm5959, %v5911, 0
      %v6045 = vsel %vm5959, %v5912, 0
      %v6048 = vsel %vm5959, %v5913, 0
      %v6051 = vsel %vm5959, %v5914, 0
      %v6054 = vsel %vm5959, %v5915, 0
      %v6057 = vsel %vm5959, %v5916, 0
      %v6060 = vsel %vm5959, %v5917, 0
      %v6063 = vsel %vm5959, %v5918, 0
      %v6066 = vsel %vm5959, %v5919, 0
      %v6069 = vsel %vm5959, %v5920, 0
      %v6072 = vsel %vm5959, %v5921, 0
      %v6075 = vsel %vm5959, %v5922, 0
      %v6078 = vsel %vm5959, %v5923, 0
      %v6081 = vsel %vm5959, %v5924, 0
      %v6084 = vsel %vm5959, %v5925, 0
      %v6087 = vsel %vm5959, %v5926, 0
      %v6090 = vsel %vm5959, %v5927, 0
      %v6093 = vsel %vm5959, %v5928, 0
      %v6096 = vsel %vm5959, %v5929, 0
      %v6099 = vsel %vm5959, %v5930, 0
      %v6102 = vsel %vm5959, %v5931, 0
      %v6105 = vsel %vm5959, %v5932, 0
      %v6108 = vsel %vm5959, %v5933, 0
      %v6111 = vsel %vm5959, %v5934, 0
      %v6114 = vsel %vm5959, %v5935, 0
      %v6117 = vsel %vm5959, %v5936, 0
      %v6120 = vsel %vm5959, %v5937, 0
      %v6123 = vsel %vm5959, %v5938, 0
      %v6126 = vsel %vm5959, %v5939, 0
      %v6129 = vsel %vm5959, %v5940, 0
      %v6132 = vsel %vm5959, %v5941, 0
      %v6135 = vsel %vm5959, %v5942, 0
      %v6138 = vsel %vm5959, %v5943, 0
      %v6141 = vsel %vm5959, %v5944, 0
      %v6144 = vsel %vm5959, %v5945, 0
      %v6147 = vsel %vm5959, %v5946, 0
      %v6150 = vsel %vm5959, %v5947, 0
      %6152 = vmatprep.subr.mxu0 0.0
      %6153 = vmatpush1.msra.mxu0 0.0
      %6154 = vmatprep.subr.mxu0 0.0
      %6155 = vmatpush1.msra.mxu0 0.0
      %6156 = vmatprep.subr.mxu0 0.0
      %6157 = vmatpush1.msra.mxu0 0.0
      %6158 = vmatprep.subr.mxu0 0.0
      %6159 = vmatpush1.msra.mxu0 0.0
      %6160 = vmatprep.subr.mxu0 0.0
      %6161 = vmatpush1.msra.mxu0 0.0
      %6162 = vmatprep.subr.mxu0 0.0
      %6163 = vmatpush1.msra.mxu0 0.0
      %6164 = vmatprep.subr.mxu0 0.0
      %6165 = vmatpush1.msra.mxu0 0.0
      %6166 = vmatprep.subr.mxu0 0.0
      %6167 = vmatpush1.msra.mxu0 0.0
      %6168 = vmatprep.subr.mxu0 0.0
      %6169 = vmatpush1.msra.mxu0 0.0
      %6170 = vmatprep.subr.mxu0 0.0
      %6171 = vmatpush1.msra.mxu0 0.0
      %6172 = vmatprep.subr.mxu0 0.0
      %6173 = vmatpush1.msra.mxu0 0.0
      %6174 = vmatprep.subr.mxu0 0.0
      %6175 = vmatpush1.msra.mxu0 0.0
      %6176 = vmatprep.subr.mxu0 0.0
      %6177 = vmatpush1.msra.mxu0 %v5951
      %6178 = vmatprep.subr.mxu0 0.0
      %6179 = vmatpush1.msra.mxu0 %v5950
      %6180 = vmatprep.subr.mxu0 0.0
      %6181 = vmatpush1.msra.mxu0 %v5949
      %6182 = vmatprep.subr.mxu0 0.0
      %6183 = vmatpush1.msra.mxu0 %v5948
      %6184 = vmatprep.subr.mxu0 0.0
      %6185 = vmatpush2.msra.mxu0 0.0
      %6186 = vmatprep.subr.mxu0 0.0
      %6187 = vmatpush2.msra.mxu0 0.0
      %6188 = vmatprep.subr.mxu0 0.0
      %6189 = vmatpush2.msra.mxu0 0.0
      %6190 = vmatprep.subr.mxu0 0.0
      %6191 = vmatpush2.msra.mxu0 0.0
      %6192 = vmatprep.subr.mxu0 0.0
      %6193 = vmatpush2.msra.mxu0 0.0
      %6194 = vmatprep.subr.mxu0 0.0
      %6195 = vmatpush2.msra.mxu0 0.0
      %6196 = vmatprep.subr.mxu0 0.0
      %6197 = vmatpush2.msra.mxu0 0.0
      %6198 = vmatprep.subr.mxu0 0.0
      %6199 = vmatpush2.msra.mxu0 0.0
      %6200 = vmatprep.subr.mxu0 0.0
      %6201 = vmatpush2.msra.mxu0 0.0
      %6202 = vmatprep.subr.mxu0 0.0
      %6203 = vmatpush2.msra.mxu0 0.0
      %6204 = vmatprep.subr.mxu0 0.0
      %6205 = vmatpush2.msra.mxu0 0.0
      %6206 = vmatprep.subr.mxu0 0.0
      %6207 = vmatpush2.msra.mxu0 0.0
      %6208 = vmatprep.subr.mxu0 0.0
      %6209 = vmatpush2.msra.mxu0 0.0
      %6210 = vmatprep.subr.mxu0 0.0
      %6211 = vmatpush2.msra.mxu0 0.0
      %6212 = vmatprep.subr.mxu0 0.0
      %6213 = vmatpush2.msra.mxu0 0.0
      %6214 = vmatprep.subr.mxu0 0.0
      %6215 = vmatpush2.msra.mxu0 0.0
      %6216 = vmatprep.mubr.f32.mxu0 0.0
      %6217 = vmatmul.mubr.f32.gmra.mxu0 %v5961
      %v6218 = vpop.f32.mrf.mxu0
      %v6219 = vadd.f32 %v5957, %v6218
      %v6220 = vpop.f32.mrf.mxu0
      %6221 = vmatprep.mubr.f32.mxu0 0.0
      %6222 = vmatmul.mubr.f32.gmra.mxu0 %v5964
      %v6223 = vpop.f32.mrf.mxu0
      %v6224 = vadd.f32 %v5957, %v6223
      %v6225 = vpop.f32.mrf.mxu0
      %6226 = vmatprep.mubr.f32.mxu0 0.0
      %6227 = vmatmul.mubr.f32.gmra.mxu0 %v5967
      %v6228 = vpop.f32.mrf.mxu0
      %v6229 = vadd.f32 %v5957, %v6228
      %v6230 = vpop.f32.mrf.mxu0
      %6231 = vmatprep.mubr.f32.mxu0 0.0
      %6232 = vmatmul.mubr.f32.gmra.mxu0 %v5970
      %v6233 = vpop.f32.mrf.mxu0
      %v6234 = vadd.f32 %v5957, %v6233
      %v6235 = vpop.f32.mrf.mxu0
      %6236 = vmatprep.mubr.f32.mxu0 0.0
      %6237 = vmatmul.mubr.f32.gmra.mxu0 %v5973
      %v6238 = vpop.f32.mrf.mxu0
      %v6239 = vadd.f32 %v5957, %v6238
      %v6240 = vpop.f32.mrf.mxu0
      %6241 = vmatprep.mubr.f32.mxu0 0.0
      %6242 = vmatmul.mubr.f32.gmra.mxu0 %v5976
      %v6243 = vpop.f32.mrf.mxu0
      %v6244 = vadd.f32 %v5957, %v6243
      %v6245 = vpop.f32.mrf.mxu0
      %6246 = vmatprep.mubr.f32.mxu0 0.0
      %6247 = vmatmul.mubr.f32.gmra.mxu0 %v5979
      %v6248 = vpop.f32.mrf.mxu0
      %v6249 = vadd.f32 %v5957, %v6248
      %v6250 = vpop.f32.mrf.mxu0
      %6251 = vmatprep.mubr.f32.mxu0 0.0
      %6252 = vmatmul.mubr.f32.gmra.mxu0 %v5982
      %v6253 = vpop.f32.mrf.mxu0
      %v6254 = vadd.f32 %v5957, %v6253
      %v6255 = vpop.f32.mrf.mxu0
      %6256 = vmatprep.mubr.f32.mxu0 0.0
      %6257 = vmatmul.mubr.f32.gmra.mxu0 %v5985
      %v6258 = vpop.f32.mrf.mxu0
      %v6259 = vadd.f32 %v5957, %v6258
      %v6260 = vpop.f32.mrf.mxu0
      %6261 = vmatprep.mubr.f32.mxu0 0.0
      %6262 = vmatmul.mubr.f32.gmra.mxu0 %v5988
      %v6263 = vpop.f32.mrf.mxu0
      %v6264 = vadd.f32 %v5957, %v6263
      %v6265 = vpop.f32.mrf.mxu0
      %6266 = vmatprep.mubr.f32.mxu0 0.0
      %6267 = vmatmul.mubr.f32.gmra.mxu0 %v5991
      %v6268 = vpop.f32.mrf.mxu0
      %v6269 = vadd.f32 %v5957, %v6268
      %v6270 = vpop.f32.mrf.mxu0
      %6271 = vmatprep.mubr.f32.mxu0 0.0
      %6272 = vmatmul.mubr.f32.gmra.mxu0 %v5994
      %v6273 = vpop.f32.mrf.mxu0
      %v6274 = vadd.f32 %v5957, %v6273
      %v6275 = vpop.f32.mrf.mxu0
      %6276 = vmatprep.mubr.f32.mxu0 0.0
      %6277 = vmatmul.mubr.f32.gmra.mxu0 %v5997
      %v6278 = vpop.f32.mrf.mxu0
      %v6279 = vadd.f32 %v5957, %v6278
      %v6280 = vpop.f32.mrf.mxu0
      %6281 = vmatprep.mubr.f32.mxu0 0.0
      %6282 = vmatmul.mubr.f32.gmra.mxu0 %v6000
      %v6283 = vpop.f32.mrf.mxu0
      %v6284 = vadd.f32 %v5957, %v6283
      %v6285 = vpop.f32.mrf.mxu0
      %6286 = vmatprep.mubr.f32.mxu0 0.0
      %6287 = vmatmul.mubr.f32.gmra.mxu0 %v6003
      %v6288 = vpop.f32.mrf.mxu0
      %v6289 = vadd.f32 %v5957, %v6288
      %v6290 = vpop.f32.mrf.mxu0
      %6291 = vmatprep.mubr.f32.mxu0 0.0
      %6292 = vmatmul.mubr.f32.gmra.mxu0 %v6006
      %v6293 = vpop.f32.mrf.mxu0
      %v6294 = vadd.f32 %v5957, %v6293
      %v6295 = vpop.f32.mrf.mxu0
      %6296 = vmatprep.mubr.f32.mxu0 0.0
      %6297 = vmatmul.mubr.f32.gmra.mxu0 %v6009
      %v6298 = vpop.f32.mrf.mxu0
      %v6299 = vadd.f32 %v5957, %v6298
      %v6300 = vpop.f32.mrf.mxu0
      %6301 = vmatprep.mubr.f32.mxu0 0.0
      %6302 = vmatmul.mubr.f32.gmra.mxu0 %v6012
      %v6303 = vpop.f32.mrf.mxu0
      %v6304 = vadd.f32 %v5957, %v6303
      %v6305 = vpop.f32.mrf.mxu0
      %6306 = vmatprep.mubr.f32.mxu0 0.0
      %6307 = vmatmul.mubr.f32.gmra.mxu0 %v6015
      %v6308 = vpop.f32.mrf.mxu0
      %v6309 = vadd.f32 %v5957, %v6308
      %v6310 = vpop.f32.mrf.mxu0
      %6311 = vmatprep.mubr.f32.mxu0 0.0
      %6312 = vmatmul.mubr.f32.gmra.mxu0 %v6018
      %v6313 = vpop.f32.mrf.mxu0
      %v6314 = vadd.f32 %v5957, %v6313
      %v6315 = vpop.f32.mrf.mxu0
      %6316 = vmatprep.mubr.f32.mxu0 0.0
      %6317 = vmatmul.mubr.f32.gmra.mxu0 %v6021
      %v6318 = vpop.f32.mrf.mxu0
      %v6319 = vadd.f32 %v5957, %v6318
      %v6320 = vpop.f32.mrf.mxu0
      %6321 = vmatprep.mubr.f32.mxu0 0.0
      %6322 = vmatmul.mubr.f32.gmra.mxu0 %v6024
      %v6323 = vpop.f32.mrf.mxu0
      %v6324 = vadd.f32 %v5957, %v6323
      %v6325 = vpop.f32.mrf.mxu0
      %6326 = vmatprep.mubr.f32.mxu0 0.0
      %6327 = vmatmul.mubr.f32.gmra.mxu0 %v6027
      %v6328 = vpop.f32.mrf.mxu0
      %v6329 = vadd.f32 %v5957, %v6328
      %v6330 = vpop.f32.mrf.mxu0
      %6331 = vmatprep.mubr.f32.mxu0 0.0
      %6332 = vmatmul.mubr.f32.gmra.mxu0 %v6030
      %v6333 = vpop.f32.mrf.mxu0
      %v6334 = vadd.f32 %v5957, %v6333
      %v6335 = vpop.f32.mrf.mxu0
      %6336 = vmatprep.mubr.f32.mxu0 0.0
      %6337 = vmatmul.mubr.f32.gmra.mxu0 %v6033
      %v6338 = vpop.f32.mrf.mxu0
      %v6339 = vadd.f32 %v5957, %v6338
      %v6340 = vpop.f32.mrf.mxu0
      %6341 = vmatprep.mubr.f32.mxu0 0.0
      %6342 = vmatmul.mubr.f32.gmra.mxu0 %v6036
      %v6343 = vpop.f32.mrf.mxu0
      %v6344 = vadd.f32 %v5957, %v6343
      %v6345 = vpop.f32.mrf.mxu0
      %6346 = vmatprep.mubr.f32.mxu0 0.0
      %6347 = vmatmul.mubr.f32.gmra.mxu0 %v6039
      %v6348 = vpop.f32.mrf.mxu0
      %v6349 = vadd.f32 %v5957, %v6348
      %v6350 = vpop.f32.mrf.mxu0
      %6351 = vmatprep.mubr.f32.mxu0 0.0
      %6352 = vmatmul.mubr.f32.gmra.mxu0 %v6042
      %v6353 = vpop.f32.mrf.mxu0
      %v6354 = vadd.f32 %v5957, %v6353
      %v6355 = vpop.f32.mrf.mxu0
      %6356 = vmatprep.mubr.f32.mxu0 0.0
      %6357 = vmatmul.mubr.f32.gmra.mxu0 %v6045
      %v6358 = vpop.f32.mrf.mxu0
      %v6359 = vadd.f32 %v5957, %v6358
      %v6360 = vpop.f32.mrf.mxu0
      %6361 = vmatprep.mubr.f32.mxu0 0.0
      %6362 = vmatmul.mubr.f32.gmra.mxu0 %v6048
      %v6363 = vpop.f32.mrf.mxu0
      %v6364 = vadd.f32 %v5957, %v6363
      %v6365 = vpop.f32.mrf.mxu0
      %6366 = vmatprep.mubr.f32.mxu0 0.0
      %6367 = vmatmul.mubr.f32.gmra.mxu0 %v6051
      %v6368 = vpop.f32.mrf.mxu0
      %v6369 = vadd.f32 %v5957, %v6368
      %v6370 = vpop.f32.mrf.mxu0
      %6371 = vmatprep.mubr.f32.mxu0 0.0
      %6372 = vmatmul.mubr.f32.gmra.mxu0 %v6054
      %v6373 = vpop.f32.mrf.mxu0
      %v6374 = vadd.f32 %v5957, %v6373
      %v6375 = vpop.f32.mrf.mxu0
      %6376 = vmatprep.mubr.f32.mxu0 0.0
      %6377 = vmatmul.mubr.f32.gmra.mxu0 %v6057
      %v6378 = vpop.f32.mrf.mxu0
      %v6379 = vadd.f32 %v5957, %v6378
      %v6380 = vpop.f32.mrf.mxu0
      %6381 = vmatprep.mubr.f32.mxu0 0.0
      %6382 = vmatmul.mubr.f32.gmra.mxu0 %v6060
      %v6383 = vpop.f32.mrf.mxu0
      %v6384 = vadd.f32 %v5957, %v6383
      %v6385 = vpop.f32.mrf.mxu0
      %6386 = vmatprep.mubr.f32.mxu0 0.0
      %6387 = vmatmul.mubr.f32.gmra.mxu0 %v6063
      %v6388 = vpop.f32.mrf.mxu0
      %v6389 = vadd.f32 %v5957, %v6388
      %v6390 = vpop.f32.mrf.mxu0
      %6391 = vmatprep.mubr.f32.mxu0 0.0
      %6392 = vmatmul.mubr.f32.gmra.mxu0 %v6066
      %v6393 = vpop.f32.mrf.mxu0
      %v6394 = vadd.f32 %v5957, %v6393
      %v6395 = vpop.f32.mrf.mxu0
      %6396 = vmatprep.mubr.f32.mxu0 0.0
      %6397 = vmatmul.mubr.f32.gmra.mxu0 %v6069
      %v6398 = vpop.f32.mrf.mxu0
      %v6399 = vadd.f32 %v5957, %v6398
      %v6400 = vpop.f32.mrf.mxu0
      %6401 = vmatprep.mubr.f32.mxu0 0.0
      %6402 = vmatmul.mubr.f32.gmra.mxu0 %v6072
      %v6403 = vpop.f32.mrf.mxu0
      %v6404 = vadd.f32 %v5957, %v6403
      %v6405 = vpop.f32.mrf.mxu0
      %6406 = vmatprep.mubr.f32.mxu0 0.0
      %6407 = vmatmul.mubr.f32.gmra.mxu0 %v6075
      %v6408 = vpop.f32.mrf.mxu0
      %v6409 = vadd.f32 %v5957, %v6408
      %v6410 = vpop.f32.mrf.mxu0
      %6411 = vmatprep.mubr.f32.mxu0 0.0
      %6412 = vmatmul.mubr.f32.gmra.mxu0 %v6078
      %v6413 = vpop.f32.mrf.mxu0
      %v6414 = vadd.f32 %v5957, %v6413
      %v6415 = vpop.f32.mrf.mxu0
      %6416 = vmatprep.mubr.f32.mxu0 0.0
      %6417 = vmatmul.mubr.f32.gmra.mxu0 %v6081
      %v6418 = vpop.f32.mrf.mxu0
      %v6419 = vadd.f32 %v5957, %v6418
      %v6420 = vpop.f32.mrf.mxu0
      %6421 = vmatprep.mubr.f32.mxu0 0.0
      %6422 = vmatmul.mubr.f32.gmra.mxu0 %v6084
      %v6423 = vpop.f32.mrf.mxu0
      %v6424 = vadd.f32 %v5957, %v6423
      %v6425 = vpop.f32.mrf.mxu0
      %6426 = vmatprep.mubr.f32.mxu0 0.0
      %6427 = vmatmul.mubr.f32.gmra.mxu0 %v6087
      %v6428 = vpop.f32.mrf.mxu0
      %v6429 = vadd.f32 %v5957, %v6428
      %v6430 = vpop.f32.mrf.mxu0
      %6431 = vmatprep.mubr.f32.mxu0 0.0
      %6432 = vmatmul.mubr.f32.gmra.mxu0 %v6090
      %v6433 = vpop.f32.mrf.mxu0
      %v6434 = vadd.f32 %v5957, %v6433
      %v6435 = vpop.f32.mrf.mxu0
      %6436 = vmatprep.mubr.f32.mxu0 0.0
      %6437 = vmatmul.mubr.f32.gmra.mxu0 %v6093
      %v6438 = vpop.f32.mrf.mxu0
      %v6439 = vadd.f32 %v5957, %v6438
      %v6440 = vpop.f32.mrf.mxu0
      %6441 = vmatprep.mubr.f32.mxu0 0.0
      %6442 = vmatmul.mubr.f32.gmra.mxu0 %v6096
      %v6443 = vpop.f32.mrf.mxu0
      %v6444 = vadd.f32 %v5957, %v6443
      %v6445 = vpop.f32.mrf.mxu0
      %6446 = vmatprep.mubr.f32.mxu0 0.0
      %6447 = vmatmul.mubr.f32.gmra.mxu0 %v6099
      %v6448 = vpop.f32.mrf.mxu0
      %v6449 = vadd.f32 %v5957, %v6448
      %v6450 = vpop.f32.mrf.mxu0
      %6451 = vmatprep.mubr.f32.mxu0 0.0
      %6452 = vmatmul.mubr.f32.gmra.mxu0 %v6102
      %v6453 = vpop.f32.mrf.mxu0
      %v6454 = vadd.f32 %v5957, %v6453
      %v6455 = vpop.f32.mrf.mxu0
      %6456 = vmatprep.mubr.f32.mxu0 0.0
      %6457 = vmatmul.mubr.f32.gmra.mxu0 %v6105
      %v6458 = vpop.f32.mrf.mxu0
      %v6459 = vadd.f32 %v5957, %v6458
      %v6460 = vpop.f32.mrf.mxu0
      %6461 = vmatprep.mubr.f32.mxu0 0.0
      %6462 = vmatmul.mubr.f32.gmra.mxu0 %v6108
      %v6463 = vpop.f32.mrf.mxu0
      %v6464 = vadd.f32 %v5957, %v6463
      %v6465 = vpop.f32.mrf.mxu0
      %6466 = vmatprep.mubr.f32.mxu0 0.0
      %6467 = vmatmul.mubr.f32.gmra.mxu0 %v6111
      %v6468 = vpop.f32.mrf.mxu0
      %v6469 = vadd.f32 %v5957, %v6468
      %v6470 = vpop.f32.mrf.mxu0
      %6471 = vmatprep.mubr.f32.mxu0 0.0
      %6472 = vmatmul.mubr.f32.gmra.mxu0 %v6114
      %v6473 = vpop.f32.mrf.mxu0
      %v6474 = vadd.f32 %v5957, %v6473
      %v6475 = vpop.f32.mrf.mxu0
      %6476 = vmatprep.mubr.f32.mxu0 0.0
      %6477 = vmatmul.mubr.f32.gmra.mxu0 %v6117
      %v6478 = vpop.f32.mrf.mxu0
      %v6479 = vadd.f32 %v5957, %v6478
      %v6480 = vpop.f32.mrf.mxu0
      %6481 = vmatprep.mubr.f32.mxu0 0.0
      %6482 = vmatmul.mubr.f32.gmra.mxu0 %v6120
      %v6483 = vpop.f32.mrf.mxu0
      %v6484 = vadd.f32 %v5957, %v6483
      %v6485 = vpop.f32.mrf.mxu0
      %6486 = vmatprep.mubr.f32.mxu0 0.0
      %6487 = vmatmul.mubr.f32.gmra.mxu0 %v6123
      %v6488 = vpop.f32.mrf.mxu0
      %v6489 = vadd.f32 %v5957, %v6488
      %v6490 = vpop.f32.mrf.mxu0
      %6491 = vmatprep.mubr.f32.mxu0 0.0
      %6492 = vmatmul.mubr.f32.gmra.mxu0 %v6126
      %v6493 = vpop.f32.mrf.mxu0
      %v6494 = vadd.f32 %v5957, %v6493
      %v6495 = vpop.f32.mrf.mxu0
      %6496 = vmatprep.mubr.f32.mxu0 0.0
      %6497 = vmatmul.mubr.f32.gmra.mxu0 %v6129
      %v6498 = vpop.f32.mrf.mxu0
      %v6499 = vadd.f32 %v5957, %v6498
      %v6500 = vpop.f32.mrf.mxu0
      %6501 = vmatprep.mubr.f32.mxu0 0.0
      %6502 = vmatmul.mubr.f32.gmra.mxu0 %v6132
      %v6503 = vpop.f32.mrf.mxu0
      %v6504 = vadd.f32 %v5957, %v6503
      %v6505 = vpop.f32.mrf.mxu0
      %6506 = vmatprep.mubr.f32.mxu0 0.0
      %6507 = vmatmul.mubr.f32.gmra.mxu0 %v6135
      %v6508 = vpop.f32.mrf.mxu0
      %v6509 = vadd.f32 %v5957, %v6508
      %v6510 = vpop.f32.mrf.mxu0
      %6511 = vmatprep.mubr.f32.mxu0 0.0
      %6512 = vmatmul.mubr.f32.gmra.mxu0 %v6138
      %v6513 = vpop.f32.mrf.mxu0
      %v6514 = vadd.f32 %v5957, %v6513
      %v6515 = vpop.f32.mrf.mxu0
      %6516 = vmatprep.mubr.f32.mxu0 0.0
      %6517 = vmatmul.mubr.f32.gmra.mxu0 %v6141
      %v6518 = vpop.f32.mrf.mxu0
      %v6519 = vadd.f32 %v5957, %v6518
      %v6520 = vpop.f32.mrf.mxu0
      %6521 = vmatprep.mubr.f32.mxu0 0.0
      %6522 = vmatmul.mubr.f32.gmra.mxu0 %v6144
      %v6523 = vpop.f32.mrf.mxu0
      %v6524 = vadd.f32 %v5957, %v6523
      %v6525 = vpop.f32.mrf.mxu0
      %6526 = vmatprep.mubr.f32.mxu0 0.0
      %6527 = vmatmul.mubr.f32.gmra.mxu0 %v6147
      %v6528 = vpop.f32.mrf.mxu0
      %v6529 = vadd.f32 %v5957, %v6528
      %v6530 = vpop.f32.mrf.mxu0
      %6531 = vmatprep.mubr.f32.mxu0 0.0
      %6532 = vmatmul.mubr.f32.gmra.mxu0 %v6150
      %v6533 = vpop.f32.mrf.mxu0
      %v6534 = vadd.f32 %v5957, %v6533
      %v6535 = vpop.f32.mrf.mxu0
      %6536 = vdwg.mxu0
      %v6537 = vld [vmem:[%s7] sm:$0xff]
      %v6538 = vld [vmem:[%s7 + $0x8] sm:$0xff]
      %v6539 = vld [vmem:[%s7 + $0x10] sm:$0xff]
      %v6540 = vld [vmem:[%s7 + $0x18] sm:$0xff]
      %v6541 = vld [vmem:[%s8] sm:$0x1]
      %v6543 = vlaneseq
      %v6544 = vshrl.u32 %v6543, 7
      %v6545 = vsub.s32 0, %v6544
      %v6546 = vrot.slane %v6541, %v6545
      %6548 = vmatprep.subr.mxu0 0.0
      %6549 = vmatpush1.msra.mxu0 0.0
      %6550 = vmatprep.subr.mxu0 0.0
      %6551 = vmatpush1.msra.mxu0 0.0
      %6552 = vmatprep.subr.mxu0 0.0
      %6553 = vmatpush1.msra.mxu0 0.0
      %6554 = vmatprep.subr.mxu0 0.0
      %6555 = vmatpush1.msra.mxu0 0.0
      %6556 = vmatprep.subr.mxu0 0.0
      %6557 = vmatpush1.msra.mxu0 0.0
      %6558 = vmatprep.subr.mxu0 0.0
      %6559 = vmatpush1.msra.mxu0 0.0
      %6560 = vmatprep.subr.mxu0 0.0
      %6561 = vmatpush1.msra.mxu0 0.0
      %6562 = vmatprep.subr.mxu0 0.0
      %6563 = vmatpush1.msra.mxu0 0.0
      %6564 = vmatprep.subr.mxu0 0.0
      %6565 = vmatpush1.msra.mxu0 0.0
      %6566 = vmatprep.subr.mxu0 0.0
      %6567 = vmatpush1.msra.mxu0 0.0
      %6568 = vmatprep.subr.mxu0 0.0
      %6569 = vmatpush1.msra.mxu0 0.0
      %6570 = vmatprep.subr.mxu0 0.0
      %6571 = vmatpush1.msra.mxu0 0.0
      %6572 = vmatprep.subr.mxu0 0.0
      %6573 = vmatpush1.msra.mxu0 %v6540
      %6574 = vmatprep.subr.mxu0 0.0
      %6575 = vmatpush1.msra.mxu0 %v6539
      %6576 = vmatprep.subr.mxu0 0.0
      %6577 = vmatpush1.msra.mxu0 %v6538
      %6578 = vmatprep.subr.mxu0 0.0
      %6579 = vmatpush1.msra.mxu0 %v6537
      %6580 = vmatprep.subr.mxu0 0.0
      %6581 = vmatpush2.msra.mxu0 0.0
      %6582 = vmatprep.subr.mxu0 0.0
      %6583 = vmatpush2.msra.mxu0 0.0
      %6584 = vmatprep.subr.mxu0 0.0
      %6585 = vmatpush2.msra.mxu0 0.0
      %6586 = vmatprep.subr.mxu0 0.0
      %6587 = vmatpush2.msra.mxu0 0.0
      %6588 = vmatprep.subr.mxu0 0.0
      %6589 = vmatpush2.msra.mxu0 0.0
      %6590 = vmatprep.subr.mxu0 0.0
      %6591 = vmatpush2.msra.mxu0 0.0
      %6592 = vmatprep.subr.mxu0 0.0
      %6593 = vmatpush2.msra.mxu0 0.0
      %6594 = vmatprep.subr.mxu0 0.0
      %6595 = vmatpush2.msra.mxu0 0.0
      %6596 = vmatprep.subr.mxu0 0.0
      %6597 = vmatpush2.msra.mxu0 0.0
      %6598 = vmatprep.subr.mxu0 0.0
      %6599 = vmatpush2.msra.mxu0 0.0
      %6600 = vmatprep.subr.mxu0 0.0
      %6601 = vmatpush2.msra.mxu0 0.0
      %6602 = vmatprep.subr.mxu0 0.0
      %6603 = vmatpush2.msra.mxu0 0.0
      %6604 = vmatprep.subr.mxu0 0.0
      %6605 = vmatpush2.msra.mxu0 0.0
      %6606 = vmatprep.subr.mxu0 0.0
      %6607 = vmatpush2.msra.mxu0 0.0
      %6608 = vmatprep.subr.mxu0 0.0
      %6609 = vmatpush2.msra.mxu0 0.0
      %6610 = vmatprep.subr.mxu0 0.0
      %6611 = vmatpush2.msra.mxu0 0.0
      %6612 = vmatprep.mubr.f32.mxu0 0.0
      %6613 = vmatmul.mubr.f32.gmra.mxu0 %v5961
      %v6614 = vpop.f32.mrf.mxu0
      %v6615 = vadd.f32 %v6546, %v6614
      %v6616 = vpop.f32.mrf.mxu0
      %6617 = vmatprep.mubr.f32.mxu0 0.0
      %6618 = vmatmul.mubr.f32.gmra.mxu0 %v5964
      %v6619 = vpop.f32.mrf.mxu0
      %v6620 = vadd.f32 %v6546, %v6619
      %v6621 = vpop.f32.mrf.mxu0
      %6622 = vmatprep.mubr.f32.mxu0 0.0
      %6623 = vmatmul.mubr.f32.gmra.mxu0 %v5967
      %v6624 = vpop.f32.mrf.mxu0
      %v6625 = vadd.f32 %v6546, %v6624
      %v6626 = vpop.f32.mrf.mxu0
      %6627 = vmatprep.mubr.f32.mxu0 0.0
      %6628 = vmatmul.mubr.f32.gmra.mxu0 %v5970
      %v6629 = vpop.f32.mrf.mxu0
      %v6630 = vadd.f32 %v6546, %v6629
      %v6631 = vpop.f32.mrf.mxu0
      %6632 = vmatprep.mubr.f32.mxu0 0.0
      %6633 = vmatmul.mubr.f32.gmra.mxu0 %v5973
      %v6634 = vpop.f32.mrf.mxu0
      %v6635 = vadd.f32 %v6546, %v6634
      %v6636 = vpop.f32.mrf.mxu0
      %6637 = vmatprep.mubr.f32.mxu0 0.0
      %6638 = vmatmul.mubr.f32.gmra.mxu0 %v5976
      %v6639 = vpop.f32.mrf.mxu0
      %v6640 = vadd.f32 %v6546, %v6639
      %v6641 = vpop.f32.mrf.mxu0
      %6642 = vmatprep.mubr.f32.mxu0 0.0
      %6643 = vmatmul.mubr.f32.gmra.mxu0 %v5979
      %v6644 = vpop.f32.mrf.mxu0
      %v6645 = vadd.f32 %v6546, %v6644
      %v6646 = vpop.f32.mrf.mxu0
      %6647 = vmatprep.mubr.f32.mxu0 0.0
      %6648 = vmatmul.mubr.f32.gmra.mxu0 %v5982
      %v6649 = vpop.f32.mrf.mxu0
      %v6650 = vadd.f32 %v6546, %v6649
      %v6651 = vpop.f32.mrf.mxu0
      %6652 = vmatprep.mubr.f32.mxu0 0.0
      %6653 = vmatmul.mubr.f32.gmra.mxu0 %v5985
      %v6654 = vpop.f32.mrf.mxu0
      %v6655 = vadd.f32 %v6546, %v6654
      %v6656 = vpop.f32.mrf.mxu0
      %6657 = vmatprep.mubr.f32.mxu0 0.0
      %6658 = vmatmul.mubr.f32.gmra.mxu0 %v5988
      %v6659 = vpop.f32.mrf.mxu0
      %v6660 = vadd.f32 %v6546, %v6659
      %v6661 = vpop.f32.mrf.mxu0
      %6662 = vmatprep.mubr.f32.mxu0 0.0
      %6663 = vmatmul.mubr.f32.gmra.mxu0 %v5991
      %v6664 = vpop.f32.mrf.mxu0
      %v6665 = vadd.f32 %v6546, %v6664
      %v6666 = vpop.f32.mrf.mxu0
      %6667 = vmatprep.mubr.f32.mxu0 0.0
      %6668 = vmatmul.mubr.f32.gmra.mxu0 %v5994
      %v6669 = vpop.f32.mrf.mxu0
      %v6670 = vadd.f32 %v6546, %v6669
      %v6671 = vpop.f32.mrf.mxu0
      %6672 = vmatprep.mubr.f32.mxu0 0.0
      %6673 = vmatmul.mubr.f32.gmra.mxu0 %v5997
      %v6674 = vpop.f32.mrf.mxu0
      %v6675 = vadd.f32 %v6546, %v6674
      %v6676 = vpop.f32.mrf.mxu0
      %6677 = vmatprep.mubr.f32.mxu0 0.0
      %6678 = vmatmul.mubr.f32.gmra.mxu0 %v6000
      %v6679 = vpop.f32.mrf.mxu0
      %v6680 = vadd.f32 %v6546, %v6679
      %v6681 = vpop.f32.mrf.mxu0
      %6682 = vmatprep.mubr.f32.mxu0 0.0
      %6683 = vmatmul.mubr.f32.gmra.mxu0 %v6003
      %v6684 = vpop.f32.mrf.mxu0
      %v6685 = vadd.f32 %v6546, %v6684
      %v6686 = vpop.f32.mrf.mxu0
      %6687 = vmatprep.mubr.f32.mxu0 0.0
      %6688 = vmatmul.mubr.f32.gmra.mxu0 %v6006
      %v6689 = vpop.f32.mrf.mxu0
      %v6690 = vadd.f32 %v6546, %v6689
      %v6691 = vpop.f32.mrf.mxu0
      %6692 = vmatprep.mubr.f32.mxu0 0.0
      %6693 = vmatmul.mubr.f32.gmra.mxu0 %v6009
      %v6694 = vpop.f32.mrf.mxu0
      %v6695 = vadd.f32 %v6546, %v6694
      %v6696 = vpop.f32.mrf.mxu0
      %6697 = vmatprep.mubr.f32.mxu0 0.0
      %6698 = vmatmul.mubr.f32.gmra.mxu0 %v6012
      %v6699 = vpop.f32.mrf.mxu0
      %v6700 = vadd.f32 %v6546, %v6699
      %v6701 = vpop.f32.mrf.mxu0
      %6702 = vmatprep.mubr.f32.mxu0 0.0
      %6703 = vmatmul.mubr.f32.gmra.mxu0 %v6015
      %v6704 = vpop.f32.mrf.mxu0
      %v6705 = vadd.f32 %v6546, %v6704
      %v6706 = vpop.f32.mrf.mxu0
      %6707 = vmatprep.mubr.f32.mxu0 0.0
      %6708 = vmatmul.mubr.f32.gmra.mxu0 %v6018
      %v6709 = vpop.f32.mrf.mxu0
      %v6710 = vadd.f32 %v6546, %v6709
      %v6711 = vpop.f32.mrf.mxu0
      %6712 = vmatprep.mubr.f32.mxu0 0.0
      %6713 = vmatmul.mubr.f32.gmra.mxu0 %v6021
      %v6714 = vpop.f32.mrf.mxu0
      %v6715 = vadd.f32 %v6546, %v6714
      %v6716 = vpop.f32.mrf.mxu0
      %6717 = vmatprep.mubr.f32.mxu0 0.0
      %6718 = vmatmul.mubr.f32.gmra.mxu0 %v6024
      %v6719 = vpop.f32.mrf.mxu0
      %v6720 = vadd.f32 %v6546, %v6719
      %v6721 = vpop.f32.mrf.mxu0
      %6722 = vmatprep.mubr.f32.mxu0 0.0
      %6723 = vmatmul.mubr.f32.gmra.mxu0 %v6027
      %v6724 = vpop.f32.mrf.mxu0
      %v6725 = vadd.f32 %v6546, %v6724
      %v6726 = vpop.f32.mrf.mxu0
      %6727 = vmatprep.mubr.f32.mxu0 0.0
      %6728 = vmatmul.mubr.f32.gmra.mxu0 %v6030
      %v6729 = vpop.f32.mrf.mxu0
      %v6730 = vadd.f32 %v6546, %v6729
      %v6731 = vpop.f32.mrf.mxu0
      %6732 = vmatprep.mubr.f32.mxu0 0.0
      %6733 = vmatmul.mubr.f32.gmra.mxu0 %v6033
      %v6734 = vpop.f32.mrf.mxu0
      %v6735 = vadd.f32 %v6546, %v6734
      %v6736 = vpop.f32.mrf.mxu0
      %6737 = vmatprep.mubr.f32.mxu0 0.0
      %6738 = vmatmul.mubr.f32.gmra.mxu0 %v6036
      %v6739 = vpop.f32.mrf.mxu0
      %v6740 = vadd.f32 %v6546, %v6739
      %v6741 = vpop.f32.mrf.mxu0
      %6742 = vmatprep.mubr.f32.mxu0 0.0
      %6743 = vmatmul.mubr.f32.gmra.mxu0 %v6039
      %v6744 = vpop.f32.mrf.mxu0
      %v6745 = vadd.f32 %v6546, %v6744
      %v6746 = vpop.f32.mrf.mxu0
      %6747 = vmatprep.mubr.f32.mxu0 0.0
      %6748 = vmatmul.mubr.f32.gmra.mxu0 %v6042
      %v6749 = vpop.f32.mrf.mxu0
      %v6750 = vadd.f32 %v6546, %v6749
      %v6751 = vpop.f32.mrf.mxu0
      %6752 = vmatprep.mubr.f32.mxu0 0.0
      %6753 = vmatmul.mubr.f32.gmra.mxu0 %v6045
      %v6754 = vpop.f32.mrf.mxu0
      %v6755 = vadd.f32 %v6546, %v6754
      %v6756 = vpop.f32.mrf.mxu0
      %6757 = vmatprep.mubr.f32.mxu0 0.0
      %6758 = vmatmul.mubr.f32.gmra.mxu0 %v6048
      %v6759 = vpop.f32.mrf.mxu0
      %v6760 = vadd.f32 %v6546, %v6759
      %v6761 = vpop.f32.mrf.mxu0
      %6762 = vmatprep.mubr.f32.mxu0 0.0
      %6763 = vmatmul.mubr.f32.gmra.mxu0 %v6051
      %v6764 = vpop.f32.mrf.mxu0
      %v6765 = vadd.f32 %v6546, %v6764
      %v6766 = vpop.f32.mrf.mxu0
      %6767 = vmatprep.mubr.f32.mxu0 0.0
      %6768 = vmatmul.mubr.f32.gmra.mxu0 %v6054
      %v6769 = vpop.f32.mrf.mxu0
      %v6770 = vadd.f32 %v6546, %v6769
      %v6771 = vpop.f32.mrf.mxu0
      %6772 = vmatprep.mubr.f32.mxu0 0.0
      %6773 = vmatmul.mubr.f32.gmra.mxu0 %v6057
      %v6774 = vpop.f32.mrf.mxu0
      %v6775 = vadd.f32 %v6546, %v6774
      %v6776 = vpop.f32.mrf.mxu0
      %6777 = vmatprep.mubr.f32.mxu0 0.0
      %6778 = vmatmul.mubr.f32.gmra.mxu0 %v6060
      %v6779 = vpop.f32.mrf.mxu0
      %v6780 = vadd.f32 %v6546, %v6779
      %v6781 = vpop.f32.mrf.mxu0
      %6782 = vmatprep.mubr.f32.mxu0 0.0
      %6783 = vmatmul.mubr.f32.gmra.mxu0 %v6063
      %v6784 = vpop.f32.mrf.mxu0
      %v6785 = vadd.f32 %v6546, %v6784
      %v6786 = vpop.f32.mrf.mxu0
      %6787 = vmatprep.mubr.f32.mxu0 0.0
      %6788 = vmatmul.mubr.f32.gmra.mxu0 %v6066
      %v6789 = vpop.f32.mrf.mxu0
      %v6790 = vadd.f32 %v6546, %v6789
      %v6791 = vpop.f32.mrf.mxu0
      %6792 = vmatprep.mubr.f32.mxu0 0.0
      %6793 = vmatmul.mubr.f32.gmra.mxu0 %v6069
      %v6794 = vpop.f32.mrf.mxu0
      %v6795 = vadd.f32 %v6546, %v6794
      %v6796 = vpop.f32.mrf.mxu0
      %6797 = vmatprep.mubr.f32.mxu0 0.0
      %6798 = vmatmul.mubr.f32.gmra.mxu0 %v6072
      %v6799 = vpop.f32.mrf.mxu0
      %v6800 = vadd.f32 %v6546, %v6799
      %v6801 = vpop.f32.mrf.mxu0
      %6802 = vmatprep.mubr.f32.mxu0 0.0
      %6803 = vmatmul.mubr.f32.gmra.mxu0 %v6075
      %v6804 = vpop.f32.mrf.mxu0
      %v6805 = vadd.f32 %v6546, %v6804
      %v6806 = vpop.f32.mrf.mxu0
      %6807 = vmatprep.mubr.f32.mxu0 0.0
      %6808 = vmatmul.mubr.f32.gmra.mxu0 %v6078
      %v6809 = vpop.f32.mrf.mxu0
      %v6810 = vadd.f32 %v6546, %v6809
      %v6811 = vpop.f32.mrf.mxu0
      %6812 = vmatprep.mubr.f32.mxu0 0.0
      %6813 = vmatmul.mubr.f32.gmra.mxu0 %v6081
      %v6814 = vpop.f32.mrf.mxu0
      %v6815 = vadd.f32 %v6546, %v6814
      %v6816 = vpop.f32.mrf.mxu0
      %6817 = vmatprep.mubr.f32.mxu0 0.0
      %6818 = vmatmul.mubr.f32.gmra.mxu0 %v6084
      %v6819 = vpop.f32.mrf.mxu0
      %v6820 = vadd.f32 %v6546, %v6819
      %v6821 = vpop.f32.mrf.mxu0
      %6822 = vmatprep.mubr.f32.mxu0 0.0
      %6823 = vmatmul.mubr.f32.gmra.mxu0 %v6087
      %v6824 = vpop.f32.mrf.mxu0
      %v6825 = vadd.f32 %v6546, %v6824
      %v6826 = vpop.f32.mrf.mxu0
      %6827 = vmatprep.mubr.f32.mxu0 0.0
      %6828 = vmatmul.mubr.f32.gmra.mxu0 %v6090
      %v6829 = vpop.f32.mrf.mxu0
      %v6830 = vadd.f32 %v6546, %v6829
      %v6831 = vpop.f32.mrf.mxu0
      %6832 = vmatprep.mubr.f32.mxu0 0.0
      %6833 = vmatmul.mubr.f32.gmra.mxu0 %v6093
      %v6834 = vpop.f32.mrf.mxu0
      %v6835 = vadd.f32 %v6546, %v6834
      %v6836 = vpop.f32.mrf.mxu0
      %6837 = vmatprep.mubr.f32.mxu0 0.0
      %6838 = vmatmul.mubr.f32.gmra.mxu0 %v6096
      %v6839 = vpop.f32.mrf.mxu0
      %v6840 = vadd.f32 %v6546, %v6839
      %v6841 = vpop.f32.mrf.mxu0
      %6842 = vmatprep.mubr.f32.mxu0 0.0
      %6843 = vmatmul.mubr.f32.gmra.mxu0 %v6099
      %v6844 = vpop.f32.mrf.mxu0
      %v6845 = vadd.f32 %v6546, %v6844
      %v6846 = vpop.f32.mrf.mxu0
      %6847 = vmatprep.mubr.f32.mxu0 0.0
      %6848 = vmatmul.mubr.f32.gmra.mxu0 %v6102
      %v6849 = vpop.f32.mrf.mxu0
      %v6850 = vadd.f32 %v6546, %v6849
      %v6851 = vpop.f32.mrf.mxu0
      %6852 = vmatprep.mubr.f32.mxu0 0.0
      %6853 = vmatmul.mubr.f32.gmra.mxu0 %v6105
      %v6854 = vpop.f32.mrf.mxu0
      %v6855 = vadd.f32 %v6546, %v6854
      %v6856 = vpop.f32.mrf.mxu0
      %6857 = vmatprep.mubr.f32.mxu0 0.0
      %6858 = vmatmul.mubr.f32.gmra.mxu0 %v6108
      %v6859 = vpop.f32.mrf.mxu0
      %v6860 = vadd.f32 %v6546, %v6859
      %v6861 = vpop.f32.mrf.mxu0
      %6862 = vmatprep.mubr.f32.mxu0 0.0
      %6863 = vmatmul.mubr.f32.gmra.mxu0 %v6111
      %v6864 = vpop.f32.mrf.mxu0
      %v6865 = vadd.f32 %v6546, %v6864
      %v6866 = vpop.f32.mrf.mxu0
      %6867 = vmatprep.mubr.f32.mxu0 0.0
      %6868 = vmatmul.mubr.f32.gmra.mxu0 %v6114
      %v6869 = vpop.f32.mrf.mxu0
      %v6870 = vadd.f32 %v6546, %v6869
      %v6871 = vpop.f32.mrf.mxu0
      %6872 = vmatprep.mubr.f32.mxu0 0.0
      %6873 = vmatmul.mubr.f32.gmra.mxu0 %v6117
      %v6874 = vpop.f32.mrf.mxu0
      %v6875 = vadd.f32 %v6546, %v6874
      %v6876 = vpop.f32.mrf.mxu0
      %6877 = vmatprep.mubr.f32.mxu0 0.0
      %6878 = vmatmul.mubr.f32.gmra.mxu0 %v6120
      %v6879 = vpop.f32.mrf.mxu0
      %v6880 = vadd.f32 %v6546, %v6879
      %v6881 = vpop.f32.mrf.mxu0
      %6882 = vmatprep.mubr.f32.mxu0 0.0
      %6883 = vmatmul.mubr.f32.gmra.mxu0 %v6123
      %v6884 = vpop.f32.mrf.mxu0
      %v6885 = vadd.f32 %v6546, %v6884
      %v6886 = vpop.f32.mrf.mxu0
      %6887 = vmatprep.mubr.f32.mxu0 0.0
      %6888 = vmatmul.mubr.f32.gmra.mxu0 %v6126
      %v6889 = vpop.f32.mrf.mxu0
      %v6890 = vadd.f32 %v6546, %v6889
      %v6891 = vpop.f32.mrf.mxu0
      %6892 = vmatprep.mubr.f32.mxu0 0.0
      %6893 = vmatmul.mubr.f32.gmra.mxu0 %v6129
      %v6894 = vpop.f32.mrf.mxu0
      %v6895 = vadd.f32 %v6546, %v6894
      %v6896 = vpop.f32.mrf.mxu0
      %6897 = vmatprep.mubr.f32.mxu0 0.0
      %6898 = vmatmul.mubr.f32.gmra.mxu0 %v6132
      %v6899 = vpop.f32.mrf.mxu0
      %v6900 = vadd.f32 %v6546, %v6899
      %v6901 = vpop.f32.mrf.mxu0
      %6902 = vmatprep.mubr.f32.mxu0 0.0
      %6903 = vmatmul.mubr.f32.gmra.mxu0 %v6135
      %v6904 = vpop.f32.mrf.mxu0
      %v6905 = vadd.f32 %v6546, %v6904
      %v6906 = vpop.f32.mrf.mxu0
      %6907 = vmatprep.mubr.f32.mxu0 0.0
      %6908 = vmatmul.mubr.f32.gmra.mxu0 %v6138
      %v6909 = vpop.f32.mrf.mxu0
      %v6910 = vadd.f32 %v6546, %v6909
      %v6911 = vpop.f32.mrf.mxu0
      %6912 = vmatprep.mubr.f32.mxu0 0.0
      %6913 = vmatmul.mubr.f32.gmra.mxu0 %v6141
      %v6914 = vpop.f32.mrf.mxu0
      %v6915 = vadd.f32 %v6546, %v6914
      %v6916 = vpop.f32.mrf.mxu0
      %6917 = vmatprep.mubr.f32.mxu0 0.0
      %6918 = vmatmul.mubr.f32.gmra.mxu0 %v6144
      %v6919 = vpop.f32.mrf.mxu0
      %v6920 = vadd.f32 %v6546, %v6919
      %v6921 = vpop.f32.mrf.mxu0
      %6922 = vmatprep.mubr.f32.mxu0 0.0
      %6923 = vmatmul.mubr.f32.gmra.mxu0 %v6147
      %v6924 = vpop.f32.mrf.mxu0
      %v6925 = vadd.f32 %v6546, %v6924
      %v6926 = vpop.f32.mrf.mxu0
      %6927 = vmatprep.mubr.f32.mxu0 0.0
      %6928 = vmatmul.mubr.f32.gmra.mxu0 %v6150
      %v6929 = vpop.f32.mrf.mxu0
      %v6930 = vadd.f32 %v6546, %v6929
      %v6931 = vpop.f32.mrf.mxu0
      %6932 = vdwg.mxu0
      %v6933 = vld [vmem:[%s512] sm:$0xff]
      %v6934 = vld [vmem:[%s512 + $0x8] sm:$0xff]
      %v6935 = vld [vmem:[%s512 + $0x10] sm:$0xff]
      %v6936 = vld [vmem:[%s512 + $0x18] sm:$0xff]
      %v6937 = vld [vmem:[%s512 + $0x20] sm:$0xff]
      %v6938 = vld [vmem:[%s512 + $0x28] sm:$0xff]
      %v6939 = vld [vmem:[%s512 + $0x30] sm:$0xff]
      %v6940 = vld [vmem:[%s512 + $0x38] sm:$0xff]
      %v6941 = vld [vmem:[%s512 + $0x40] sm:$0xff]
      %v6942 = vld [vmem:[%s512 + $0x48] sm:$0xff]
      %v6943 = vld [vmem:[%s512 + $0x50] sm:$0xff]
      %v6944 = vld [vmem:[%s512 + $0x58] sm:$0xff]
      %v6945 = vld [vmem:[%s512 + $0x60] sm:$0xff]
      %v6946 = vld [vmem:[%s512 + $0x68] sm:$0xff]
      %v6947 = vld [vmem:[%s512 + $0x70] sm:$0xff]
      %v6948 = vld [vmem:[%s512 + $0x78] sm:$0xff]
      %v6949 = vld [vmem:[%s512 + $0x80] sm:$0xff]
      %v6950 = vld [vmem:[%s512 + $0x88] sm:$0xff]
      %v6951 = vld [vmem:[%s512 + $0x90] sm:$0xff]
      %v6952 = vld [vmem:[%s512 + $0x98] sm:$0xff]
      %v6953 = vld [vmem:[%s512 + $0xa0] sm:$0xff]
      %v6954 = vld [vmem:[%s512 + $0xa8] sm:$0xff]
      %v6955 = vld [vmem:[%s512 + $0xb0] sm:$0xff]
      %v6956 = vld [vmem:[%s512 + $0xb8] sm:$0xff]
      %v6957 = vld [vmem:[%s512 + $0xc0] sm:$0xff]
      %v6958 = vld [vmem:[%s512 + $0xc8] sm:$0xff]
      %v6959 = vld [vmem:[%s512 + $0xd0] sm:$0xff]
      %v6960 = vld [vmem:[%s512 + $0xd8] sm:$0xff]
      %v6961 = vld [vmem:[%s512 + $0xe0] sm:$0xff]
      %v6962 = vld [vmem:[%s512 + $0xe8] sm:$0xff]
      %v6963 = vld [vmem:[%s512 + $0xf0] sm:$0xff]
      %v6964 = vld [vmem:[%s512 + $0xf8] sm:$0xff]
      %v6965 = vld [vmem:[%s512 + $0x100] sm:$0xff]
      %v6966 = vld [vmem:[%s512 + $0x108] sm:$0xff]
      %v6967 = vld [vmem:[%s512 + $0x110] sm:$0xff]
      %v6968 = vld [vmem:[%s512 + $0x118] sm:$0xff]
      %v6969 = vld [vmem:[%s512 + $0x120] sm:$0xff]
      %v6970 = vld [vmem:[%s512 + $0x128] sm:$0xff]
      %v6971 = vld [vmem:[%s512 + $0x130] sm:$0xff]
      %v6972 = vld [vmem:[%s512 + $0x138] sm:$0xff]
      %v6973 = vld [vmem:[%s512 + $0x140] sm:$0xff]
      %v6974 = vld [vmem:[%s512 + $0x148] sm:$0xff]
      %v6975 = vld [vmem:[%s512 + $0x150] sm:$0xff]
      %v6976 = vld [vmem:[%s512 + $0x158] sm:$0xff]
      %v6977 = vld [vmem:[%s512 + $0x160] sm:$0xff]
      %v6978 = vld [vmem:[%s512 + $0x168] sm:$0xff]
      %v6979 = vld [vmem:[%s512 + $0x170] sm:$0xff]
      %v6980 = vld [vmem:[%s512 + $0x178] sm:$0xff]
      %v6981 = vld [vmem:[%s512 + $0x180] sm:$0xff]
      %v6982 = vld [vmem:[%s512 + $0x188] sm:$0xff]
      %v6983 = vld [vmem:[%s512 + $0x190] sm:$0xff]
      %v6984 = vld [vmem:[%s512 + $0x198] sm:$0xff]
      %v6985 = vld [vmem:[%s512 + $0x1a0] sm:$0xff]
      %v6986 = vld [vmem:[%s512 + $0x1a8] sm:$0xff]
      %v6987 = vld [vmem:[%s512 + $0x1b0] sm:$0xff]
      %v6988 = vld [vmem:[%s512 + $0x1b8] sm:$0xff]
      %v6989 = vld [vmem:[%s512 + $0x1c0] sm:$0xff]
      %v6990 = vld [vmem:[%s512 + $0x1c8] sm:$0xff]
      %v6991 = vld [vmem:[%s512 + $0x1d0] sm:$0xff]
      %v6992 = vld [vmem:[%s512 + $0x1d8] sm:$0xff]
      %v6993 = vld [vmem:[%s512 + $0x1e0] sm:$0xff]
      %v6994 = vld [vmem:[%s512 + $0x1e8] sm:$0xff]
      %v6995 = vld [vmem:[%s512 + $0x1f0] sm:$0xff]
      %v6996 = vld [vmem:[%s512 + $0x1f8] sm:$0xff]
      %v6997 = vmul.f32 %v6933, %v6219
      %v6998 = vmul.f32 %v6934, %v6224
      %v6999 = vmul.f32 %v6935, %v6229
      %v7000 = vmul.f32 %v6936, %v6234
      %v7001 = vmul.f32 %v6937, %v6239
      %v7002 = vmul.f32 %v6938, %v6244
      %v7003 = vmul.f32 %v6939, %v6249
      %v7004 = vmul.f32 %v6940, %v6254
      %v7005 = vmul.f32 %v6941, %v6259
      %v7006 = vmul.f32 %v6942, %v6264
      %v7007 = vmul.f32 %v6943, %v6269
      %v7008 = vmul.f32 %v6944, %v6274
      %v7009 = vmul.f32 %v6945, %v6279
      %v7010 = vmul.f32 %v6946, %v6284
      %v7011 = vmul.f32 %v6947, %v6289
      %v7012 = vmul.f32 %v6948, %v6294
      %v7013 = vmul.f32 %v6949, %v6299
      %v7014 = vmul.f32 %v6950, %v6304
      %v7015 = vmul.f32 %v6951, %v6309
      %v7016 = vmul.f32 %v6952, %v6314
      %v7017 = vmul.f32 %v6953, %v6319
      %v7018 = vmul.f32 %v6954, %v6324
      %v7019 = vmul.f32 %v6955, %v6329
      %v7020 = vmul.f32 %v6956, %v6334
      %v7021 = vmul.f32 %v6957, %v6339
      %v7022 = vmul.f32 %v6958, %v6344
      %v7023 = vmul.f32 %v6959, %v6349
      %v7024 = vmul.f32 %v6960, %v6354
      %v7025 = vmul.f32 %v6961, %v6359
      %v7026 = vmul.f32 %v6962, %v6364
      %v7027 = vmul.f32 %v6963, %v6369
      %v7028 = vmul.f32 %v6964, %v6374
      %v7029 = vmul.f32 %v6965, %v6379
      %v7030 = vmul.f32 %v6966, %v6384
      %v7031 = vmul.f32 %v6967, %v6389
      %v7032 = vmul.f32 %v6968, %v6394
      %v7033 = vmul.f32 %v6969, %v6399
      %v7034 = vmul.f32 %v6970, %v6404
      %v7035 = vmul.f32 %v6971, %v6409
      %v7036 = vmul.f32 %v6972, %v6414
      %v7037 = vmul.f32 %v6973, %v6419
      %v7038 = vmul.f32 %v6974, %v6424
      %v7039 = vmul.f32 %v6975, %v6429
      %v7040 = vmul.f32 %v6976, %v6434
      %v7041 = vmul.f32 %v6977, %v6439
      %v7042 = vmul.f32 %v6978, %v6444
      %v7043 = vmul.f32 %v6979, %v6449
      %v7044 = vmul.f32 %v6980, %v6454
      %v7045 = vmul.f32 %v6981, %v6459
      %v7046 = vmul.f32 %v6982, %v6464
      %v7047 = vmul.f32 %v6983, %v6469
      %v7048 = vmul.f32 %v6984, %v6474
      %v7049 = vmul.f32 %v6985, %v6479
      %v7050 = vmul.f32 %v6986, %v6484
      %v7051 = vmul.f32 %v6987, %v6489
      %v7052 = vmul.f32 %v6988, %v6494
      %v7053 = vmul.f32 %v6989, %v6499
      %v7054 = vmul.f32 %v6990, %v6504
      %v7055 = vmul.f32 %v6991, %v6509
      %v7056 = vmul.f32 %v6992, %v6514
      %v7057 = vmul.f32 %v6993, %v6519
      %v7058 = vmul.f32 %v6994, %v6524
      %v7059 = vmul.f32 %v6995, %v6529
      %v7060 = vmul.f32 %v6996, %v6534
      %v7061 = vadd.f32 %v6997, %v6615
      %v7062 = vadd.f32 %v6998, %v6620
      %v7063 = vadd.f32 %v6999, %v6625
      %v7064 = vadd.f32 %v7000, %v6630
      %v7065 = vadd.f32 %v7001, %v6635
      %v7066 = vadd.f32 %v7002, %v6640
      %v7067 = vadd.f32 %v7003, %v6645
      %v7068 = vadd.f32 %v7004, %v6650
      %v7069 = vadd.f32 %v7005, %v6655
      %v7070 = vadd.f32 %v7006, %v6660
      %v7071 = vadd.f32 %v7007, %v6665
      %v7072 = vadd.f32 %v7008, %v6670
      %v7073 = vadd.f32 %v7009, %v6675
      %v7074 = vadd.f32 %v7010, %v6680
      %v7075 = vadd.f32 %v7011, %v6685
      %v7076 = vadd.f32 %v7012, %v6690
      %v7077 = vadd.f32 %v7013, %v6695
      %v7078 = vadd.f32 %v7014, %v6700
      %v7079 = vadd.f32 %v7015, %v6705
      %v7080 = vadd.f32 %v7016, %v6710
      %v7081 = vadd.f32 %v7017, %v6715
      %v7082 = vadd.f32 %v7018, %v6720
      %v7083 = vadd.f32 %v7019, %v6725
      %v7084 = vadd.f32 %v7020, %v6730
      %v7085 = vadd.f32 %v7021, %v6735
      %v7086 = vadd.f32 %v7022, %v6740
      %v7087 = vadd.f32 %v7023, %v6745
      %v7088 = vadd.f32 %v7024, %v6750
      %v7089 = vadd.f32 %v7025, %v6755
      %v7090 = vadd.f32 %v7026, %v6760
      %v7091 = vadd.f32 %v7027, %v6765
      %v7092 = vadd.f32 %v7028, %v6770
      %v7093 = vadd.f32 %v7029, %v6775
      %v7094 = vadd.f32 %v7030, %v6780
      %v7095 = vadd.f32 %v7031, %v6785
      %v7096 = vadd.f32 %v7032, %v6790
      %v7097 = vadd.f32 %v7033, %v6795
      %v7098 = vadd.f32 %v7034, %v6800
      %v7099 = vadd.f32 %v7035, %v6805
      %v7100 = vadd.f32 %v7036, %v6810
      %v7101 = vadd.f32 %v7037, %v6815
      %v7102 = vadd.f32 %v7038, %v6820
      %v7103 = vadd.f32 %v7039, %v6825
      %v7104 = vadd.f32 %v7040, %v6830
      %v7105 = vadd.f32 %v7041, %v6835
      %v7106 = vadd.f32 %v7042, %v6840
      %v7107 = vadd.f32 %v7043, %v6845
      %v7108 = vadd.f32 %v7044, %v6850
      %v7109 = vadd.f32 %v7045, %v6855
      %v7110 = vadd.f32 %v7046, %v6860
      %v7111 = vadd.f32 %v7047, %v6865
      %v7112 = vadd.f32 %v7048, %v6870
      %v7113 = vadd.f32 %v7049, %v6875
      %v7114 = vadd.f32 %v7050, %v6880
      %v7115 = vadd.f32 %v7051, %v6885
      %v7116 = vadd.f32 %v7052, %v6890
      %v7117 = vadd.f32 %v7053, %v6895
      %v7118 = vadd.f32 %v7054, %v6900
      %v7119 = vadd.f32 %v7055, %v6905
      %v7120 = vadd.f32 %v7056, %v6910
      %v7121 = vadd.f32 %v7057, %v6915
      %v7122 = vadd.f32 %v7058, %v6920
      %v7123 = vadd.f32 %v7059, %v6925
      %v7124 = vadd.f32 %v7060, %v6930
      %v7125 = vld [vmem:[%s9] sm:$0xff]
      %v7126 = vld [vmem:[%s10] sm:$0x1]
      %v7128 = vlaneseq
      %v7129 = vshrl.u32 %v7128, 7
      %v7130 = vsub.s32 0, %v7129
      %v7131 = vrot.slane %v7126, %v7130
      %vm7133 = vcmask 64512
      %v7135 = vsel %vm7133, %v7061, 0
      %v7138 = vsel %vm7133, %v7062, 0
      %v7141 = vsel %vm7133, %v7063, 0
      %v7144 = vsel %vm7133, %v7064, 0
      %v7147 = vsel %vm7133, %v7065, 0
      %v7150 = vsel %vm7133, %v7066, 0
      %v7153 = vsel %vm7133, %v7067, 0
      %v7156 = vsel %vm7133, %v7068, 0
      %v7159 = vsel %vm7133, %v7069, 0
      %v7162 = vsel %vm7133, %v7070, 0
      %v7165 = vsel %vm7133, %v7071, 0
      %v7168 = vsel %vm7133, %v7072, 0
      %v7171 = vsel %vm7133, %v7073, 0
      %v7174 = vsel %vm7133, %v7074, 0
      %v7177 = vsel %vm7133, %v7075, 0
      %v7180 = vsel %vm7133, %v7076, 0
      %v7183 = vsel %vm7133, %v7077, 0
      %v7186 = vsel %vm7133, %v7078, 0
      %v7189 = vsel %vm7133, %v7079, 0
      %v7192 = vsel %vm7133, %v7080, 0
      %v7195 = vsel %vm7133, %v7081, 0
      %v7198 = vsel %vm7133, %v7082, 0
      %v7201 = vsel %vm7133, %v7083, 0
      %v7204 = vsel %vm7133, %v7084, 0
      %v7207 = vsel %vm7133, %v7085, 0
      %v7210 = vsel %vm7133, %v7086, 0
      %v7213 = vsel %vm7133, %v7087, 0
      %v7216 = vsel %vm7133, %v7088, 0
      %v7219 = vsel %vm7133, %v7089, 0
      %v7222 = vsel %vm7133, %v7090, 0
      %v7225 = vsel %vm7133, %v7091, 0
      %v7228 = vsel %vm7133, %v7092, 0
      %v7231 = vsel %vm7133, %v7093, 0
      %v7234 = vsel %vm7133, %v7094, 0
      %v7237 = vsel %vm7133, %v7095, 0
      %v7240 = vsel %vm7133, %v7096, 0
      %v7243 = vsel %vm7133, %v7097, 0
      %v7246 = vsel %vm7133, %v7098, 0
      %v7249 = vsel %vm7133, %v7099, 0
      %v7252 = vsel %vm7133, %v7100, 0
      %v7255 = vsel %vm7133, %v7101, 0
      %v7258 = vsel %vm7133, %v7102, 0
      %v7261 = vsel %vm7133, %v7103, 0
      %v7264 = vsel %vm7133, %v7104, 0
      %v7267 = vsel %vm7133, %v7105, 0
      %v7270 = vsel %vm7133, %v7106, 0
      %v7273 = vsel %vm7133, %v7107, 0
      %v7276 = vsel %vm7133, %v7108, 0
      %v7279 = vsel %vm7133, %v7109, 0
      %v7282 = vsel %vm7133, %v7110, 0
      %v7285 = vsel %vm7133, %v7111, 0
      %v7288 = vsel %vm7133, %v7112, 0
      %v7291 = vsel %vm7133, %v7113, 0
      %v7294 = vsel %vm7133, %v7114, 0
      %v7297 = vsel %vm7133, %v7115, 0
      %v7300 = vsel %vm7133, %v7116, 0
      %v7303 = vsel %vm7133, %v7117, 0
      %v7306 = vsel %vm7133, %v7118, 0
      %v7309 = vsel %vm7133, %v7119, 0
      %v7312 = vsel %vm7133, %v7120, 0
      %v7315 = vsel %vm7133, %v7121, 0
      %v7318 = vsel %vm7133, %v7122, 0
      %v7321 = vsel %vm7133, %v7123, 0
      %v7324 = vsel %vm7133, %v7124, 0
      %7326 = vmatprep.subr.mxu0 0.0
      %7327 = vmatpush1.msra.mxu0 0.0
      %7328 = vmatprep.subr.mxu0 0.0
      %7329 = vmatpush1.msra.mxu0 0.0
      %7330 = vmatprep.subr.mxu0 0.0
      %7331 = vmatpush1.msra.mxu0 0.0
      %7332 = vmatprep.subr.mxu0 0.0
      %7333 = vmatpush1.msra.mxu0 0.0
      %7334 = vmatprep.subr.mxu0 0.0
      %7335 = vmatpush1.msra.mxu0 0.0
      %7336 = vmatprep.subr.mxu0 0.0
      %7337 = vmatpush1.msra.mxu0 0.0
      %7338 = vmatprep.subr.mxu0 0.0
      %7339 = vmatpush1.msra.mxu0 0.0
      %7340 = vmatprep.subr.mxu0 0.0
      %7341 = vmatpush1.msra.mxu0 0.0
      %7342 = vmatprep.subr.mxu0 0.0
      %7343 = vmatpush1.msra.mxu0 0.0
      %7344 = vmatprep.subr.mxu0 0.0
      %7345 = vmatpush1.msra.mxu0 0.0
      %7346 = vmatprep.subr.mxu0 0.0
      %7347 = vmatpush1.msra.mxu0 0.0
      %7348 = vmatprep.subr.mxu0 0.0
      %7349 = vmatpush1.msra.mxu0 0.0
      %7350 = vmatprep.subr.mxu0 0.0
      %7351 = vmatpush1.msra.mxu0 0.0
      %7352 = vmatprep.subr.mxu0 0.0
      %7353 = vmatpush1.msra.mxu0 0.0
      %7354 = vmatprep.subr.mxu0 0.0
      %7355 = vmatpush1.msra.mxu0 0.0
      %7356 = vmatprep.subr.mxu0 0.0
      %7357 = vmatpush1.msra.mxu0 %v7125
      %7358 = vmatprep.subr.mxu0 0.0
      %7359 = vmatpush2.msra.mxu0 0.0
      %7360 = vmatprep.subr.mxu0 0.0
      %7361 = vmatpush2.msra.mxu0 0.0
      %7362 = vmatprep.subr.mxu0 0.0
      %7363 = vmatpush2.msra.mxu0 0.0
      %7364 = vmatprep.subr.mxu0 0.0
      %7365 = vmatpush2.msra.mxu0 0.0
      %7366 = vmatprep.subr.mxu0 0.0
      %7367 = vmatpush2.msra.mxu0 0.0
      %7368 = vmatprep.subr.mxu0 0.0
      %7369 = vmatpush2.msra.mxu0 0.0
      %7370 = vmatprep.subr.mxu0 0.0
      %7371 = vmatpush2.msra.mxu0 0.0
      %7372 = vmatprep.subr.mxu0 0.0
      %7373 = vmatpush2.msra.mxu0 0.0
      %7374 = vmatprep.subr.mxu0 0.0
      %7375 = vmatpush2.msra.mxu0 0.0
      %7376 = vmatprep.subr.mxu0 0.0
      %7377 = vmatpush2.msra.mxu0 0.0
      %7378 = vmatprep.subr.mxu0 0.0
      %7379 = vmatpush2.msra.mxu0 0.0
      %7380 = vmatprep.subr.mxu0 0.0
      %7381 = vmatpush2.msra.mxu0 0.0
      %7382 = vmatprep.subr.mxu0 0.0
      %7383 = vmatpush2.msra.mxu0 0.0
      %7384 = vmatprep.subr.mxu0 0.0
      %7385 = vmatpush2.msra.mxu0 0.0
      %7386 = vmatprep.subr.mxu0 0.0
      %7387 = vmatpush2.msra.mxu0 0.0
      %7388 = vmatprep.subr.mxu0 0.0
      %7389 = vmatpush2.msra.mxu0 0.0
      %7390 = vmatprep.mubr.f32.mxu0 0.0
      %7391 = vmatmul.mubr.f32.gmra.mxu0 %v7135
      %v7392 = vpop.f32.mrf.mxu0
      %v7393 = vadd.f32 %v7131, %v7392
      %v7394 = vpop.f32.mrf.mxu0
      %7395 = vmatprep.mubr.f32.mxu0 0.0
      %7396 = vmatmul.mubr.f32.gmra.mxu0 %v7138
      %v7397 = vpop.f32.mrf.mxu0
      %v7398 = vadd.f32 %v7131, %v7397
      %v7399 = vpop.f32.mrf.mxu0
      %7400 = vmatprep.mubr.f32.mxu0 0.0
      %7401 = vmatmul.mubr.f32.gmra.mxu0 %v7141
      %v7402 = vpop.f32.mrf.mxu0
      %v7403 = vadd.f32 %v7131, %v7402
      %v7404 = vpop.f32.mrf.mxu0
      %7405 = vmatprep.mubr.f32.mxu0 0.0
      %7406 = vmatmul.mubr.f32.gmra.mxu0 %v7144
      %v7407 = vpop.f32.mrf.mxu0
      %v7408 = vadd.f32 %v7131, %v7407
      %v7409 = vpop.f32.mrf.mxu0
      %7410 = vmatprep.mubr.f32.mxu0 0.0
      %7411 = vmatmul.mubr.f32.gmra.mxu0 %v7147
      %v7412 = vpop.f32.mrf.mxu0
      %v7413 = vadd.f32 %v7131, %v7412
      %v7414 = vpop.f32.mrf.mxu0
      %7415 = vmatprep.mubr.f32.mxu0 0.0
      %7416 = vmatmul.mubr.f32.gmra.mxu0 %v7150
      %v7417 = vpop.f32.mrf.mxu0
      %v7418 = vadd.f32 %v7131, %v7417
      %v7419 = vpop.f32.mrf.mxu0
      %7420 = vmatprep.mubr.f32.mxu0 0.0
      %7421 = vmatmul.mubr.f32.gmra.mxu0 %v7153
      %v7422 = vpop.f32.mrf.mxu0
      %v7423 = vadd.f32 %v7131, %v7422
      %v7424 = vpop.f32.mrf.mxu0
      %7425 = vmatprep.mubr.f32.mxu0 0.0
      %7426 = vmatmul.mubr.f32.gmra.mxu0 %v7156
      %v7427 = vpop.f32.mrf.mxu0
      %v7428 = vadd.f32 %v7131, %v7427
      %v7429 = vpop.f32.mrf.mxu0
      %7430 = vmatprep.mubr.f32.mxu0 0.0
      %7431 = vmatmul.mubr.f32.gmra.mxu0 %v7159
      %v7432 = vpop.f32.mrf.mxu0
      %v7433 = vadd.f32 %v7131, %v7432
      %v7434 = vpop.f32.mrf.mxu0
      %7435 = vmatprep.mubr.f32.mxu0 0.0
      %7436 = vmatmul.mubr.f32.gmra.mxu0 %v7162
      %v7437 = vpop.f32.mrf.mxu0
      %v7438 = vadd.f32 %v7131, %v7437
      %v7439 = vpop.f32.mrf.mxu0
      %7440 = vmatprep.mubr.f32.mxu0 0.0
      %7441 = vmatmul.mubr.f32.gmra.mxu0 %v7165
      %v7442 = vpop.f32.mrf.mxu0
      %v7443 = vadd.f32 %v7131, %v7442
      %v7444 = vpop.f32.mrf.mxu0
      %7445 = vmatprep.mubr.f32.mxu0 0.0
      %7446 = vmatmul.mubr.f32.gmra.mxu0 %v7168
      %v7447 = vpop.f32.mrf.mxu0
      %v7448 = vadd.f32 %v7131, %v7447
      %v7449 = vpop.f32.mrf.mxu0
      %7450 = vmatprep.mubr.f32.mxu0 0.0
      %7451 = vmatmul.mubr.f32.gmra.mxu0 %v7171
      %v7452 = vpop.f32.mrf.mxu0
      %v7453 = vadd.f32 %v7131, %v7452
      %v7454 = vpop.f32.mrf.mxu0
      %7455 = vmatprep.mubr.f32.mxu0 0.0
      %7456 = vmatmul.mubr.f32.gmra.mxu0 %v7174
      %v7457 = vpop.f32.mrf.mxu0
      %v7458 = vadd.f32 %v7131, %v7457
      %v7459 = vpop.f32.mrf.mxu0
      %7460 = vmatprep.mubr.f32.mxu0 0.0
      %7461 = vmatmul.mubr.f32.gmra.mxu0 %v7177
      %v7462 = vpop.f32.mrf.mxu0
      %v7463 = vadd.f32 %v7131, %v7462
      %v7464 = vpop.f32.mrf.mxu0
      %7465 = vmatprep.mubr.f32.mxu0 0.0
      %7466 = vmatmul.mubr.f32.gmra.mxu0 %v7180
      %v7467 = vpop.f32.mrf.mxu0
      %v7468 = vadd.f32 %v7131, %v7467
      %v7469 = vpop.f32.mrf.mxu0
      %7470 = vmatprep.mubr.f32.mxu0 0.0
      %7471 = vmatmul.mubr.f32.gmra.mxu0 %v7183
      %v7472 = vpop.f32.mrf.mxu0
      %v7473 = vadd.f32 %v7131, %v7472
      %v7474 = vpop.f32.mrf.mxu0
      %7475 = vmatprep.mubr.f32.mxu0 0.0
      %7476 = vmatmul.mubr.f32.gmra.mxu0 %v7186
      %v7477 = vpop.f32.mrf.mxu0
      %v7478 = vadd.f32 %v7131, %v7477
      %v7479 = vpop.f32.mrf.mxu0
      %7480 = vmatprep.mubr.f32.mxu0 0.0
      %7481 = vmatmul.mubr.f32.gmra.mxu0 %v7189
      %v7482 = vpop.f32.mrf.mxu0
      %v7483 = vadd.f32 %v7131, %v7482
      %v7484 = vpop.f32.mrf.mxu0
      %7485 = vmatprep.mubr.f32.mxu0 0.0
      %7486 = vmatmul.mubr.f32.gmra.mxu0 %v7192
      %v7487 = vpop.f32.mrf.mxu0
      %v7488 = vadd.f32 %v7131, %v7487
      %v7489 = vpop.f32.mrf.mxu0
      %7490 = vmatprep.mubr.f32.mxu0 0.0
      %7491 = vmatmul.mubr.f32.gmra.mxu0 %v7195
      %v7492 = vpop.f32.mrf.mxu0
      %v7493 = vadd.f32 %v7131, %v7492
      %v7494 = vpop.f32.mrf.mxu0
      %7495 = vmatprep.mubr.f32.mxu0 0.0
      %7496 = vmatmul.mubr.f32.gmra.mxu0 %v7198
      %v7497 = vpop.f32.mrf.mxu0
      %v7498 = vadd.f32 %v7131, %v7497
      %v7499 = vpop.f32.mrf.mxu0
      %7500 = vmatprep.mubr.f32.mxu0 0.0
      %7501 = vmatmul.mubr.f32.gmra.mxu0 %v7201
      %v7502 = vpop.f32.mrf.mxu0
      %v7503 = vadd.f32 %v7131, %v7502
      %v7504 = vpop.f32.mrf.mxu0
      %7505 = vmatprep.mubr.f32.mxu0 0.0
      %7506 = vmatmul.mubr.f32.gmra.mxu0 %v7204
      %v7507 = vpop.f32.mrf.mxu0
      %v7508 = vadd.f32 %v7131, %v7507
      %v7509 = vpop.f32.mrf.mxu0
      %7510 = vmatprep.mubr.f32.mxu0 0.0
      %7511 = vmatmul.mubr.f32.gmra.mxu0 %v7207
      %v7512 = vpop.f32.mrf.mxu0
      %v7513 = vadd.f32 %v7131, %v7512
      %v7514 = vpop.f32.mrf.mxu0
      %7515 = vmatprep.mubr.f32.mxu0 0.0
      %7516 = vmatmul.mubr.f32.gmra.mxu0 %v7210
      %v7517 = vpop.f32.mrf.mxu0
      %v7518 = vadd.f32 %v7131, %v7517
      %v7519 = vpop.f32.mrf.mxu0
      %7520 = vmatprep.mubr.f32.mxu0 0.0
      %7521 = vmatmul.mubr.f32.gmra.mxu0 %v7213
      %v7522 = vpop.f32.mrf.mxu0
      %v7523 = vadd.f32 %v7131, %v7522
      %v7524 = vpop.f32.mrf.mxu0
      %7525 = vmatprep.mubr.f32.mxu0 0.0
      %7526 = vmatmul.mubr.f32.gmra.mxu0 %v7216
      %v7527 = vpop.f32.mrf.mxu0
      %v7528 = vadd.f32 %v7131, %v7527
      %v7529 = vpop.f32.mrf.mxu0
      %7530 = vmatprep.mubr.f32.mxu0 0.0
      %7531 = vmatmul.mubr.f32.gmra.mxu0 %v7219
      %v7532 = vpop.f32.mrf.mxu0
      %v7533 = vadd.f32 %v7131, %v7532
      %v7534 = vpop.f32.mrf.mxu0
      %7535 = vmatprep.mubr.f32.mxu0 0.0
      %7536 = vmatmul.mubr.f32.gmra.mxu0 %v7222
      %v7537 = vpop.f32.mrf.mxu0
      %v7538 = vadd.f32 %v7131, %v7537
      %v7539 = vpop.f32.mrf.mxu0
      %7540 = vmatprep.mubr.f32.mxu0 0.0
      %7541 = vmatmul.mubr.f32.gmra.mxu0 %v7225
      %v7542 = vpop.f32.mrf.mxu0
      %v7543 = vadd.f32 %v7131, %v7542
      %v7544 = vpop.f32.mrf.mxu0
      %7545 = vmatprep.mubr.f32.mxu0 0.0
      %7546 = vmatmul.mubr.f32.gmra.mxu0 %v7228
      %v7547 = vpop.f32.mrf.mxu0
      %v7548 = vadd.f32 %v7131, %v7547
      %v7549 = vpop.f32.mrf.mxu0
      %7550 = vmatprep.mubr.f32.mxu0 0.0
      %7551 = vmatmul.mubr.f32.gmra.mxu0 %v7231
      %v7552 = vpop.f32.mrf.mxu0
      %v7553 = vadd.f32 %v7131, %v7552
      %v7554 = vpop.f32.mrf.mxu0
      %7555 = vmatprep.mubr.f32.mxu0 0.0
      %7556 = vmatmul.mubr.f32.gmra.mxu0 %v7234
      %v7557 = vpop.f32.mrf.mxu0
      %v7558 = vadd.f32 %v7131, %v7557
      %v7559 = vpop.f32.mrf.mxu0
      %7560 = vmatprep.mubr.f32.mxu0 0.0
      %7561 = vmatmul.mubr.f32.gmra.mxu0 %v7237
      %v7562 = vpop.f32.mrf.mxu0
      %v7563 = vadd.f32 %v7131, %v7562
      %v7564 = vpop.f32.mrf.mxu0
      %7565 = vmatprep.mubr.f32.mxu0 0.0
      %7566 = vmatmul.mubr.f32.gmra.mxu0 %v7240
      %v7567 = vpop.f32.mrf.mxu0
      %v7568 = vadd.f32 %v7131, %v7567
      %v7569 = vpop.f32.mrf.mxu0
      %7570 = vmatprep.mubr.f32.mxu0 0.0
      %7571 = vmatmul.mubr.f32.gmra.mxu0 %v7243
      %v7572 = vpop.f32.mrf.mxu0
      %v7573 = vadd.f32 %v7131, %v7572
      %v7574 = vpop.f32.mrf.mxu0
      %7575 = vmatprep.mubr.f32.mxu0 0.0
      %7576 = vmatmul.mubr.f32.gmra.mxu0 %v7246
      %v7577 = vpop.f32.mrf.mxu0
      %v7578 = vadd.f32 %v7131, %v7577
      %v7579 = vpop.f32.mrf.mxu0
      %7580 = vmatprep.mubr.f32.mxu0 0.0
      %7581 = vmatmul.mubr.f32.gmra.mxu0 %v7249
      %v7582 = vpop.f32.mrf.mxu0
      %v7583 = vadd.f32 %v7131, %v7582
      %v7584 = vpop.f32.mrf.mxu0
      %7585 = vmatprep.mubr.f32.mxu0 0.0
      %7586 = vmatmul.mubr.f32.gmra.mxu0 %v7252
      %v7587 = vpop.f32.mrf.mxu0
      %v7588 = vadd.f32 %v7131, %v7587
      %v7589 = vpop.f32.mrf.mxu0
      %7590 = vmatprep.mubr.f32.mxu0 0.0
      %7591 = vmatmul.mubr.f32.gmra.mxu0 %v7255
      %v7592 = vpop.f32.mrf.mxu0
      %v7593 = vadd.f32 %v7131, %v7592
      %v7594 = vpop.f32.mrf.mxu0
      %7595 = vmatprep.mubr.f32.mxu0 0.0
      %7596 = vmatmul.mubr.f32.gmra.mxu0 %v7258
      %v7597 = vpop.f32.mrf.mxu0
      %v7598 = vadd.f32 %v7131, %v7597
      %v7599 = vpop.f32.mrf.mxu0
      %7600 = vmatprep.mubr.f32.mxu0 0.0
      %7601 = vmatmul.mubr.f32.gmra.mxu0 %v7261
      %v7602 = vpop.f32.mrf.mxu0
      %v7603 = vadd.f32 %v7131, %v7602
      %v7604 = vpop.f32.mrf.mxu0
      %7605 = vmatprep.mubr.f32.mxu0 0.0
      %7606 = vmatmul.mubr.f32.gmra.mxu0 %v7264
      %v7607 = vpop.f32.mrf.mxu0
      %v7608 = vadd.f32 %v7131, %v7607
      %v7609 = vpop.f32.mrf.mxu0
      %7610 = vmatprep.mubr.f32.mxu0 0.0
      %7611 = vmatmul.mubr.f32.gmra.mxu0 %v7267
      %v7612 = vpop.f32.mrf.mxu0
      %v7613 = vadd.f32 %v7131, %v7612
      %v7614 = vpop.f32.mrf.mxu0
      %7615 = vmatprep.mubr.f32.mxu0 0.0
      %7616 = vmatmul.mubr.f32.gmra.mxu0 %v7270
      %v7617 = vpop.f32.mrf.mxu0
      %v7618 = vadd.f32 %v7131, %v7617
      %v7619 = vpop.f32.mrf.mxu0
      %7620 = vmatprep.mubr.f32.mxu0 0.0
      %7621 = vmatmul.mubr.f32.gmra.mxu0 %v7273
      %v7622 = vpop.f32.mrf.mxu0
      %v7623 = vadd.f32 %v7131, %v7622
      %v7624 = vpop.f32.mrf.mxu0
      %7625 = vmatprep.mubr.f32.mxu0 0.0
      %7626 = vmatmul.mubr.f32.gmra.mxu0 %v7276
      %v7627 = vpop.f32.mrf.mxu0
      %v7628 = vadd.f32 %v7131, %v7627
      %v7629 = vpop.f32.mrf.mxu0
      %7630 = vmatprep.mubr.f32.mxu0 0.0
      %7631 = vmatmul.mubr.f32.gmra.mxu0 %v7279
      %v7632 = vpop.f32.mrf.mxu0
      %v7633 = vadd.f32 %v7131, %v7632
      %v7634 = vpop.f32.mrf.mxu0
      %7635 = vmatprep.mubr.f32.mxu0 0.0
      %7636 = vmatmul.mubr.f32.gmra.mxu0 %v7282
      %v7637 = vpop.f32.mrf.mxu0
      %v7638 = vadd.f32 %v7131, %v7637
      %v7639 = vpop.f32.mrf.mxu0
      %7640 = vmatprep.mubr.f32.mxu0 0.0
      %7641 = vmatmul.mubr.f32.gmra.mxu0 %v7285
      %v7642 = vpop.f32.mrf.mxu0
      %v7643 = vadd.f32 %v7131, %v7642
      %v7644 = vpop.f32.mrf.mxu0
      %7645 = vmatprep.mubr.f32.mxu0 0.0
      %7646 = vmatmul.mubr.f32.gmra.mxu0 %v7288
      %v7647 = vpop.f32.mrf.mxu0
      %v7648 = vadd.f32 %v7131, %v7647
      %v7649 = vpop.f32.mrf.mxu0
      %7650 = vmatprep.mubr.f32.mxu0 0.0
      %7651 = vmatmul.mubr.f32.gmra.mxu0 %v7291
      %v7652 = vpop.f32.mrf.mxu0
      %v7653 = vadd.f32 %v7131, %v7652
      %v7654 = vpop.f32.mrf.mxu0
      %7655 = vmatprep.mubr.f32.mxu0 0.0
      %7656 = vmatmul.mubr.f32.gmra.mxu0 %v7294
      %v7657 = vpop.f32.mrf.mxu0
      %v7658 = vadd.f32 %v7131, %v7657
      %v7659 = vpop.f32.mrf.mxu0
      %7660 = vmatprep.mubr.f32.mxu0 0.0
      %7661 = vmatmul.mubr.f32.gmra.mxu0 %v7297
      %v7662 = vpop.f32.mrf.mxu0
      %v7663 = vadd.f32 %v7131, %v7662
      %v7664 = vpop.f32.mrf.mxu0
      %7665 = vmatprep.mubr.f32.mxu0 0.0
      %7666 = vmatmul.mubr.f32.gmra.mxu0 %v7300
      %v7667 = vpop.f32.mrf.mxu0
      %v7668 = vadd.f32 %v7131, %v7667
      %v7669 = vpop.f32.mrf.mxu0
      %7670 = vmatprep.mubr.f32.mxu0 0.0
      %7671 = vmatmul.mubr.f32.gmra.mxu0 %v7303
      %v7672 = vpop.f32.mrf.mxu0
      %v7673 = vadd.f32 %v7131, %v7672
      %v7674 = vpop.f32.mrf.mxu0
      %7675 = vmatprep.mubr.f32.mxu0 0.0
      %7676 = vmatmul.mubr.f32.gmra.mxu0 %v7306
      %v7677 = vpop.f32.mrf.mxu0
      %v7678 = vadd.f32 %v7131, %v7677
      %v7679 = vpop.f32.mrf.mxu0
      %7680 = vmatprep.mubr.f32.mxu0 0.0
      %7681 = vmatmul.mubr.f32.gmra.mxu0 %v7309
      %v7682 = vpop.f32.mrf.mxu0
      %v7683 = vadd.f32 %v7131, %v7682
      %v7684 = vpop.f32.mrf.mxu0
      %7685 = vmatprep.mubr.f32.mxu0 0.0
      %7686 = vmatmul.mubr.f32.gmra.mxu0 %v7312
      %v7687 = vpop.f32.mrf.mxu0
      %v7688 = vadd.f32 %v7131, %v7687
      %v7689 = vpop.f32.mrf.mxu0
      %7690 = vmatprep.mubr.f32.mxu0 0.0
      %7691 = vmatmul.mubr.f32.gmra.mxu0 %v7315
      %v7692 = vpop.f32.mrf.mxu0
      %v7693 = vadd.f32 %v7131, %v7692
      %v7694 = vpop.f32.mrf.mxu0
      %7695 = vmatprep.mubr.f32.mxu0 0.0
      %7696 = vmatmul.mubr.f32.gmra.mxu0 %v7318
      %v7697 = vpop.f32.mrf.mxu0
      %v7698 = vadd.f32 %v7131, %v7697
      %v7699 = vpop.f32.mrf.mxu0
      %7700 = vmatprep.mubr.f32.mxu0 0.0
      %7701 = vmatmul.mubr.f32.gmra.mxu0 %v7321
      %v7702 = vpop.f32.mrf.mxu0
      %v7703 = vadd.f32 %v7131, %v7702
      %v7704 = vpop.f32.mrf.mxu0
      %7705 = vmatprep.mubr.f32.mxu0 0.0
      %7706 = vmatmul.mubr.f32.gmra.mxu0 %v7324
      %v7707 = vpop.f32.mrf.mxu0
      %v7708 = vadd.f32 %v7131, %v7707
      %v7709 = vpop.f32.mrf.mxu0
      %7710 = vdwg.mxu0
      %v7711 = vmax.f32 %v7393, 0.0
      %v7712 = vmax.f32 %v7398, 0.0
      %v7713 = vmax.f32 %v7403, 0.0
      %v7714 = vmax.f32 %v7408, 0.0
      %v7715 = vmax.f32 %v7413, 0.0
      %v7716 = vmax.f32 %v7418, 0.0
      %v7717 = vmax.f32 %v7423, 0.0
      %v7718 = vmax.f32 %v7428, 0.0
      %v7719 = vmax.f32 %v7433, 0.0
      %v7720 = vmax.f32 %v7438, 0.0
      %v7721 = vmax.f32 %v7443, 0.0
      %v7722 = vmax.f32 %v7448, 0.0
      %v7723 = vmax.f32 %v7453, 0.0
      %v7724 = vmax.f32 %v7458, 0.0
      %v7725 = vmax.f32 %v7463, 0.0
      %v7726 = vmax.f32 %v7468, 0.0
      %v7727 = vmax.f32 %v7473, 0.0
      %v7728 = vmax.f32 %v7478, 0.0
      %v7729 = vmax.f32 %v7483, 0.0
      %v7730 = vmax.f32 %v7488, 0.0
      %v7731 = vmax.f32 %v7493, 0.0
      %v7732 = vmax.f32 %v7498, 0.0
      %v7733 = vmax.f32 %v7503, 0.0
      %v7734 = vmax.f32 %v7508, 0.0
      %v7735 = vmax.f32 %v7513, 0.0
      %v7736 = vmax.f32 %v7518, 0.0
      %v7737 = vmax.f32 %v7523, 0.0
      %v7738 = vmax.f32 %v7528, 0.0
      %v7739 = vmax.f32 %v7533, 0.0
      %v7740 = vmax.f32 %v7538, 0.0
      %v7741 = vmax.f32 %v7543, 0.0
      %v7742 = vmax.f32 %v7548, 0.0
      %v7743 = vmax.f32 %v7553, 0.0
      %v7744 = vmax.f32 %v7558, 0.0
      %v7745 = vmax.f32 %v7563, 0.0
      %v7746 = vmax.f32 %v7568, 0.0
      %v7747 = vmax.f32 %v7573, 0.0
      %v7748 = vmax.f32 %v7578, 0.0
      %v7749 = vmax.f32 %v7583, 0.0
      %v7750 = vmax.f32 %v7588, 0.0
      %v7751 = vmax.f32 %v7593, 0.0
      %v7752 = vmax.f32 %v7598, 0.0
      %v7753 = vmax.f32 %v7603, 0.0
      %v7754 = vmax.f32 %v7608, 0.0
      %v7755 = vmax.f32 %v7613, 0.0
      %v7756 = vmax.f32 %v7618, 0.0
      %v7757 = vmax.f32 %v7623, 0.0
      %v7758 = vmax.f32 %v7628, 0.0
      %v7759 = vmax.f32 %v7633, 0.0
      %v7760 = vmax.f32 %v7638, 0.0
      %v7761 = vmax.f32 %v7643, 0.0
      %v7762 = vmax.f32 %v7648, 0.0
      %v7763 = vmax.f32 %v7653, 0.0
      %v7764 = vmax.f32 %v7658, 0.0
      %v7765 = vmax.f32 %v7663, 0.0
      %v7766 = vmax.f32 %v7668, 0.0
      %v7767 = vmax.f32 %v7673, 0.0
      %v7768 = vmax.f32 %v7678, 0.0
      %v7769 = vmax.f32 %v7683, 0.0
      %v7770 = vmax.f32 %v7688, 0.0
      %v7771 = vmax.f32 %v7693, 0.0
      %v7772 = vmax.f32 %v7698, 0.0
      %v7773 = vmax.f32 %v7703, 0.0
      %v7774 = vmax.f32 %v7708, 0.0
      %v7775 = vld [vmem:[%s11] sm:$0xff]
      %v7776 = vld [vmem:[%s11 + $0x8] sm:$0xff]
      %v7777 = vld [vmem:[%s11 + $0x10] sm:$0xff]
      %v7778 = vld [vmem:[%s11 + $0x18] sm:$0xff]
      %v7779 = vld [vmem:[%s12] sm:$0x1]
      %v7781 = vlaneseq
      %v7782 = vshrl.u32 %v7781, 7
      %v7783 = vsub.s32 0, %v7782
      %v7784 = vrot.slane %v7779, %v7783
      %v7787 = vsel %vm5959, %v7711, 0
      %v7790 = vsel %vm5959, %v7712, 0
      %v7793 = vsel %vm5959, %v7713, 0
      %v7796 = vsel %vm5959, %v7714, 0
      %v7799 = vsel %vm5959, %v7715, 0
      %v7802 = vsel %vm5959, %v7716, 0
      %v7805 = vsel %vm5959, %v7717, 0
      %v7808 = vsel %vm5959, %v7718, 0
      %v7811 = vsel %vm5959, %v7719, 0
      %v7814 = vsel %vm5959, %v7720, 0
      %v7817 = vsel %vm5959, %v7721, 0
      %v7820 = vsel %vm5959, %v7722, 0
      %v7823 = vsel %vm5959, %v7723, 0
      %v7826 = vsel %vm5959, %v7724, 0
      %v7829 = vsel %vm5959, %v7725, 0
      %v7832 = vsel %vm5959, %v7726, 0
      %v7835 = vsel %vm5959, %v7727, 0
      %v7838 = vsel %vm5959, %v7728, 0
      %v7841 = vsel %vm5959, %v7729, 0
      %v7844 = vsel %vm5959, %v7730, 0
      %v7847 = vsel %vm5959, %v7731, 0
      %v7850 = vsel %vm5959, %v7732, 0
      %v7853 = vsel %vm5959, %v7733, 0
      %v7856 = vsel %vm5959, %v7734, 0
      %v7859 = vsel %vm5959, %v7735, 0
      %v7862 = vsel %vm5959, %v7736, 0
      %v7865 = vsel %vm5959, %v7737, 0
      %v7868 = vsel %vm5959, %v7738, 0
      %v7871 = vsel %vm5959, %v7739, 0
      %v7874 = vsel %vm5959, %v7740, 0
      %v7877 = vsel %vm5959, %v7741, 0
      %v7880 = vsel %vm5959, %v7742, 0
      %v7883 = vsel %vm5959, %v7743, 0
      %v7886 = vsel %vm5959, %v7744, 0
      %v7889 = vsel %vm5959, %v7745, 0
      %v7892 = vsel %vm5959, %v7746, 0
      %v7895 = vsel %vm5959, %v7747, 0
      %v7898 = vsel %vm5959, %v7748, 0
      %v7901 = vsel %vm5959, %v7749, 0
      %v7904 = vsel %vm5959, %v7750, 0
      %v7907 = vsel %vm5959, %v7751, 0
      %v7910 = vsel %vm5959, %v7752, 0
      %v7913 = vsel %vm5959, %v7753, 0
      %v7916 = vsel %vm5959, %v7754, 0
      %v7919 = vsel %vm5959, %v7755, 0
      %v7922 = vsel %vm5959, %v7756, 0
      %v7925 = vsel %vm5959, %v7757, 0
      %v7928 = vsel %vm5959, %v7758, 0
      %v7931 = vsel %vm5959, %v7759, 0
      %v7934 = vsel %vm5959, %v7760, 0
      %v7937 = vsel %vm5959, %v7761, 0
      %v7940 = vsel %vm5959, %v7762, 0
      %v7943 = vsel %vm5959, %v7763, 0
      %v7946 = vsel %vm5959, %v7764, 0
      %v7949 = vsel %vm5959, %v7765, 0
      %v7952 = vsel %vm5959, %v7766, 0
      %v7955 = vsel %vm5959, %v7767, 0
      %v7958 = vsel %vm5959, %v7768, 0
      %v7961 = vsel %vm5959, %v7769, 0
      %v7964 = vsel %vm5959, %v7770, 0
      %v7967 = vsel %vm5959, %v7771, 0
      %v7970 = vsel %vm5959, %v7772, 0
      %v7973 = vsel %vm5959, %v7773, 0
      %v7976 = vsel %vm5959, %v7774, 0
      %7978 = vmatprep.subr.mxu0 0.0
      %7979 = vmatpush1.msra.mxu0 0.0
      %7980 = vmatprep.subr.mxu0 0.0
      %7981 = vmatpush1.msra.mxu0 0.0
      %7982 = vmatprep.subr.mxu0 0.0
      %7983 = vmatpush1.msra.mxu0 0.0
      %7984 = vmatprep.subr.mxu0 0.0
      %7985 = vmatpush1.msra.mxu0 0.0
      %7986 = vmatprep.subr.mxu0 0.0
      %7987 = vmatpush1.msra.mxu0 0.0
      %7988 = vmatprep.subr.mxu0 0.0
      %7989 = vmatpush1.msra.mxu0 0.0
      %7990 = vmatprep.subr.mxu0 0.0
      %7991 = vmatpush1.msra.mxu0 0.0
      %7992 = vmatprep.subr.mxu0 0.0
      %7993 = vmatpush1.msra.mxu0 0.0
      %7994 = vmatprep.subr.mxu0 0.0
      %7995 = vmatpush1.msra.mxu0 0.0
      %7996 = vmatprep.subr.mxu0 0.0
      %7997 = vmatpush1.msra.mxu0 0.0
      %7998 = vmatprep.subr.mxu0 0.0
      %7999 = vmatpush1.msra.mxu0 0.0
      %8000 = vmatprep.subr.mxu0 0.0
      %8001 = vmatpush1.msra.mxu0 0.0
      %8002 = vmatprep.subr.mxu0 0.0
      %8003 = vmatpush1.msra.mxu0 %v7778
      %8004 = vmatprep.subr.mxu0 0.0
      %8005 = vmatpush1.msra.mxu0 %v7777
      %8006 = vmatprep.subr.mxu0 0.0
      %8007 = vmatpush1.msra.mxu0 %v7776
      %8008 = vmatprep.subr.mxu0 0.0
      %8009 = vmatpush1.msra.mxu0 %v7775
      %8010 = vmatprep.subr.mxu0 0.0
      %8011 = vmatpush2.msra.mxu0 0.0
      %8012 = vmatprep.subr.mxu0 0.0
      %8013 = vmatpush2.msra.mxu0 0.0
      %8014 = vmatprep.subr.mxu0 0.0
      %8015 = vmatpush2.msra.mxu0 0.0
      %8016 = vmatprep.subr.mxu0 0.0
      %8017 = vmatpush2.msra.mxu0 0.0
      %8018 = vmatprep.subr.mxu0 0.0
      %8019 = vmatpush2.msra.mxu0 0.0
      %8020 = vmatprep.subr.mxu0 0.0
      %8021 = vmatpush2.msra.mxu0 0.0
      %8022 = vmatprep.subr.mxu0 0.0
      %8023 = vmatpush2.msra.mxu0 0.0
      %8024 = vmatprep.subr.mxu0 0.0
      %8025 = vmatpush2.msra.mxu0 0.0
      %8026 = vmatprep.subr.mxu0 0.0
      %8027 = vmatpush2.msra.mxu0 0.0
      %8028 = vmatprep.subr.mxu0 0.0
      %8029 = vmatpush2.msra.mxu0 0.0
      %8030 = vmatprep.subr.mxu0 0.0
      %8031 = vmatpush2.msra.mxu0 0.0
      %8032 = vmatprep.subr.mxu0 0.0
      %8033 = vmatpush2.msra.mxu0 0.0
      %8034 = vmatprep.subr.mxu0 0.0
      %8035 = vmatpush2.msra.mxu0 0.0
      %8036 = vmatprep.subr.mxu0 0.0
      %8037 = vmatpush2.msra.mxu0 0.0
      %8038 = vmatprep.subr.mxu0 0.0
      %8039 = vmatpush2.msra.mxu0 0.0
      %8040 = vmatprep.subr.mxu0 0.0
      %8041 = vmatpush2.msra.mxu0 0.0
      %8042 = vmatprep.mubr.f32.mxu0 0.0
      %8043 = vmatmul.mubr.f32.gmra.mxu0 %v7787
      %v8044 = vpop.f32.mrf.mxu0
      %v8045 = vadd.f32 %v7784, %v8044
      %v8046 = vpop.f32.mrf.mxu0
      %8047 = vmatprep.mubr.f32.mxu0 0.0
      %8048 = vmatmul.mubr.f32.gmra.mxu0 %v7790
      %v8049 = vpop.f32.mrf.mxu0
      %v8050 = vadd.f32 %v7784, %v8049
      %v8051 = vpop.f32.mrf.mxu0
      %8052 = vmatprep.mubr.f32.mxu0 0.0
      %8053 = vmatmul.mubr.f32.gmra.mxu0 %v7793
      %v8054 = vpop.f32.mrf.mxu0
      %v8055 = vadd.f32 %v7784, %v8054
      %v8056 = vpop.f32.mrf.mxu0
      %8057 = vmatprep.mubr.f32.mxu0 0.0
      %8058 = vmatmul.mubr.f32.gmra.mxu0 %v7796
      %v8059 = vpop.f32.mrf.mxu0
      %v8060 = vadd.f32 %v7784, %v8059
      %v8061 = vpop.f32.mrf.mxu0
      %8062 = vmatprep.mubr.f32.mxu0 0.0
      %8063 = vmatmul.mubr.f32.gmra.mxu0 %v7799
      %v8064 = vpop.f32.mrf.mxu0
      %v8065 = vadd.f32 %v7784, %v8064
      %v8066 = vpop.f32.mrf.mxu0
      %8067 = vmatprep.mubr.f32.mxu0 0.0
      %8068 = vmatmul.mubr.f32.gmra.mxu0 %v7802
      %v8069 = vpop.f32.mrf.mxu0
      %v8070 = vadd.f32 %v7784, %v8069
      %v8071 = vpop.f32.mrf.mxu0
      %8072 = vmatprep.mubr.f32.mxu0 0.0
      %8073 = vmatmul.mubr.f32.gmra.mxu0 %v7805
      %v8074 = vpop.f32.mrf.mxu0
      %v8075 = vadd.f32 %v7784, %v8074
      %v8076 = vpop.f32.mrf.mxu0
      %8077 = vmatprep.mubr.f32.mxu0 0.0
      %8078 = vmatmul.mubr.f32.gmra.mxu0 %v7808
      %v8079 = vpop.f32.mrf.mxu0
      %v8080 = vadd.f32 %v7784, %v8079
      %v8081 = vpop.f32.mrf.mxu0
      %8082 = vmatprep.mubr.f32.mxu0 0.0
      %8083 = vmatmul.mubr.f32.gmra.mxu0 %v7811
      %v8084 = vpop.f32.mrf.mxu0
      %v8085 = vadd.f32 %v7784, %v8084
      %v8086 = vpop.f32.mrf.mxu0
      %8087 = vmatprep.mubr.f32.mxu0 0.0
      %8088 = vmatmul.mubr.f32.gmra.mxu0 %v7814
      %v8089 = vpop.f32.mrf.mxu0
      %v8090 = vadd.f32 %v7784, %v8089
      %v8091 = vpop.f32.mrf.mxu0
      %8092 = vmatprep.mubr.f32.mxu0 0.0
      %8093 = vmatmul.mubr.f32.gmra.mxu0 %v7817
      %v8094 = vpop.f32.mrf.mxu0
      %v8095 = vadd.f32 %v7784, %v8094
      %v8096 = vpop.f32.mrf.mxu0
      %8097 = vmatprep.mubr.f32.mxu0 0.0
      %8098 = vmatmul.mubr.f32.gmra.mxu0 %v7820
      %v8099 = vpop.f32.mrf.mxu0
      %v8100 = vadd.f32 %v7784, %v8099
      %v8101 = vpop.f32.mrf.mxu0
      %8102 = vmatprep.mubr.f32.mxu0 0.0
      %8103 = vmatmul.mubr.f32.gmra.mxu0 %v7823
      %v8104 = vpop.f32.mrf.mxu0
      %v8105 = vadd.f32 %v7784, %v8104
      %v8106 = vpop.f32.mrf.mxu0
      %8107 = vmatprep.mubr.f32.mxu0 0.0
      %8108 = vmatmul.mubr.f32.gmra.mxu0 %v7826
      %v8109 = vpop.f32.mrf.mxu0
      %v8110 = vadd.f32 %v7784, %v8109
      %v8111 = vpop.f32.mrf.mxu0
      %8112 = vmatprep.mubr.f32.mxu0 0.0
      %8113 = vmatmul.mubr.f32.gmra.mxu0 %v7829
      %v8114 = vpop.f32.mrf.mxu0
      %v8115 = vadd.f32 %v7784, %v8114
      %v8116 = vpop.f32.mrf.mxu0
      %8117 = vmatprep.mubr.f32.mxu0 0.0
      %8118 = vmatmul.mubr.f32.gmra.mxu0 %v7832
      %v8119 = vpop.f32.mrf.mxu0
      %v8120 = vadd.f32 %v7784, %v8119
      %v8121 = vpop.f32.mrf.mxu0
      %8122 = vmatprep.mubr.f32.mxu0 0.0
      %8123 = vmatmul.mubr.f32.gmra.mxu0 %v7835
      %v8124 = vpop.f32.mrf.mxu0
      %v8125 = vadd.f32 %v7784, %v8124
      %v8126 = vpop.f32.mrf.mxu0
      %8127 = vmatprep.mubr.f32.mxu0 0.0
      %8128 = vmatmul.mubr.f32.gmra.mxu0 %v7838
      %v8129 = vpop.f32.mrf.mxu0
      %v8130 = vadd.f32 %v7784, %v8129
      %v8131 = vpop.f32.mrf.mxu0
      %8132 = vmatprep.mubr.f32.mxu0 0.0
      %8133 = vmatmul.mubr.f32.gmra.mxu0 %v7841
      %v8134 = vpop.f32.mrf.mxu0
      %v8135 = vadd.f32 %v7784, %v8134
      %v8136 = vpop.f32.mrf.mxu0
      %8137 = vmatprep.mubr.f32.mxu0 0.0
      %8138 = vmatmul.mubr.f32.gmra.mxu0 %v7844
      %v8139 = vpop.f32.mrf.mxu0
      %v8140 = vadd.f32 %v7784, %v8139
      %v8141 = vpop.f32.mrf.mxu0
      %8142 = vmatprep.mubr.f32.mxu0 0.0
      %8143 = vmatmul.mubr.f32.gmra.mxu0 %v7847
      %v8144 = vpop.f32.mrf.mxu0
      %v8145 = vadd.f32 %v7784, %v8144
      %v8146 = vpop.f32.mrf.mxu0
      %8147 = vmatprep.mubr.f32.mxu0 0.0
      %8148 = vmatmul.mubr.f32.gmra.mxu0 %v7850
      %v8149 = vpop.f32.mrf.mxu0
      %v8150 = vadd.f32 %v7784, %v8149
      %v8151 = vpop.f32.mrf.mxu0
      %8152 = vmatprep.mubr.f32.mxu0 0.0
      %8153 = vmatmul.mubr.f32.gmra.mxu0 %v7853
      %v8154 = vpop.f32.mrf.mxu0
      %v8155 = vadd.f32 %v7784, %v8154
      %v8156 = vpop.f32.mrf.mxu0
      %8157 = vmatprep.mubr.f32.mxu0 0.0
      %8158 = vmatmul.mubr.f32.gmra.mxu0 %v7856
      %v8159 = vpop.f32.mrf.mxu0
      %v8160 = vadd.f32 %v7784, %v8159
      %v8161 = vpop.f32.mrf.mxu0
      %8162 = vmatprep.mubr.f32.mxu0 0.0
      %8163 = vmatmul.mubr.f32.gmra.mxu0 %v7859
      %v8164 = vpop.f32.mrf.mxu0
      %v8165 = vadd.f32 %v7784, %v8164
      %v8166 = vpop.f32.mrf.mxu0
      %8167 = vmatprep.mubr.f32.mxu0 0.0
      %8168 = vmatmul.mubr.f32.gmra.mxu0 %v7862
      %v8169 = vpop.f32.mrf.mxu0
      %v8170 = vadd.f32 %v7784, %v8169
      %v8171 = vpop.f32.mrf.mxu0
      %8172 = vmatprep.mubr.f32.mxu0 0.0
      %8173 = vmatmul.mubr.f32.gmra.mxu0 %v7865
      %v8174 = vpop.f32.mrf.mxu0
      %v8175 = vadd.f32 %v7784, %v8174
      %v8176 = vpop.f32.mrf.mxu0
      %8177 = vmatprep.mubr.f32.mxu0 0.0
      %8178 = vmatmul.mubr.f32.gmra.mxu0 %v7868
      %v8179 = vpop.f32.mrf.mxu0
      %v8180 = vadd.f32 %v7784, %v8179
      %v8181 = vpop.f32.mrf.mxu0
      %8182 = vmatprep.mubr.f32.mxu0 0.0
      %8183 = vmatmul.mubr.f32.gmra.mxu0 %v7871
      %v8184 = vpop.f32.mrf.mxu0
      %v8185 = vadd.f32 %v7784, %v8184
      %v8186 = vpop.f32.mrf.mxu0
      %8187 = vmatprep.mubr.f32.mxu0 0.0
      %8188 = vmatmul.mubr.f32.gmra.mxu0 %v7874
      %v8189 = vpop.f32.mrf.mxu0
      %v8190 = vadd.f32 %v7784, %v8189
      %v8191 = vpop.f32.mrf.mxu0
      %8192 = vmatprep.mubr.f32.mxu0 0.0
      %8193 = vmatmul.mubr.f32.gmra.mxu0 %v7877
      %v8194 = vpop.f32.mrf.mxu0
      %v8195 = vadd.f32 %v7784, %v8194
      %v8196 = vpop.f32.mrf.mxu0
      %8197 = vmatprep.mubr.f32.mxu0 0.0
      %8198 = vmatmul.mubr.f32.gmra.mxu0 %v7880
      %v8199 = vpop.f32.mrf.mxu0
      %v8200 = vadd.f32 %v7784, %v8199
      %v8201 = vpop.f32.mrf.mxu0
      %8202 = vmatprep.mubr.f32.mxu0 0.0
      %8203 = vmatmul.mubr.f32.gmra.mxu0 %v7883
      %v8204 = vpop.f32.mrf.mxu0
      %v8205 = vadd.f32 %v7784, %v8204
      %v8206 = vpop.f32.mrf.mxu0
      %8207 = vmatprep.mubr.f32.mxu0 0.0
      %8208 = vmatmul.mubr.f32.gmra.mxu0 %v7886
      %v8209 = vpop.f32.mrf.mxu0
      %v8210 = vadd.f32 %v7784, %v8209
      %v8211 = vpop.f32.mrf.mxu0
      %8212 = vmatprep.mubr.f32.mxu0 0.0
      %8213 = vmatmul.mubr.f32.gmra.mxu0 %v7889
      %v8214 = vpop.f32.mrf.mxu0
      %v8215 = vadd.f32 %v7784, %v8214
      %v8216 = vpop.f32.mrf.mxu0
      %8217 = vmatprep.mubr.f32.mxu0 0.0
      %8218 = vmatmul.mubr.f32.gmra.mxu0 %v7892
      %v8219 = vpop.f32.mrf.mxu0
      %v8220 = vadd.f32 %v7784, %v8219
      %v8221 = vpop.f32.mrf.mxu0
      %8222 = vmatprep.mubr.f32.mxu0 0.0
      %8223 = vmatmul.mubr.f32.gmra.mxu0 %v7895
      %v8224 = vpop.f32.mrf.mxu0
      %v8225 = vadd.f32 %v7784, %v8224
      %v8226 = vpop.f32.mrf.mxu0
      %8227 = vmatprep.mubr.f32.mxu0 0.0
      %8228 = vmatmul.mubr.f32.gmra.mxu0 %v7898
      %v8229 = vpop.f32.mrf.mxu0
      %v8230 = vadd.f32 %v7784, %v8229
      %v8231 = vpop.f32.mrf.mxu0
      %8232 = vmatprep.mubr.f32.mxu0 0.0
      %8233 = vmatmul.mubr.f32.gmra.mxu0 %v7901
      %v8234 = vpop.f32.mrf.mxu0
      %v8235 = vadd.f32 %v7784, %v8234
      %v8236 = vpop.f32.mrf.mxu0
      %8237 = vmatprep.mubr.f32.mxu0 0.0
      %8238 = vmatmul.mubr.f32.gmra.mxu0 %v7904
      %v8239 = vpop.f32.mrf.mxu0
      %v8240 = vadd.f32 %v7784, %v8239
      %v8241 = vpop.f32.mrf.mxu0
      %8242 = vmatprep.mubr.f32.mxu0 0.0
      %8243 = vmatmul.mubr.f32.gmra.mxu0 %v7907
      %v8244 = vpop.f32.mrf.mxu0
      %v8245 = vadd.f32 %v7784, %v8244
      %v8246 = vpop.f32.mrf.mxu0
      %8247 = vmatprep.mubr.f32.mxu0 0.0
      %8248 = vmatmul.mubr.f32.gmra.mxu0 %v7910
      %v8249 = vpop.f32.mrf.mxu0
      %v8250 = vadd.f32 %v7784, %v8249
      %v8251 = vpop.f32.mrf.mxu0
      %8252 = vmatprep.mubr.f32.mxu0 0.0
      %8253 = vmatmul.mubr.f32.gmra.mxu0 %v7913
      %v8254 = vpop.f32.mrf.mxu0
      %v8255 = vadd.f32 %v7784, %v8254
      %v8256 = vpop.f32.mrf.mxu0
      %8257 = vmatprep.mubr.f32.mxu0 0.0
      %8258 = vmatmul.mubr.f32.gmra.mxu0 %v7916
      %v8259 = vpop.f32.mrf.mxu0
      %v8260 = vadd.f32 %v7784, %v8259
      %v8261 = vpop.f32.mrf.mxu0
      %8262 = vmatprep.mubr.f32.mxu0 0.0
      %8263 = vmatmul.mubr.f32.gmra.mxu0 %v7919
      %v8264 = vpop.f32.mrf.mxu0
      %v8265 = vadd.f32 %v7784, %v8264
      %v8266 = vpop.f32.mrf.mxu0
      %8267 = vmatprep.mubr.f32.mxu0 0.0
      %8268 = vmatmul.mubr.f32.gmra.mxu0 %v7922
      %v8269 = vpop.f32.mrf.mxu0
      %v8270 = vadd.f32 %v7784, %v8269
      %v8271 = vpop.f32.mrf.mxu0
      %8272 = vmatprep.mubr.f32.mxu0 0.0
      %8273 = vmatmul.mubr.f32.gmra.mxu0 %v7925
      %v8274 = vpop.f32.mrf.mxu0
      %v8275 = vadd.f32 %v7784, %v8274
      %v8276 = vpop.f32.mrf.mxu0
      %8277 = vmatprep.mubr.f32.mxu0 0.0
      %8278 = vmatmul.mubr.f32.gmra.mxu0 %v7928
      %v8279 = vpop.f32.mrf.mxu0
      %v8280 = vadd.f32 %v7784, %v8279
      %v8281 = vpop.f32.mrf.mxu0
      %8282 = vmatprep.mubr.f32.mxu0 0.0
      %8283 = vmatmul.mubr.f32.gmra.mxu0 %v7931
      %v8284 = vpop.f32.mrf.mxu0
      %v8285 = vadd.f32 %v7784, %v8284
      %v8286 = vpop.f32.mrf.mxu0
      %8287 = vmatprep.mubr.f32.mxu0 0.0
      %8288 = vmatmul.mubr.f32.gmra.mxu0 %v7934
      %v8289 = vpop.f32.mrf.mxu0
      %v8290 = vadd.f32 %v7784, %v8289
      %v8291 = vpop.f32.mrf.mxu0
      %8292 = vmatprep.mubr.f32.mxu0 0.0
      %8293 = vmatmul.mubr.f32.gmra.mxu0 %v7937
      %v8294 = vpop.f32.mrf.mxu0
      %v8295 = vadd.f32 %v7784, %v8294
      %v8296 = vpop.f32.mrf.mxu0
      %8297 = vmatprep.mubr.f32.mxu0 0.0
      %8298 = vmatmul.mubr.f32.gmra.mxu0 %v7940
      %v8299 = vpop.f32.mrf.mxu0
      %v8300 = vadd.f32 %v7784, %v8299
      %v8301 = vpop.f32.mrf.mxu0
      %8302 = vmatprep.mubr.f32.mxu0 0.0
      %8303 = vmatmul.mubr.f32.gmra.mxu0 %v7943
      %v8304 = vpop.f32.mrf.mxu0
      %v8305 = vadd.f32 %v7784, %v8304
      %v8306 = vpop.f32.mrf.mxu0
      %8307 = vmatprep.mubr.f32.mxu0 0.0
      %8308 = vmatmul.mubr.f32.gmra.mxu0 %v7946
      %v8309 = vpop.f32.mrf.mxu0
      %v8310 = vadd.f32 %v7784, %v8309
      %v8311 = vpop.f32.mrf.mxu0
      %8312 = vmatprep.mubr.f32.mxu0 0.0
      %8313 = vmatmul.mubr.f32.gmra.mxu0 %v7949
      %v8314 = vpop.f32.mrf.mxu0
      %v8315 = vadd.f32 %v7784, %v8314
      %v8316 = vpop.f32.mrf.mxu0
      %8317 = vmatprep.mubr.f32.mxu0 0.0
      %8318 = vmatmul.mubr.f32.gmra.mxu0 %v7952
      %v8319 = vpop.f32.mrf.mxu0
      %v8320 = vadd.f32 %v7784, %v8319
      %v8321 = vpop.f32.mrf.mxu0
      %8322 = vmatprep.mubr.f32.mxu0 0.0
      %8323 = vmatmul.mubr.f32.gmra.mxu0 %v7955
      %v8324 = vpop.f32.mrf.mxu0
      %v8325 = vadd.f32 %v7784, %v8324
      %v8326 = vpop.f32.mrf.mxu0
      %8327 = vmatprep.mubr.f32.mxu0 0.0
      %8328 = vmatmul.mubr.f32.gmra.mxu0 %v7958
      %v8329 = vpop.f32.mrf.mxu0
      %v8330 = vadd.f32 %v7784, %v8329
      %v8331 = vpop.f32.mrf.mxu0
      %8332 = vmatprep.mubr.f32.mxu0 0.0
      %8333 = vmatmul.mubr.f32.gmra.mxu0 %v7961
      %v8334 = vpop.f32.mrf.mxu0
      %v8335 = vadd.f32 %v7784, %v8334
      %v8336 = vpop.f32.mrf.mxu0
      %8337 = vmatprep.mubr.f32.mxu0 0.0
      %8338 = vmatmul.mubr.f32.gmra.mxu0 %v7964
      %v8339 = vpop.f32.mrf.mxu0
      %v8340 = vadd.f32 %v7784, %v8339
      %v8341 = vpop.f32.mrf.mxu0
      %8342 = vmatprep.mubr.f32.mxu0 0.0
      %8343 = vmatmul.mubr.f32.gmra.mxu0 %v7967
      %v8344 = vpop.f32.mrf.mxu0
      %v8345 = vadd.f32 %v7784, %v8344
      %v8346 = vpop.f32.mrf.mxu0
      %8347 = vmatprep.mubr.f32.mxu0 0.0
      %8348 = vmatmul.mubr.f32.gmra.mxu0 %v7970
      %v8349 = vpop.f32.mrf.mxu0
      %v8350 = vadd.f32 %v7784, %v8349
      %v8351 = vpop.f32.mrf.mxu0
      %8352 = vmatprep.mubr.f32.mxu0 0.0
      %8353 = vmatmul.mubr.f32.gmra.mxu0 %v7973
      %v8354 = vpop.f32.mrf.mxu0
      %v8355 = vadd.f32 %v7784, %v8354
      %v8356 = vpop.f32.mrf.mxu0
      %8357 = vmatprep.mubr.f32.mxu0 0.0
      %8358 = vmatmul.mubr.f32.gmra.mxu0 %v7976
      %v8359 = vpop.f32.mrf.mxu0
      %v8360 = vadd.f32 %v7784, %v8359
      %v8361 = vpop.f32.mrf.mxu0
      %8362 = vdwg.mxu0
      %v8363 = vmax.f32 %v8045, 0.0
      %v8364 = vmax.f32 %v8050, 0.0
      %v8365 = vmax.f32 %v8055, 0.0
      %v8366 = vmax.f32 %v8060, 0.0
      %v8367 = vmax.f32 %v8065, 0.0
      %v8368 = vmax.f32 %v8070, 0.0
      %v8369 = vmax.f32 %v8075, 0.0
      %v8370 = vmax.f32 %v8080, 0.0
      %v8371 = vmax.f32 %v8085, 0.0
      %v8372 = vmax.f32 %v8090, 0.0
      %v8373 = vmax.f32 %v8095, 0.0
      %v8374 = vmax.f32 %v8100, 0.0
      %v8375 = vmax.f32 %v8105, 0.0
      %v8376 = vmax.f32 %v8110, 0.0
      %v8377 = vmax.f32 %v8115, 0.0
      %v8378 = vmax.f32 %v8120, 0.0
      %v8379 = vmax.f32 %v8125, 0.0
      %v8380 = vmax.f32 %v8130, 0.0
      %v8381 = vmax.f32 %v8135, 0.0
      %v8382 = vmax.f32 %v8140, 0.0
      %v8383 = vmax.f32 %v8145, 0.0
      %v8384 = vmax.f32 %v8150, 0.0
      %v8385 = vmax.f32 %v8155, 0.0
      %v8386 = vmax.f32 %v8160, 0.0
      %v8387 = vmax.f32 %v8165, 0.0
      %v8388 = vmax.f32 %v8170, 0.0
      %v8389 = vmax.f32 %v8175, 0.0
      %v8390 = vmax.f32 %v8180, 0.0
      %v8391 = vmax.f32 %v8185, 0.0
      %v8392 = vmax.f32 %v8190, 0.0
      %v8393 = vmax.f32 %v8195, 0.0
      %v8394 = vmax.f32 %v8200, 0.0
      %v8395 = vmax.f32 %v8205, 0.0
      %v8396 = vmax.f32 %v8210, 0.0
      %v8397 = vmax.f32 %v8215, 0.0
      %v8398 = vmax.f32 %v8220, 0.0
      %v8399 = vmax.f32 %v8225, 0.0
      %v8400 = vmax.f32 %v8230, 0.0
      %v8401 = vmax.f32 %v8235, 0.0
      %v8402 = vmax.f32 %v8240, 0.0
      %v8403 = vmax.f32 %v8245, 0.0
      %v8404 = vmax.f32 %v8250, 0.0
      %v8405 = vmax.f32 %v8255, 0.0
      %v8406 = vmax.f32 %v8260, 0.0
      %v8407 = vmax.f32 %v8265, 0.0
      %v8408 = vmax.f32 %v8270, 0.0
      %v8409 = vmax.f32 %v8275, 0.0
      %v8410 = vmax.f32 %v8280, 0.0
      %v8411 = vmax.f32 %v8285, 0.0
      %v8412 = vmax.f32 %v8290, 0.0
      %v8413 = vmax.f32 %v8295, 0.0
      %v8414 = vmax.f32 %v8300, 0.0
      %v8415 = vmax.f32 %v8305, 0.0
      %v8416 = vmax.f32 %v8310, 0.0
      %v8417 = vmax.f32 %v8315, 0.0
      %v8418 = vmax.f32 %v8320, 0.0
      %v8419 = vmax.f32 %v8325, 0.0
      %v8420 = vmax.f32 %v8330, 0.0
      %v8421 = vmax.f32 %v8335, 0.0
      %v8422 = vmax.f32 %v8340, 0.0
      %v8423 = vmax.f32 %v8345, 0.0
      %v8424 = vmax.f32 %v8350, 0.0
      %v8425 = vmax.f32 %v8355, 0.0
      %v8426 = vmax.f32 %v8360, 0.0
      %v8427 = vld [vmem:[%s13] sm:$0xff]
      %v8428 = vld [vmem:[%s13 + $0x8] sm:$0xff]
      %v8429 = vld [vmem:[%s13 + $0x10] sm:$0xff]
      %v8430 = vld [vmem:[%s13 + $0x18] sm:$0xff]
      %v8431 = vld [vmem:[%s14] sm:$0x1]
      %v8433 = vlaneseq
      %v8434 = vshrl.u32 %v8433, 7
      %v8435 = vsub.s32 0, %v8434
      %v8436 = vrot.slane %v8431, %v8435
      %v8439 = vsel %vm5959, %v8363, 0
      %v8442 = vsel %vm5959, %v8364, 0
      %v8445 = vsel %vm5959, %v8365, 0
      %v8448 = vsel %vm5959, %v8366, 0
      %v8451 = vsel %vm5959, %v8367, 0
      %v8454 = vsel %vm5959, %v8368, 0
      %v8457 = vsel %vm5959, %v8369, 0
      %v8460 = vsel %vm5959, %v8370, 0
      %v8463 = vsel %vm5959, %v8371, 0
      %v8466 = vsel %vm5959, %v8372, 0
      %v8469 = vsel %vm5959, %v8373, 0
      %v8472 = vsel %vm5959, %v8374, 0
      %v8475 = vsel %vm5959, %v8375, 0
      %v8478 = vsel %vm5959, %v8376, 0
      %v8481 = vsel %vm5959, %v8377, 0
      %v8484 = vsel %vm5959, %v8378, 0
      %v8487 = vsel %vm5959, %v8379, 0
      %v8490 = vsel %vm5959, %v8380, 0
      %v8493 = vsel %vm5959, %v8381, 0
      %v8496 = vsel %vm5959, %v8382, 0
      %v8499 = vsel %vm5959, %v8383, 0
      %v8502 = vsel %vm5959, %v8384, 0
      %v8505 = vsel %vm5959, %v8385, 0
      %v8508 = vsel %vm5959, %v8386, 0
      %v8511 = vsel %vm5959, %v8387, 0
      %v8514 = vsel %vm5959, %v8388, 0
      %v8517 = vsel %vm5959, %v8389, 0
      %v8520 = vsel %vm5959, %v8390, 0
      %v8523 = vsel %vm5959, %v8391, 0
      %v8526 = vsel %vm5959, %v8392, 0
      %v8529 = vsel %vm5959, %v8393, 0
      %v8532 = vsel %vm5959, %v8394, 0
      %v8535 = vsel %vm5959, %v8395, 0
      %v8538 = vsel %vm5959, %v8396, 0
      %v8541 = vsel %vm5959, %v8397, 0
      %v8544 = vsel %vm5959, %v8398, 0
      %v8547 = vsel %vm5959, %v8399, 0
      %v8550 = vsel %vm5959, %v8400, 0
      %v8553 = vsel %vm5959, %v8401, 0
      %v8556 = vsel %vm5959, %v8402, 0
      %v8559 = vsel %vm5959, %v8403, 0
      %v8562 = vsel %vm5959, %v8404, 0
      %v8565 = vsel %vm5959, %v8405, 0
      %v8568 = vsel %vm5959, %v8406, 0
      %v8571 = vsel %vm5959, %v8407, 0
      %v8574 = vsel %vm5959, %v8408, 0
      %v8577 = vsel %vm5959, %v8409, 0
      %v8580 = vsel %vm5959, %v8410, 0
      %v8583 = vsel %vm5959, %v8411, 0
      %v8586 = vsel %vm5959, %v8412, 0
      %v8589 = vsel %vm5959, %v8413, 0
      %v8592 = vsel %vm5959, %v8414, 0
      %v8595 = vsel %vm5959, %v8415, 0
      %v8598 = vsel %vm5959, %v8416, 0
      %v8601 = vsel %vm5959, %v8417, 0
      %v8604 = vsel %vm5959, %v8418, 0
      %v8607 = vsel %vm5959, %v8419, 0
      %v8610 = vsel %vm5959, %v8420, 0
      %v8613 = vsel %vm5959, %v8421, 0
      %v8616 = vsel %vm5959, %v8422, 0
      %v8619 = vsel %vm5959, %v8423, 0
      %v8622 = vsel %vm5959, %v8424, 0
      %v8625 = vsel %vm5959, %v8425, 0
      %v8628 = vsel %vm5959, %v8426, 0
      %8630 = vmatprep.subr.mxu0 0.0
      %8631 = vmatpush1.msra.mxu0 0.0
      %8632 = vmatprep.subr.mxu0 0.0
      %8633 = vmatpush1.msra.mxu0 0.0
      %8634 = vmatprep.subr.mxu0 0.0
      %8635 = vmatpush1.msra.mxu0 0.0
      %8636 = vmatprep.subr.mxu0 0.0
      %8637 = vmatpush1.msra.mxu0 0.0
      %8638 = vmatprep.subr.mxu0 0.0
      %8639 = vmatpush1.msra.mxu0 0.0
      %8640 = vmatprep.subr.mxu0 0.0
      %8641 = vmatpush1.msra.mxu0 0.0
      %8642 = vmatprep.subr.mxu0 0.0
      %8643 = vmatpush1.msra.mxu0 0.0
      %8644 = vmatprep.subr.mxu0 0.0
      %8645 = vmatpush1.msra.mxu0 0.0
      %8646 = vmatprep.subr.mxu0 0.0
      %8647 = vmatpush1.msra.mxu0 0.0
      %8648 = vmatprep.subr.mxu0 0.0
      %8649 = vmatpush1.msra.mxu0 0.0
      %8650 = vmatprep.subr.mxu0 0.0
      %8651 = vmatpush1.msra.mxu0 0.0
      %8652 = vmatprep.subr.mxu0 0.0
      %8653 = vmatpush1.msra.mxu0 0.0
      %8654 = vmatprep.subr.mxu0 0.0
      %8655 = vmatpush1.msra.mxu0 %v8430
      %8656 = vmatprep.subr.mxu0 0.0
      %8657 = vmatpush1.msra.mxu0 %v8429
      %8658 = vmatprep.subr.mxu0 0.0
      %8659 = vmatpush1.msra.mxu0 %v8428
      %8660 = vmatprep.subr.mxu0 0.0
      %8661 = vmatpush1.msra.mxu0 %v8427
      %8662 = vmatprep.subr.mxu0 0.0
      %8663 = vmatpush2.msra.mxu0 0.0
      %8664 = vmatprep.subr.mxu0 0.0
      %8665 = vmatpush2.msra.mxu0 0.0
      %8666 = vmatprep.subr.mxu0 0.0
      %8667 = vmatpush2.msra.mxu0 0.0
      %8668 = vmatprep.subr.mxu0 0.0
      %8669 = vmatpush2.msra.mxu0 0.0
      %8670 = vmatprep.subr.mxu0 0.0
      %8671 = vmatpush2.msra.mxu0 0.0
      %8672 = vmatprep.subr.mxu0 0.0
      %8673 = vmatpush2.msra.mxu0 0.0
      %8674 = vmatprep.subr.mxu0 0.0
      %8675 = vmatpush2.msra.mxu0 0.0
      %8676 = vmatprep.subr.mxu0 0.0
      %8677 = vmatpush2.msra.mxu0 0.0
      %8678 = vmatprep.subr.mxu0 0.0
      %8679 = vmatpush2.msra.mxu0 0.0
      %8680 = vmatprep.subr.mxu0 0.0
      %8681 = vmatpush2.msra.mxu0 0.0
      %8682 = vmatprep.subr.mxu0 0.0
      %8683 = vmatpush2.msra.mxu0 0.0
      %8684 = vmatprep.subr.mxu0 0.0
      %8685 = vmatpush2.msra.mxu0 0.0
      %8686 = vmatprep.subr.mxu0 0.0
      %8687 = vmatpush2.msra.mxu0 0.0
      %8688 = vmatprep.subr.mxu0 0.0
      %8689 = vmatpush2.msra.mxu0 0.0
      %8690 = vmatprep.subr.mxu0 0.0
      %8691 = vmatpush2.msra.mxu0 0.0
      %8692 = vmatprep.subr.mxu0 0.0
      %8693 = vmatpush2.msra.mxu0 0.0
      %8694 = vmatprep.mubr.f32.mxu0 0.0
      %8695 = vmatmul.mubr.f32.gmra.mxu0 %v8439
      %v8696 = vpop.f32.mrf.mxu0
      %v8697 = vadd.f32 %v8436, %v8696
      %v8698 = vpop.f32.mrf.mxu0
      %8699 = vmatprep.mubr.f32.mxu0 0.0
      %8700 = vmatmul.mubr.f32.gmra.mxu0 %v8442
      %v8701 = vpop.f32.mrf.mxu0
      %v8702 = vadd.f32 %v8436, %v8701
      %v8703 = vpop.f32.mrf.mxu0
      %8704 = vmatprep.mubr.f32.mxu0 0.0
      %8705 = vmatmul.mubr.f32.gmra.mxu0 %v8445
      %v8706 = vpop.f32.mrf.mxu0
      %v8707 = vadd.f32 %v8436, %v8706
      %v8708 = vpop.f32.mrf.mxu0
      %8709 = vmatprep.mubr.f32.mxu0 0.0
      %8710 = vmatmul.mubr.f32.gmra.mxu0 %v8448
      %v8711 = vpop.f32.mrf.mxu0
      %v8712 = vadd.f32 %v8436, %v8711
      %v8713 = vpop.f32.mrf.mxu0
      %8714 = vmatprep.mubr.f32.mxu0 0.0
      %8715 = vmatmul.mubr.f32.gmra.mxu0 %v8451
      %v8716 = vpop.f32.mrf.mxu0
      %v8717 = vadd.f32 %v8436, %v8716
      %v8718 = vpop.f32.mrf.mxu0
      %8719 = vmatprep.mubr.f32.mxu0 0.0
      %8720 = vmatmul.mubr.f32.gmra.mxu0 %v8454
      %v8721 = vpop.f32.mrf.mxu0
      %v8722 = vadd.f32 %v8436, %v8721
      %v8723 = vpop.f32.mrf.mxu0
      %8724 = vmatprep.mubr.f32.mxu0 0.0
      %8725 = vmatmul.mubr.f32.gmra.mxu0 %v8457
      %v8726 = vpop.f32.mrf.mxu0
      %v8727 = vadd.f32 %v8436, %v8726
      %v8728 = vpop.f32.mrf.mxu0
      %8729 = vmatprep.mubr.f32.mxu0 0.0
      %8730 = vmatmul.mubr.f32.gmra.mxu0 %v8460
      %v8731 = vpop.f32.mrf.mxu0
      %v8732 = vadd.f32 %v8436, %v8731
      %v8733 = vpop.f32.mrf.mxu0
      %8734 = vmatprep.mubr.f32.mxu0 0.0
      %8735 = vmatmul.mubr.f32.gmra.mxu0 %v8463
      %v8736 = vpop.f32.mrf.mxu0
      %v8737 = vadd.f32 %v8436, %v8736
      %v8738 = vpop.f32.mrf.mxu0
      %8739 = vmatprep.mubr.f32.mxu0 0.0
      %8740 = vmatmul.mubr.f32.gmra.mxu0 %v8466
      %v8741 = vpop.f32.mrf.mxu0
      %v8742 = vadd.f32 %v8436, %v8741
      %v8743 = vpop.f32.mrf.mxu0
      %8744 = vmatprep.mubr.f32.mxu0 0.0
      %8745 = vmatmul.mubr.f32.gmra.mxu0 %v8469
      %v8746 = vpop.f32.mrf.mxu0
      %v8747 = vadd.f32 %v8436, %v8746
      %v8748 = vpop.f32.mrf.mxu0
      %8749 = vmatprep.mubr.f32.mxu0 0.0
      %8750 = vmatmul.mubr.f32.gmra.mxu0 %v8472
      %v8751 = vpop.f32.mrf.mxu0
      %v8752 = vadd.f32 %v8436, %v8751
      %v8753 = vpop.f32.mrf.mxu0
      %8754 = vmatprep.mubr.f32.mxu0 0.0
      %8755 = vmatmul.mubr.f32.gmra.mxu0 %v8475
      %v8756 = vpop.f32.mrf.mxu0
      %v8757 = vadd.f32 %v8436, %v8756
      %v8758 = vpop.f32.mrf.mxu0
      %8759 = vmatprep.mubr.f32.mxu0 0.0
      %8760 = vmatmul.mubr.f32.gmra.mxu0 %v8478
      %v8761 = vpop.f32.mrf.mxu0
      %v8762 = vadd.f32 %v8436, %v8761
      %v8763 = vpop.f32.mrf.mxu0
      %8764 = vmatprep.mubr.f32.mxu0 0.0
      %8765 = vmatmul.mubr.f32.gmra.mxu0 %v8481
      %v8766 = vpop.f32.mrf.mxu0
      %v8767 = vadd.f32 %v8436, %v8766
      %v8768 = vpop.f32.mrf.mxu0
      %8769 = vmatprep.mubr.f32.mxu0 0.0
      %8770 = vmatmul.mubr.f32.gmra.mxu0 %v8484
      %v8771 = vpop.f32.mrf.mxu0
      %v8772 = vadd.f32 %v8436, %v8771
      %v8773 = vpop.f32.mrf.mxu0
      %8774 = vmatprep.mubr.f32.mxu0 0.0
      %8775 = vmatmul.mubr.f32.gmra.mxu0 %v8487
      %v8776 = vpop.f32.mrf.mxu0
      %v8777 = vadd.f32 %v8436, %v8776
      %v8778 = vpop.f32.mrf.mxu0
      %8779 = vmatprep.mubr.f32.mxu0 0.0
      %8780 = vmatmul.mubr.f32.gmra.mxu0 %v8490
      %v8781 = vpop.f32.mrf.mxu0
      %v8782 = vadd.f32 %v8436, %v8781
      %v8783 = vpop.f32.mrf.mxu0
      %8784 = vmatprep.mubr.f32.mxu0 0.0
      %8785 = vmatmul.mubr.f32.gmra.mxu0 %v8493
      %v8786 = vpop.f32.mrf.mxu0
      %v8787 = vadd.f32 %v8436, %v8786
      %v8788 = vpop.f32.mrf.mxu0
      %8789 = vmatprep.mubr.f32.mxu0 0.0
      %8790 = vmatmul.mubr.f32.gmra.mxu0 %v8496
      %v8791 = vpop.f32.mrf.mxu0
      %v8792 = vadd.f32 %v8436, %v8791
      %v8793 = vpop.f32.mrf.mxu0
      %8794 = vmatprep.mubr.f32.mxu0 0.0
      %8795 = vmatmul.mubr.f32.gmra.mxu0 %v8499
      %v8796 = vpop.f32.mrf.mxu0
      %v8797 = vadd.f32 %v8436, %v8796
      %v8798 = vpop.f32.mrf.mxu0
      %8799 = vmatprep.mubr.f32.mxu0 0.0
      %8800 = vmatmul.mubr.f32.gmra.mxu0 %v8502
      %v8801 = vpop.f32.mrf.mxu0
      %v8802 = vadd.f32 %v8436, %v8801
      %v8803 = vpop.f32.mrf.mxu0
      %8804 = vmatprep.mubr.f32.mxu0 0.0
      %8805 = vmatmul.mubr.f32.gmra.mxu0 %v8505
      %v8806 = vpop.f32.mrf.mxu0
      %v8807 = vadd.f32 %v8436, %v8806
      %v8808 = vpop.f32.mrf.mxu0
      %8809 = vmatprep.mubr.f32.mxu0 0.0
      %8810 = vmatmul.mubr.f32.gmra.mxu0 %v8508
      %v8811 = vpop.f32.mrf.mxu0
      %v8812 = vadd.f32 %v8436, %v8811
      %v8813 = vpop.f32.mrf.mxu0
      %8814 = vmatprep.mubr.f32.mxu0 0.0
      %8815 = vmatmul.mubr.f32.gmra.mxu0 %v8511
      %v8816 = vpop.f32.mrf.mxu0
      %v8817 = vadd.f32 %v8436, %v8816
      %v8818 = vpop.f32.mrf.mxu0
      %8819 = vmatprep.mubr.f32.mxu0 0.0
      %8820 = vmatmul.mubr.f32.gmra.mxu0 %v8514
      %v8821 = vpop.f32.mrf.mxu0
      %v8822 = vadd.f32 %v8436, %v8821
      %v8823 = vpop.f32.mrf.mxu0
      %8824 = vmatprep.mubr.f32.mxu0 0.0
      %8825 = vmatmul.mubr.f32.gmra.mxu0 %v8517
      %v8826 = vpop.f32.mrf.mxu0
      %v8827 = vadd.f32 %v8436, %v8826
      %v8828 = vpop.f32.mrf.mxu0
      %8829 = vmatprep.mubr.f32.mxu0 0.0
      %8830 = vmatmul.mubr.f32.gmra.mxu0 %v8520
      %v8831 = vpop.f32.mrf.mxu0
      %v8832 = vadd.f32 %v8436, %v8831
      %v8833 = vpop.f32.mrf.mxu0
      %8834 = vmatprep.mubr.f32.mxu0 0.0
      %8835 = vmatmul.mubr.f32.gmra.mxu0 %v8523
      %v8836 = vpop.f32.mrf.mxu0
      %v8837 = vadd.f32 %v8436, %v8836
      %v8838 = vpop.f32.mrf.mxu0
      %8839 = vmatprep.mubr.f32.mxu0 0.0
      %8840 = vmatmul.mubr.f32.gmra.mxu0 %v8526
      %v8841 = vpop.f32.mrf.mxu0
      %v8842 = vadd.f32 %v8436, %v8841
      %v8843 = vpop.f32.mrf.mxu0
      %8844 = vmatprep.mubr.f32.mxu0 0.0
      %8845 = vmatmul.mubr.f32.gmra.mxu0 %v8529
      %v8846 = vpop.f32.mrf.mxu0
      %v8847 = vadd.f32 %v8436, %v8846
      %v8848 = vpop.f32.mrf.mxu0
      %8849 = vmatprep.mubr.f32.mxu0 0.0
      %8850 = vmatmul.mubr.f32.gmra.mxu0 %v8532
      %v8851 = vpop.f32.mrf.mxu0
      %v8852 = vadd.f32 %v8436, %v8851
      %v8853 = vpop.f32.mrf.mxu0
      %8854 = vmatprep.mubr.f32.mxu0 0.0
      %8855 = vmatmul.mubr.f32.gmra.mxu0 %v8535
      %v8856 = vpop.f32.mrf.mxu0
      %v8857 = vadd.f32 %v8436, %v8856
      %v8858 = vpop.f32.mrf.mxu0
      %8859 = vmatprep.mubr.f32.mxu0 0.0
      %8860 = vmatmul.mubr.f32.gmra.mxu0 %v8538
      %v8861 = vpop.f32.mrf.mxu0
      %v8862 = vadd.f32 %v8436, %v8861
      %v8863 = vpop.f32.mrf.mxu0
      %8864 = vmatprep.mubr.f32.mxu0 0.0
      %8865 = vmatmul.mubr.f32.gmra.mxu0 %v8541
      %v8866 = vpop.f32.mrf.mxu0
      %v8867 = vadd.f32 %v8436, %v8866
      %v8868 = vpop.f32.mrf.mxu0
      %8869 = vmatprep.mubr.f32.mxu0 0.0
      %8870 = vmatmul.mubr.f32.gmra.mxu0 %v8544
      %v8871 = vpop.f32.mrf.mxu0
      %v8872 = vadd.f32 %v8436, %v8871
      %v8873 = vpop.f32.mrf.mxu0
      %8874 = vmatprep.mubr.f32.mxu0 0.0
      %8875 = vmatmul.mubr.f32.gmra.mxu0 %v8547
      %v8876 = vpop.f32.mrf.mxu0
      %v8877 = vadd.f32 %v8436, %v8876
      %v8878 = vpop.f32.mrf.mxu0
      %8879 = vmatprep.mubr.f32.mxu0 0.0
      %8880 = vmatmul.mubr.f32.gmra.mxu0 %v8550
      %v8881 = vpop.f32.mrf.mxu0
      %v8882 = vadd.f32 %v8436, %v8881
      %v8883 = vpop.f32.mrf.mxu0
      %8884 = vmatprep.mubr.f32.mxu0 0.0
      %8885 = vmatmul.mubr.f32.gmra.mxu0 %v8553
      %v8886 = vpop.f32.mrf.mxu0
      %v8887 = vadd.f32 %v8436, %v8886
      %v8888 = vpop.f32.mrf.mxu0
      %8889 = vmatprep.mubr.f32.mxu0 0.0
      %8890 = vmatmul.mubr.f32.gmra.mxu0 %v8556
      %v8891 = vpop.f32.mrf.mxu0
      %v8892 = vadd.f32 %v8436, %v8891
      %v8893 = vpop.f32.mrf.mxu0
      %8894 = vmatprep.mubr.f32.mxu0 0.0
      %8895 = vmatmul.mubr.f32.gmra.mxu0 %v8559
      %v8896 = vpop.f32.mrf.mxu0
      %v8897 = vadd.f32 %v8436, %v8896
      %v8898 = vpop.f32.mrf.mxu0
      %8899 = vmatprep.mubr.f32.mxu0 0.0
      %8900 = vmatmul.mubr.f32.gmra.mxu0 %v8562
      %v8901 = vpop.f32.mrf.mxu0
      %v8902 = vadd.f32 %v8436, %v8901
      %v8903 = vpop.f32.mrf.mxu0
      %8904 = vmatprep.mubr.f32.mxu0 0.0
      %8905 = vmatmul.mubr.f32.gmra.mxu0 %v8565
      %v8906 = vpop.f32.mrf.mxu0
      %v8907 = vadd.f32 %v8436, %v8906
      %v8908 = vpop.f32.mrf.mxu0
      %8909 = vmatprep.mubr.f32.mxu0 0.0
      %8910 = vmatmul.mubr.f32.gmra.mxu0 %v8568
      %v8911 = vpop.f32.mrf.mxu0
      %v8912 = vadd.f32 %v8436, %v8911
      %v8913 = vpop.f32.mrf.mxu0
      %8914 = vmatprep.mubr.f32.mxu0 0.0
      %8915 = vmatmul.mubr.f32.gmra.mxu0 %v8571
      %v8916 = vpop.f32.mrf.mxu0
      %v8917 = vadd.f32 %v8436, %v8916
      %v8918 = vpop.f32.mrf.mxu0
      %8919 = vmatprep.mubr.f32.mxu0 0.0
      %8920 = vmatmul.mubr.f32.gmra.mxu0 %v8574
      %v8921 = vpop.f32.mrf.mxu0
      %v8922 = vadd.f32 %v8436, %v8921
      %v8923 = vpop.f32.mrf.mxu0
      %8924 = vmatprep.mubr.f32.mxu0 0.0
      %8925 = vmatmul.mubr.f32.gmra.mxu0 %v8577
      %v8926 = vpop.f32.mrf.mxu0
      %v8927 = vadd.f32 %v8436, %v8926
      %v8928 = vpop.f32.mrf.mxu0
      %8929 = vmatprep.mubr.f32.mxu0 0.0
      %8930 = vmatmul.mubr.f32.gmra.mxu0 %v8580
      %v8931 = vpop.f32.mrf.mxu0
      %v8932 = vadd.f32 %v8436, %v8931
      %v8933 = vpop.f32.mrf.mxu0
      %8934 = vmatprep.mubr.f32.mxu0 0.0
      %8935 = vmatmul.mubr.f32.gmra.mxu0 %v8583
      %v8936 = vpop.f32.mrf.mxu0
      %v8937 = vadd.f32 %v8436, %v8936
      %v8938 = vpop.f32.mrf.mxu0
      %8939 = vmatprep.mubr.f32.mxu0 0.0
      %8940 = vmatmul.mubr.f32.gmra.mxu0 %v8586
      %v8941 = vpop.f32.mrf.mxu0
      %v8942 = vadd.f32 %v8436, %v8941
      %v8943 = vpop.f32.mrf.mxu0
      %8944 = vmatprep.mubr.f32.mxu0 0.0
      %8945 = vmatmul.mubr.f32.gmra.mxu0 %v8589
      %v8946 = vpop.f32.mrf.mxu0
      %v8947 = vadd.f32 %v8436, %v8946
      %v8948 = vpop.f32.mrf.mxu0
      %8949 = vmatprep.mubr.f32.mxu0 0.0
      %8950 = vmatmul.mubr.f32.gmra.mxu0 %v8592
      %v8951 = vpop.f32.mrf.mxu0
      %v8952 = vadd.f32 %v8436, %v8951
      %v8953 = vpop.f32.mrf.mxu0
      %8954 = vmatprep.mubr.f32.mxu0 0.0
      %8955 = vmatmul.mubr.f32.gmra.mxu0 %v8595
      %v8956 = vpop.f32.mrf.mxu0
      %v8957 = vadd.f32 %v8436, %v8956
      %v8958 = vpop.f32.mrf.mxu0
      %8959 = vmatprep.mubr.f32.mxu0 0.0
      %8960 = vmatmul.mubr.f32.gmra.mxu0 %v8598
      %v8961 = vpop.f32.mrf.mxu0
      %v8962 = vadd.f32 %v8436, %v8961
      %v8963 = vpop.f32.mrf.mxu0
      %8964 = vmatprep.mubr.f32.mxu0 0.0
      %8965 = vmatmul.mubr.f32.gmra.mxu0 %v8601
      %v8966 = vpop.f32.mrf.mxu0
      %v8967 = vadd.f32 %v8436, %v8966
      %v8968 = vpop.f32.mrf.mxu0
      %8969 = vmatprep.mubr.f32.mxu0 0.0
      %8970 = vmatmul.mubr.f32.gmra.mxu0 %v8604
      %v8971 = vpop.f32.mrf.mxu0
      %v8972 = vadd.f32 %v8436, %v8971
      %v8973 = vpop.f32.mrf.mxu0
      %8974 = vmatprep.mubr.f32.mxu0 0.0
      %8975 = vmatmul.mubr.f32.gmra.mxu0 %v8607
      %v8976 = vpop.f32.mrf.mxu0
      %v8977 = vadd.f32 %v8436, %v8976
      %v8978 = vpop.f32.mrf.mxu0
      %8979 = vmatprep.mubr.f32.mxu0 0.0
      %8980 = vmatmul.mubr.f32.gmra.mxu0 %v8610
      %v8981 = vpop.f32.mrf.mxu0
      %v8982 = vadd.f32 %v8436, %v8981
      %v8983 = vpop.f32.mrf.mxu0
      %8984 = vmatprep.mubr.f32.mxu0 0.0
      %8985 = vmatmul.mubr.f32.gmra.mxu0 %v8613
      %v8986 = vpop.f32.mrf.mxu0
      %v8987 = vadd.f32 %v8436, %v8986
      %v8988 = vpop.f32.mrf.mxu0
      %8989 = vmatprep.mubr.f32.mxu0 0.0
      %8990 = vmatmul.mubr.f32.gmra.mxu0 %v8616
      %v8991 = vpop.f32.mrf.mxu0
      %v8992 = vadd.f32 %v8436, %v8991
      %v8993 = vpop.f32.mrf.mxu0
      %8994 = vmatprep.mubr.f32.mxu0 0.0
      %8995 = vmatmul.mubr.f32.gmra.mxu0 %v8619
      %v8996 = vpop.f32.mrf.mxu0
      %v8997 = vadd.f32 %v8436, %v8996
      %v8998 = vpop.f32.mrf.mxu0
      %8999 = vmatprep.mubr.f32.mxu0 0.0
      %9000 = vmatmul.mubr.f32.gmra.mxu0 %v8622
      %v9001 = vpop.f32.mrf.mxu0
      %v9002 = vadd.f32 %v8436, %v9001
      %v9003 = vpop.f32.mrf.mxu0
      %9004 = vmatprep.mubr.f32.mxu0 0.0
      %9005 = vmatmul.mubr.f32.gmra.mxu0 %v8625
      %v9006 = vpop.f32.mrf.mxu0
      %v9007 = vadd.f32 %v8436, %v9006
      %v9008 = vpop.f32.mrf.mxu0
      %9009 = vmatprep.mubr.f32.mxu0 0.0
      %9010 = vmatmul.mubr.f32.gmra.mxu0 %v8628
      %v9011 = vpop.f32.mrf.mxu0
      %v9012 = vadd.f32 %v8436, %v9011
      %v9013 = vpop.f32.mrf.mxu0
      %9014 = vdwg.mxu0
      %vm9015 = vcmask 31744
      %9016 = vst.msk [vmem:[%s518] sm:$0xff] %vm9015, %v8697
      %9017 = vst.msk [vmem:[%s518 + $0x8] sm:$0xff] %vm9015, %v8702
      %9018 = vst.msk [vmem:[%s518 + $0x10] sm:$0xff] %vm9015, %v8707
      %9019 = vst.msk [vmem:[%s518 + $0x18] sm:$0xff] %vm9015, %v8712
      %9020 = vst.msk [vmem:[%s518 + $0x20] sm:$0xff] %vm9015, %v8717
      %9021 = vst.msk [vmem:[%s518 + $0x28] sm:$0xff] %vm9015, %v8722
      %9022 = vst.msk [vmem:[%s518 + $0x30] sm:$0xff] %vm9015, %v8727
      %9023 = vst.msk [vmem:[%s518 + $0x38] sm:$0xff] %vm9015, %v8732
      %9024 = vst.msk [vmem:[%s518 + $0x40] sm:$0xff] %vm9015, %v8737
      %9025 = vst.msk [vmem:[%s518 + $0x48] sm:$0xff] %vm9015, %v8742
      %9026 = vst.msk [vmem:[%s518 + $0x50] sm:$0xff] %vm9015, %v8747
      %9027 = vst.msk [vmem:[%s518 + $0x58] sm:$0xff] %vm9015, %v8752
      %9028 = vst.msk [vmem:[%s518 + $0x60] sm:$0xff] %vm9015, %v8757
      %9029 = vst.msk [vmem:[%s518 + $0x68] sm:$0xff] %vm9015, %v8762
      %9030 = vst.msk [vmem:[%s518 + $0x70] sm:$0xff] %vm9015, %v8767
      %9031 = vst.msk [vmem:[%s518 + $0x78] sm:$0xff] %vm9015, %v8772
      %9032 = vst.msk [vmem:[%s518 + $0x80] sm:$0xff] %vm9015, %v8777
      %9033 = vst.msk [vmem:[%s518 + $0x88] sm:$0xff] %vm9015, %v8782
      %9034 = vst.msk [vmem:[%s518 + $0x90] sm:$0xff] %vm9015, %v8787
      %9035 = vst.msk [vmem:[%s518 + $0x98] sm:$0xff] %vm9015, %v8792
      %9036 = vst.msk [vmem:[%s518 + $0xa0] sm:$0xff] %vm9015, %v8797
      %9037 = vst.msk [vmem:[%s518 + $0xa8] sm:$0xff] %vm9015, %v8802
      %9038 = vst.msk [vmem:[%s518 + $0xb0] sm:$0xff] %vm9015, %v8807
      %9039 = vst.msk [vmem:[%s518 + $0xb8] sm:$0xff] %vm9015, %v8812
      %9040 = vst.msk [vmem:[%s518 + $0xc0] sm:$0xff] %vm9015, %v8817
      %9041 = vst.msk [vmem:[%s518 + $0xc8] sm:$0xff] %vm9015, %v8822
      %9042 = vst.msk [vmem:[%s518 + $0xd0] sm:$0xff] %vm9015, %v8827
      %9043 = vst.msk [vmem:[%s518 + $0xd8] sm:$0xff] %vm9015, %v8832
      %9044 = vst.msk [vmem:[%s518 + $0xe0] sm:$0xff] %vm9015, %v8837
      %9045 = vst.msk [vmem:[%s518 + $0xe8] sm:$0xff] %vm9015, %v8842
      %9046 = vst.msk [vmem:[%s518 + $0xf0] sm:$0xff] %vm9015, %v8847
      %9047 = vst.msk [vmem:[%s518 + $0xf8] sm:$0xff] %vm9015, %v8852
      %9048 = vst.msk [vmem:[%s518 + $0x100] sm:$0xff] %vm9015, %v8857
      %9049 = vst.msk [vmem:[%s518 + $0x108] sm:$0xff] %vm9015, %v8862
      %9050 = vst.msk [vmem:[%s518 + $0x110] sm:$0xff] %vm9015, %v8867
      %9051 = vst.msk [vmem:[%s518 + $0x118] sm:$0xff] %vm9015, %v8872
      %9052 = vst.msk [vmem:[%s518 + $0x120] sm:$0xff] %vm9015, %v8877
      %9053 = vst.msk [vmem:[%s518 + $0x128] sm:$0xff] %vm9015, %v8882
      %9054 = vst.msk [vmem:[%s518 + $0x130] sm:$0xff] %vm9015, %v8887
      %9055 = vst.msk [vmem:[%s518 + $0x138] sm:$0xff] %vm9015, %v8892
      %9056 = vst.msk [vmem:[%s518 + $0x140] sm:$0xff] %vm9015, %v8897
      %9057 = vst.msk [vmem:[%s518 + $0x148] sm:$0xff] %vm9015, %v8902
      %9058 = vst.msk [vmem:[%s518 + $0x150] sm:$0xff] %vm9015, %v8907
      %9059 = vst.msk [vmem:[%s518 + $0x158] sm:$0xff] %vm9015, %v8912
      %9060 = vst.msk [vmem:[%s518 + $0x160] sm:$0xff] %vm9015, %v8917
      %9061 = vst.msk [vmem:[%s518 + $0x168] sm:$0xff] %vm9015, %v8922
      %9062 = vst.msk [vmem:[%s518 + $0x170] sm:$0xff] %vm9015, %v8927
      %9063 = vst.msk [vmem:[%s518 + $0x178] sm:$0xff] %vm9015, %v8932
      %9064 = vst.msk [vmem:[%s518 + $0x180] sm:$0xff] %vm9015, %v8937
      %9065 = vst.msk [vmem:[%s518 + $0x188] sm:$0xff] %vm9015, %v8942
      %9066 = vst.msk [vmem:[%s518 + $0x190] sm:$0xff] %vm9015, %v8947
      %9067 = vst.msk [vmem:[%s518 + $0x198] sm:$0xff] %vm9015, %v8952
      %9068 = vst.msk [vmem:[%s518 + $0x1a0] sm:$0xff] %vm9015, %v8957
      %9069 = vst.msk [vmem:[%s518 + $0x1a8] sm:$0xff] %vm9015, %v8962
      %9070 = vst.msk [vmem:[%s518 + $0x1b0] sm:$0xff] %vm9015, %v8967
      %9071 = vst.msk [vmem:[%s518 + $0x1b8] sm:$0xff] %vm9015, %v8972
      %9072 = vst.msk [vmem:[%s518 + $0x1c0] sm:$0xff] %vm9015, %v8977
      %9073 = vst.msk [vmem:[%s518 + $0x1c8] sm:$0xff] %vm9015, %v8982
      %9074 = vst.msk [vmem:[%s518 + $0x1d0] sm:$0xff] %vm9015, %v8987
      %9075 = vst.msk [vmem:[%s518 + $0x1d8] sm:$0xff] %vm9015, %v8992
      %9076 = vst.msk [vmem:[%s518 + $0x1e0] sm:$0xff] %vm9015, %v8997
      %9077 = vst.msk [vmem:[%s518 + $0x1e8] sm:$0xff] %vm9015, %v9002
      %9078 = vst.msk [vmem:[%s518 + $0x1f0] sm:$0xff] %vm9015, %v9007
      %9079 = vst.msk [vmem:[%s518 + $0x1f8] sm:$0xff] %vm9015, %v9012
      %s9080 = smul.u32 64, %s26
      %p9081 = scmp.lt.s32.totalorder %s9080, 511
      %s9082 = scalar_select %p9081, %s9080, 511
      %s9083 = smul.addr %s9082, 8
      %s9084 = scalar_lea.vmem %s15, %s9083
      // Predicated region
      $region81: #{tpu_custom_call.1} parent=79 // pred_check
        %p9085 = pneg %p369
      $region82: #{tpu_custom_call.1} parent=79 // pred_check_branch
        %9087 = sbr.rel (%p9085) target = $region84
      $region83: #{tpu_custom_call.1} parent=79 // pred_region
        %s9088 = smul.u32 64, %s26
      $region84: #{tpu_custom_call.1} parent=79 // pred_fallthru
        _
    $region80: #{tpu_custom_call.1} parent=5 // pred_fallthru
      _
    %p9089 = scmp.le.s32.totalorder 2, %s21
    // Predicated region
    $region85: #{tpu_custom_call.1} parent=5 // pred_check
      %p9090 = pneg %p9089
    $region86: #{tpu_custom_call.1} parent=5 // pred_check_branch
      %9092 = sbr.rel (%p9090) target = $region88
    $region87: #{tpu_custom_call.1} parent=5 // pred_region
      %s9093 = ssub.s32 %s21, 2
      // Predicated region
      $region89: #{tpu_custom_call.1} parent=87 // pred_check
        %p9094 = pneg %p375
      $region90: #{tpu_custom_call.1} parent=87 // pred_check_branch
        %9096 = sbr.rel (%p9094) target = $region92
      $region91: #{tpu_custom_call.1} parent=87 // pred_region
        %s9097 = smul.u32 64, %s27
        %p9098 = scmp.lt.s32.totalorder %s9097, 511
        %s9099 = scalar_select %p9098, %s9097, 511
        %s9100 = smul.addr %s9099, 8
        %s9101 = scalar_lea.vmem %s15, %s9100
      $region92: #{tpu_custom_call.1} parent=87 // pred_fallthru
        _
    $region88: #{tpu_custom_call.1} parent=5 // pred_fallthru
      _
  $region6: #{tpu_custom_call.1} parent=0 // loop_footer
    %s25 = sadd.s32 1, %s21
  $region7: #{tpu_custom_call.1} parent=0 // loop_footer_branch
    %20 = sbr.rel target = $region3
  $region8: #{tpu_custom_call.1} parent=0 // loop_exit
    _

</llo_original>
